<compile_context>
chip_gen: v7x
topology: tpu7x:2x2x1
jax: 0.10.0
libtpu: 0.0.40
codegen_flags: <defaults>
</compile_context>

<pallas_src>
import functools
import math

import jax
import jax.numpy as jnp
from jax.experimental import pallas as pl
from jax.experimental.pallas import tpu as pltpu

_EPS = 1e-5

# row indices inside the per-block packed vector slab (each row padded to 128 lanes, f32)
_R_FFN1_LN_G, _R_FFN1_LN_B = 0, 1
_R_FFN1_B1, _R_FFN1_B2 = 2, 3
_R_MHSA_LN_G, _R_MHSA_LN_B = 4, 5
_R_B_QKV, _R_BO = 6, 7
_R_CONV_LN_G, _R_CONV_LN_B = 8, 9
_R_PW1_BA, _R_PW1_BG = 10, 11
_R_PW2_B = 12
_R_FFN2_LN_G, _R_FFN2_LN_B = 13, 14
_R_FFN2_B1, _R_FFN2_B2 = 15, 16
_R_FIN_LN_G, _R_FIN_LN_B = 17, 18
_R_DW0 = 19                       # followed by conv_k rows of depthwise-conv weights

# rows of the front/head vector slab
_F_TR_B, _F_LN_G, _F_LN_B, _F_FC1_B, _F_FC2_B, _F_FC3_B = 0, 1, 2, 3, 4, 5


# ----------------------------- fully fused forward kernel -------------------------------

def _conformer_kernel(
    x_ref, m_ref,
    front_w_ref, fh_vec_ref, blk_vec_ref,
    ffn1_w1_ref, ffn1_w2_ref, w_qkv_ref, wo_ref,
    pw1_wa_ref, pw1_wg_ref, pw2_w_ref, ffn2_w1_ref, ffn2_w2_ref,
    fc1_w_ref, fc2_w_ref, fc3_w_ref,
    o_ref,
    *, n_blocks, n_heads, d_k, d_v, d_model, d_ff, conv_k, n_lang, eps, unbiased_n):
  T = x_ref.shape[1]
  D = d_model
  hdk = n_heads * d_k
  hdv = n_heads * d_v

  fh = fh_vec_ref[...].astype(jnp.float32)                    # (6, 128) slab

  def fvec(r, w=D):
    return fh[r:r + 1, :w]                                    # (1, w)

  def ln(v, g, b):
    mu = jnp.mean(v, axis=-1, keepdims=True)
    var = jnp.mean(jnp.square(v - mu), axis=-1, keepdims=True)
    return (v - mu) * jax.lax.rsqrt(var + eps) * g + b

  def dense(v, w, b, act=None):
    # bf16 operands into the MXU, f32 accumulation; epilogue in f32.
    y = jnp.dot(v.astype(jnp.bfloat16), w, preferred_element_type=jnp.float32) + b
    if act == "swish":
      y = y * jax.nn.sigmoid(y)
    elif act == "relu":
      y = jnp.maximum(y, 0.0)
    return y

  # ---- front: transform (host-tiled to d_model) + LayerNorm (== LN + replicate) ----
  x_in = x_ref[0].astype(jnp.float32)                         # (T, input_dim)
  x = dense(x_in, front_w_ref[...], fvec(_F_TR_B))            # (T, D)
  x = ln(x, fvec(_F_LN_G), fvec(_F_LN_B))

  mask = m_ref[0].astype(jnp.float32)                         # (T, T) additive mask
  scale = 1.0 / math.sqrt(d_k)

  # hoisted depthwise-conv shift matrices (block independent; exact 0/1 selection in f32)
  pad_l = (conv_k - 1) // 2
  ii = jax.lax.broadcasted_iota(jnp.int32, (T, T), 0)
  jj = jax.lax.broadcasted_iota(jnp.int32, (T, T), 1)
  shift_mats = []                                             # (S_off @ y)[t] = y[t+off]
  for kk in range(conv_k):
    off = kk - pad_l
    shift_mats.append((jj == ii + off).astype(jnp.float32))

  for blk in range(n_blocks):
    vecs = blk_vec_ref[blk].astype(jnp.float32)               # (NV, 128) slab

    def bvec(r, w=D, _vecs=vecs):
      return _vecs[r:r + 1, :w]                               # (1, w)

    # ---- feed-forward module 1 (half-step residual) ----
    y = ln(x, bvec(_R_FFN1_LN_G), bvec(_R_FFN1_LN_B))
    y = dense(y, ffn1_w1_ref[blk], bvec(_R_FFN1_B1, d_ff), act="swish")
    y = dense(y, ffn1_w2_ref[blk], bvec(_R_FFN1_B2))
    x = x + 0.5 * y

    # ---- multi-head self-attention (no transposes, no lane concats) ----
    y = ln(x, bvec(_R_MHSA_LN_G), bvec(_R_MHSA_LN_B))
    qkv = dense(y, w_qkv_ref[blk], bvec(_R_B_QKV, 2 * hdk + hdv))   # (T, 2*H*dk + H*dv)
    att = jnp.zeros((T, D), jnp.float32)
    for h in range(n_heads):
      qh = qkv[:, h * d_k:(h + 1) * d_k].astype(jnp.bfloat16)
      kh = qkv[:, hdk + h * d_k: hdk + (h + 1) * d_k].astype(jnp.bfloat16)
      vh = qkv[:, 2 * hdk + h * d_v: 2 * hdk + (h + 1) * d_v].astype(jnp.bfloat16)
      # contraction over d_k without materializing kh.T
      s = jax.lax.dot_general(qh, kh, (((1,), (1,)), ((), ())),
                              preferred_element_type=jnp.float32) * scale
      s = s + mask
      s = s - jnp.max(s, axis=-1, keepdims=True)
      p = jnp.exp(s)
      p = p * pl.reciprocal(jnp.sum(p, axis=-1, keepdims=True), approx=True)
      ctx = jnp.dot(p.astype(jnp.bfloat16), vh, preferred_element_type=jnp.float32)
      # per-head out-projection accumulation (== concat(ctx_h) @ wo)
      att = att + jnp.dot(ctx.astype(jnp.bfloat16), wo_ref[blk, h],
                          preferred_element_type=jnp.float32)
    x = x + att + bvec(_R_BO)

    # ---- convolution module: pointwise GLU -> depthwise conv -> swish -> pointwise ----
    y = ln(x, bvec(_R_CONV_LN_G), bvec(_R_CONV_LN_B))
    a = dense(y, pw1_wa_ref[blk], bvec(_R_PW1_BA))            # value half
    g = dense(y, pw1_wg_ref[blk], bvec(_R_PW1_BG))            # gate half
    y = a * jax.nn.sigmoid(g)                                 # GLU, no lane slicing
    # 'same' depthwise conv: time shifts via exact f32 shift-matrix matmuls (MXU),
    # boundary zeros built into the shift matrices -> no pads / concats / relayouts.
    acc = y * bvec(_R_DW0 + pad_l)                            # centre tap (off == 0)
    for kk in range(conv_k):
      if kk == pad_l:
        continue
      sh = jnp.dot(shift_mats[kk], y, preferred_element_type=jnp.float32)
      acc = acc + sh * bvec(_R_DW0 + kk)
    # TODO(synk): BatchNorm between depthwise conv and swish omitted (internals unknown).
    y = acc * jax.nn.sigmoid(acc)                             # swish
    y = dense(y, pw2_w_ref[blk], bvec(_R_PW2_B))
    x = x + y

    # ---- feed-forward module 2 (half-step residual) + final LayerNorm ----
    y = ln(x, bvec(_R_FFN2_LN_G), bvec(_R_FFN2_LN_B))
    y = dense(y, ffn2_w1_ref[blk], bvec(_R_FFN2_B1, d_ff), act="swish")
    y = dense(y, ffn2_w2_ref[blk], bvec(_R_FFN2_B2))
    x = x + 0.5 * y
    x = ln(x, bvec(_R_FIN_LN_G), bvec(_R_FIN_LN_B))

  # ---- stats pooling (torch.std: unbiased) + FC head, all in-kernel ----
  mu = jnp.mean(x, axis=0, keepdims=True)                     # (1, D)
  std = jnp.sqrt(jnp.sum(jnp.square(x - mu), axis=0, keepdims=True) / unbiased_n)
  # fc1 on [mean | std] without a lane concat: split fc1_w by rows and accumulate.
  h1 = (jnp.dot(mu.astype(jnp.bfloat16), fc1_w_ref[:D, :],
                preferred_element_type=jnp.float32)
        + jnp.dot(std.astype(jnp.bfloat16), fc1_w_ref[D:, :],
                  preferred_element_type=jnp.float32)
        + fvec(_F_FC1_B))
  h1 = jnp.maximum(h1, 0.0)
  h2 = dense(h1, fc2_w_ref[...], fvec(_F_FC2_B), act="relu")
  out = dense(h2, fc3_w_ref[...], fvec(_F_FC3_B, n_lang))
  o_ref[0] = out.astype(o_ref.dtype)


def conformer_forward(prepped, x, atten_mask, cfg):
  B, T, in_dim = x.shape
  n_lang = cfg["n_lang"]
  kernel = functools.partial(
      _conformer_kernel,
      n_blocks=cfg["n_blocks"], n_heads=cfg["n_heads"],
      d_k=cfg["d_k"], d_v=cfg["d_v"], d_model=cfg["d_model"], d_ff=cfg["d_ff"],
      conv_k=cfg["conv_kernel"], n_lang=n_lang, eps=_EPS, unbiased_n=T - 1)
  # parameters: full-array blocks with constant index maps -> fetched once, VMEM resident
  param_specs = [pl.BlockSpec(p.shape, lambda b, nd=p.ndim: (0,) * nd) for p in prepped]
  out = pl.pallas_call(
      kernel,
      out_shape=jax.ShapeDtypeStruct((B, 1, n_lang), jnp.float32),
      grid=(B,),
      in_specs=[pl.BlockSpec((1, T, in_dim), lambda b: (b, 0, 0)),
                pl.BlockSpec((1, T, T), lambda b: (b, 0, 0))] + param_specs,
      out_specs=pl.BlockSpec((1, 1, n_lang), lambda b: (b, 0, 0)),
      compiler_params=pltpu.CompilerParams(dimension_semantics=("parallel",)),
  )(x, atten_mask, *prepped)
  return out[:, 0, :]


# ----------------------------- parameter init (reference-style) -------------------------

def _dense_init(key, fan_in, fan_out):
  kw, kb = jax.random.split(key)
  bound = 1.0 / math.sqrt(fan_in)
  w = jax.random.uniform(kw, (fan_in, fan_out), jnp.float32, -bound, bound)
  b = jax.random.uniform(kb, (fan_out,), jnp.float32, -bound, bound)
  return w, b


def _init_block(key, d_model, d_k, d_v, d_ff, n_heads, conv_k):
  ks = jax.random.split(key, 11)
  p = {}
  p["ffn1_ln_g"] = jnp.ones((d_model,), jnp.float32)
  p["ffn1_ln_b"] = jnp.zeros((d_model,), jnp.float32)
  p["ffn1_w1"], p["ffn1_b1"] = _dense_init(ks[0], d_model, d_ff)
  p["ffn1_w2"], p["ffn1_b2"] = _dense_init(ks[1], d_ff, d_model)
  p["mhsa_ln_g"] = jnp.ones((d_model,), jnp.float32)
  p["mhsa_ln_b"] = jnp.zeros((d_model,), jnp.float32)
  p["wq"], p["bq"] = _dense_init(ks[2], d_model, n_heads * d_k)
  p["wk"], p["bk"] = _dense_init(ks[3], d_model, n_heads * d_k)
  p["wv"], p["bv"] = _dense_init(ks[4], d_model, n_heads * d_v)
  p["wo"], p["bo"] = _dense_init(ks[5], n_heads * d_v, d_model)
  p["conv_ln_g"] = jnp.ones((d_model,), jnp.float32)
  p["conv_ln_b"] = jnp.zeros((d_model,), jnp.float32)
  p["pw1_w"], p["pw1_b"] = _dense_init(ks[6], d_model, 2 * d_model)
  p["dw_w"] = jax.random.uniform(ks[7], (conv_k, d_model), jnp.float32,
                                 -1.0 / math.sqrt(conv_k), 1.0 / math.sqrt(conv_k))
  p["pw2_w"], p["pw2_b"] = _dense_init(ks[8], d_model, d_model)
  p["ffn2_ln_g"] = jnp.ones((d_model,), jnp.float32)
  p["ffn2_ln_b"] = jnp.zeros((d_model,), jnp.float32)
  p["ffn2_w1"], p["ffn2_b1"] = _dense_init(ks[9], d_model, d_ff)
  p["ffn2_w2"], p["ffn2_b2"] = _dense_init(ks[10], d_ff, d_model)
  p["final_ln_g"] = jnp.ones((d_model,), jnp.float32)
  p["final_ln_b"] = jnp.zeros((d_model,), jnp.float32)
  return p


def init_params(key, cfg):
  k_tr, k_blk, k_fc1, k_fc2, k_fc3 = jax.random.split(key, 5)
  params = {}
  params["transform_w"], params["transform_b"] = _dense_init(
      k_tr, cfg["input_dim"], cfg["feat_dim"])
  params["ln1_g"] = jnp.ones((cfg["feat_dim"],), jnp.float32)
  params["ln1_b"] = jnp.zeros((cfg["feat_dim"],), jnp.float32)
  params["blocks"] = [
      _init_block(k, cfg["d_model"], cfg["d_k"], cfg["d_v"], cfg["d_ff"],
                  cfg["n_heads"], cfg["conv_kernel"])
      for k in jax.random.split(k_blk, cfg["n_blocks"])
  ]
  params["fc1_w"], params["fc1_b"] = _dense_init(k_fc1, 2 * cfg["d_model"], cfg["d_model"])
  params["fc2_w"], params["fc2_b"] = _dense_init(k_fc2, cfg["d_model"], cfg["d_model"])
  params["fc3_w"], params["fc3_b"] = _dense_init(k_fc3, cfg["d_model"], cfg["n_lang"])
  return params


# ----------------------------- host-side parameter packing ------------------------------

def _pad_row(v):
  v = jnp.asarray(v, jnp.float32).reshape(1, -1)
  return jnp.pad(v, ((0, 0), (0, 128 - v.shape[1])))


def prepare_params(params, cfg):
  D, H = cfg["d_model"], cfg["n_heads"]
  d_v, conv_k = cfg["d_v"], cfg["conv_kernel"]

  # front: tile transform / LN params n_heads times along the feature axis so the kernel
  # directly produces the replicated (T, d_model) output (mathematically identical).
  front_w = jnp.tile(params["transform_w"], (1, H)).astype(jnp.bfloat16)
  fh_vecs = jnp.concatenate([
      _pad_row(jnp.tile(params["transform_b"], H)),
      _pad_row(jnp.tile(params["ln1_g"], H)),
      _pad_row(jnp.tile(params["ln1_b"], H)),
      _pad_row(params["fc1_b"]),
      _pad_row(params["fc2_b"]),
      _pad_row(params["fc3_b"]),
  ], axis=0)

  blk_vecs = []
  ffn1_w1, ffn1_w2, w_qkv, wo = [], [], [], []
  pw1_wa, pw1_wg, pw2_w, ffn2_w1, ffn2_w2 = [], [], [], [], []
  for p in params["blocks"]:
    rows = [
        _pad_row(p["ffn1_ln_g"]), _pad_row(p["ffn1_ln_b"]),
        _pad_row(p["ffn1_b1"]), _pad_row(p["ffn1_b2"]),
        _pad_row(p["mhsa_ln_g"]), _pad_row(p["mhsa_ln_b"]),
        _pad_row(jnp.concatenate([p["bq"], p["bk"], p["bv"]])),
        _pad_row(p["bo"]),
        _pad_row(p["conv_ln_g"]), _pad_row(p["conv_ln_b"]),
        _pad_row(p["pw1_b"][:D]), _pad_row(p["pw1_b"][D:]),
        _pad_row(p["pw2_b"]),
        _pad_row(p["ffn2_ln_g"]), _pad_row(p["ffn2_ln_b"]),
        _pad_row(p["ffn2_b1"]), _pad_row(p["ffn2_b2"]),
        _pad_row(p["final_ln_g"]), _pad_row(p["final_ln_b"]),
    ] + [_pad_row(p["dw_w"][k]) for k in range(conv_k)]
    blk_vecs.append(jnp.concatenate(rows, axis=0))
    ffn1_w1.append(p["ffn1_w1"])
    ffn1_w2.append(p["ffn1_w2"])
    w_qkv.append(jnp.concatenate([p["wq"], p["wk"], p["wv"]], axis=1))  # fused QKV
    wo.append(p["wo"].reshape(H, d_v, D))                               # per-head split
    pw1_wa.append(p["pw1_w"][:, :D])                                    # GLU value half
    pw1_wg.append(p["pw1_w"][:, D:])                                    # GLU gate half
    pw2_w.append(p["pw2_w"])
    ffn2_w1.append(p["ffn2_w1"])
    ffn2_w2.append(p["ffn2_w2"])

  bf = lambda xs: jnp.stack(xs).astype(jnp.bfloat16)
  return [
      front_w, fh_vecs, jnp.stack(blk_vecs),
      bf(ffn1_w1), bf(ffn1_w2), bf(w_qkv), bf(wo),
      bf(pw1_wa), bf(pw1_wg), bf(pw2_w), bf(ffn2_w1), bf(ffn2_w2),
      params["fc1_w"].astype(jnp.bfloat16),
      params["fc2_w"].astype(jnp.bfloat16),
      params["fc3_w"].astype(jnp.bfloat16),
  ]


# ----------------------------- main ------------------------------------------------------

if __name__ == "__main__":
  cfg = dict(input_dim=16, feat_dim=8, d_k=8, d_v=8, n_heads=4, d_ff=64,
             max_len=8, dropout=0.1, n_lang=6, conv_kernel=3, n_blocks=4)
  cfg["d_model"] = cfg["feat_dim"] * cfg["n_heads"]   # 32
  B, T = 2, cfg["max_len"]

  key = jax.random.PRNGKey(0)
  k_par, k_x = jax.random.split(key)
  params = init_params(k_par, cfg)
  prepped = prepare_params(params, cfg)               # pack + bf16-cast weights once
  x = jax.random.normal(k_x, (B, T, cfg["input_dim"]), jnp.float32)

  # additive attention mask (B, T, T): 0.0 = attend, -1e9 = masked key (padding)
  valid_len = jnp.array([T, T - 2])
  key_pos = jnp.arange(T)[None, None, :]
  atten_mask = jnp.where(key_pos < valid_len[:, None, None], 0.0, -1e9).astype(jnp.float32)
  atten_mask = jnp.broadcast_to(atten_mask, (B, T, T))

  fwd = jax.jit(functools.partial(conformer_forward, cfg=cfg))
  out = fwd(prepped, x, atten_mask)
  jax.block_until_ready(out)

  assert out.shape == (B, cfg["n_lang"]), out.shape
  assert bool(jnp.all(jnp.isfinite(out)))
  print("KERNEL_OK")
</pallas_src>

<mosaic_0001>
module attributes {stable_mosaic.version = 11 : i64} {
  func.func @_conformer_kernel(%arg0: i32, %arg1: memref<1x8x16xf32, #tpu.memory_space<vmem>>, %arg2: memref<1x8x8xf32, #tpu.memory_space<vmem>>, %arg3: memref<16x32xbf16, #tpu.memory_space<vmem>>, %arg4: memref<6x128xf32, #tpu.memory_space<vmem>>, %arg5: memref<4x22x128xf32, #tpu.memory_space<vmem>>, %arg6: memref<4x32x64xbf16, #tpu.memory_space<vmem>>, %arg7: memref<4x64x32xbf16, #tpu.memory_space<vmem>>, %arg8: memref<4x32x96xbf16, #tpu.memory_space<vmem>>, %arg9: memref<4x4x8x32xbf16, #tpu.memory_space<vmem>>, %arg10: memref<4x32x32xbf16, #tpu.memory_space<vmem>>, %arg11: memref<4x32x32xbf16, #tpu.memory_space<vmem>>, %arg12: memref<4x32x32xbf16, #tpu.memory_space<vmem>>, %arg13: memref<4x32x64xbf16, #tpu.memory_space<vmem>>, %arg14: memref<4x64x32xbf16, #tpu.memory_space<vmem>>, %arg15: memref<64x32xbf16, #tpu.memory_space<vmem>>, %arg16: memref<32x32xbf16, #tpu.memory_space<vmem>>, %arg17: memref<32x6xbf16, #tpu.memory_space<vmem>>, %arg18: memref<1x1x6xf32, #tpu.memory_space<vmem>>) attributes {dimension_semantics = [#tpu.dimension_semantics<parallel>], iteration_bounds = array<i64: 2>, scalar_prefetch = 0 : i64, scratch_operands = 0 : i64, tpu.core_type = #tpu.core_type<tc>, window_params = [{transform_indices = @transform_0, window_bounds = array<i64: 1, 8, 16>}, {transform_indices = @transform_1, window_bounds = array<i64: 1, 8, 8>}, {pipeline_mode = #tpu.pipeline_mode<synchronous>, transform_indices = @transform_2, window_bounds = array<i64: 16, 32>}, {pipeline_mode = #tpu.pipeline_mode<synchronous>, transform_indices = @transform_3, window_bounds = array<i64: 6, 128>}, {pipeline_mode = #tpu.pipeline_mode<synchronous>, transform_indices = @transform_4, window_bounds = array<i64: 4, 22, 128>}, {pipeline_mode = #tpu.pipeline_mode<synchronous>, transform_indices = @transform_5, window_bounds = array<i64: 4, 32, 64>}, {pipeline_mode = #tpu.pipeline_mode<synchronous>, transform_indices = @transform_6, window_bounds = array<i64: 4, 64, 32>}, {pipeline_mode = #tpu.pipeline_mode<synchronous>, transform_indices = @transform_7, window_bounds = array<i64: 4, 32, 96>}, {pipeline_mode = #tpu.pipeline_mode<synchronous>, transform_indices = @transform_8, window_bounds = array<i64: 4, 4, 8, 32>}, {pipeline_mode = #tpu.pipeline_mode<synchronous>, transform_indices = @transform_9, window_bounds = array<i64: 4, 32, 32>}, {pipeline_mode = #tpu.pipeline_mode<synchronous>, transform_indices = @transform_10, window_bounds = array<i64: 4, 32, 32>}, {pipeline_mode = #tpu.pipeline_mode<synchronous>, transform_indices = @transform_11, window_bounds = array<i64: 4, 32, 32>}, {pipeline_mode = #tpu.pipeline_mode<synchronous>, transform_indices = @transform_12, window_bounds = array<i64: 4, 32, 64>}, {pipeline_mode = #tpu.pipeline_mode<synchronous>, transform_indices = @transform_13, window_bounds = array<i64: 4, 64, 32>}, {pipeline_mode = #tpu.pipeline_mode<synchronous>, transform_indices = @transform_14, window_bounds = array<i64: 64, 32>}, {pipeline_mode = #tpu.pipeline_mode<synchronous>, transform_indices = @transform_15, window_bounds = array<i64: 32, 32>}, {pipeline_mode = #tpu.pipeline_mode<synchronous>, transform_indices = @transform_16, window_bounds = array<i64: 32, 6>}, {transform_indices = @transform_17, window_bounds = array<i64: 1, 1, 6>}]} {
    %c0 = arith.constant 0 : index
    %c0_0 = arith.constant 0 : index
    %0 = vector.load %arg4[%c0, %c0_0] : memref<6x128xf32, #tpu.memory_space<vmem>>, vector<6x128xf32>
    %c0_1 = arith.constant 0 : index
    %c0_2 = arith.constant 0 : index
    %c0_3 = arith.constant 0 : index
    %1 = vector.load %arg1[%c0_1, %c0_2, %c0_3] : memref<1x8x16xf32, #tpu.memory_space<vmem>>, vector<1x8x16xf32>
    %2 = vector.shape_cast %1 : vector<1x8x16xf32> to vector<8x16xf32>
    %c0_4 = arith.constant 0 : index
    %c0_5 = arith.constant 0 : index
    %3 = vector.load %arg3[%c0_4, %c0_5] : memref<16x32xbf16, #tpu.memory_space<vmem>>, vector<16x32xbf16>
    %4 = vector.extract_strided_slice %0 {offsets = [0, 0], sizes = [1, 32], strides = [1, 1]} : vector<6x128xf32> to vector<1x32xf32>
    %5 = arith.truncf %2 : vector<8x16xf32> to vector<8x16xbf16>
    %cst = arith.constant dense<0.000000e+00> : vector<8x32xf32>
    %6 = tpu.matmul %5, %3, %cst {dimension_numbers = #tpu.dot_dimension_numbers<[1], [0], [0], [1], [0, 0, 1, 1], [], []>} : vector<8x16xbf16>, vector<16x32xbf16>, vector<8x32xf32> -> vector<8x32xf32>
    %7 = vector.broadcast %4 : vector<1x32xf32> to vector<8x32xf32>
    %8 = arith.addf %6, %7 : vector<8x32xf32>
    %9 = vector.extract_strided_slice %0 {offsets = [1, 0], sizes = [1, 32], strides = [1, 1]} : vector<6x128xf32> to vector<1x32xf32>
    %10 = vector.extract_strided_slice %0 {offsets = [2, 0], sizes = [1, 32], strides = [1, 1]} : vector<6x128xf32> to vector<1x32xf32>
    %cst_6 = arith.constant dense<0.000000e+00> : vector<8xf32>
    %11 = vector.multi_reduction <add>, %8, %cst_6 [1] : vector<8x32xf32> to vector<8xf32>
    %12 = vector.shape_cast %11 : vector<8xf32> to vector<8x1xf32>
    %cst_7 = arith.constant 3.200000e+01 : f32
    %13 = vector.broadcast %cst_7 : f32 to vector<8x1xf32>
    %14 = arith.divf %12, %13 : vector<8x1xf32>
    %15 = vector.broadcast %14 : vector<8x1xf32> to vector<8x32xf32>
    %16 = arith.subf %8, %15 : vector<8x32xf32>
    %17 = arith.mulf %16, %16 : vector<8x32xf32>
    %cst_8 = arith.constant dense<0.000000e+00> : vector<8xf32>
    %18 = vector.multi_reduction <add>, %17, %cst_8 [1] : vector<8x32xf32> to vector<8xf32>
    %19 = vector.shape_cast %18 : vector<8xf32> to vector<8x1xf32>
    %cst_9 = arith.constant 3.200000e+01 : f32
    %20 = vector.broadcast %cst_9 : f32 to vector<8x1xf32>
    %21 = arith.divf %19, %20 : vector<8x1xf32>
    %22 = vector.broadcast %14 : vector<8x1xf32> to vector<8x32xf32>
    %23 = arith.subf %8, %22 : vector<8x32xf32>
    %cst_10 = arith.constant 9.99999974E-6 : f32
    %24 = vector.broadcast %cst_10 : f32 to vector<8x1xf32>
    %25 = arith.addf %21, %24 : vector<8x1xf32>
    %26 = math.rsqrt %25 : vector<8x1xf32>
    %27 = vector.broadcast %26 : vector<8x1xf32> to vector<8x32xf32>
    %28 = arith.mulf %23, %27 : vector<8x32xf32>
    %29 = vector.broadcast %9 : vector<1x32xf32> to vector<8x32xf32>
    %30 = arith.mulf %28, %29 : vector<8x32xf32>
    %31 = vector.broadcast %10 : vector<1x32xf32> to vector<8x32xf32>
    %32 = arith.addf %30, %31 : vector<8x32xf32>
    %c0_11 = arith.constant 0 : index
    %c0_12 = arith.constant 0 : index
    %c0_13 = arith.constant 0 : index
    %33 = vector.load %arg2[%c0_11, %c0_12, %c0_13] : memref<1x8x8xf32, #tpu.memory_space<vmem>>, vector<1x8x8xf32>
    %34 = vector.shape_cast %33 : vector<1x8x8xf32> to vector<8x8xf32>
    %35 = tpu.iota {dimensions = array<i32: 0>} : vector<8x8xi32>
    %36 = tpu.iota {dimensions = array<i32: 1>} : vector<8x8xi32>
    %c-1_i32 = arith.constant -1 : i32
    %37 = vector.broadcast %c-1_i32 : i32 to vector<8x8xi32>
    %38 = arith.addi %35, %37 : vector<8x8xi32>
    %39 = arith.cmpi eq, %36, %38 : vector<8x8xi32>
    %40 = arith.extui %39 : vector<8x8xi1> to vector<8x8xi32>
    %41 = arith.sitofp %40 : vector<8x8xi32> to vector<8x8xf32>
    %c1_i32 = arith.constant 1 : i32
    %42 = vector.broadcast %c1_i32 : i32 to vector<8x8xi32>
    %43 = arith.addi %35, %42 : vector<8x8xi32>
    %44 = arith.cmpi eq, %36, %43 : vector<8x8xi32>
    %45 = arith.extui %44 : vector<8x8xi1> to vector<8x8xi32>
    %46 = arith.sitofp %45 : vector<8x8xi32> to vector<8x8xf32>
    %c0_14 = arith.constant 0 : index
    %c0_15 = arith.constant 0 : index
    %c0_16 = arith.constant 0 : index
    %47 = vector.load %arg5[%c0_14, %c0_15, %c0_16] : memref<4x22x128xf32, #tpu.memory_space<vmem>>, vector<1x22x128xf32>
    %48 = vector.shape_cast %47 : vector<1x22x128xf32> to vector<22x128xf32>
    %49 = vector.extract_strided_slice %48 {offsets = [0, 0], sizes = [1, 32], strides = [1, 1]} : vector<22x128xf32> to vector<1x32xf32>
    %50 = vector.extract_strided_slice %48 {offsets = [1, 0], sizes = [1, 32], strides = [1, 1]} : vector<22x128xf32> to vector<1x32xf32>
    %cst_17 = arith.constant dense<0.000000e+00> : vector<8xf32>
    %51 = vector.multi_reduction <add>, %32, %cst_17 [1] : vector<8x32xf32> to vector<8xf32>
    %52 = vector.shape_cast %51 : vector<8xf32> to vector<8x1xf32>
    %cst_18 = arith.constant 3.200000e+01 : f32
    %53 = vector.broadcast %cst_18 : f32 to vector<8x1xf32>
    %54 = arith.divf %52, %53 : vector<8x1xf32>
    %55 = vector.broadcast %54 : vector<8x1xf32> to vector<8x32xf32>
    %56 = arith.subf %32, %55 : vector<8x32xf32>
    %57 = arith.mulf %56, %56 : vector<8x32xf32>
    %cst_19 = arith.constant dense<0.000000e+00> : vector<8xf32>
    %58 = vector.multi_reduction <add>, %57, %cst_19 [1] : vector<8x32xf32> to vector<8xf32>
    %59 = vector.shape_cast %58 : vector<8xf32> to vector<8x1xf32>
    %cst_20 = arith.constant 3.200000e+01 : f32
    %60 = vector.broadcast %cst_20 : f32 to vector<8x1xf32>
    %61 = arith.divf %59, %60 : vector<8x1xf32>
    %62 = vector.broadcast %54 : vector<8x1xf32> to vector<8x32xf32>
    %63 = arith.subf %32, %62 : vector<8x32xf32>
    %cst_21 = arith.constant 9.99999974E-6 : f32
    %64 = vector.broadcast %cst_21 : f32 to vector<8x1xf32>
    %65 = arith.addf %61, %64 : vector<8x1xf32>
    %66 = math.rsqrt %65 : vector<8x1xf32>
    %67 = vector.broadcast %66 : vector<8x1xf32> to vector<8x32xf32>
    %68 = arith.mulf %63, %67 : vector<8x32xf32>
    %69 = vector.broadcast %49 : vector<1x32xf32> to vector<8x32xf32>
    %70 = arith.mulf %68, %69 : vector<8x32xf32>
    %71 = vector.broadcast %50 : vector<1x32xf32> to vector<8x32xf32>
    %72 = arith.addf %70, %71 : vector<8x32xf32>
    %c0_22 = arith.constant 0 : index
    %c0_23 = arith.constant 0 : index
    %c0_24 = arith.constant 0 : index
    %73 = vector.load %arg6[%c0_22, %c0_23, %c0_24] : memref<4x32x64xbf16, #tpu.memory_space<vmem>>, vector<1x32x64xbf16>
    %74 = vector.shape_cast %73 : vector<1x32x64xbf16> to vector<32x64xbf16>
    %75 = vector.extract_strided_slice %48 {offsets = [2, 0], sizes = [1, 64], strides = [1, 1]} : vector<22x128xf32> to vector<1x64xf32>
    %76 = arith.truncf %72 : vector<8x32xf32> to vector<8x32xbf16>
    %cst_25 = arith.constant dense<0.000000e+00> : vector<8x64xf32>
    %77 = tpu.matmul %76, %74, %cst_25 {dimension_numbers = #tpu.dot_dimension_numbers<[1], [0], [0], [1], [0, 0, 1, 1], [], []>} : vector<8x32xbf16>, vector<32x64xbf16>, vector<8x64xf32> -> vector<8x64xf32>
    %78 = vector.broadcast %75 : vector<1x64xf32> to vector<8x64xf32>
    %79 = arith.addf %77, %78 : vector<8x64xf32>
    %80 = arith.negf %79 : vector<8x64xf32>
    %81 = math.exp %80 : vector<8x64xf32>
    %cst_26 = arith.constant 1.000000e+00 : f32
    %82 = vector.broadcast %cst_26 : f32 to vector<8x64xf32>
    %83 = arith.addf %82, %81 : vector<8x64xf32>
    %84 = arith.divf %82, %83 : vector<8x64xf32>
    %85 = arith.mulf %79, %84 : vector<8x64xf32>
    %c0_27 = arith.constant 0 : index
    %c0_28 = arith.constant 0 : index
    %c0_29 = arith.constant 0 : index
    %86 = vector.load %arg7[%c0_27, %c0_28, %c0_29] : memref<4x64x32xbf16, #tpu.memory_space<vmem>>, vector<1x64x32xbf16>
    %87 = vector.shape_cast %86 : vector<1x64x32xbf16> to vector<64x32xbf16>
    %88 = vector.extract_strided_slice %48 {offsets = [3, 0], sizes = [1, 32], strides = [1, 1]} : vector<22x128xf32> to vector<1x32xf32>
    %89 = arith.truncf %85 : vector<8x64xf32> to vector<8x64xbf16>
    %cst_30 = arith.constant dense<0.000000e+00> : vector<8x32xf32>
    %90 = tpu.matmul %89, %87, %cst_30 {dimension_numbers = #tpu.dot_dimension_numbers<[1], [0], [0], [1], [0, 0, 1, 1], [], []>} : vector<8x64xbf16>, vector<64x32xbf16>, vector<8x32xf32> -> vector<8x32xf32>
    %91 = vector.broadcast %88 : vector<1x32xf32> to vector<8x32xf32>
    %92 = arith.addf %90, %91 : vector<8x32xf32>
    %cst_31 = arith.constant 5.000000e-01 : f32
    %93 = vector.broadcast %cst_31 : f32 to vector<8x32xf32>
    %94 = arith.mulf %93, %92 : vector<8x32xf32>
    %95 = arith.addf %32, %94 : vector<8x32xf32>
    %96 = vector.extract_strided_slice %48 {offsets = [4, 0], sizes = [1, 32], strides = [1, 1]} : vector<22x128xf32> to vector<1x32xf32>
    %97 = vector.extract_strided_slice %48 {offsets = [5, 0], sizes = [1, 32], strides = [1, 1]} : vector<22x128xf32> to vector<1x32xf32>
    %cst_32 = arith.constant dense<0.000000e+00> : vector<8xf32>
    %98 = vector.multi_reduction <add>, %95, %cst_32 [1] : vector<8x32xf32> to vector<8xf32>
    %99 = vector.shape_cast %98 : vector<8xf32> to vector<8x1xf32>
    %cst_33 = arith.constant 3.200000e+01 : f32
    %100 = vector.broadcast %cst_33 : f32 to vector<8x1xf32>
    %101 = arith.divf %99, %100 : vector<8x1xf32>
    %102 = vector.broadcast %101 : vector<8x1xf32> to vector<8x32xf32>
    %103 = arith.subf %95, %102 : vector<8x32xf32>
    %104 = arith.mulf %103, %103 : vector<8x32xf32>
    %cst_34 = arith.constant dense<0.000000e+00> : vector<8xf32>
    %105 = vector.multi_reduction <add>, %104, %cst_34 [1] : vector<8x32xf32> to vector<8xf32>
    %106 = vector.shape_cast %105 : vector<8xf32> to vector<8x1xf32>
    %cst_35 = arith.constant 3.200000e+01 : f32
    %107 = vector.broadcast %cst_35 : f32 to vector<8x1xf32>
    %108 = arith.divf %106, %107 : vector<8x1xf32>
    %109 = vector.broadcast %101 : vector<8x1xf32> to vector<8x32xf32>
    %110 = arith.subf %95, %109 : vector<8x32xf32>
    %cst_36 = arith.constant 9.99999974E-6 : f32
    %111 = vector.broadcast %cst_36 : f32 to vector<8x1xf32>
    %112 = arith.addf %108, %111 : vector<8x1xf32>
    %113 = math.rsqrt %112 : vector<8x1xf32>
    %114 = vector.broadcast %113 : vector<8x1xf32> to vector<8x32xf32>
    %115 = arith.mulf %110, %114 : vector<8x32xf32>
    %116 = vector.broadcast %96 : vector<1x32xf32> to vector<8x32xf32>
    %117 = arith.mulf %115, %116 : vector<8x32xf32>
    %118 = vector.broadcast %97 : vector<1x32xf32> to vector<8x32xf32>
    %119 = arith.addf %117, %118 : vector<8x32xf32>
    %c0_37 = arith.constant 0 : index
    %c0_38 = arith.constant 0 : index
    %c0_39 = arith.constant 0 : index
    %120 = vector.load %arg8[%c0_37, %c0_38, %c0_39] : memref<4x32x96xbf16, #tpu.memory_space<vmem>>, vector<1x32x96xbf16>
    %121 = vector.shape_cast %120 : vector<1x32x96xbf16> to vector<32x96xbf16>
    %122 = vector.extract_strided_slice %48 {offsets = [6, 0], sizes = [1, 96], strides = [1, 1]} : vector<22x128xf32> to vector<1x96xf32>
    %123 = arith.truncf %119 : vector<8x32xf32> to vector<8x32xbf16>
    %cst_40 = arith.constant dense<0.000000e+00> : vector<8x96xf32>
    %124 = tpu.matmul %123, %121, %cst_40 {dimension_numbers = #tpu.dot_dimension_numbers<[1], [0], [0], [1], [0, 0, 1, 1], [], []>} : vector<8x32xbf16>, vector<32x96xbf16>, vector<8x96xf32> -> vector<8x96xf32>
    %125 = vector.broadcast %122 : vector<1x96xf32> to vector<8x96xf32>
    %126 = arith.addf %124, %125 : vector<8x96xf32>
    %cst_41 = arith.constant 0.000000e+00 : f32
    %127 = vector.broadcast %cst_41 : f32 to vector<8x32xf32>
    %128 = vector.extract_strided_slice %126 {offsets = [0, 0], sizes = [8, 8], strides = [1, 1]} : vector<8x96xf32> to vector<8x8xf32>
    %129 = arith.truncf %128 : vector<8x8xf32> to vector<8x8xbf16>
    %130 = vector.extract_strided_slice %126 {offsets = [0, 32], sizes = [8, 8], strides = [1, 1]} : vector<8x96xf32> to vector<8x8xf32>
    %131 = arith.truncf %130 : vector<8x8xf32> to vector<8x8xbf16>
    %132 = vector.extract_strided_slice %126 {offsets = [0, 64], sizes = [8, 8], strides = [1, 1]} : vector<8x96xf32> to vector<8x8xf32>
    %133 = arith.truncf %132 : vector<8x8xf32> to vector<8x8xbf16>
    %cst_42 = arith.constant dense<0.000000e+00> : vector<8x8xf32>
    %134 = tpu.matmul %129, %131, %cst_42 {dimension_numbers = #tpu.dot_dimension_numbers<[1], [1], [0], [0], [0, 0, 1, 0], [], []>} : vector<8x8xbf16>, vector<8x8xbf16>, vector<8x8xf32> -> vector<8x8xf32>
    %cst_43 = arith.constant 0.353553385 : f32
    %135 = vector.broadcast %cst_43 : f32 to vector<8x8xf32>
    %136 = arith.mulf %134, %135 : vector<8x8xf32>
    %137 = arith.addf %136, %34 : vector<8x8xf32>
    %cst_44 = arith.constant dense<0xFF800000> : vector<8xf32>
    %138 = vector.multi_reduction <maximumf>, %137, %cst_44 [1] : vector<8x8xf32> to vector<8xf32>
    %139 = vector.shape_cast %138 : vector<8xf32> to vector<8x1xf32>
    %140 = vector.broadcast %139 : vector<8x1xf32> to vector<8x8xf32>
    %141 = arith.subf %137, %140 : vector<8x8xf32>
    %142 = math.exp %141 : vector<8x8xf32>
    %cst_45 = arith.constant dense<0.000000e+00> : vector<8xf32>
    %143 = vector.multi_reduction <add>, %142, %cst_45 [1] : vector<8x8xf32> to vector<8xf32>
    %144 = vector.shape_cast %143 : vector<8xf32> to vector<8x1xf32>
    %145 = tpu.reciprocal %144 {approx = true} : vector<8x1xf32> -> vector<8x1xf32>
    %146 = vector.broadcast %145 : vector<8x1xf32> to vector<8x8xf32>
    %147 = arith.mulf %142, %146 : vector<8x8xf32>
    %148 = arith.truncf %147 : vector<8x8xf32> to vector<8x8xbf16>
    %cst_46 = arith.constant dense<0.000000e+00> : vector<8x8xf32>
    %149 = tpu.matmul %148, %133, %cst_46 {dimension_numbers = #tpu.dot_dimension_numbers<[1], [0], [0], [1], [0, 0, 1, 1], [], []>} : vector<8x8xbf16>, vector<8x8xbf16>, vector<8x8xf32> -> vector<8x8xf32>
    %150 = arith.truncf %149 : vector<8x8xf32> to vector<8x8xbf16>
    %c0_47 = arith.constant 0 : index
    %c0_48 = arith.constant 0 : index
    %c0_49 = arith.constant 0 : index
    %c0_50 = arith.constant 0 : index
    %151 = vector.load %arg9[%c0_47, %c0_48, %c0_49, %c0_50] : memref<4x4x8x32xbf16, #tpu.memory_space<vmem>>, vector<1x1x8x32xbf16>
    %152 = vector.shape_cast %151 : vector<1x1x8x32xbf16> to vector<8x32xbf16>
    %cst_51 = arith.constant dense<0.000000e+00> : vector<8x32xf32>
    %153 = tpu.matmul %150, %152, %cst_51 {dimension_numbers = #tpu.dot_dimension_numbers<[1], [0], [0], [1], [0, 0, 1, 1], [], []>} : vector<8x8xbf16>, vector<8x32xbf16>, vector<8x32xf32> -> vector<8x32xf32>
    %154 = arith.addf %127, %153 : vector<8x32xf32>
    %155 = vector.extract_strided_slice %126 {offsets = [0, 8], sizes = [8, 8], strides = [1, 1]} : vector<8x96xf32> to vector<8x8xf32>
    %156 = arith.truncf %155 : vector<8x8xf32> to vector<8x8xbf16>
    %157 = vector.extract_strided_slice %126 {offsets = [0, 40], sizes = [8, 8], strides = [1, 1]} : vector<8x96xf32> to vector<8x8xf32>
    %158 = arith.truncf %157 : vector<8x8xf32> to vector<8x8xbf16>
    %159 = vector.extract_strided_slice %126 {offsets = [0, 72], sizes = [8, 8], strides = [1, 1]} : vector<8x96xf32> to vector<8x8xf32>
    %160 = arith.truncf %159 : vector<8x8xf32> to vector<8x8xbf16>
    %cst_52 = arith.constant dense<0.000000e+00> : vector<8x8xf32>
    %161 = tpu.matmul %156, %158, %cst_52 {dimension_numbers = #tpu.dot_dimension_numbers<[1], [1], [0], [0], [0, 0, 1, 0], [], []>} : vector<8x8xbf16>, vector<8x8xbf16>, vector<8x8xf32> -> vector<8x8xf32>
    %cst_53 = arith.constant 0.353553385 : f32
    %162 = vector.broadcast %cst_53 : f32 to vector<8x8xf32>
    %163 = arith.mulf %161, %162 : vector<8x8xf32>
    %164 = arith.addf %163, %34 : vector<8x8xf32>
    %cst_54 = arith.constant dense<0xFF800000> : vector<8xf32>
    %165 = vector.multi_reduction <maximumf>, %164, %cst_54 [1] : vector<8x8xf32> to vector<8xf32>
    %166 = vector.shape_cast %165 : vector<8xf32> to vector<8x1xf32>
    %167 = vector.broadcast %166 : vector<8x1xf32> to vector<8x8xf32>
    %168 = arith.subf %164, %167 : vector<8x8xf32>
    %169 = math.exp %168 : vector<8x8xf32>
    %cst_55 = arith.constant dense<0.000000e+00> : vector<8xf32>
    %170 = vector.multi_reduction <add>, %169, %cst_55 [1] : vector<8x8xf32> to vector<8xf32>
    %171 = vector.shape_cast %170 : vector<8xf32> to vector<8x1xf32>
    %172 = tpu.reciprocal %171 {approx = true} : vector<8x1xf32> -> vector<8x1xf32>
    %173 = vector.broadcast %172 : vector<8x1xf32> to vector<8x8xf32>
    %174 = arith.mulf %169, %173 : vector<8x8xf32>
    %175 = arith.truncf %174 : vector<8x8xf32> to vector<8x8xbf16>
    %cst_56 = arith.constant dense<0.000000e+00> : vector<8x8xf32>
    %176 = tpu.matmul %175, %160, %cst_56 {dimension_numbers = #tpu.dot_dimension_numbers<[1], [0], [0], [1], [0, 0, 1, 1], [], []>} : vector<8x8xbf16>, vector<8x8xbf16>, vector<8x8xf32> -> vector<8x8xf32>
    %177 = arith.truncf %176 : vector<8x8xf32> to vector<8x8xbf16>
    %c0_57 = arith.constant 0 : index
    %c1 = arith.constant 1 : index
    %c0_58 = arith.constant 0 : index
    %c0_59 = arith.constant 0 : index
    %178 = vector.load %arg9[%c0_57, %c1, %c0_58, %c0_59] : memref<4x4x8x32xbf16, #tpu.memory_space<vmem>>, vector<1x1x8x32xbf16>
    %179 = vector.shape_cast %178 : vector<1x1x8x32xbf16> to vector<8x32xbf16>
    %cst_60 = arith.constant dense<0.000000e+00> : vector<8x32xf32>
    %180 = tpu.matmul %177, %179, %cst_60 {dimension_numbers = #tpu.dot_dimension_numbers<[1], [0], [0], [1], [0, 0, 1, 1], [], []>} : vector<8x8xbf16>, vector<8x32xbf16>, vector<8x32xf32> -> vector<8x32xf32>
    %181 = arith.addf %154, %180 : vector<8x32xf32>
    %182 = vector.extract_strided_slice %126 {offsets = [0, 16], sizes = [8, 8], strides = [1, 1]} : vector<8x96xf32> to vector<8x8xf32>
    %183 = arith.truncf %182 : vector<8x8xf32> to vector<8x8xbf16>
    %184 = vector.extract_strided_slice %126 {offsets = [0, 48], sizes = [8, 8], strides = [1, 1]} : vector<8x96xf32> to vector<8x8xf32>
    %185 = arith.truncf %184 : vector<8x8xf32> to vector<8x8xbf16>
    %186 = vector.extract_strided_slice %126 {offsets = [0, 80], sizes = [8, 8], strides = [1, 1]} : vector<8x96xf32> to vector<8x8xf32>
    %187 = arith.truncf %186 : vector<8x8xf32> to vector<8x8xbf16>
    %cst_61 = arith.constant dense<0.000000e+00> : vector<8x8xf32>
    %188 = tpu.matmul %183, %185, %cst_61 {dimension_numbers = #tpu.dot_dimension_numbers<[1], [1], [0], [0], [0, 0, 1, 0], [], []>} : vector<8x8xbf16>, vector<8x8xbf16>, vector<8x8xf32> -> vector<8x8xf32>
    %cst_62 = arith.constant 0.353553385 : f32
    %189 = vector.broadcast %cst_62 : f32 to vector<8x8xf32>
    %190 = arith.mulf %188, %189 : vector<8x8xf32>
    %191 = arith.addf %190, %34 : vector<8x8xf32>
    %cst_63 = arith.constant dense<0xFF800000> : vector<8xf32>
    %192 = vector.multi_reduction <maximumf>, %191, %cst_63 [1] : vector<8x8xf32> to vector<8xf32>
    %193 = vector.shape_cast %192 : vector<8xf32> to vector<8x1xf32>
    %194 = vector.broadcast %193 : vector<8x1xf32> to vector<8x8xf32>
    %195 = arith.subf %191, %194 : vector<8x8xf32>
    %196 = math.exp %195 : vector<8x8xf32>
    %cst_64 = arith.constant dense<0.000000e+00> : vector<8xf32>
    %197 = vector.multi_reduction <add>, %196, %cst_64 [1] : vector<8x8xf32> to vector<8xf32>
    %198 = vector.shape_cast %197 : vector<8xf32> to vector<8x1xf32>
    %199 = tpu.reciprocal %198 {approx = true} : vector<8x1xf32> -> vector<8x1xf32>
    %200 = vector.broadcast %199 : vector<8x1xf32> to vector<8x8xf32>
    %201 = arith.mulf %196, %200 : vector<8x8xf32>
    %202 = arith.truncf %201 : vector<8x8xf32> to vector<8x8xbf16>
    %cst_65 = arith.constant dense<0.000000e+00> : vector<8x8xf32>
    %203 = tpu.matmul %202, %187, %cst_65 {dimension_numbers = #tpu.dot_dimension_numbers<[1], [0], [0], [1], [0, 0, 1, 1], [], []>} : vector<8x8xbf16>, vector<8x8xbf16>, vector<8x8xf32> -> vector<8x8xf32>
    %204 = arith.truncf %203 : vector<8x8xf32> to vector<8x8xbf16>
    %c0_66 = arith.constant 0 : index
    %c2 = arith.constant 2 : index
    %c0_67 = arith.constant 0 : index
    %c0_68 = arith.constant 0 : index
    %205 = vector.load %arg9[%c0_66, %c2, %c0_67, %c0_68] : memref<4x4x8x32xbf16, #tpu.memory_space<vmem>>, vector<1x1x8x32xbf16>
    %206 = vector.shape_cast %205 : vector<1x1x8x32xbf16> to vector<8x32xbf16>
    %cst_69 = arith.constant dense<0.000000e+00> : vector<8x32xf32>
    %207 = tpu.matmul %204, %206, %cst_69 {dimension_numbers = #tpu.dot_dimension_numbers<[1], [0], [0], [1], [0, 0, 1, 1], [], []>} : vector<8x8xbf16>, vector<8x32xbf16>, vector<8x32xf32> -> vector<8x32xf32>
    %208 = arith.addf %181, %207 : vector<8x32xf32>
    %209 = vector.extract_strided_slice %126 {offsets = [0, 24], sizes = [8, 8], strides = [1, 1]} : vector<8x96xf32> to vector<8x8xf32>
    %210 = arith.truncf %209 : vector<8x8xf32> to vector<8x8xbf16>
    %211 = vector.extract_strided_slice %126 {offsets = [0, 56], sizes = [8, 8], strides = [1, 1]} : vector<8x96xf32> to vector<8x8xf32>
    %212 = arith.truncf %211 : vector<8x8xf32> to vector<8x8xbf16>
    %213 = vector.extract_strided_slice %126 {offsets = [0, 88], sizes = [8, 8], strides = [1, 1]} : vector<8x96xf32> to vector<8x8xf32>
    %214 = arith.truncf %213 : vector<8x8xf32> to vector<8x8xbf16>
    %cst_70 = arith.constant dense<0.000000e+00> : vector<8x8xf32>
    %215 = tpu.matmul %210, %212, %cst_70 {dimension_numbers = #tpu.dot_dimension_numbers<[1], [1], [0], [0], [0, 0, 1, 0], [], []>} : vector<8x8xbf16>, vector<8x8xbf16>, vector<8x8xf32> -> vector<8x8xf32>
    %cst_71 = arith.constant 0.353553385 : f32
    %216 = vector.broadcast %cst_71 : f32 to vector<8x8xf32>
    %217 = arith.mulf %215, %216 : vector<8x8xf32>
    %218 = arith.addf %217, %34 : vector<8x8xf32>
    %cst_72 = arith.constant dense<0xFF800000> : vector<8xf32>
    %219 = vector.multi_reduction <maximumf>, %218, %cst_72 [1] : vector<8x8xf32> to vector<8xf32>
    %220 = vector.shape_cast %219 : vector<8xf32> to vector<8x1xf32>
    %221 = vector.broadcast %220 : vector<8x1xf32> to vector<8x8xf32>
    %222 = arith.subf %218, %221 : vector<8x8xf32>
    %223 = math.exp %222 : vector<8x8xf32>
    %cst_73 = arith.constant dense<0.000000e+00> : vector<8xf32>
    %224 = vector.multi_reduction <add>, %223, %cst_73 [1] : vector<8x8xf32> to vector<8xf32>
    %225 = vector.shape_cast %224 : vector<8xf32> to vector<8x1xf32>
    %226 = tpu.reciprocal %225 {approx = true} : vector<8x1xf32> -> vector<8x1xf32>
    %227 = vector.broadcast %226 : vector<8x1xf32> to vector<8x8xf32>
    %228 = arith.mulf %223, %227 : vector<8x8xf32>
    %229 = arith.truncf %228 : vector<8x8xf32> to vector<8x8xbf16>
    %cst_74 = arith.constant dense<0.000000e+00> : vector<8x8xf32>
    %230 = tpu.matmul %229, %214, %cst_74 {dimension_numbers = #tpu.dot_dimension_numbers<[1], [0], [0], [1], [0, 0, 1, 1], [], []>} : vector<8x8xbf16>, vector<8x8xbf16>, vector<8x8xf32> -> vector<8x8xf32>
    %231 = arith.truncf %230 : vector<8x8xf32> to vector<8x8xbf16>
    %c0_75 = arith.constant 0 : index
    %c3 = arith.constant 3 : index
    %c0_76 = arith.constant 0 : index
    %c0_77 = arith.constant 0 : index
    %232 = vector.load %arg9[%c0_75, %c3, %c0_76, %c0_77] : memref<4x4x8x32xbf16, #tpu.memory_space<vmem>>, vector<1x1x8x32xbf16>
    %233 = vector.shape_cast %232 : vector<1x1x8x32xbf16> to vector<8x32xbf16>
    %cst_78 = arith.constant dense<0.000000e+00> : vector<8x32xf32>
    %234 = tpu.matmul %231, %233, %cst_78 {dimension_numbers = #tpu.dot_dimension_numbers<[1], [0], [0], [1], [0, 0, 1, 1], [], []>} : vector<8x8xbf16>, vector<8x32xbf16>, vector<8x32xf32> -> vector<8x32xf32>
    %235 = arith.addf %208, %234 : vector<8x32xf32>
    %236 = arith.addf %95, %235 : vector<8x32xf32>
    %237 = vector.extract_strided_slice %48 {offsets = [7, 0], sizes = [1, 32], strides = [1, 1]} : vector<22x128xf32> to vector<1x32xf32>
    %238 = vector.broadcast %237 : vector<1x32xf32> to vector<8x32xf32>
    %239 = arith.addf %236, %238 : vector<8x32xf32>
    %240 = vector.extract_strided_slice %48 {offsets = [8, 0], sizes = [1, 32], strides = [1, 1]} : vector<22x128xf32> to vector<1x32xf32>
    %241 = vector.extract_strided_slice %48 {offsets = [9, 0], sizes = [1, 32], strides = [1, 1]} : vector<22x128xf32> to vector<1x32xf32>
    %cst_79 = arith.constant dense<0.000000e+00> : vector<8xf32>
    %242 = vector.multi_reduction <add>, %239, %cst_79 [1] : vector<8x32xf32> to vector<8xf32>
    %243 = vector.shape_cast %242 : vector<8xf32> to vector<8x1xf32>
    %cst_80 = arith.constant 3.200000e+01 : f32
    %244 = vector.broadcast %cst_80 : f32 to vector<8x1xf32>
    %245 = arith.divf %243, %244 : vector<8x1xf32>
    %246 = vector.broadcast %245 : vector<8x1xf32> to vector<8x32xf32>
    %247 = arith.subf %239, %246 : vector<8x32xf32>
    %248 = arith.mulf %247, %247 : vector<8x32xf32>
    %cst_81 = arith.constant dense<0.000000e+00> : vector<8xf32>
    %249 = vector.multi_reduction <add>, %248, %cst_81 [1] : vector<8x32xf32> to vector<8xf32>
    %250 = vector.shape_cast %249 : vector<8xf32> to vector<8x1xf32>
    %cst_82 = arith.constant 3.200000e+01 : f32
    %251 = vector.broadcast %cst_82 : f32 to vector<8x1xf32>
    %252 = arith.divf %250, %251 : vector<8x1xf32>
    %253 = vector.broadcast %245 : vector<8x1xf32> to vector<8x32xf32>
    %254 = arith.subf %239, %253 : vector<8x32xf32>
    %cst_83 = arith.constant 9.99999974E-6 : f32
    %255 = vector.broadcast %cst_83 : f32 to vector<8x1xf32>
    %256 = arith.addf %252, %255 : vector<8x1xf32>
    %257 = math.rsqrt %256 : vector<8x1xf32>
    %258 = vector.broadcast %257 : vector<8x1xf32> to vector<8x32xf32>
    %259 = arith.mulf %254, %258 : vector<8x32xf32>
    %260 = vector.broadcast %240 : vector<1x32xf32> to vector<8x32xf32>
    %261 = arith.mulf %259, %260 : vector<8x32xf32>
    %262 = vector.broadcast %241 : vector<1x32xf32> to vector<8x32xf32>
    %263 = arith.addf %261, %262 : vector<8x32xf32>
    %c0_84 = arith.constant 0 : index
    %c0_85 = arith.constant 0 : index
    %c0_86 = arith.constant 0 : index
    %264 = vector.load %arg10[%c0_84, %c0_85, %c0_86] : memref<4x32x32xbf16, #tpu.memory_space<vmem>>, vector<1x32x32xbf16>
    %265 = vector.shape_cast %264 : vector<1x32x32xbf16> to vector<32x32xbf16>
    %266 = vector.extract_strided_slice %48 {offsets = [10, 0], sizes = [1, 32], strides = [1, 1]} : vector<22x128xf32> to vector<1x32xf32>
    %267 = arith.truncf %263 : vector<8x32xf32> to vector<8x32xbf16>
    %cst_87 = arith.constant dense<0.000000e+00> : vector<8x32xf32>
    %268 = tpu.matmul %267, %265, %cst_87 {dimension_numbers = #tpu.dot_dimension_numbers<[1], [0], [0], [1], [0, 0, 1, 1], [], []>} : vector<8x32xbf16>, vector<32x32xbf16>, vector<8x32xf32> -> vector<8x32xf32>
    %269 = vector.broadcast %266 : vector<1x32xf32> to vector<8x32xf32>
    %270 = arith.addf %268, %269 : vector<8x32xf32>
    %c0_88 = arith.constant 0 : index
    %c0_89 = arith.constant 0 : index
    %c0_90 = arith.constant 0 : index
    %271 = vector.load %arg11[%c0_88, %c0_89, %c0_90] : memref<4x32x32xbf16, #tpu.memory_space<vmem>>, vector<1x32x32xbf16>
    %272 = vector.shape_cast %271 : vector<1x32x32xbf16> to vector<32x32xbf16>
    %273 = vector.extract_strided_slice %48 {offsets = [11, 0], sizes = [1, 32], strides = [1, 1]} : vector<22x128xf32> to vector<1x32xf32>
    %274 = arith.truncf %263 : vector<8x32xf32> to vector<8x32xbf16>
    %cst_91 = arith.constant dense<0.000000e+00> : vector<8x32xf32>
    %275 = tpu.matmul %274, %272, %cst_91 {dimension_numbers = #tpu.dot_dimension_numbers<[1], [0], [0], [1], [0, 0, 1, 1], [], []>} : vector<8x32xbf16>, vector<32x32xbf16>, vector<8x32xf32> -> vector<8x32xf32>
    %276 = vector.broadcast %273 : vector<1x32xf32> to vector<8x32xf32>
    %277 = arith.addf %275, %276 : vector<8x32xf32>
    %278 = arith.negf %277 : vector<8x32xf32>
    %279 = math.exp %278 : vector<8x32xf32>
    %cst_92 = arith.constant 1.000000e+00 : f32
    %280 = vector.broadcast %cst_92 : f32 to vector<8x32xf32>
    %281 = arith.addf %280, %279 : vector<8x32xf32>
    %282 = arith.divf %280, %281 : vector<8x32xf32>
    %283 = arith.mulf %270, %282 : vector<8x32xf32>
    %284 = vector.extract_strided_slice %48 {offsets = [20, 0], sizes = [1, 32], strides = [1, 1]} : vector<22x128xf32> to vector<1x32xf32>
    %285 = vector.broadcast %284 : vector<1x32xf32> to vector<8x32xf32>
    %286 = arith.mulf %283, %285 : vector<8x32xf32>
    %cst_93 = arith.constant dense<0.000000e+00> : vector<8x32xf32>
    %287 = tpu.matmul %41, %283, %cst_93 {dimension_numbers = #tpu.dot_dimension_numbers<[1], [0], [0], [1], [0, 0, 1, 1], [], []>} : vector<8x8xf32>, vector<8x32xf32>, vector<8x32xf32> -> vector<8x32xf32>
    %288 = vector.extract_strided_slice %48 {offsets = [19, 0], sizes = [1, 32], strides = [1, 1]} : vector<22x128xf32> to vector<1x32xf32>
    %289 = vector.broadcast %288 : vector<1x32xf32> to vector<8x32xf32>
    %290 = arith.mulf %287, %289 : vector<8x32xf32>
    %291 = arith.addf %286, %290 : vector<8x32xf32>
    %cst_94 = arith.constant dense<0.000000e+00> : vector<8x32xf32>
    %292 = tpu.matmul %46, %283, %cst_94 {dimension_numbers = #tpu.dot_dimension_numbers<[1], [0], [0], [1], [0, 0, 1, 1], [], []>} : vector<8x8xf32>, vector<8x32xf32>, vector<8x32xf32> -> vector<8x32xf32>
    %293 = vector.extract_strided_slice %48 {offsets = [21, 0], sizes = [1, 32], strides = [1, 1]} : vector<22x128xf32> to vector<1x32xf32>
    %294 = vector.broadcast %293 : vector<1x32xf32> to vector<8x32xf32>
    %295 = arith.mulf %292, %294 : vector<8x32xf32>
    %296 = arith.addf %291, %295 : vector<8x32xf32>
    %297 = arith.negf %296 : vector<8x32xf32>
    %298 = math.exp %297 : vector<8x32xf32>
    %cst_95 = arith.constant 1.000000e+00 : f32
    %299 = vector.broadcast %cst_95 : f32 to vector<8x32xf32>
    %300 = arith.addf %299, %298 : vector<8x32xf32>
    %301 = arith.divf %299, %300 : vector<8x32xf32>
    %302 = arith.mulf %296, %301 : vector<8x32xf32>
    %c0_96 = arith.constant 0 : index
    %c0_97 = arith.constant 0 : index
    %c0_98 = arith.constant 0 : index
    %303 = vector.load %arg12[%c0_96, %c0_97, %c0_98] : memref<4x32x32xbf16, #tpu.memory_space<vmem>>, vector<1x32x32xbf16>
    %304 = vector.shape_cast %303 : vector<1x32x32xbf16> to vector<32x32xbf16>
    %305 = vector.extract_strided_slice %48 {offsets = [12, 0], sizes = [1, 32], strides = [1, 1]} : vector<22x128xf32> to vector<1x32xf32>
    %306 = arith.truncf %302 : vector<8x32xf32> to vector<8x32xbf16>
    %cst_99 = arith.constant dense<0.000000e+00> : vector<8x32xf32>
    %307 = tpu.matmul %306, %304, %cst_99 {dimension_numbers = #tpu.dot_dimension_numbers<[1], [0], [0], [1], [0, 0, 1, 1], [], []>} : vector<8x32xbf16>, vector<32x32xbf16>, vector<8x32xf32> -> vector<8x32xf32>
    %308 = vector.broadcast %305 : vector<1x32xf32> to vector<8x32xf32>
    %309 = arith.addf %307, %308 : vector<8x32xf32>
    %310 = arith.addf %239, %309 : vector<8x32xf32>
    %311 = vector.extract_strided_slice %48 {offsets = [13, 0], sizes = [1, 32], strides = [1, 1]} : vector<22x128xf32> to vector<1x32xf32>
    %312 = vector.extract_strided_slice %48 {offsets = [14, 0], sizes = [1, 32], strides = [1, 1]} : vector<22x128xf32> to vector<1x32xf32>
    %cst_100 = arith.constant dense<0.000000e+00> : vector<8xf32>
    %313 = vector.multi_reduction <add>, %310, %cst_100 [1] : vector<8x32xf32> to vector<8xf32>
    %314 = vector.shape_cast %313 : vector<8xf32> to vector<8x1xf32>
    %cst_101 = arith.constant 3.200000e+01 : f32
    %315 = vector.broadcast %cst_101 : f32 to vector<8x1xf32>
    %316 = arith.divf %314, %315 : vector<8x1xf32>
    %317 = vector.broadcast %316 : vector<8x1xf32> to vector<8x32xf32>
    %318 = arith.subf %310, %317 : vector<8x32xf32>
    %319 = arith.mulf %318, %318 : vector<8x32xf32>
    %cst_102 = arith.constant dense<0.000000e+00> : vector<8xf32>
    %320 = vector.multi_reduction <add>, %319, %cst_102 [1] : vector<8x32xf32> to vector<8xf32>
    %321 = vector.shape_cast %320 : vector<8xf32> to vector<8x1xf32>
    %cst_103 = arith.constant 3.200000e+01 : f32
    %322 = vector.broadcast %cst_103 : f32 to vector<8x1xf32>
    %323 = arith.divf %321, %322 : vector<8x1xf32>
    %324 = vector.broadcast %316 : vector<8x1xf32> to vector<8x32xf32>
    %325 = arith.subf %310, %324 : vector<8x32xf32>
    %cst_104 = arith.constant 9.99999974E-6 : f32
    %326 = vector.broadcast %cst_104 : f32 to vector<8x1xf32>
    %327 = arith.addf %323, %326 : vector<8x1xf32>
    %328 = math.rsqrt %327 : vector<8x1xf32>
    %329 = vector.broadcast %328 : vector<8x1xf32> to vector<8x32xf32>
    %330 = arith.mulf %325, %329 : vector<8x32xf32>
    %331 = vector.broadcast %311 : vector<1x32xf32> to vector<8x32xf32>
    %332 = arith.mulf %330, %331 : vector<8x32xf32>
    %333 = vector.broadcast %312 : vector<1x32xf32> to vector<8x32xf32>
    %334 = arith.addf %332, %333 : vector<8x32xf32>
    %c0_105 = arith.constant 0 : index
    %c0_106 = arith.constant 0 : index
    %c0_107 = arith.constant 0 : index
    %335 = vector.load %arg13[%c0_105, %c0_106, %c0_107] : memref<4x32x64xbf16, #tpu.memory_space<vmem>>, vector<1x32x64xbf16>
    %336 = vector.shape_cast %335 : vector<1x32x64xbf16> to vector<32x64xbf16>
    %337 = vector.extract_strided_slice %48 {offsets = [15, 0], sizes = [1, 64], strides = [1, 1]} : vector<22x128xf32> to vector<1x64xf32>
    %338 = arith.truncf %334 : vector<8x32xf32> to vector<8x32xbf16>
    %cst_108 = arith.constant dense<0.000000e+00> : vector<8x64xf32>
    %339 = tpu.matmul %338, %336, %cst_108 {dimension_numbers = #tpu.dot_dimension_numbers<[1], [0], [0], [1], [0, 0, 1, 1], [], []>} : vector<8x32xbf16>, vector<32x64xbf16>, vector<8x64xf32> -> vector<8x64xf32>
    %340 = vector.broadcast %337 : vector<1x64xf32> to vector<8x64xf32>
    %341 = arith.addf %339, %340 : vector<8x64xf32>
    %342 = arith.negf %341 : vector<8x64xf32>
    %343 = math.exp %342 : vector<8x64xf32>
    %cst_109 = arith.constant 1.000000e+00 : f32
    %344 = vector.broadcast %cst_109 : f32 to vector<8x64xf32>
    %345 = arith.addf %344, %343 : vector<8x64xf32>
    %346 = arith.divf %344, %345 : vector<8x64xf32>
    %347 = arith.mulf %341, %346 : vector<8x64xf32>
    %c0_110 = arith.constant 0 : index
    %c0_111 = arith.constant 0 : index
    %c0_112 = arith.constant 0 : index
    %348 = vector.load %arg14[%c0_110, %c0_111, %c0_112] : memref<4x64x32xbf16, #tpu.memory_space<vmem>>, vector<1x64x32xbf16>
    %349 = vector.shape_cast %348 : vector<1x64x32xbf16> to vector<64x32xbf16>
    %350 = vector.extract_strided_slice %48 {offsets = [16, 0], sizes = [1, 32], strides = [1, 1]} : vector<22x128xf32> to vector<1x32xf32>
    %351 = arith.truncf %347 : vector<8x64xf32> to vector<8x64xbf16>
    %cst_113 = arith.constant dense<0.000000e+00> : vector<8x32xf32>
    %352 = tpu.matmul %351, %349, %cst_113 {dimension_numbers = #tpu.dot_dimension_numbers<[1], [0], [0], [1], [0, 0, 1, 1], [], []>} : vector<8x64xbf16>, vector<64x32xbf16>, vector<8x32xf32> -> vector<8x32xf32>
    %353 = vector.broadcast %350 : vector<1x32xf32> to vector<8x32xf32>
    %354 = arith.addf %352, %353 : vector<8x32xf32>
    %cst_114 = arith.constant 5.000000e-01 : f32
    %355 = vector.broadcast %cst_114 : f32 to vector<8x32xf32>
    %356 = arith.mulf %355, %354 : vector<8x32xf32>
    %357 = arith.addf %310, %356 : vector<8x32xf32>
    %358 = vector.extract_strided_slice %48 {offsets = [17, 0], sizes = [1, 32], strides = [1, 1]} : vector<22x128xf32> to vector<1x32xf32>
    %359 = vector.extract_strided_slice %48 {offsets = [18, 0], sizes = [1, 32], strides = [1, 1]} : vector<22x128xf32> to vector<1x32xf32>
    %cst_115 = arith.constant dense<0.000000e+00> : vector<8xf32>
    %360 = vector.multi_reduction <add>, %357, %cst_115 [1] : vector<8x32xf32> to vector<8xf32>
    %361 = vector.shape_cast %360 : vector<8xf32> to vector<8x1xf32>
    %cst_116 = arith.constant 3.200000e+01 : f32
    %362 = vector.broadcast %cst_116 : f32 to vector<8x1xf32>
    %363 = arith.divf %361, %362 : vector<8x1xf32>
    %364 = vector.broadcast %363 : vector<8x1xf32> to vector<8x32xf32>
    %365 = arith.subf %357, %364 : vector<8x32xf32>
    %366 = arith.mulf %365, %365 : vector<8x32xf32>
    %cst_117 = arith.constant dense<0.000000e+00> : vector<8xf32>
    %367 = vector.multi_reduction <add>, %366, %cst_117 [1] : vector<8x32xf32> to vector<8xf32>
    %368 = vector.shape_cast %367 : vector<8xf32> to vector<8x1xf32>
    %cst_118 = arith.constant 3.200000e+01 : f32
    %369 = vector.broadcast %cst_118 : f32 to vector<8x1xf32>
    %370 = arith.divf %368, %369 : vector<8x1xf32>
    %371 = vector.broadcast %363 : vector<8x1xf32> to vector<8x32xf32>
    %372 = arith.subf %357, %371 : vector<8x32xf32>
    %cst_119 = arith.constant 9.99999974E-6 : f32
    %373 = vector.broadcast %cst_119 : f32 to vector<8x1xf32>
    %374 = arith.addf %370, %373 : vector<8x1xf32>
    %375 = math.rsqrt %374 : vector<8x1xf32>
    %376 = vector.broadcast %375 : vector<8x1xf32> to vector<8x32xf32>
    %377 = arith.mulf %372, %376 : vector<8x32xf32>
    %378 = vector.broadcast %358 : vector<1x32xf32> to vector<8x32xf32>
    %379 = arith.mulf %377, %378 : vector<8x32xf32>
    %380 = vector.broadcast %359 : vector<1x32xf32> to vector<8x32xf32>
    %381 = arith.addf %379, %380 : vector<8x32xf32>
    %c1_120 = arith.constant 1 : index
    %c0_121 = arith.constant 0 : index
    %c0_122 = arith.constant 0 : index
    %382 = vector.load %arg5[%c1_120, %c0_121, %c0_122] : memref<4x22x128xf32, #tpu.memory_space<vmem>>, vector<1x22x128xf32>
    %383 = vector.shape_cast %382 : vector<1x22x128xf32> to vector<22x128xf32>
    %384 = vector.extract_strided_slice %383 {offsets = [0, 0], sizes = [1, 32], strides = [1, 1]} : vector<22x128xf32> to vector<1x32xf32>
    %385 = vector.extract_strided_slice %383 {offsets = [1, 0], sizes = [1, 32], strides = [1, 1]} : vector<22x128xf32> to vector<1x32xf32>
    %cst_123 = arith.constant dense<0.000000e+00> : vector<8xf32>
    %386 = vector.multi_reduction <add>, %381, %cst_123 [1] : vector<8x32xf32> to vector<8xf32>
    %387 = vector.shape_cast %386 : vector<8xf32> to vector<8x1xf32>
    %cst_124 = arith.constant 3.200000e+01 : f32
    %388 = vector.broadcast %cst_124 : f32 to vector<8x1xf32>
    %389 = arith.divf %387, %388 : vector<8x1xf32>
    %390 = vector.broadcast %389 : vector<8x1xf32> to vector<8x32xf32>
    %391 = arith.subf %381, %390 : vector<8x32xf32>
    %392 = arith.mulf %391, %391 : vector<8x32xf32>
    %cst_125 = arith.constant dense<0.000000e+00> : vector<8xf32>
    %393 = vector.multi_reduction <add>, %392, %cst_125 [1] : vector<8x32xf32> to vector<8xf32>
    %394 = vector.shape_cast %393 : vector<8xf32> to vector<8x1xf32>
    %cst_126 = arith.constant 3.200000e+01 : f32
    %395 = vector.broadcast %cst_126 : f32 to vector<8x1xf32>
    %396 = arith.divf %394, %395 : vector<8x1xf32>
    %397 = vector.broadcast %389 : vector<8x1xf32> to vector<8x32xf32>
    %398 = arith.subf %381, %397 : vector<8x32xf32>
    %cst_127 = arith.constant 9.99999974E-6 : f32
    %399 = vector.broadcast %cst_127 : f32 to vector<8x1xf32>
    %400 = arith.addf %396, %399 : vector<8x1xf32>
    %401 = math.rsqrt %400 : vector<8x1xf32>
    %402 = vector.broadcast %401 : vector<8x1xf32> to vector<8x32xf32>
    %403 = arith.mulf %398, %402 : vector<8x32xf32>
    %404 = vector.broadcast %384 : vector<1x32xf32> to vector<8x32xf32>
    %405 = arith.mulf %403, %404 : vector<8x32xf32>
    %406 = vector.broadcast %385 : vector<1x32xf32> to vector<8x32xf32>
    %407 = arith.addf %405, %406 : vector<8x32xf32>
    %c1_128 = arith.constant 1 : index
    %c0_129 = arith.constant 0 : index
    %c0_130 = arith.constant 0 : index
    %408 = vector.load %arg6[%c1_128, %c0_129, %c0_130] : memref<4x32x64xbf16, #tpu.memory_space<vmem>>, vector<1x32x64xbf16>
    %409 = vector.shape_cast %408 : vector<1x32x64xbf16> to vector<32x64xbf16>
    %410 = vector.extract_strided_slice %383 {offsets = [2, 0], sizes = [1, 64], strides = [1, 1]} : vector<22x128xf32> to vector<1x64xf32>
    %411 = arith.truncf %407 : vector<8x32xf32> to vector<8x32xbf16>
    %cst_131 = arith.constant dense<0.000000e+00> : vector<8x64xf32>
    %412 = tpu.matmul %411, %409, %cst_131 {dimension_numbers = #tpu.dot_dimension_numbers<[1], [0], [0], [1], [0, 0, 1, 1], [], []>} : vector<8x32xbf16>, vector<32x64xbf16>, vector<8x64xf32> -> vector<8x64xf32>
    %413 = vector.broadcast %410 : vector<1x64xf32> to vector<8x64xf32>
    %414 = arith.addf %412, %413 : vector<8x64xf32>
    %415 = arith.negf %414 : vector<8x64xf32>
    %416 = math.exp %415 : vector<8x64xf32>
    %cst_132 = arith.constant 1.000000e+00 : f32
    %417 = vector.broadcast %cst_132 : f32 to vector<8x64xf32>
    %418 = arith.addf %417, %416 : vector<8x64xf32>
    %419 = arith.divf %417, %418 : vector<8x64xf32>
    %420 = arith.mulf %414, %419 : vector<8x64xf32>
    %c1_133 = arith.constant 1 : index
    %c0_134 = arith.constant 0 : index
    %c0_135 = arith.constant 0 : index
    %421 = vector.load %arg7[%c1_133, %c0_134, %c0_135] : memref<4x64x32xbf16, #tpu.memory_space<vmem>>, vector<1x64x32xbf16>
    %422 = vector.shape_cast %421 : vector<1x64x32xbf16> to vector<64x32xbf16>
    %423 = vector.extract_strided_slice %383 {offsets = [3, 0], sizes = [1, 32], strides = [1, 1]} : vector<22x128xf32> to vector<1x32xf32>
    %424 = arith.truncf %420 : vector<8x64xf32> to vector<8x64xbf16>
    %cst_136 = arith.constant dense<0.000000e+00> : vector<8x32xf32>
    %425 = tpu.matmul %424, %422, %cst_136 {dimension_numbers = #tpu.dot_dimension_numbers<[1], [0], [0], [1], [0, 0, 1, 1], [], []>} : vector<8x64xbf16>, vector<64x32xbf16>, vector<8x32xf32> -> vector<8x32xf32>
    %426 = vector.broadcast %423 : vector<1x32xf32> to vector<8x32xf32>
    %427 = arith.addf %425, %426 : vector<8x32xf32>
    %cst_137 = arith.constant 5.000000e-01 : f32
    %428 = vector.broadcast %cst_137 : f32 to vector<8x32xf32>
    %429 = arith.mulf %428, %427 : vector<8x32xf32>
    %430 = arith.addf %381, %429 : vector<8x32xf32>
    %431 = vector.extract_strided_slice %383 {offsets = [4, 0], sizes = [1, 32], strides = [1, 1]} : vector<22x128xf32> to vector<1x32xf32>
    %432 = vector.extract_strided_slice %383 {offsets = [5, 0], sizes = [1, 32], strides = [1, 1]} : vector<22x128xf32> to vector<1x32xf32>
    %cst_138 = arith.constant dense<0.000000e+00> : vector<8xf32>
    %433 = vector.multi_reduction <add>, %430, %cst_138 [1] : vector<8x32xf32> to vector<8xf32>
    %434 = vector.shape_cast %433 : vector<8xf32> to vector<8x1xf32>
    %cst_139 = arith.constant 3.200000e+01 : f32
    %435 = vector.broadcast %cst_139 : f32 to vector<8x1xf32>
    %436 = arith.divf %434, %435 : vector<8x1xf32>
    %437 = vector.broadcast %436 : vector<8x1xf32> to vector<8x32xf32>
    %438 = arith.subf %430, %437 : vector<8x32xf32>
    %439 = arith.mulf %438, %438 : vector<8x32xf32>
    %cst_140 = arith.constant dense<0.000000e+00> : vector<8xf32>
    %440 = vector.multi_reduction <add>, %439, %cst_140 [1] : vector<8x32xf32> to vector<8xf32>
    %441 = vector.shape_cast %440 : vector<8xf32> to vector<8x1xf32>
    %cst_141 = arith.constant 3.200000e+01 : f32
    %442 = vector.broadcast %cst_141 : f32 to vector<8x1xf32>
    %443 = arith.divf %441, %442 : vector<8x1xf32>
    %444 = vector.broadcast %436 : vector<8x1xf32> to vector<8x32xf32>
    %445 = arith.subf %430, %444 : vector<8x32xf32>
    %cst_142 = arith.constant 9.99999974E-6 : f32
    %446 = vector.broadcast %cst_142 : f32 to vector<8x1xf32>
    %447 = arith.addf %443, %446 : vector<8x1xf32>
    %448 = math.rsqrt %447 : vector<8x1xf32>
    %449 = vector.broadcast %448 : vector<8x1xf32> to vector<8x32xf32>
    %450 = arith.mulf %445, %449 : vector<8x32xf32>
    %451 = vector.broadcast %431 : vector<1x32xf32> to vector<8x32xf32>
    %452 = arith.mulf %450, %451 : vector<8x32xf32>
    %453 = vector.broadcast %432 : vector<1x32xf32> to vector<8x32xf32>
    %454 = arith.addf %452, %453 : vector<8x32xf32>
    %c1_143 = arith.constant 1 : index
    %c0_144 = arith.constant 0 : index
    %c0_145 = arith.constant 0 : index
    %455 = vector.load %arg8[%c1_143, %c0_144, %c0_145] : memref<4x32x96xbf16, #tpu.memory_space<vmem>>, vector<1x32x96xbf16>
    %456 = vector.shape_cast %455 : vector<1x32x96xbf16> to vector<32x96xbf16>
    %457 = vector.extract_strided_slice %383 {offsets = [6, 0], sizes = [1, 96], strides = [1, 1]} : vector<22x128xf32> to vector<1x96xf32>
    %458 = arith.truncf %454 : vector<8x32xf32> to vector<8x32xbf16>
    %cst_146 = arith.constant dense<0.000000e+00> : vector<8x96xf32>
    %459 = tpu.matmul %458, %456, %cst_146 {dimension_numbers = #tpu.dot_dimension_numbers<[1], [0], [0], [1], [0, 0, 1, 1], [], []>} : vector<8x32xbf16>, vector<32x96xbf16>, vector<8x96xf32> -> vector<8x96xf32>
    %460 = vector.broadcast %457 : vector<1x96xf32> to vector<8x96xf32>
    %461 = arith.addf %459, %460 : vector<8x96xf32>
    %cst_147 = arith.constant 0.000000e+00 : f32
    %462 = vector.broadcast %cst_147 : f32 to vector<8x32xf32>
    %463 = vector.extract_strided_slice %461 {offsets = [0, 0], sizes = [8, 8], strides = [1, 1]} : vector<8x96xf32> to vector<8x8xf32>
    %464 = arith.truncf %463 : vector<8x8xf32> to vector<8x8xbf16>
    %465 = vector.extract_strided_slice %461 {offsets = [0, 32], sizes = [8, 8], strides = [1, 1]} : vector<8x96xf32> to vector<8x8xf32>
    %466 = arith.truncf %465 : vector<8x8xf32> to vector<8x8xbf16>
    %467 = vector.extract_strided_slice %461 {offsets = [0, 64], sizes = [8, 8], strides = [1, 1]} : vector<8x96xf32> to vector<8x8xf32>
    %468 = arith.truncf %467 : vector<8x8xf32> to vector<8x8xbf16>
    %cst_148 = arith.constant dense<0.000000e+00> : vector<8x8xf32>
    %469 = tpu.matmul %464, %466, %cst_148 {dimension_numbers = #tpu.dot_dimension_numbers<[1], [1], [0], [0], [0, 0, 1, 0], [], []>} : vector<8x8xbf16>, vector<8x8xbf16>, vector<8x8xf32> -> vector<8x8xf32>
    %cst_149 = arith.constant 0.353553385 : f32
    %470 = vector.broadcast %cst_149 : f32 to vector<8x8xf32>
    %471 = arith.mulf %469, %470 : vector<8x8xf32>
    %472 = arith.addf %471, %34 : vector<8x8xf32>
    %cst_150 = arith.constant dense<0xFF800000> : vector<8xf32>
    %473 = vector.multi_reduction <maximumf>, %472, %cst_150 [1] : vector<8x8xf32> to vector<8xf32>
    %474 = vector.shape_cast %473 : vector<8xf32> to vector<8x1xf32>
    %475 = vector.broadcast %474 : vector<8x1xf32> to vector<8x8xf32>
    %476 = arith.subf %472, %475 : vector<8x8xf32>
    %477 = math.exp %476 : vector<8x8xf32>
    %cst_151 = arith.constant dense<0.000000e+00> : vector<8xf32>
    %478 = vector.multi_reduction <add>, %477, %cst_151 [1] : vector<8x8xf32> to vector<8xf32>
    %479 = vector.shape_cast %478 : vector<8xf32> to vector<8x1xf32>
    %480 = tpu.reciprocal %479 {approx = true} : vector<8x1xf32> -> vector<8x1xf32>
    %481 = vector.broadcast %480 : vector<8x1xf32> to vector<8x8xf32>
    %482 = arith.mulf %477, %481 : vector<8x8xf32>
    %483 = arith.truncf %482 : vector<8x8xf32> to vector<8x8xbf16>
    %cst_152 = arith.constant dense<0.000000e+00> : vector<8x8xf32>
    %484 = tpu.matmul %483, %468, %cst_152 {dimension_numbers = #tpu.dot_dimension_numbers<[1], [0], [0], [1], [0, 0, 1, 1], [], []>} : vector<8x8xbf16>, vector<8x8xbf16>, vector<8x8xf32> -> vector<8x8xf32>
    %485 = arith.truncf %484 : vector<8x8xf32> to vector<8x8xbf16>
    %c1_153 = arith.constant 1 : index
    %c0_154 = arith.constant 0 : index
    %c0_155 = arith.constant 0 : index
    %c0_156 = arith.constant 0 : index
    %486 = vector.load %arg9[%c1_153, %c0_154, %c0_155, %c0_156] : memref<4x4x8x32xbf16, #tpu.memory_space<vmem>>, vector<1x1x8x32xbf16>
    %487 = vector.shape_cast %486 : vector<1x1x8x32xbf16> to vector<8x32xbf16>
    %cst_157 = arith.constant dense<0.000000e+00> : vector<8x32xf32>
    %488 = tpu.matmul %485, %487, %cst_157 {dimension_numbers = #tpu.dot_dimension_numbers<[1], [0], [0], [1], [0, 0, 1, 1], [], []>} : vector<8x8xbf16>, vector<8x32xbf16>, vector<8x32xf32> -> vector<8x32xf32>
    %489 = arith.addf %462, %488 : vector<8x32xf32>
    %490 = vector.extract_strided_slice %461 {offsets = [0, 8], sizes = [8, 8], strides = [1, 1]} : vector<8x96xf32> to vector<8x8xf32>
    %491 = arith.truncf %490 : vector<8x8xf32> to vector<8x8xbf16>
    %492 = vector.extract_strided_slice %461 {offsets = [0, 40], sizes = [8, 8], strides = [1, 1]} : vector<8x96xf32> to vector<8x8xf32>
    %493 = arith.truncf %492 : vector<8x8xf32> to vector<8x8xbf16>
    %494 = vector.extract_strided_slice %461 {offsets = [0, 72], sizes = [8, 8], strides = [1, 1]} : vector<8x96xf32> to vector<8x8xf32>
    %495 = arith.truncf %494 : vector<8x8xf32> to vector<8x8xbf16>
    %cst_158 = arith.constant dense<0.000000e+00> : vector<8x8xf32>
    %496 = tpu.matmul %491, %493, %cst_158 {dimension_numbers = #tpu.dot_dimension_numbers<[1], [1], [0], [0], [0, 0, 1, 0], [], []>} : vector<8x8xbf16>, vector<8x8xbf16>, vector<8x8xf32> -> vector<8x8xf32>
    %cst_159 = arith.constant 0.353553385 : f32
    %497 = vector.broadcast %cst_159 : f32 to vector<8x8xf32>
    %498 = arith.mulf %496, %497 : vector<8x8xf32>
    %499 = arith.addf %498, %34 : vector<8x8xf32>
    %cst_160 = arith.constant dense<0xFF800000> : vector<8xf32>
    %500 = vector.multi_reduction <maximumf>, %499, %cst_160 [1] : vector<8x8xf32> to vector<8xf32>
    %501 = vector.shape_cast %500 : vector<8xf32> to vector<8x1xf32>
    %502 = vector.broadcast %501 : vector<8x1xf32> to vector<8x8xf32>
    %503 = arith.subf %499, %502 : vector<8x8xf32>
    %504 = math.exp %503 : vector<8x8xf32>
    %cst_161 = arith.constant dense<0.000000e+00> : vector<8xf32>
    %505 = vector.multi_reduction <add>, %504, %cst_161 [1] : vector<8x8xf32> to vector<8xf32>
    %506 = vector.shape_cast %505 : vector<8xf32> to vector<8x1xf32>
    %507 = tpu.reciprocal %506 {approx = true} : vector<8x1xf32> -> vector<8x1xf32>
    %508 = vector.broadcast %507 : vector<8x1xf32> to vector<8x8xf32>
    %509 = arith.mulf %504, %508 : vector<8x8xf32>
    %510 = arith.truncf %509 : vector<8x8xf32> to vector<8x8xbf16>
    %cst_162 = arith.constant dense<0.000000e+00> : vector<8x8xf32>
    %511 = tpu.matmul %510, %495, %cst_162 {dimension_numbers = #tpu.dot_dimension_numbers<[1], [0], [0], [1], [0, 0, 1, 1], [], []>} : vector<8x8xbf16>, vector<8x8xbf16>, vector<8x8xf32> -> vector<8x8xf32>
    %512 = arith.truncf %511 : vector<8x8xf32> to vector<8x8xbf16>
    %c1_163 = arith.constant 1 : index
    %c1_164 = arith.constant 1 : index
    %c0_165 = arith.constant 0 : index
    %c0_166 = arith.constant 0 : index
    %513 = vector.load %arg9[%c1_163, %c1_164, %c0_165, %c0_166] : memref<4x4x8x32xbf16, #tpu.memory_space<vmem>>, vector<1x1x8x32xbf16>
    %514 = vector.shape_cast %513 : vector<1x1x8x32xbf16> to vector<8x32xbf16>
    %cst_167 = arith.constant dense<0.000000e+00> : vector<8x32xf32>
    %515 = tpu.matmul %512, %514, %cst_167 {dimension_numbers = #tpu.dot_dimension_numbers<[1], [0], [0], [1], [0, 0, 1, 1], [], []>} : vector<8x8xbf16>, vector<8x32xbf16>, vector<8x32xf32> -> vector<8x32xf32>
    %516 = arith.addf %489, %515 : vector<8x32xf32>
    %517 = vector.extract_strided_slice %461 {offsets = [0, 16], sizes = [8, 8], strides = [1, 1]} : vector<8x96xf32> to vector<8x8xf32>
    %518 = arith.truncf %517 : vector<8x8xf32> to vector<8x8xbf16>
    %519 = vector.extract_strided_slice %461 {offsets = [0, 48], sizes = [8, 8], strides = [1, 1]} : vector<8x96xf32> to vector<8x8xf32>
    %520 = arith.truncf %519 : vector<8x8xf32> to vector<8x8xbf16>
    %521 = vector.extract_strided_slice %461 {offsets = [0, 80], sizes = [8, 8], strides = [1, 1]} : vector<8x96xf32> to vector<8x8xf32>
    %522 = arith.truncf %521 : vector<8x8xf32> to vector<8x8xbf16>
    %cst_168 = arith.constant dense<0.000000e+00> : vector<8x8xf32>
    %523 = tpu.matmul %518, %520, %cst_168 {dimension_numbers = #tpu.dot_dimension_numbers<[1], [1], [0], [0], [0, 0, 1, 0], [], []>} : vector<8x8xbf16>, vector<8x8xbf16>, vector<8x8xf32> -> vector<8x8xf32>
    %cst_169 = arith.constant 0.353553385 : f32
    %524 = vector.broadcast %cst_169 : f32 to vector<8x8xf32>
    %525 = arith.mulf %523, %524 : vector<8x8xf32>
    %526 = arith.addf %525, %34 : vector<8x8xf32>
    %cst_170 = arith.constant dense<0xFF800000> : vector<8xf32>
    %527 = vector.multi_reduction <maximumf>, %526, %cst_170 [1] : vector<8x8xf32> to vector<8xf32>
    %528 = vector.shape_cast %527 : vector<8xf32> to vector<8x1xf32>
    %529 = vector.broadcast %528 : vector<8x1xf32> to vector<8x8xf32>
    %530 = arith.subf %526, %529 : vector<8x8xf32>
    %531 = math.exp %530 : vector<8x8xf32>
    %cst_171 = arith.constant dense<0.000000e+00> : vector<8xf32>
    %532 = vector.multi_reduction <add>, %531, %cst_171 [1] : vector<8x8xf32> to vector<8xf32>
    %533 = vector.shape_cast %532 : vector<8xf32> to vector<8x1xf32>
    %534 = tpu.reciprocal %533 {approx = true} : vector<8x1xf32> -> vector<8x1xf32>
    %535 = vector.broadcast %534 : vector<8x1xf32> to vector<8x8xf32>
    %536 = arith.mulf %531, %535 : vector<8x8xf32>
    %537 = arith.truncf %536 : vector<8x8xf32> to vector<8x8xbf16>
    %cst_172 = arith.constant dense<0.000000e+00> : vector<8x8xf32>
    %538 = tpu.matmul %537, %522, %cst_172 {dimension_numbers = #tpu.dot_dimension_numbers<[1], [0], [0], [1], [0, 0, 1, 1], [], []>} : vector<8x8xbf16>, vector<8x8xbf16>, vector<8x8xf32> -> vector<8x8xf32>
    %539 = arith.truncf %538 : vector<8x8xf32> to vector<8x8xbf16>
    %c1_173 = arith.constant 1 : index
    %c2_174 = arith.constant 2 : index
    %c0_175 = arith.constant 0 : index
    %c0_176 = arith.constant 0 : index
    %540 = vector.load %arg9[%c1_173, %c2_174, %c0_175, %c0_176] : memref<4x4x8x32xbf16, #tpu.memory_space<vmem>>, vector<1x1x8x32xbf16>
    %541 = vector.shape_cast %540 : vector<1x1x8x32xbf16> to vector<8x32xbf16>
    %cst_177 = arith.constant dense<0.000000e+00> : vector<8x32xf32>
    %542 = tpu.matmul %539, %541, %cst_177 {dimension_numbers = #tpu.dot_dimension_numbers<[1], [0], [0], [1], [0, 0, 1, 1], [], []>} : vector<8x8xbf16>, vector<8x32xbf16>, vector<8x32xf32> -> vector<8x32xf32>
    %543 = arith.addf %516, %542 : vector<8x32xf32>
    %544 = vector.extract_strided_slice %461 {offsets = [0, 24], sizes = [8, 8], strides = [1, 1]} : vector<8x96xf32> to vector<8x8xf32>
    %545 = arith.truncf %544 : vector<8x8xf32> to vector<8x8xbf16>
    %546 = vector.extract_strided_slice %461 {offsets = [0, 56], sizes = [8, 8], strides = [1, 1]} : vector<8x96xf32> to vector<8x8xf32>
    %547 = arith.truncf %546 : vector<8x8xf32> to vector<8x8xbf16>
    %548 = vector.extract_strided_slice %461 {offsets = [0, 88], sizes = [8, 8], strides = [1, 1]} : vector<8x96xf32> to vector<8x8xf32>
    %549 = arith.truncf %548 : vector<8x8xf32> to vector<8x8xbf16>
    %cst_178 = arith.constant dense<0.000000e+00> : vector<8x8xf32>
    %550 = tpu.matmul %545, %547, %cst_178 {dimension_numbers = #tpu.dot_dimension_numbers<[1], [1], [0], [0], [0, 0, 1, 0], [], []>} : vector<8x8xbf16>, vector<8x8xbf16>, vector<8x8xf32> -> vector<8x8xf32>
    %cst_179 = arith.constant 0.353553385 : f32
    %551 = vector.broadcast %cst_179 : f32 to vector<8x8xf32>
    %552 = arith.mulf %550, %551 : vector<8x8xf32>
    %553 = arith.addf %552, %34 : vector<8x8xf32>
    %cst_180 = arith.constant dense<0xFF800000> : vector<8xf32>
    %554 = vector.multi_reduction <maximumf>, %553, %cst_180 [1] : vector<8x8xf32> to vector<8xf32>
    %555 = vector.shape_cast %554 : vector<8xf32> to vector<8x1xf32>
    %556 = vector.broadcast %555 : vector<8x1xf32> to vector<8x8xf32>
    %557 = arith.subf %553, %556 : vector<8x8xf32>
    %558 = math.exp %557 : vector<8x8xf32>
    %cst_181 = arith.constant dense<0.000000e+00> : vector<8xf32>
    %559 = vector.multi_reduction <add>, %558, %cst_181 [1] : vector<8x8xf32> to vector<8xf32>
    %560 = vector.shape_cast %559 : vector<8xf32> to vector<8x1xf32>
    %561 = tpu.reciprocal %560 {approx = true} : vector<8x1xf32> -> vector<8x1xf32>
    %562 = vector.broadcast %561 : vector<8x1xf32> to vector<8x8xf32>
    %563 = arith.mulf %558, %562 : vector<8x8xf32>
    %564 = arith.truncf %563 : vector<8x8xf32> to vector<8x8xbf16>
    %cst_182 = arith.constant dense<0.000000e+00> : vector<8x8xf32>
    %565 = tpu.matmul %564, %549, %cst_182 {dimension_numbers = #tpu.dot_dimension_numbers<[1], [0], [0], [1], [0, 0, 1, 1], [], []>} : vector<8x8xbf16>, vector<8x8xbf16>, vector<8x8xf32> -> vector<8x8xf32>
    %566 = arith.truncf %565 : vector<8x8xf32> to vector<8x8xbf16>
    %c1_183 = arith.constant 1 : index
    %c3_184 = arith.constant 3 : index
    %c0_185 = arith.constant 0 : index
    %c0_186 = arith.constant 0 : index
    %567 = vector.load %arg9[%c1_183, %c3_184, %c0_185, %c0_186] : memref<4x4x8x32xbf16, #tpu.memory_space<vmem>>, vector<1x1x8x32xbf16>
    %568 = vector.shape_cast %567 : vector<1x1x8x32xbf16> to vector<8x32xbf16>
    %cst_187 = arith.constant dense<0.000000e+00> : vector<8x32xf32>
    %569 = tpu.matmul %566, %568, %cst_187 {dimension_numbers = #tpu.dot_dimension_numbers<[1], [0], [0], [1], [0, 0, 1, 1], [], []>} : vector<8x8xbf16>, vector<8x32xbf16>, vector<8x32xf32> -> vector<8x32xf32>
    %570 = arith.addf %543, %569 : vector<8x32xf32>
    %571 = arith.addf %430, %570 : vector<8x32xf32>
    %572 = vector.extract_strided_slice %383 {offsets = [7, 0], sizes = [1, 32], strides = [1, 1]} : vector<22x128xf32> to vector<1x32xf32>
    %573 = vector.broadcast %572 : vector<1x32xf32> to vector<8x32xf32>
    %574 = arith.addf %571, %573 : vector<8x32xf32>
    %575 = vector.extract_strided_slice %383 {offsets = [8, 0], sizes = [1, 32], strides = [1, 1]} : vector<22x128xf32> to vector<1x32xf32>
    %576 = vector.extract_strided_slice %383 {offsets = [9, 0], sizes = [1, 32], strides = [1, 1]} : vector<22x128xf32> to vector<1x32xf32>
    %cst_188 = arith.constant dense<0.000000e+00> : vector<8xf32>
    %577 = vector.multi_reduction <add>, %574, %cst_188 [1] : vector<8x32xf32> to vector<8xf32>
    %578 = vector.shape_cast %577 : vector<8xf32> to vector<8x1xf32>
    %cst_189 = arith.constant 3.200000e+01 : f32
    %579 = vector.broadcast %cst_189 : f32 to vector<8x1xf32>
    %580 = arith.divf %578, %579 : vector<8x1xf32>
    %581 = vector.broadcast %580 : vector<8x1xf32> to vector<8x32xf32>
    %582 = arith.subf %574, %581 : vector<8x32xf32>
    %583 = arith.mulf %582, %582 : vector<8x32xf32>
    %cst_190 = arith.constant dense<0.000000e+00> : vector<8xf32>
    %584 = vector.multi_reduction <add>, %583, %cst_190 [1] : vector<8x32xf32> to vector<8xf32>
    %585 = vector.shape_cast %584 : vector<8xf32> to vector<8x1xf32>
    %cst_191 = arith.constant 3.200000e+01 : f32
    %586 = vector.broadcast %cst_191 : f32 to vector<8x1xf32>
    %587 = arith.divf %585, %586 : vector<8x1xf32>
    %588 = vector.broadcast %580 : vector<8x1xf32> to vector<8x32xf32>
    %589 = arith.subf %574, %588 : vector<8x32xf32>
    %cst_192 = arith.constant 9.99999974E-6 : f32
    %590 = vector.broadcast %cst_192 : f32 to vector<8x1xf32>
    %591 = arith.addf %587, %590 : vector<8x1xf32>
    %592 = math.rsqrt %591 : vector<8x1xf32>
    %593 = vector.broadcast %592 : vector<8x1xf32> to vector<8x32xf32>
    %594 = arith.mulf %589, %593 : vector<8x32xf32>
    %595 = vector.broadcast %575 : vector<1x32xf32> to vector<8x32xf32>
    %596 = arith.mulf %594, %595 : vector<8x32xf32>
    %597 = vector.broadcast %576 : vector<1x32xf32> to vector<8x32xf32>
    %598 = arith.addf %596, %597 : vector<8x32xf32>
    %c1_193 = arith.constant 1 : index
    %c0_194 = arith.constant 0 : index
    %c0_195 = arith.constant 0 : index
    %599 = vector.load %arg10[%c1_193, %c0_194, %c0_195] : memref<4x32x32xbf16, #tpu.memory_space<vmem>>, vector<1x32x32xbf16>
    %600 = vector.shape_cast %599 : vector<1x32x32xbf16> to vector<32x32xbf16>
    %601 = vector.extract_strided_slice %383 {offsets = [10, 0], sizes = [1, 32], strides = [1, 1]} : vector<22x128xf32> to vector<1x32xf32>
    %602 = arith.truncf %598 : vector<8x32xf32> to vector<8x32xbf16>
    %cst_196 = arith.constant dense<0.000000e+00> : vector<8x32xf32>
    %603 = tpu.matmul %602, %600, %cst_196 {dimension_numbers = #tpu.dot_dimension_numbers<[1], [0], [0], [1], [0, 0, 1, 1], [], []>} : vector<8x32xbf16>, vector<32x32xbf16>, vector<8x32xf32> -> vector<8x32xf32>
    %604 = vector.broadcast %601 : vector<1x32xf32> to vector<8x32xf32>
    %605 = arith.addf %603, %604 : vector<8x32xf32>
    %c1_197 = arith.constant 1 : index
    %c0_198 = arith.constant 0 : index
    %c0_199 = arith.constant 0 : index
    %606 = vector.load %arg11[%c1_197, %c0_198, %c0_199] : memref<4x32x32xbf16, #tpu.memory_space<vmem>>, vector<1x32x32xbf16>
    %607 = vector.shape_cast %606 : vector<1x32x32xbf16> to vector<32x32xbf16>
    %608 = vector.extract_strided_slice %383 {offsets = [11, 0], sizes = [1, 32], strides = [1, 1]} : vector<22x128xf32> to vector<1x32xf32>
    %609 = arith.truncf %598 : vector<8x32xf32> to vector<8x32xbf16>
    %cst_200 = arith.constant dense<0.000000e+00> : vector<8x32xf32>
    %610 = tpu.matmul %609, %607, %cst_200 {dimension_numbers = #tpu.dot_dimension_numbers<[1], [0], [0], [1], [0, 0, 1, 1], [], []>} : vector<8x32xbf16>, vector<32x32xbf16>, vector<8x32xf32> -> vector<8x32xf32>
    %611 = vector.broadcast %608 : vector<1x32xf32> to vector<8x32xf32>
    %612 = arith.addf %610, %611 : vector<8x32xf32>
    %613 = arith.negf %612 : vector<8x32xf32>
    %614 = math.exp %613 : vector<8x32xf32>
    %cst_201 = arith.constant 1.000000e+00 : f32
    %615 = vector.broadcast %cst_201 : f32 to vector<8x32xf32>
    %616 = arith.addf %615, %614 : vector<8x32xf32>
    %617 = arith.divf %615, %616 : vector<8x32xf32>
    %618 = arith.mulf %605, %617 : vector<8x32xf32>
    %619 = vector.extract_strided_slice %383 {offsets = [20, 0], sizes = [1, 32], strides = [1, 1]} : vector<22x128xf32> to vector<1x32xf32>
    %620 = vector.broadcast %619 : vector<1x32xf32> to vector<8x32xf32>
    %621 = arith.mulf %618, %620 : vector<8x32xf32>
    %cst_202 = arith.constant dense<0.000000e+00> : vector<8x32xf32>
    %622 = tpu.matmul %41, %618, %cst_202 {dimension_numbers = #tpu.dot_dimension_numbers<[1], [0], [0], [1], [0, 0, 1, 1], [], []>} : vector<8x8xf32>, vector<8x32xf32>, vector<8x32xf32> -> vector<8x32xf32>
    %623 = vector.extract_strided_slice %383 {offsets = [19, 0], sizes = [1, 32], strides = [1, 1]} : vector<22x128xf32> to vector<1x32xf32>
    %624 = vector.broadcast %623 : vector<1x32xf32> to vector<8x32xf32>
    %625 = arith.mulf %622, %624 : vector<8x32xf32>
    %626 = arith.addf %621, %625 : vector<8x32xf32>
    %cst_203 = arith.constant dense<0.000000e+00> : vector<8x32xf32>
    %627 = tpu.matmul %46, %618, %cst_203 {dimension_numbers = #tpu.dot_dimension_numbers<[1], [0], [0], [1], [0, 0, 1, 1], [], []>} : vector<8x8xf32>, vector<8x32xf32>, vector<8x32xf32> -> vector<8x32xf32>
    %628 = vector.extract_strided_slice %383 {offsets = [21, 0], sizes = [1, 32], strides = [1, 1]} : vector<22x128xf32> to vector<1x32xf32>
    %629 = vector.broadcast %628 : vector<1x32xf32> to vector<8x32xf32>
    %630 = arith.mulf %627, %629 : vector<8x32xf32>
    %631 = arith.addf %626, %630 : vector<8x32xf32>
    %632 = arith.negf %631 : vector<8x32xf32>
    %633 = math.exp %632 : vector<8x32xf32>
    %cst_204 = arith.constant 1.000000e+00 : f32
    %634 = vector.broadcast %cst_204 : f32 to vector<8x32xf32>
    %635 = arith.addf %634, %633 : vector<8x32xf32>
    %636 = arith.divf %634, %635 : vector<8x32xf32>
    %637 = arith.mulf %631, %636 : vector<8x32xf32>
    %c1_205 = arith.constant 1 : index
    %c0_206 = arith.constant 0 : index
    %c0_207 = arith.constant 0 : index
    %638 = vector.load %arg12[%c1_205, %c0_206, %c0_207] : memref<4x32x32xbf16, #tpu.memory_space<vmem>>, vector<1x32x32xbf16>
    %639 = vector.shape_cast %638 : vector<1x32x32xbf16> to vector<32x32xbf16>
    %640 = vector.extract_strided_slice %383 {offsets = [12, 0], sizes = [1, 32], strides = [1, 1]} : vector<22x128xf32> to vector<1x32xf32>
    %641 = arith.truncf %637 : vector<8x32xf32> to vector<8x32xbf16>
    %cst_208 = arith.constant dense<0.000000e+00> : vector<8x32xf32>
    %642 = tpu.matmul %641, %639, %cst_208 {dimension_numbers = #tpu.dot_dimension_numbers<[1], [0], [0], [1], [0, 0, 1, 1], [], []>} : vector<8x32xbf16>, vector<32x32xbf16>, vector<8x32xf32> -> vector<8x32xf32>
    %643 = vector.broadcast %640 : vector<1x32xf32> to vector<8x32xf32>
    %644 = arith.addf %642, %643 : vector<8x32xf32>
    %645 = arith.addf %574, %644 : vector<8x32xf32>
    %646 = vector.extract_strided_slice %383 {offsets = [13, 0], sizes = [1, 32], strides = [1, 1]} : vector<22x128xf32> to vector<1x32xf32>
    %647 = vector.extract_strided_slice %383 {offsets = [14, 0], sizes = [1, 32], strides = [1, 1]} : vector<22x128xf32> to vector<1x32xf32>
    %cst_209 = arith.constant dense<0.000000e+00> : vector<8xf32>
    %648 = vector.multi_reduction <add>, %645, %cst_209 [1] : vector<8x32xf32> to vector<8xf32>
    %649 = vector.shape_cast %648 : vector<8xf32> to vector<8x1xf32>
    %cst_210 = arith.constant 3.200000e+01 : f32
    %650 = vector.broadcast %cst_210 : f32 to vector<8x1xf32>
    %651 = arith.divf %649, %650 : vector<8x1xf32>
    %652 = vector.broadcast %651 : vector<8x1xf32> to vector<8x32xf32>
    %653 = arith.subf %645, %652 : vector<8x32xf32>
    %654 = arith.mulf %653, %653 : vector<8x32xf32>
    %cst_211 = arith.constant dense<0.000000e+00> : vector<8xf32>
    %655 = vector.multi_reduction <add>, %654, %cst_211 [1] : vector<8x32xf32> to vector<8xf32>
    %656 = vector.shape_cast %655 : vector<8xf32> to vector<8x1xf32>
    %cst_212 = arith.constant 3.200000e+01 : f32
    %657 = vector.broadcast %cst_212 : f32 to vector<8x1xf32>
    %658 = arith.divf %656, %657 : vector<8x1xf32>
    %659 = vector.broadcast %651 : vector<8x1xf32> to vector<8x32xf32>
    %660 = arith.subf %645, %659 : vector<8x32xf32>
    %cst_213 = arith.constant 9.99999974E-6 : f32
    %661 = vector.broadcast %cst_213 : f32 to vector<8x1xf32>
    %662 = arith.addf %658, %661 : vector<8x1xf32>
    %663 = math.rsqrt %662 : vector<8x1xf32>
    %664 = vector.broadcast %663 : vector<8x1xf32> to vector<8x32xf32>
    %665 = arith.mulf %660, %664 : vector<8x32xf32>
    %666 = vector.broadcast %646 : vector<1x32xf32> to vector<8x32xf32>
    %667 = arith.mulf %665, %666 : vector<8x32xf32>
    %668 = vector.broadcast %647 : vector<1x32xf32> to vector<8x32xf32>
    %669 = arith.addf %667, %668 : vector<8x32xf32>
    %c1_214 = arith.constant 1 : index
    %c0_215 = arith.constant 0 : index
    %c0_216 = arith.constant 0 : index
    %670 = vector.load %arg13[%c1_214, %c0_215, %c0_216] : memref<4x32x64xbf16, #tpu.memory_space<vmem>>, vector<1x32x64xbf16>
    %671 = vector.shape_cast %670 : vector<1x32x64xbf16> to vector<32x64xbf16>
    %672 = vector.extract_strided_slice %383 {offsets = [15, 0], sizes = [1, 64], strides = [1, 1]} : vector<22x128xf32> to vector<1x64xf32>
    %673 = arith.truncf %669 : vector<8x32xf32> to vector<8x32xbf16>
    %cst_217 = arith.constant dense<0.000000e+00> : vector<8x64xf32>
    %674 = tpu.matmul %673, %671, %cst_217 {dimension_numbers = #tpu.dot_dimension_numbers<[1], [0], [0], [1], [0, 0, 1, 1], [], []>} : vector<8x32xbf16>, vector<32x64xbf16>, vector<8x64xf32> -> vector<8x64xf32>
    %675 = vector.broadcast %672 : vector<1x64xf32> to vector<8x64xf32>
    %676 = arith.addf %674, %675 : vector<8x64xf32>
    %677 = arith.negf %676 : vector<8x64xf32>
    %678 = math.exp %677 : vector<8x64xf32>
    %cst_218 = arith.constant 1.000000e+00 : f32
    %679 = vector.broadcast %cst_218 : f32 to vector<8x64xf32>
    %680 = arith.addf %679, %678 : vector<8x64xf32>
    %681 = arith.divf %679, %680 : vector<8x64xf32>
    %682 = arith.mulf %676, %681 : vector<8x64xf32>
    %c1_219 = arith.constant 1 : index
    %c0_220 = arith.constant 0 : index
    %c0_221 = arith.constant 0 : index
    %683 = vector.load %arg14[%c1_219, %c0_220, %c0_221] : memref<4x64x32xbf16, #tpu.memory_space<vmem>>, vector<1x64x32xbf16>
    %684 = vector.shape_cast %683 : vector<1x64x32xbf16> to vector<64x32xbf16>
    %685 = vector.extract_strided_slice %383 {offsets = [16, 0], sizes = [1, 32], strides = [1, 1]} : vector<22x128xf32> to vector<1x32xf32>
    %686 = arith.truncf %682 : vector<8x64xf32> to vector<8x64xbf16>
    %cst_222 = arith.constant dense<0.000000e+00> : vector<8x32xf32>
    %687 = tpu.matmul %686, %684, %cst_222 {dimension_numbers = #tpu.dot_dimension_numbers<[1], [0], [0], [1], [0, 0, 1, 1], [], []>} : vector<8x64xbf16>, vector<64x32xbf16>, vector<8x32xf32> -> vector<8x32xf32>
    %688 = vector.broadcast %685 : vector<1x32xf32> to vector<8x32xf32>
    %689 = arith.addf %687, %688 : vector<8x32xf32>
    %cst_223 = arith.constant 5.000000e-01 : f32
    %690 = vector.broadcast %cst_223 : f32 to vector<8x32xf32>
    %691 = arith.mulf %690, %689 : vector<8x32xf32>
    %692 = arith.addf %645, %691 : vector<8x32xf32>
    %693 = vector.extract_strided_slice %383 {offsets = [17, 0], sizes = [1, 32], strides = [1, 1]} : vector<22x128xf32> to vector<1x32xf32>
    %694 = vector.extract_strided_slice %383 {offsets = [18, 0], sizes = [1, 32], strides = [1, 1]} : vector<22x128xf32> to vector<1x32xf32>
    %cst_224 = arith.constant dense<0.000000e+00> : vector<8xf32>
    %695 = vector.multi_reduction <add>, %692, %cst_224 [1] : vector<8x32xf32> to vector<8xf32>
    %696 = vector.shape_cast %695 : vector<8xf32> to vector<8x1xf32>
    %cst_225 = arith.constant 3.200000e+01 : f32
    %697 = vector.broadcast %cst_225 : f32 to vector<8x1xf32>
    %698 = arith.divf %696, %697 : vector<8x1xf32>
    %699 = vector.broadcast %698 : vector<8x1xf32> to vector<8x32xf32>
    %700 = arith.subf %692, %699 : vector<8x32xf32>
    %701 = arith.mulf %700, %700 : vector<8x32xf32>
    %cst_226 = arith.constant dense<0.000000e+00> : vector<8xf32>
    %702 = vector.multi_reduction <add>, %701, %cst_226 [1] : vector<8x32xf32> to vector<8xf32>
    %703 = vector.shape_cast %702 : vector<8xf32> to vector<8x1xf32>
    %cst_227 = arith.constant 3.200000e+01 : f32
    %704 = vector.broadcast %cst_227 : f32 to vector<8x1xf32>
    %705 = arith.divf %703, %704 : vector<8x1xf32>
    %706 = vector.broadcast %698 : vector<8x1xf32> to vector<8x32xf32>
    %707 = arith.subf %692, %706 : vector<8x32xf32>
    %cst_228 = arith.constant 9.99999974E-6 : f32
    %708 = vector.broadcast %cst_228 : f32 to vector<8x1xf32>
    %709 = arith.addf %705, %708 : vector<8x1xf32>
    %710 = math.rsqrt %709 : vector<8x1xf32>
    %711 = vector.broadcast %710 : vector<8x1xf32> to vector<8x32xf32>
    %712 = arith.mulf %707, %711 : vector<8x32xf32>
    %713 = vector.broadcast %693 : vector<1x32xf32> to vector<8x32xf32>
    %714 = arith.mulf %712, %713 : vector<8x32xf32>
    %715 = vector.broadcast %694 : vector<1x32xf32> to vector<8x32xf32>
    %716 = arith.addf %714, %715 : vector<8x32xf32>
    %c2_229 = arith.constant 2 : index
    %c0_230 = arith.constant 0 : index
    %c0_231 = arith.constant 0 : index
    %717 = vector.load %arg5[%c2_229, %c0_230, %c0_231] : memref<4x22x128xf32, #tpu.memory_space<vmem>>, vector<1x22x128xf32>
    %718 = vector.shape_cast %717 : vector<1x22x128xf32> to vector<22x128xf32>
    %719 = vector.extract_strided_slice %718 {offsets = [0, 0], sizes = [1, 32], strides = [1, 1]} : vector<22x128xf32> to vector<1x32xf32>
    %720 = vector.extract_strided_slice %718 {offsets = [1, 0], sizes = [1, 32], strides = [1, 1]} : vector<22x128xf32> to vector<1x32xf32>
    %cst_232 = arith.constant dense<0.000000e+00> : vector<8xf32>
    %721 = vector.multi_reduction <add>, %716, %cst_232 [1] : vector<8x32xf32> to vector<8xf32>
    %722 = vector.shape_cast %721 : vector<8xf32> to vector<8x1xf32>
    %cst_233 = arith.constant 3.200000e+01 : f32
    %723 = vector.broadcast %cst_233 : f32 to vector<8x1xf32>
    %724 = arith.divf %722, %723 : vector<8x1xf32>
    %725 = vector.broadcast %724 : vector<8x1xf32> to vector<8x32xf32>
    %726 = arith.subf %716, %725 : vector<8x32xf32>
    %727 = arith.mulf %726, %726 : vector<8x32xf32>
    %cst_234 = arith.constant dense<0.000000e+00> : vector<8xf32>
    %728 = vector.multi_reduction <add>, %727, %cst_234 [1] : vector<8x32xf32> to vector<8xf32>
    %729 = vector.shape_cast %728 : vector<8xf32> to vector<8x1xf32>
    %cst_235 = arith.constant 3.200000e+01 : f32
    %730 = vector.broadcast %cst_235 : f32 to vector<8x1xf32>
    %731 = arith.divf %729, %730 : vector<8x1xf32>
    %732 = vector.broadcast %724 : vector<8x1xf32> to vector<8x32xf32>
    %733 = arith.subf %716, %732 : vector<8x32xf32>
    %cst_236 = arith.constant 9.99999974E-6 : f32
    %734 = vector.broadcast %cst_236 : f32 to vector<8x1xf32>
    %735 = arith.addf %731, %734 : vector<8x1xf32>
    %736 = math.rsqrt %735 : vector<8x1xf32>
    %737 = vector.broadcast %736 : vector<8x1xf32> to vector<8x32xf32>
    %738 = arith.mulf %733, %737 : vector<8x32xf32>
    %739 = vector.broadcast %719 : vector<1x32xf32> to vector<8x32xf32>
    %740 = arith.mulf %738, %739 : vector<8x32xf32>
    %741 = vector.broadcast %720 : vector<1x32xf32> to vector<8x32xf32>
    %742 = arith.addf %740, %741 : vector<8x32xf32>
    %c2_237 = arith.constant 2 : index
    %c0_238 = arith.constant 0 : index
    %c0_239 = arith.constant 0 : index
    %743 = vector.load %arg6[%c2_237, %c0_238, %c0_239] : memref<4x32x64xbf16, #tpu.memory_space<vmem>>, vector<1x32x64xbf16>
    %744 = vector.shape_cast %743 : vector<1x32x64xbf16> to vector<32x64xbf16>
    %745 = vector.extract_strided_slice %718 {offsets = [2, 0], sizes = [1, 64], strides = [1, 1]} : vector<22x128xf32> to vector<1x64xf32>
    %746 = arith.truncf %742 : vector<8x32xf32> to vector<8x32xbf16>
    %cst_240 = arith.constant dense<0.000000e+00> : vector<8x64xf32>
    %747 = tpu.matmul %746, %744, %cst_240 {dimension_numbers = #tpu.dot_dimension_numbers<[1], [0], [0], [1], [0, 0, 1, 1], [], []>} : vector<8x32xbf16>, vector<32x64xbf16>, vector<8x64xf32> -> vector<8x64xf32>
    %748 = vector.broadcast %745 : vector<1x64xf32> to vector<8x64xf32>
    %749 = arith.addf %747, %748 : vector<8x64xf32>
    %750 = arith.negf %749 : vector<8x64xf32>
    %751 = math.exp %750 : vector<8x64xf32>
    %cst_241 = arith.constant 1.000000e+00 : f32
    %752 = vector.broadcast %cst_241 : f32 to vector<8x64xf32>
    %753 = arith.addf %752, %751 : vector<8x64xf32>
    %754 = arith.divf %752, %753 : vector<8x64xf32>
    %755 = arith.mulf %749, %754 : vector<8x64xf32>
    %c2_242 = arith.constant 2 : index
    %c0_243 = arith.constant 0 : index
    %c0_244 = arith.constant 0 : index
    %756 = vector.load %arg7[%c2_242, %c0_243, %c0_244] : memref<4x64x32xbf16, #tpu.memory_space<vmem>>, vector<1x64x32xbf16>
    %757 = vector.shape_cast %756 : vector<1x64x32xbf16> to vector<64x32xbf16>
    %758 = vector.extract_strided_slice %718 {offsets = [3, 0], sizes = [1, 32], strides = [1, 1]} : vector<22x128xf32> to vector<1x32xf32>
    %759 = arith.truncf %755 : vector<8x64xf32> to vector<8x64xbf16>
    %cst_245 = arith.constant dense<0.000000e+00> : vector<8x32xf32>
    %760 = tpu.matmul %759, %757, %cst_245 {dimension_numbers = #tpu.dot_dimension_numbers<[1], [0], [0], [1], [0, 0, 1, 1], [], []>} : vector<8x64xbf16>, vector<64x32xbf16>, vector<8x32xf32> -> vector<8x32xf32>
    %761 = vector.broadcast %758 : vector<1x32xf32> to vector<8x32xf32>
    %762 = arith.addf %760, %761 : vector<8x32xf32>
    %cst_246 = arith.constant 5.000000e-01 : f32
    %763 = vector.broadcast %cst_246 : f32 to vector<8x32xf32>
    %764 = arith.mulf %763, %762 : vector<8x32xf32>
    %765 = arith.addf %716, %764 : vector<8x32xf32>
    %766 = vector.extract_strided_slice %718 {offsets = [4, 0], sizes = [1, 32], strides = [1, 1]} : vector<22x128xf32> to vector<1x32xf32>
    %767 = vector.extract_strided_slice %718 {offsets = [5, 0], sizes = [1, 32], strides = [1, 1]} : vector<22x128xf32> to vector<1x32xf32>
    %cst_247 = arith.constant dense<0.000000e+00> : vector<8xf32>
    %768 = vector.multi_reduction <add>, %765, %cst_247 [1] : vector<8x32xf32> to vector<8xf32>
    %769 = vector.shape_cast %768 : vector<8xf32> to vector<8x1xf32>
    %cst_248 = arith.constant 3.200000e+01 : f32
    %770 = vector.broadcast %cst_248 : f32 to vector<8x1xf32>
    %771 = arith.divf %769, %770 : vector<8x1xf32>
    %772 = vector.broadcast %771 : vector<8x1xf32> to vector<8x32xf32>
    %773 = arith.subf %765, %772 : vector<8x32xf32>
    %774 = arith.mulf %773, %773 : vector<8x32xf32>
    %cst_249 = arith.constant dense<0.000000e+00> : vector<8xf32>
    %775 = vector.multi_reduction <add>, %774, %cst_249 [1] : vector<8x32xf32> to vector<8xf32>
    %776 = vector.shape_cast %775 : vector<8xf32> to vector<8x1xf32>
    %cst_250 = arith.constant 3.200000e+01 : f32
    %777 = vector.broadcast %cst_250 : f32 to vector<8x1xf32>
    %778 = arith.divf %776, %777 : vector<8x1xf32>
    %779 = vector.broadcast %771 : vector<8x1xf32> to vector<8x32xf32>
    %780 = arith.subf %765, %779 : vector<8x32xf32>
    %cst_251 = arith.constant 9.99999974E-6 : f32
    %781 = vector.broadcast %cst_251 : f32 to vector<8x1xf32>
    %782 = arith.addf %778, %781 : vector<8x1xf32>
    %783 = math.rsqrt %782 : vector<8x1xf32>
    %784 = vector.broadcast %783 : vector<8x1xf32> to vector<8x32xf32>
    %785 = arith.mulf %780, %784 : vector<8x32xf32>
    %786 = vector.broadcast %766 : vector<1x32xf32> to vector<8x32xf32>
    %787 = arith.mulf %785, %786 : vector<8x32xf32>
    %788 = vector.broadcast %767 : vector<1x32xf32> to vector<8x32xf32>
    %789 = arith.addf %787, %788 : vector<8x32xf32>
    %c2_252 = arith.constant 2 : index
    %c0_253 = arith.constant 0 : index
    %c0_254 = arith.constant 0 : index
    %790 = vector.load %arg8[%c2_252, %c0_253, %c0_254] : memref<4x32x96xbf16, #tpu.memory_space<vmem>>, vector<1x32x96xbf16>
    %791 = vector.shape_cast %790 : vector<1x32x96xbf16> to vector<32x96xbf16>
    %792 = vector.extract_strided_slice %718 {offsets = [6, 0], sizes = [1, 96], strides = [1, 1]} : vector<22x128xf32> to vector<1x96xf32>
    %793 = arith.truncf %789 : vector<8x32xf32> to vector<8x32xbf16>
    %cst_255 = arith.constant dense<0.000000e+00> : vector<8x96xf32>
    %794 = tpu.matmul %793, %791, %cst_255 {dimension_numbers = #tpu.dot_dimension_numbers<[1], [0], [0], [1], [0, 0, 1, 1], [], []>} : vector<8x32xbf16>, vector<32x96xbf16>, vector<8x96xf32> -> vector<8x96xf32>
    %795 = vector.broadcast %792 : vector<1x96xf32> to vector<8x96xf32>
    %796 = arith.addf %794, %795 : vector<8x96xf32>
    %cst_256 = arith.constant 0.000000e+00 : f32
    %797 = vector.broadcast %cst_256 : f32 to vector<8x32xf32>
    %798 = vector.extract_strided_slice %796 {offsets = [0, 0], sizes = [8, 8], strides = [1, 1]} : vector<8x96xf32> to vector<8x8xf32>
    %799 = arith.truncf %798 : vector<8x8xf32> to vector<8x8xbf16>
    %800 = vector.extract_strided_slice %796 {offsets = [0, 32], sizes = [8, 8], strides = [1, 1]} : vector<8x96xf32> to vector<8x8xf32>
    %801 = arith.truncf %800 : vector<8x8xf32> to vector<8x8xbf16>
    %802 = vector.extract_strided_slice %796 {offsets = [0, 64], sizes = [8, 8], strides = [1, 1]} : vector<8x96xf32> to vector<8x8xf32>
    %803 = arith.truncf %802 : vector<8x8xf32> to vector<8x8xbf16>
    %cst_257 = arith.constant dense<0.000000e+00> : vector<8x8xf32>
    %804 = tpu.matmul %799, %801, %cst_257 {dimension_numbers = #tpu.dot_dimension_numbers<[1], [1], [0], [0], [0, 0, 1, 0], [], []>} : vector<8x8xbf16>, vector<8x8xbf16>, vector<8x8xf32> -> vector<8x8xf32>
    %cst_258 = arith.constant 0.353553385 : f32
    %805 = vector.broadcast %cst_258 : f32 to vector<8x8xf32>
    %806 = arith.mulf %804, %805 : vector<8x8xf32>
    %807 = arith.addf %806, %34 : vector<8x8xf32>
    %cst_259 = arith.constant dense<0xFF800000> : vector<8xf32>
    %808 = vector.multi_reduction <maximumf>, %807, %cst_259 [1] : vector<8x8xf32> to vector<8xf32>
    %809 = vector.shape_cast %808 : vector<8xf32> to vector<8x1xf32>
    %810 = vector.broadcast %809 : vector<8x1xf32> to vector<8x8xf32>
    %811 = arith.subf %807, %810 : vector<8x8xf32>
    %812 = math.exp %811 : vector<8x8xf32>
    %cst_260 = arith.constant dense<0.000000e+00> : vector<8xf32>
    %813 = vector.multi_reduction <add>, %812, %cst_260 [1] : vector<8x8xf32> to vector<8xf32>
    %814 = vector.shape_cast %813 : vector<8xf32> to vector<8x1xf32>
    %815 = tpu.reciprocal %814 {approx = true} : vector<8x1xf32> -> vector<8x1xf32>
    %816 = vector.broadcast %815 : vector<8x1xf32> to vector<8x8xf32>
    %817 = arith.mulf %812, %816 : vector<8x8xf32>
    %818 = arith.truncf %817 : vector<8x8xf32> to vector<8x8xbf16>
    %cst_261 = arith.constant dense<0.000000e+00> : vector<8x8xf32>
    %819 = tpu.matmul %818, %803, %cst_261 {dimension_numbers = #tpu.dot_dimension_numbers<[1], [0], [0], [1], [0, 0, 1, 1], [], []>} : vector<8x8xbf16>, vector<8x8xbf16>, vector<8x8xf32> -> vector<8x8xf32>
    %820 = arith.truncf %819 : vector<8x8xf32> to vector<8x8xbf16>
    %c2_262 = arith.constant 2 : index
    %c0_263 = arith.constant 0 : index
    %c0_264 = arith.constant 0 : index
    %c0_265 = arith.constant 0 : index
    %821 = vector.load %arg9[%c2_262, %c0_263, %c0_264, %c0_265] : memref<4x4x8x32xbf16, #tpu.memory_space<vmem>>, vector<1x1x8x32xbf16>
    %822 = vector.shape_cast %821 : vector<1x1x8x32xbf16> to vector<8x32xbf16>
    %cst_266 = arith.constant dense<0.000000e+00> : vector<8x32xf32>
    %823 = tpu.matmul %820, %822, %cst_266 {dimension_numbers = #tpu.dot_dimension_numbers<[1], [0], [0], [1], [0, 0, 1, 1], [], []>} : vector<8x8xbf16>, vector<8x32xbf16>, vector<8x32xf32> -> vector<8x32xf32>
    %824 = arith.addf %797, %823 : vector<8x32xf32>
    %825 = vector.extract_strided_slice %796 {offsets = [0, 8], sizes = [8, 8], strides = [1, 1]} : vector<8x96xf32> to vector<8x8xf32>
    %826 = arith.truncf %825 : vector<8x8xf32> to vector<8x8xbf16>
    %827 = vector.extract_strided_slice %796 {offsets = [0, 40], sizes = [8, 8], strides = [1, 1]} : vector<8x96xf32> to vector<8x8xf32>
    %828 = arith.truncf %827 : vector<8x8xf32> to vector<8x8xbf16>
    %829 = vector.extract_strided_slice %796 {offsets = [0, 72], sizes = [8, 8], strides = [1, 1]} : vector<8x96xf32> to vector<8x8xf32>
    %830 = arith.truncf %829 : vector<8x8xf32> to vector<8x8xbf16>
    %cst_267 = arith.constant dense<0.000000e+00> : vector<8x8xf32>
    %831 = tpu.matmul %826, %828, %cst_267 {dimension_numbers = #tpu.dot_dimension_numbers<[1], [1], [0], [0], [0, 0, 1, 0], [], []>} : vector<8x8xbf16>, vector<8x8xbf16>, vector<8x8xf32> -> vector<8x8xf32>
    %cst_268 = arith.constant 0.353553385 : f32
    %832 = vector.broadcast %cst_268 : f32 to vector<8x8xf32>
    %833 = arith.mulf %831, %832 : vector<8x8xf32>
    %834 = arith.addf %833, %34 : vector<8x8xf32>
    %cst_269 = arith.constant dense<0xFF800000> : vector<8xf32>
    %835 = vector.multi_reduction <maximumf>, %834, %cst_269 [1] : vector<8x8xf32> to vector<8xf32>
    %836 = vector.shape_cast %835 : vector<8xf32> to vector<8x1xf32>
    %837 = vector.broadcast %836 : vector<8x1xf32> to vector<8x8xf32>
    %838 = arith.subf %834, %837 : vector<8x8xf32>
    %839 = math.exp %838 : vector<8x8xf32>
    %cst_270 = arith.constant dense<0.000000e+00> : vector<8xf32>
    %840 = vector.multi_reduction <add>, %839, %cst_270 [1] : vector<8x8xf32> to vector<8xf32>
    %841 = vector.shape_cast %840 : vector<8xf32> to vector<8x1xf32>
    %842 = tpu.reciprocal %841 {approx = true} : vector<8x1xf32> -> vector<8x1xf32>
    %843 = vector.broadcast %842 : vector<8x1xf32> to vector<8x8xf32>
    %844 = arith.mulf %839, %843 : vector<8x8xf32>
    %845 = arith.truncf %844 : vector<8x8xf32> to vector<8x8xbf16>
    %cst_271 = arith.constant dense<0.000000e+00> : vector<8x8xf32>
    %846 = tpu.matmul %845, %830, %cst_271 {dimension_numbers = #tpu.dot_dimension_numbers<[1], [0], [0], [1], [0, 0, 1, 1], [], []>} : vector<8x8xbf16>, vector<8x8xbf16>, vector<8x8xf32> -> vector<8x8xf32>
    %847 = arith.truncf %846 : vector<8x8xf32> to vector<8x8xbf16>
    %c2_272 = arith.constant 2 : index
    %c1_273 = arith.constant 1 : index
    %c0_274 = arith.constant 0 : index
    %c0_275 = arith.constant 0 : index
    %848 = vector.load %arg9[%c2_272, %c1_273, %c0_274, %c0_275] : memref<4x4x8x32xbf16, #tpu.memory_space<vmem>>, vector<1x1x8x32xbf16>
    %849 = vector.shape_cast %848 : vector<1x1x8x32xbf16> to vector<8x32xbf16>
    %cst_276 = arith.constant dense<0.000000e+00> : vector<8x32xf32>
    %850 = tpu.matmul %847, %849, %cst_276 {dimension_numbers = #tpu.dot_dimension_numbers<[1], [0], [0], [1], [0, 0, 1, 1], [], []>} : vector<8x8xbf16>, vector<8x32xbf16>, vector<8x32xf32> -> vector<8x32xf32>
    %851 = arith.addf %824, %850 : vector<8x32xf32>
    %852 = vector.extract_strided_slice %796 {offsets = [0, 16], sizes = [8, 8], strides = [1, 1]} : vector<8x96xf32> to vector<8x8xf32>
    %853 = arith.truncf %852 : vector<8x8xf32> to vector<8x8xbf16>
    %854 = vector.extract_strided_slice %796 {offsets = [0, 48], sizes = [8, 8], strides = [1, 1]} : vector<8x96xf32> to vector<8x8xf32>
    %855 = arith.truncf %854 : vector<8x8xf32> to vector<8x8xbf16>
    %856 = vector.extract_strided_slice %796 {offsets = [0, 80], sizes = [8, 8], strides = [1, 1]} : vector<8x96xf32> to vector<8x8xf32>
    %857 = arith.truncf %856 : vector<8x8xf32> to vector<8x8xbf16>
    %cst_277 = arith.constant dense<0.000000e+00> : vector<8x8xf32>
    %858 = tpu.matmul %853, %855, %cst_277 {dimension_numbers = #tpu.dot_dimension_numbers<[1], [1], [0], [0], [0, 0, 1, 0], [], []>} : vector<8x8xbf16>, vector<8x8xbf16>, vector<8x8xf32> -> vector<8x8xf32>
    %cst_278 = arith.constant 0.353553385 : f32
    %859 = vector.broadcast %cst_278 : f32 to vector<8x8xf32>
    %860 = arith.mulf %858, %859 : vector<8x8xf32>
    %861 = arith.addf %860, %34 : vector<8x8xf32>
    %cst_279 = arith.constant dense<0xFF800000> : vector<8xf32>
    %862 = vector.multi_reduction <maximumf>, %861, %cst_279 [1] : vector<8x8xf32> to vector<8xf32>
    %863 = vector.shape_cast %862 : vector<8xf32> to vector<8x1xf32>
    %864 = vector.broadcast %863 : vector<8x1xf32> to vector<8x8xf32>
    %865 = arith.subf %861, %864 : vector<8x8xf32>
    %866 = math.exp %865 : vector<8x8xf32>
    %cst_280 = arith.constant dense<0.000000e+00> : vector<8xf32>
    %867 = vector.multi_reduction <add>, %866, %cst_280 [1] : vector<8x8xf32> to vector<8xf32>
    %868 = vector.shape_cast %867 : vector<8xf32> to vector<8x1xf32>
    %869 = tpu.reciprocal %868 {approx = true} : vector<8x1xf32> -> vector<8x1xf32>
    %870 = vector.broadcast %869 : vector<8x1xf32> to vector<8x8xf32>
    %871 = arith.mulf %866, %870 : vector<8x8xf32>
    %872 = arith.truncf %871 : vector<8x8xf32> to vector<8x8xbf16>
    %cst_281 = arith.constant dense<0.000000e+00> : vector<8x8xf32>
    %873 = tpu.matmul %872, %857, %cst_281 {dimension_numbers = #tpu.dot_dimension_numbers<[1], [0], [0], [1], [0, 0, 1, 1], [], []>} : vector<8x8xbf16>, vector<8x8xbf16>, vector<8x8xf32> -> vector<8x8xf32>
    %874 = arith.truncf %873 : vector<8x8xf32> to vector<8x8xbf16>
    %c2_282 = arith.constant 2 : index
    %c2_283 = arith.constant 2 : index
    %c0_284 = arith.constant 0 : index
    %c0_285 = arith.constant 0 : index
    %875 = vector.load %arg9[%c2_282, %c2_283, %c0_284, %c0_285] : memref<4x4x8x32xbf16, #tpu.memory_space<vmem>>, vector<1x1x8x32xbf16>
    %876 = vector.shape_cast %875 : vector<1x1x8x32xbf16> to vector<8x32xbf16>
    %cst_286 = arith.constant dense<0.000000e+00> : vector<8x32xf32>
    %877 = tpu.matmul %874, %876, %cst_286 {dimension_numbers = #tpu.dot_dimension_numbers<[1], [0], [0], [1], [0, 0, 1, 1], [], []>} : vector<8x8xbf16>, vector<8x32xbf16>, vector<8x32xf32> -> vector<8x32xf32>
    %878 = arith.addf %851, %877 : vector<8x32xf32>
    %879 = vector.extract_strided_slice %796 {offsets = [0, 24], sizes = [8, 8], strides = [1, 1]} : vector<8x96xf32> to vector<8x8xf32>
    %880 = arith.truncf %879 : vector<8x8xf32> to vector<8x8xbf16>
    %881 = vector.extract_strided_slice %796 {offsets = [0, 56], sizes = [8, 8], strides = [1, 1]} : vector<8x96xf32> to vector<8x8xf32>
    %882 = arith.truncf %881 : vector<8x8xf32> to vector<8x8xbf16>
    %883 = vector.extract_strided_slice %796 {offsets = [0, 88], sizes = [8, 8], strides = [1, 1]} : vector<8x96xf32> to vector<8x8xf32>
    %884 = arith.truncf %883 : vector<8x8xf32> to vector<8x8xbf16>
    %cst_287 = arith.constant dense<0.000000e+00> : vector<8x8xf32>
    %885 = tpu.matmul %880, %882, %cst_287 {dimension_numbers = #tpu.dot_dimension_numbers<[1], [1], [0], [0], [0, 0, 1, 0], [], []>} : vector<8x8xbf16>, vector<8x8xbf16>, vector<8x8xf32> -> vector<8x8xf32>
    %cst_288 = arith.constant 0.353553385 : f32
    %886 = vector.broadcast %cst_288 : f32 to vector<8x8xf32>
    %887 = arith.mulf %885, %886 : vector<8x8xf32>
    %888 = arith.addf %887, %34 : vector<8x8xf32>
    %cst_289 = arith.constant dense<0xFF800000> : vector<8xf32>
    %889 = vector.multi_reduction <maximumf>, %888, %cst_289 [1] : vector<8x8xf32> to vector<8xf32>
    %890 = vector.shape_cast %889 : vector<8xf32> to vector<8x1xf32>
    %891 = vector.broadcast %890 : vector<8x1xf32> to vector<8x8xf32>
    %892 = arith.subf %888, %891 : vector<8x8xf32>
    %893 = math.exp %892 : vector<8x8xf32>
    %cst_290 = arith.constant dense<0.000000e+00> : vector<8xf32>
    %894 = vector.multi_reduction <add>, %893, %cst_290 [1] : vector<8x8xf32> to vector<8xf32>
    %895 = vector.shape_cast %894 : vector<8xf32> to vector<8x1xf32>
    %896 = tpu.reciprocal %895 {approx = true} : vector<8x1xf32> -> vector<8x1xf32>
    %897 = vector.broadcast %896 : vector<8x1xf32> to vector<8x8xf32>
    %898 = arith.mulf %893, %897 : vector<8x8xf32>
    %899 = arith.truncf %898 : vector<8x8xf32> to vector<8x8xbf16>
    %cst_291 = arith.constant dense<0.000000e+00> : vector<8x8xf32>
    %900 = tpu.matmul %899, %884, %cst_291 {dimension_numbers = #tpu.dot_dimension_numbers<[1], [0], [0], [1], [0, 0, 1, 1], [], []>} : vector<8x8xbf16>, vector<8x8xbf16>, vector<8x8xf32> -> vector<8x8xf32>
    %901 = arith.truncf %900 : vector<8x8xf32> to vector<8x8xbf16>
    %c2_292 = arith.constant 2 : index
    %c3_293 = arith.constant 3 : index
    %c0_294 = arith.constant 0 : index
    %c0_295 = arith.constant 0 : index
    %902 = vector.load %arg9[%c2_292, %c3_293, %c0_294, %c0_295] : memref<4x4x8x32xbf16, #tpu.memory_space<vmem>>, vector<1x1x8x32xbf16>
    %903 = vector.shape_cast %902 : vector<1x1x8x32xbf16> to vector<8x32xbf16>
    %cst_296 = arith.constant dense<0.000000e+00> : vector<8x32xf32>
    %904 = tpu.matmul %901, %903, %cst_296 {dimension_numbers = #tpu.dot_dimension_numbers<[1], [0], [0], [1], [0, 0, 1, 1], [], []>} : vector<8x8xbf16>, vector<8x32xbf16>, vector<8x32xf32> -> vector<8x32xf32>
    %905 = arith.addf %878, %904 : vector<8x32xf32>
    %906 = arith.addf %765, %905 : vector<8x32xf32>
    %907 = vector.extract_strided_slice %718 {offsets = [7, 0], sizes = [1, 32], strides = [1, 1]} : vector<22x128xf32> to vector<1x32xf32>
    %908 = vector.broadcast %907 : vector<1x32xf32> to vector<8x32xf32>
    %909 = arith.addf %906, %908 : vector<8x32xf32>
    %910 = vector.extract_strided_slice %718 {offsets = [8, 0], sizes = [1, 32], strides = [1, 1]} : vector<22x128xf32> to vector<1x32xf32>
    %911 = vector.extract_strided_slice %718 {offsets = [9, 0], sizes = [1, 32], strides = [1, 1]} : vector<22x128xf32> to vector<1x32xf32>
    %cst_297 = arith.constant dense<0.000000e+00> : vector<8xf32>
    %912 = vector.multi_reduction <add>, %909, %cst_297 [1] : vector<8x32xf32> to vector<8xf32>
    %913 = vector.shape_cast %912 : vector<8xf32> to vector<8x1xf32>
    %cst_298 = arith.constant 3.200000e+01 : f32
    %914 = vector.broadcast %cst_298 : f32 to vector<8x1xf32>
    %915 = arith.divf %913, %914 : vector<8x1xf32>
    %916 = vector.broadcast %915 : vector<8x1xf32> to vector<8x32xf32>
    %917 = arith.subf %909, %916 : vector<8x32xf32>
    %918 = arith.mulf %917, %917 : vector<8x32xf32>
    %cst_299 = arith.constant dense<0.000000e+00> : vector<8xf32>
    %919 = vector.multi_reduction <add>, %918, %cst_299 [1] : vector<8x32xf32> to vector<8xf32>
    %920 = vector.shape_cast %919 : vector<8xf32> to vector<8x1xf32>
    %cst_300 = arith.constant 3.200000e+01 : f32
    %921 = vector.broadcast %cst_300 : f32 to vector<8x1xf32>
    %922 = arith.divf %920, %921 : vector<8x1xf32>
    %923 = vector.broadcast %915 : vector<8x1xf32> to vector<8x32xf32>
    %924 = arith.subf %909, %923 : vector<8x32xf32>
    %cst_301 = arith.constant 9.99999974E-6 : f32
    %925 = vector.broadcast %cst_301 : f32 to vector<8x1xf32>
    %926 = arith.addf %922, %925 : vector<8x1xf32>
    %927 = math.rsqrt %926 : vector<8x1xf32>
    %928 = vector.broadcast %927 : vector<8x1xf32> to vector<8x32xf32>
    %929 = arith.mulf %924, %928 : vector<8x32xf32>
    %930 = vector.broadcast %910 : vector<1x32xf32> to vector<8x32xf32>
    %931 = arith.mulf %929, %930 : vector<8x32xf32>
    %932 = vector.broadcast %911 : vector<1x32xf32> to vector<8x32xf32>
    %933 = arith.addf %931, %932 : vector<8x32xf32>
    %c2_302 = arith.constant 2 : index
    %c0_303 = arith.constant 0 : index
    %c0_304 = arith.constant 0 : index
    %934 = vector.load %arg10[%c2_302, %c0_303, %c0_304] : memref<4x32x32xbf16, #tpu.memory_space<vmem>>, vector<1x32x32xbf16>
    %935 = vector.shape_cast %934 : vector<1x32x32xbf16> to vector<32x32xbf16>
    %936 = vector.extract_strided_slice %718 {offsets = [10, 0], sizes = [1, 32], strides = [1, 1]} : vector<22x128xf32> to vector<1x32xf32>
    %937 = arith.truncf %933 : vector<8x32xf32> to vector<8x32xbf16>
    %cst_305 = arith.constant dense<0.000000e+00> : vector<8x32xf32>
    %938 = tpu.matmul %937, %935, %cst_305 {dimension_numbers = #tpu.dot_dimension_numbers<[1], [0], [0], [1], [0, 0, 1, 1], [], []>} : vector<8x32xbf16>, vector<32x32xbf16>, vector<8x32xf32> -> vector<8x32xf32>
    %939 = vector.broadcast %936 : vector<1x32xf32> to vector<8x32xf32>
    %940 = arith.addf %938, %939 : vector<8x32xf32>
    %c2_306 = arith.constant 2 : index
    %c0_307 = arith.constant 0 : index
    %c0_308 = arith.constant 0 : index
    %941 = vector.load %arg11[%c2_306, %c0_307, %c0_308] : memref<4x32x32xbf16, #tpu.memory_space<vmem>>, vector<1x32x32xbf16>
    %942 = vector.shape_cast %941 : vector<1x32x32xbf16> to vector<32x32xbf16>
    %943 = vector.extract_strided_slice %718 {offsets = [11, 0], sizes = [1, 32], strides = [1, 1]} : vector<22x128xf32> to vector<1x32xf32>
    %944 = arith.truncf %933 : vector<8x32xf32> to vector<8x32xbf16>
    %cst_309 = arith.constant dense<0.000000e+00> : vector<8x32xf32>
    %945 = tpu.matmul %944, %942, %cst_309 {dimension_numbers = #tpu.dot_dimension_numbers<[1], [0], [0], [1], [0, 0, 1, 1], [], []>} : vector<8x32xbf16>, vector<32x32xbf16>, vector<8x32xf32> -> vector<8x32xf32>
    %946 = vector.broadcast %943 : vector<1x32xf32> to vector<8x32xf32>
    %947 = arith.addf %945, %946 : vector<8x32xf32>
    %948 = arith.negf %947 : vector<8x32xf32>
    %949 = math.exp %948 : vector<8x32xf32>
    %cst_310 = arith.constant 1.000000e+00 : f32
    %950 = vector.broadcast %cst_310 : f32 to vector<8x32xf32>
    %951 = arith.addf %950, %949 : vector<8x32xf32>
    %952 = arith.divf %950, %951 : vector<8x32xf32>
    %953 = arith.mulf %940, %952 : vector<8x32xf32>
    %954 = vector.extract_strided_slice %718 {offsets = [20, 0], sizes = [1, 32], strides = [1, 1]} : vector<22x128xf32> to vector<1x32xf32>
    %955 = vector.broadcast %954 : vector<1x32xf32> to vector<8x32xf32>
    %956 = arith.mulf %953, %955 : vector<8x32xf32>
    %cst_311 = arith.constant dense<0.000000e+00> : vector<8x32xf32>
    %957 = tpu.matmul %41, %953, %cst_311 {dimension_numbers = #tpu.dot_dimension_numbers<[1], [0], [0], [1], [0, 0, 1, 1], [], []>} : vector<8x8xf32>, vector<8x32xf32>, vector<8x32xf32> -> vector<8x32xf32>
    %958 = vector.extract_strided_slice %718 {offsets = [19, 0], sizes = [1, 32], strides = [1, 1]} : vector<22x128xf32> to vector<1x32xf32>
    %959 = vector.broadcast %958 : vector<1x32xf32> to vector<8x32xf32>
    %960 = arith.mulf %957, %959 : vector<8x32xf32>
    %961 = arith.addf %956, %960 : vector<8x32xf32>
    %cst_312 = arith.constant dense<0.000000e+00> : vector<8x32xf32>
    %962 = tpu.matmul %46, %953, %cst_312 {dimension_numbers = #tpu.dot_dimension_numbers<[1], [0], [0], [1], [0, 0, 1, 1], [], []>} : vector<8x8xf32>, vector<8x32xf32>, vector<8x32xf32> -> vector<8x32xf32>
    %963 = vector.extract_strided_slice %718 {offsets = [21, 0], sizes = [1, 32], strides = [1, 1]} : vector<22x128xf32> to vector<1x32xf32>
    %964 = vector.broadcast %963 : vector<1x32xf32> to vector<8x32xf32>
    %965 = arith.mulf %962, %964 : vector<8x32xf32>
    %966 = arith.addf %961, %965 : vector<8x32xf32>
    %967 = arith.negf %966 : vector<8x32xf32>
    %968 = math.exp %967 : vector<8x32xf32>
    %cst_313 = arith.constant 1.000000e+00 : f32
    %969 = vector.broadcast %cst_313 : f32 to vector<8x32xf32>
    %970 = arith.addf %969, %968 : vector<8x32xf32>
    %971 = arith.divf %969, %970 : vector<8x32xf32>
    %972 = arith.mulf %966, %971 : vector<8x32xf32>
    %c2_314 = arith.constant 2 : index
    %c0_315 = arith.constant 0 : index
    %c0_316 = arith.constant 0 : index
    %973 = vector.load %arg12[%c2_314, %c0_315, %c0_316] : memref<4x32x32xbf16, #tpu.memory_space<vmem>>, vector<1x32x32xbf16>
    %974 = vector.shape_cast %973 : vector<1x32x32xbf16> to vector<32x32xbf16>
    %975 = vector.extract_strided_slice %718 {offsets = [12, 0], sizes = [1, 32], strides = [1, 1]} : vector<22x128xf32> to vector<1x32xf32>
    %976 = arith.truncf %972 : vector<8x32xf32> to vector<8x32xbf16>
    %cst_317 = arith.constant dense<0.000000e+00> : vector<8x32xf32>
    %977 = tpu.matmul %976, %974, %cst_317 {dimension_numbers = #tpu.dot_dimension_numbers<[1], [0], [0], [1], [0, 0, 1, 1], [], []>} : vector<8x32xbf16>, vector<32x32xbf16>, vector<8x32xf32> -> vector<8x32xf32>
    %978 = vector.broadcast %975 : vector<1x32xf32> to vector<8x32xf32>
    %979 = arith.addf %977, %978 : vector<8x32xf32>
    %980 = arith.addf %909, %979 : vector<8x32xf32>
    %981 = vector.extract_strided_slice %718 {offsets = [13, 0], sizes = [1, 32], strides = [1, 1]} : vector<22x128xf32> to vector<1x32xf32>
    %982 = vector.extract_strided_slice %718 {offsets = [14, 0], sizes = [1, 32], strides = [1, 1]} : vector<22x128xf32> to vector<1x32xf32>
    %cst_318 = arith.constant dense<0.000000e+00> : vector<8xf32>
    %983 = vector.multi_reduction <add>, %980, %cst_318 [1] : vector<8x32xf32> to vector<8xf32>
    %984 = vector.shape_cast %983 : vector<8xf32> to vector<8x1xf32>
    %cst_319 = arith.constant 3.200000e+01 : f32
    %985 = vector.broadcast %cst_319 : f32 to vector<8x1xf32>
    %986 = arith.divf %984, %985 : vector<8x1xf32>
    %987 = vector.broadcast %986 : vector<8x1xf32> to vector<8x32xf32>
    %988 = arith.subf %980, %987 : vector<8x32xf32>
    %989 = arith.mulf %988, %988 : vector<8x32xf32>
    %cst_320 = arith.constant dense<0.000000e+00> : vector<8xf32>
    %990 = vector.multi_reduction <add>, %989, %cst_320 [1] : vector<8x32xf32> to vector<8xf32>
    %991 = vector.shape_cast %990 : vector<8xf32> to vector<8x1xf32>
    %cst_321 = arith.constant 3.200000e+01 : f32
    %992 = vector.broadcast %cst_321 : f32 to vector<8x1xf32>
    %993 = arith.divf %991, %992 : vector<8x1xf32>
    %994 = vector.broadcast %986 : vector<8x1xf32> to vector<8x32xf32>
    %995 = arith.subf %980, %994 : vector<8x32xf32>
    %cst_322 = arith.constant 9.99999974E-6 : f32
    %996 = vector.broadcast %cst_322 : f32 to vector<8x1xf32>
    %997 = arith.addf %993, %996 : vector<8x1xf32>
    %998 = math.rsqrt %997 : vector<8x1xf32>
    %999 = vector.broadcast %998 : vector<8x1xf32> to vector<8x32xf32>
    %1000 = arith.mulf %995, %999 : vector<8x32xf32>
    %1001 = vector.broadcast %981 : vector<1x32xf32> to vector<8x32xf32>
    %1002 = arith.mulf %1000, %1001 : vector<8x32xf32>
    %1003 = vector.broadcast %982 : vector<1x32xf32> to vector<8x32xf32>
    %1004 = arith.addf %1002, %1003 : vector<8x32xf32>
    %c2_323 = arith.constant 2 : index
    %c0_324 = arith.constant 0 : index
    %c0_325 = arith.constant 0 : index
    %1005 = vector.load %arg13[%c2_323, %c0_324, %c0_325] : memref<4x32x64xbf16, #tpu.memory_space<vmem>>, vector<1x32x64xbf16>
    %1006 = vector.shape_cast %1005 : vector<1x32x64xbf16> to vector<32x64xbf16>
    %1007 = vector.extract_strided_slice %718 {offsets = [15, 0], sizes = [1, 64], strides = [1, 1]} : vector<22x128xf32> to vector<1x64xf32>
    %1008 = arith.truncf %1004 : vector<8x32xf32> to vector<8x32xbf16>
    %cst_326 = arith.constant dense<0.000000e+00> : vector<8x64xf32>
    %1009 = tpu.matmul %1008, %1006, %cst_326 {dimension_numbers = #tpu.dot_dimension_numbers<[1], [0], [0], [1], [0, 0, 1, 1], [], []>} : vector<8x32xbf16>, vector<32x64xbf16>, vector<8x64xf32> -> vector<8x64xf32>
    %1010 = vector.broadcast %1007 : vector<1x64xf32> to vector<8x64xf32>
    %1011 = arith.addf %1009, %1010 : vector<8x64xf32>
    %1012 = arith.negf %1011 : vector<8x64xf32>
    %1013 = math.exp %1012 : vector<8x64xf32>
    %cst_327 = arith.constant 1.000000e+00 : f32
    %1014 = vector.broadcast %cst_327 : f32 to vector<8x64xf32>
    %1015 = arith.addf %1014, %1013 : vector<8x64xf32>
    %1016 = arith.divf %1014, %1015 : vector<8x64xf32>
    %1017 = arith.mulf %1011, %1016 : vector<8x64xf32>
    %c2_328 = arith.constant 2 : index
    %c0_329 = arith.constant 0 : index
    %c0_330 = arith.constant 0 : index
    %1018 = vector.load %arg14[%c2_328, %c0_329, %c0_330] : memref<4x64x32xbf16, #tpu.memory_space<vmem>>, vector<1x64x32xbf16>
    %1019 = vector.shape_cast %1018 : vector<1x64x32xbf16> to vector<64x32xbf16>
    %1020 = vector.extract_strided_slice %718 {offsets = [16, 0], sizes = [1, 32], strides = [1, 1]} : vector<22x128xf32> to vector<1x32xf32>
    %1021 = arith.truncf %1017 : vector<8x64xf32> to vector<8x64xbf16>
    %cst_331 = arith.constant dense<0.000000e+00> : vector<8x32xf32>
    %1022 = tpu.matmul %1021, %1019, %cst_331 {dimension_numbers = #tpu.dot_dimension_numbers<[1], [0], [0], [1], [0, 0, 1, 1], [], []>} : vector<8x64xbf16>, vector<64x32xbf16>, vector<8x32xf32> -> vector<8x32xf32>
    %1023 = vector.broadcast %1020 : vector<1x32xf32> to vector<8x32xf32>
    %1024 = arith.addf %1022, %1023 : vector<8x32xf32>
    %cst_332 = arith.constant 5.000000e-01 : f32
    %1025 = vector.broadcast %cst_332 : f32 to vector<8x32xf32>
    %1026 = arith.mulf %1025, %1024 : vector<8x32xf32>
    %1027 = arith.addf %980, %1026 : vector<8x32xf32>
    %1028 = vector.extract_strided_slice %718 {offsets = [17, 0], sizes = [1, 32], strides = [1, 1]} : vector<22x128xf32> to vector<1x32xf32>
    %1029 = vector.extract_strided_slice %718 {offsets = [18, 0], sizes = [1, 32], strides = [1, 1]} : vector<22x128xf32> to vector<1x32xf32>
    %cst_333 = arith.constant dense<0.000000e+00> : vector<8xf32>
    %1030 = vector.multi_reduction <add>, %1027, %cst_333 [1] : vector<8x32xf32> to vector<8xf32>
    %1031 = vector.shape_cast %1030 : vector<8xf32> to vector<8x1xf32>
    %cst_334 = arith.constant 3.200000e+01 : f32
    %1032 = vector.broadcast %cst_334 : f32 to vector<8x1xf32>
    %1033 = arith.divf %1031, %1032 : vector<8x1xf32>
    %1034 = vector.broadcast %1033 : vector<8x1xf32> to vector<8x32xf32>
    %1035 = arith.subf %1027, %1034 : vector<8x32xf32>
    %1036 = arith.mulf %1035, %1035 : vector<8x32xf32>
    %cst_335 = arith.constant dense<0.000000e+00> : vector<8xf32>
    %1037 = vector.multi_reduction <add>, %1036, %cst_335 [1] : vector<8x32xf32> to vector<8xf32>
    %1038 = vector.shape_cast %1037 : vector<8xf32> to vector<8x1xf32>
    %cst_336 = arith.constant 3.200000e+01 : f32
    %1039 = vector.broadcast %cst_336 : f32 to vector<8x1xf32>
    %1040 = arith.divf %1038, %1039 : vector<8x1xf32>
    %1041 = vector.broadcast %1033 : vector<8x1xf32> to vector<8x32xf32>
    %1042 = arith.subf %1027, %1041 : vector<8x32xf32>
    %cst_337 = arith.constant 9.99999974E-6 : f32
    %1043 = vector.broadcast %cst_337 : f32 to vector<8x1xf32>
    %1044 = arith.addf %1040, %1043 : vector<8x1xf32>
    %1045 = math.rsqrt %1044 : vector<8x1xf32>
    %1046 = vector.broadcast %1045 : vector<8x1xf32> to vector<8x32xf32>
    %1047 = arith.mulf %1042, %1046 : vector<8x32xf32>
    %1048 = vector.broadcast %1028 : vector<1x32xf32> to vector<8x32xf32>
    %1049 = arith.mulf %1047, %1048 : vector<8x32xf32>
    %1050 = vector.broadcast %1029 : vector<1x32xf32> to vector<8x32xf32>
    %1051 = arith.addf %1049, %1050 : vector<8x32xf32>
    %c3_338 = arith.constant 3 : index
    %c0_339 = arith.constant 0 : index
    %c0_340 = arith.constant 0 : index
    %1052 = vector.load %arg5[%c3_338, %c0_339, %c0_340] : memref<4x22x128xf32, #tpu.memory_space<vmem>>, vector<1x22x128xf32>
    %1053 = vector.shape_cast %1052 : vector<1x22x128xf32> to vector<22x128xf32>
    %1054 = vector.extract_strided_slice %1053 {offsets = [0, 0], sizes = [1, 32], strides = [1, 1]} : vector<22x128xf32> to vector<1x32xf32>
    %1055 = vector.extract_strided_slice %1053 {offsets = [1, 0], sizes = [1, 32], strides = [1, 1]} : vector<22x128xf32> to vector<1x32xf32>
    %cst_341 = arith.constant dense<0.000000e+00> : vector<8xf32>
    %1056 = vector.multi_reduction <add>, %1051, %cst_341 [1] : vector<8x32xf32> to vector<8xf32>
    %1057 = vector.shape_cast %1056 : vector<8xf32> to vector<8x1xf32>
    %cst_342 = arith.constant 3.200000e+01 : f32
    %1058 = vector.broadcast %cst_342 : f32 to vector<8x1xf32>
    %1059 = arith.divf %1057, %1058 : vector<8x1xf32>
    %1060 = vector.broadcast %1059 : vector<8x1xf32> to vector<8x32xf32>
    %1061 = arith.subf %1051, %1060 : vector<8x32xf32>
    %1062 = arith.mulf %1061, %1061 : vector<8x32xf32>
    %cst_343 = arith.constant dense<0.000000e+00> : vector<8xf32>
    %1063 = vector.multi_reduction <add>, %1062, %cst_343 [1] : vector<8x32xf32> to vector<8xf32>
    %1064 = vector.shape_cast %1063 : vector<8xf32> to vector<8x1xf32>
    %cst_344 = arith.constant 3.200000e+01 : f32
    %1065 = vector.broadcast %cst_344 : f32 to vector<8x1xf32>
    %1066 = arith.divf %1064, %1065 : vector<8x1xf32>
    %1067 = vector.broadcast %1059 : vector<8x1xf32> to vector<8x32xf32>
    %1068 = arith.subf %1051, %1067 : vector<8x32xf32>
    %cst_345 = arith.constant 9.99999974E-6 : f32
    %1069 = vector.broadcast %cst_345 : f32 to vector<8x1xf32>
    %1070 = arith.addf %1066, %1069 : vector<8x1xf32>
    %1071 = math.rsqrt %1070 : vector<8x1xf32>
    %1072 = vector.broadcast %1071 : vector<8x1xf32> to vector<8x32xf32>
    %1073 = arith.mulf %1068, %1072 : vector<8x32xf32>
    %1074 = vector.broadcast %1054 : vector<1x32xf32> to vector<8x32xf32>
    %1075 = arith.mulf %1073, %1074 : vector<8x32xf32>
    %1076 = vector.broadcast %1055 : vector<1x32xf32> to vector<8x32xf32>
    %1077 = arith.addf %1075, %1076 : vector<8x32xf32>
    %c3_346 = arith.constant 3 : index
    %c0_347 = arith.constant 0 : index
    %c0_348 = arith.constant 0 : index
    %1078 = vector.load %arg6[%c3_346, %c0_347, %c0_348] : memref<4x32x64xbf16, #tpu.memory_space<vmem>>, vector<1x32x64xbf16>
    %1079 = vector.shape_cast %1078 : vector<1x32x64xbf16> to vector<32x64xbf16>
    %1080 = vector.extract_strided_slice %1053 {offsets = [2, 0], sizes = [1, 64], strides = [1, 1]} : vector<22x128xf32> to vector<1x64xf32>
    %1081 = arith.truncf %1077 : vector<8x32xf32> to vector<8x32xbf16>
    %cst_349 = arith.constant dense<0.000000e+00> : vector<8x64xf32>
    %1082 = tpu.matmul %1081, %1079, %cst_349 {dimension_numbers = #tpu.dot_dimension_numbers<[1], [0], [0], [1], [0, 0, 1, 1], [], []>} : vector<8x32xbf16>, vector<32x64xbf16>, vector<8x64xf32> -> vector<8x64xf32>
    %1083 = vector.broadcast %1080 : vector<1x64xf32> to vector<8x64xf32>
    %1084 = arith.addf %1082, %1083 : vector<8x64xf32>
    %1085 = arith.negf %1084 : vector<8x64xf32>
    %1086 = math.exp %1085 : vector<8x64xf32>
    %cst_350 = arith.constant 1.000000e+00 : f32
    %1087 = vector.broadcast %cst_350 : f32 to vector<8x64xf32>
    %1088 = arith.addf %1087, %1086 : vector<8x64xf32>
    %1089 = arith.divf %1087, %1088 : vector<8x64xf32>
    %1090 = arith.mulf %1084, %1089 : vector<8x64xf32>
    %c3_351 = arith.constant 3 : index
    %c0_352 = arith.constant 0 : index
    %c0_353 = arith.constant 0 : index
    %1091 = vector.load %arg7[%c3_351, %c0_352, %c0_353] : memref<4x64x32xbf16, #tpu.memory_space<vmem>>, vector<1x64x32xbf16>
    %1092 = vector.shape_cast %1091 : vector<1x64x32xbf16> to vector<64x32xbf16>
    %1093 = vector.extract_strided_slice %1053 {offsets = [3, 0], sizes = [1, 32], strides = [1, 1]} : vector<22x128xf32> to vector<1x32xf32>
    %1094 = arith.truncf %1090 : vector<8x64xf32> to vector<8x64xbf16>
    %cst_354 = arith.constant dense<0.000000e+00> : vector<8x32xf32>
    %1095 = tpu.matmul %1094, %1092, %cst_354 {dimension_numbers = #tpu.dot_dimension_numbers<[1], [0], [0], [1], [0, 0, 1, 1], [], []>} : vector<8x64xbf16>, vector<64x32xbf16>, vector<8x32xf32> -> vector<8x32xf32>
    %1096 = vector.broadcast %1093 : vector<1x32xf32> to vector<8x32xf32>
    %1097 = arith.addf %1095, %1096 : vector<8x32xf32>
    %cst_355 = arith.constant 5.000000e-01 : f32
    %1098 = vector.broadcast %cst_355 : f32 to vector<8x32xf32>
    %1099 = arith.mulf %1098, %1097 : vector<8x32xf32>
    %1100 = arith.addf %1051, %1099 : vector<8x32xf32>
    %1101 = vector.extract_strided_slice %1053 {offsets = [4, 0], sizes = [1, 32], strides = [1, 1]} : vector<22x128xf32> to vector<1x32xf32>
    %1102 = vector.extract_strided_slice %1053 {offsets = [5, 0], sizes = [1, 32], strides = [1, 1]} : vector<22x128xf32> to vector<1x32xf32>
    %cst_356 = arith.constant dense<0.000000e+00> : vector<8xf32>
    %1103 = vector.multi_reduction <add>, %1100, %cst_356 [1] : vector<8x32xf32> to vector<8xf32>
    %1104 = vector.shape_cast %1103 : vector<8xf32> to vector<8x1xf32>
    %cst_357 = arith.constant 3.200000e+01 : f32
    %1105 = vector.broadcast %cst_357 : f32 to vector<8x1xf32>
    %1106 = arith.divf %1104, %1105 : vector<8x1xf32>
    %1107 = vector.broadcast %1106 : vector<8x1xf32> to vector<8x32xf32>
    %1108 = arith.subf %1100, %1107 : vector<8x32xf32>
    %1109 = arith.mulf %1108, %1108 : vector<8x32xf32>
    %cst_358 = arith.constant dense<0.000000e+00> : vector<8xf32>
    %1110 = vector.multi_reduction <add>, %1109, %cst_358 [1] : vector<8x32xf32> to vector<8xf32>
    %1111 = vector.shape_cast %1110 : vector<8xf32> to vector<8x1xf32>
    %cst_359 = arith.constant 3.200000e+01 : f32
    %1112 = vector.broadcast %cst_359 : f32 to vector<8x1xf32>
    %1113 = arith.divf %1111, %1112 : vector<8x1xf32>
    %1114 = vector.broadcast %1106 : vector<8x1xf32> to vector<8x32xf32>
    %1115 = arith.subf %1100, %1114 : vector<8x32xf32>
    %cst_360 = arith.constant 9.99999974E-6 : f32
    %1116 = vector.broadcast %cst_360 : f32 to vector<8x1xf32>
    %1117 = arith.addf %1113, %1116 : vector<8x1xf32>
    %1118 = math.rsqrt %1117 : vector<8x1xf32>
    %1119 = vector.broadcast %1118 : vector<8x1xf32> to vector<8x32xf32>
    %1120 = arith.mulf %1115, %1119 : vector<8x32xf32>
    %1121 = vector.broadcast %1101 : vector<1x32xf32> to vector<8x32xf32>
    %1122 = arith.mulf %1120, %1121 : vector<8x32xf32>
    %1123 = vector.broadcast %1102 : vector<1x32xf32> to vector<8x32xf32>
    %1124 = arith.addf %1122, %1123 : vector<8x32xf32>
    %c3_361 = arith.constant 3 : index
    %c0_362 = arith.constant 0 : index
    %c0_363 = arith.constant 0 : index
    %1125 = vector.load %arg8[%c3_361, %c0_362, %c0_363] : memref<4x32x96xbf16, #tpu.memory_space<vmem>>, vector<1x32x96xbf16>
    %1126 = vector.shape_cast %1125 : vector<1x32x96xbf16> to vector<32x96xbf16>
    %1127 = vector.extract_strided_slice %1053 {offsets = [6, 0], sizes = [1, 96], strides = [1, 1]} : vector<22x128xf32> to vector<1x96xf32>
    %1128 = arith.truncf %1124 : vector<8x32xf32> to vector<8x32xbf16>
    %cst_364 = arith.constant dense<0.000000e+00> : vector<8x96xf32>
    %1129 = tpu.matmul %1128, %1126, %cst_364 {dimension_numbers = #tpu.dot_dimension_numbers<[1], [0], [0], [1], [0, 0, 1, 1], [], []>} : vector<8x32xbf16>, vector<32x96xbf16>, vector<8x96xf32> -> vector<8x96xf32>
    %1130 = vector.broadcast %1127 : vector<1x96xf32> to vector<8x96xf32>
    %1131 = arith.addf %1129, %1130 : vector<8x96xf32>
    %cst_365 = arith.constant 0.000000e+00 : f32
    %1132 = vector.broadcast %cst_365 : f32 to vector<8x32xf32>
    %1133 = vector.extract_strided_slice %1131 {offsets = [0, 0], sizes = [8, 8], strides = [1, 1]} : vector<8x96xf32> to vector<8x8xf32>
    %1134 = arith.truncf %1133 : vector<8x8xf32> to vector<8x8xbf16>
    %1135 = vector.extract_strided_slice %1131 {offsets = [0, 32], sizes = [8, 8], strides = [1, 1]} : vector<8x96xf32> to vector<8x8xf32>
    %1136 = arith.truncf %1135 : vector<8x8xf32> to vector<8x8xbf16>
    %1137 = vector.extract_strided_slice %1131 {offsets = [0, 64], sizes = [8, 8], strides = [1, 1]} : vector<8x96xf32> to vector<8x8xf32>
    %1138 = arith.truncf %1137 : vector<8x8xf32> to vector<8x8xbf16>
    %cst_366 = arith.constant dense<0.000000e+00> : vector<8x8xf32>
    %1139 = tpu.matmul %1134, %1136, %cst_366 {dimension_numbers = #tpu.dot_dimension_numbers<[1], [1], [0], [0], [0, 0, 1, 0], [], []>} : vector<8x8xbf16>, vector<8x8xbf16>, vector<8x8xf32> -> vector<8x8xf32>
    %cst_367 = arith.constant 0.353553385 : f32
    %1140 = vector.broadcast %cst_367 : f32 to vector<8x8xf32>
    %1141 = arith.mulf %1139, %1140 : vector<8x8xf32>
    %1142 = arith.addf %1141, %34 : vector<8x8xf32>
    %cst_368 = arith.constant dense<0xFF800000> : vector<8xf32>
    %1143 = vector.multi_reduction <maximumf>, %1142, %cst_368 [1] : vector<8x8xf32> to vector<8xf32>
    %1144 = vector.shape_cast %1143 : vector<8xf32> to vector<8x1xf32>
    %1145 = vector.broadcast %1144 : vector<8x1xf32> to vector<8x8xf32>
    %1146 = arith.subf %1142, %1145 : vector<8x8xf32>
    %1147 = math.exp %1146 : vector<8x8xf32>
    %cst_369 = arith.constant dense<0.000000e+00> : vector<8xf32>
    %1148 = vector.multi_reduction <add>, %1147, %cst_369 [1] : vector<8x8xf32> to vector<8xf32>
    %1149 = vector.shape_cast %1148 : vector<8xf32> to vector<8x1xf32>
    %1150 = tpu.reciprocal %1149 {approx = true} : vector<8x1xf32> -> vector<8x1xf32>
    %1151 = vector.broadcast %1150 : vector<8x1xf32> to vector<8x8xf32>
    %1152 = arith.mulf %1147, %1151 : vector<8x8xf32>
    %1153 = arith.truncf %1152 : vector<8x8xf32> to vector<8x8xbf16>
    %cst_370 = arith.constant dense<0.000000e+00> : vector<8x8xf32>
    %1154 = tpu.matmul %1153, %1138, %cst_370 {dimension_numbers = #tpu.dot_dimension_numbers<[1], [0], [0], [1], [0, 0, 1, 1], [], []>} : vector<8x8xbf16>, vector<8x8xbf16>, vector<8x8xf32> -> vector<8x8xf32>
    %1155 = arith.truncf %1154 : vector<8x8xf32> to vector<8x8xbf16>
    %c3_371 = arith.constant 3 : index
    %c0_372 = arith.constant 0 : index
    %c0_373 = arith.constant 0 : index
    %c0_374 = arith.constant 0 : index
    %1156 = vector.load %arg9[%c3_371, %c0_372, %c0_373, %c0_374] : memref<4x4x8x32xbf16, #tpu.memory_space<vmem>>, vector<1x1x8x32xbf16>
    %1157 = vector.shape_cast %1156 : vector<1x1x8x32xbf16> to vector<8x32xbf16>
    %cst_375 = arith.constant dense<0.000000e+00> : vector<8x32xf32>
    %1158 = tpu.matmul %1155, %1157, %cst_375 {dimension_numbers = #tpu.dot_dimension_numbers<[1], [0], [0], [1], [0, 0, 1, 1], [], []>} : vector<8x8xbf16>, vector<8x32xbf16>, vector<8x32xf32> -> vector<8x32xf32>
    %1159 = arith.addf %1132, %1158 : vector<8x32xf32>
    %1160 = vector.extract_strided_slice %1131 {offsets = [0, 8], sizes = [8, 8], strides = [1, 1]} : vector<8x96xf32> to vector<8x8xf32>
    %1161 = arith.truncf %1160 : vector<8x8xf32> to vector<8x8xbf16>
    %1162 = vector.extract_strided_slice %1131 {offsets = [0, 40], sizes = [8, 8], strides = [1, 1]} : vector<8x96xf32> to vector<8x8xf32>
    %1163 = arith.truncf %1162 : vector<8x8xf32> to vector<8x8xbf16>
    %1164 = vector.extract_strided_slice %1131 {offsets = [0, 72], sizes = [8, 8], strides = [1, 1]} : vector<8x96xf32> to vector<8x8xf32>
    %1165 = arith.truncf %1164 : vector<8x8xf32> to vector<8x8xbf16>
    %cst_376 = arith.constant dense<0.000000e+00> : vector<8x8xf32>
    %1166 = tpu.matmul %1161, %1163, %cst_376 {dimension_numbers = #tpu.dot_dimension_numbers<[1], [1], [0], [0], [0, 0, 1, 0], [], []>} : vector<8x8xbf16>, vector<8x8xbf16>, vector<8x8xf32> -> vector<8x8xf32>
    %cst_377 = arith.constant 0.353553385 : f32
    %1167 = vector.broadcast %cst_377 : f32 to vector<8x8xf32>
    %1168 = arith.mulf %1166, %1167 : vector<8x8xf32>
    %1169 = arith.addf %1168, %34 : vector<8x8xf32>
    %cst_378 = arith.constant dense<0xFF800000> : vector<8xf32>
    %1170 = vector.multi_reduction <maximumf>, %1169, %cst_378 [1] : vector<8x8xf32> to vector<8xf32>
    %1171 = vector.shape_cast %1170 : vector<8xf32> to vector<8x1xf32>
    %1172 = vector.broadcast %1171 : vector<8x1xf32> to vector<8x8xf32>
    %1173 = arith.subf %1169, %1172 : vector<8x8xf32>
    %1174 = math.exp %1173 : vector<8x8xf32>
    %cst_379 = arith.constant dense<0.000000e+00> : vector<8xf32>
    %1175 = vector.multi_reduction <add>, %1174, %cst_379 [1] : vector<8x8xf32> to vector<8xf32>
    %1176 = vector.shape_cast %1175 : vector<8xf32> to vector<8x1xf32>
    %1177 = tpu.reciprocal %1176 {approx = true} : vector<8x1xf32> -> vector<8x1xf32>
    %1178 = vector.broadcast %1177 : vector<8x1xf32> to vector<8x8xf32>
    %1179 = arith.mulf %1174, %1178 : vector<8x8xf32>
    %1180 = arith.truncf %1179 : vector<8x8xf32> to vector<8x8xbf16>
    %cst_380 = arith.constant dense<0.000000e+00> : vector<8x8xf32>
    %1181 = tpu.matmul %1180, %1165, %cst_380 {dimension_numbers = #tpu.dot_dimension_numbers<[1], [0], [0], [1], [0, 0, 1, 1], [], []>} : vector<8x8xbf16>, vector<8x8xbf16>, vector<8x8xf32> -> vector<8x8xf32>
    %1182 = arith.truncf %1181 : vector<8x8xf32> to vector<8x8xbf16>
    %c3_381 = arith.constant 3 : index
    %c1_382 = arith.constant 1 : index
    %c0_383 = arith.constant 0 : index
    %c0_384 = arith.constant 0 : index
    %1183 = vector.load %arg9[%c3_381, %c1_382, %c0_383, %c0_384] : memref<4x4x8x32xbf16, #tpu.memory_space<vmem>>, vector<1x1x8x32xbf16>
    %1184 = vector.shape_cast %1183 : vector<1x1x8x32xbf16> to vector<8x32xbf16>
    %cst_385 = arith.constant dense<0.000000e+00> : vector<8x32xf32>
    %1185 = tpu.matmul %1182, %1184, %cst_385 {dimension_numbers = #tpu.dot_dimension_numbers<[1], [0], [0], [1], [0, 0, 1, 1], [], []>} : vector<8x8xbf16>, vector<8x32xbf16>, vector<8x32xf32> -> vector<8x32xf32>
    %1186 = arith.addf %1159, %1185 : vector<8x32xf32>
    %1187 = vector.extract_strided_slice %1131 {offsets = [0, 16], sizes = [8, 8], strides = [1, 1]} : vector<8x96xf32> to vector<8x8xf32>
    %1188 = arith.truncf %1187 : vector<8x8xf32> to vector<8x8xbf16>
    %1189 = vector.extract_strided_slice %1131 {offsets = [0, 48], sizes = [8, 8], strides = [1, 1]} : vector<8x96xf32> to vector<8x8xf32>
    %1190 = arith.truncf %1189 : vector<8x8xf32> to vector<8x8xbf16>
    %1191 = vector.extract_strided_slice %1131 {offsets = [0, 80], sizes = [8, 8], strides = [1, 1]} : vector<8x96xf32> to vector<8x8xf32>
    %1192 = arith.truncf %1191 : vector<8x8xf32> to vector<8x8xbf16>
    %cst_386 = arith.constant dense<0.000000e+00> : vector<8x8xf32>
    %1193 = tpu.matmul %1188, %1190, %cst_386 {dimension_numbers = #tpu.dot_dimension_numbers<[1], [1], [0], [0], [0, 0, 1, 0], [], []>} : vector<8x8xbf16>, vector<8x8xbf16>, vector<8x8xf32> -> vector<8x8xf32>
    %cst_387 = arith.constant 0.353553385 : f32
    %1194 = vector.broadcast %cst_387 : f32 to vector<8x8xf32>
    %1195 = arith.mulf %1193, %1194 : vector<8x8xf32>
    %1196 = arith.addf %1195, %34 : vector<8x8xf32>
    %cst_388 = arith.constant dense<0xFF800000> : vector<8xf32>
    %1197 = vector.multi_reduction <maximumf>, %1196, %cst_388 [1] : vector<8x8xf32> to vector<8xf32>
    %1198 = vector.shape_cast %1197 : vector<8xf32> to vector<8x1xf32>
    %1199 = vector.broadcast %1198 : vector<8x1xf32> to vector<8x8xf32>
    %1200 = arith.subf %1196, %1199 : vector<8x8xf32>
    %1201 = math.exp %1200 : vector<8x8xf32>
    %cst_389 = arith.constant dense<0.000000e+00> : vector<8xf32>
    %1202 = vector.multi_reduction <add>, %1201, %cst_389 [1] : vector<8x8xf32> to vector<8xf32>
    %1203 = vector.shape_cast %1202 : vector<8xf32> to vector<8x1xf32>
    %1204 = tpu.reciprocal %1203 {approx = true} : vector<8x1xf32> -> vector<8x1xf32>
    %1205 = vector.broadcast %1204 : vector<8x1xf32> to vector<8x8xf32>
    %1206 = arith.mulf %1201, %1205 : vector<8x8xf32>
    %1207 = arith.truncf %1206 : vector<8x8xf32> to vector<8x8xbf16>
    %cst_390 = arith.constant dense<0.000000e+00> : vector<8x8xf32>
    %1208 = tpu.matmul %1207, %1192, %cst_390 {dimension_numbers = #tpu.dot_dimension_numbers<[1], [0], [0], [1], [0, 0, 1, 1], [], []>} : vector<8x8xbf16>, vector<8x8xbf16>, vector<8x8xf32> -> vector<8x8xf32>
    %1209 = arith.truncf %1208 : vector<8x8xf32> to vector<8x8xbf16>
    %c3_391 = arith.constant 3 : index
    %c2_392 = arith.constant 2 : index
    %c0_393 = arith.constant 0 : index
    %c0_394 = arith.constant 0 : index
    %1210 = vector.load %arg9[%c3_391, %c2_392, %c0_393, %c0_394] : memref<4x4x8x32xbf16, #tpu.memory_space<vmem>>, vector<1x1x8x32xbf16>
    %1211 = vector.shape_cast %1210 : vector<1x1x8x32xbf16> to vector<8x32xbf16>
    %cst_395 = arith.constant dense<0.000000e+00> : vector<8x32xf32>
    %1212 = tpu.matmul %1209, %1211, %cst_395 {dimension_numbers = #tpu.dot_dimension_numbers<[1], [0], [0], [1], [0, 0, 1, 1], [], []>} : vector<8x8xbf16>, vector<8x32xbf16>, vector<8x32xf32> -> vector<8x32xf32>
    %1213 = arith.addf %1186, %1212 : vector<8x32xf32>
    %1214 = vector.extract_strided_slice %1131 {offsets = [0, 24], sizes = [8, 8], strides = [1, 1]} : vector<8x96xf32> to vector<8x8xf32>
    %1215 = arith.truncf %1214 : vector<8x8xf32> to vector<8x8xbf16>
    %1216 = vector.extract_strided_slice %1131 {offsets = [0, 56], sizes = [8, 8], strides = [1, 1]} : vector<8x96xf32> to vector<8x8xf32>
    %1217 = arith.truncf %1216 : vector<8x8xf32> to vector<8x8xbf16>
    %1218 = vector.extract_strided_slice %1131 {offsets = [0, 88], sizes = [8, 8], strides = [1, 1]} : vector<8x96xf32> to vector<8x8xf32>
    %1219 = arith.truncf %1218 : vector<8x8xf32> to vector<8x8xbf16>
    %cst_396 = arith.constant dense<0.000000e+00> : vector<8x8xf32>
    %1220 = tpu.matmul %1215, %1217, %cst_396 {dimension_numbers = #tpu.dot_dimension_numbers<[1], [1], [0], [0], [0, 0, 1, 0], [], []>} : vector<8x8xbf16>, vector<8x8xbf16>, vector<8x8xf32> -> vector<8x8xf32>
    %cst_397 = arith.constant 0.353553385 : f32
    %1221 = vector.broadcast %cst_397 : f32 to vector<8x8xf32>
    %1222 = arith.mulf %1220, %1221 : vector<8x8xf32>
    %1223 = arith.addf %1222, %34 : vector<8x8xf32>
    %cst_398 = arith.constant dense<0xFF800000> : vector<8xf32>
    %1224 = vector.multi_reduction <maximumf>, %1223, %cst_398 [1] : vector<8x8xf32> to vector<8xf32>
    %1225 = vector.shape_cast %1224 : vector<8xf32> to vector<8x1xf32>
    %1226 = vector.broadcast %1225 : vector<8x1xf32> to vector<8x8xf32>
    %1227 = arith.subf %1223, %1226 : vector<8x8xf32>
    %1228 = math.exp %1227 : vector<8x8xf32>
    %cst_399 = arith.constant dense<0.000000e+00> : vector<8xf32>
    %1229 = vector.multi_reduction <add>, %1228, %cst_399 [1] : vector<8x8xf32> to vector<8xf32>
    %1230 = vector.shape_cast %1229 : vector<8xf32> to vector<8x1xf32>
    %1231 = tpu.reciprocal %1230 {approx = true} : vector<8x1xf32> -> vector<8x1xf32>
    %1232 = vector.broadcast %1231 : vector<8x1xf32> to vector<8x8xf32>
    %1233 = arith.mulf %1228, %1232 : vector<8x8xf32>
    %1234 = arith.truncf %1233 : vector<8x8xf32> to vector<8x8xbf16>
    %cst_400 = arith.constant dense<0.000000e+00> : vector<8x8xf32>
    %1235 = tpu.matmul %1234, %1219, %cst_400 {dimension_numbers = #tpu.dot_dimension_numbers<[1], [0], [0], [1], [0, 0, 1, 1], [], []>} : vector<8x8xbf16>, vector<8x8xbf16>, vector<8x8xf32> -> vector<8x8xf32>
    %1236 = arith.truncf %1235 : vector<8x8xf32> to vector<8x8xbf16>
    %c3_401 = arith.constant 3 : index
    %c3_402 = arith.constant 3 : index
    %c0_403 = arith.constant 0 : index
    %c0_404 = arith.constant 0 : index
    %1237 = vector.load %arg9[%c3_401, %c3_402, %c0_403, %c0_404] : memref<4x4x8x32xbf16, #tpu.memory_space<vmem>>, vector<1x1x8x32xbf16>
    %1238 = vector.shape_cast %1237 : vector<1x1x8x32xbf16> to vector<8x32xbf16>
    %cst_405 = arith.constant dense<0.000000e+00> : vector<8x32xf32>
    %1239 = tpu.matmul %1236, %1238, %cst_405 {dimension_numbers = #tpu.dot_dimension_numbers<[1], [0], [0], [1], [0, 0, 1, 1], [], []>} : vector<8x8xbf16>, vector<8x32xbf16>, vector<8x32xf32> -> vector<8x32xf32>
    %1240 = arith.addf %1213, %1239 : vector<8x32xf32>
    %1241 = arith.addf %1100, %1240 : vector<8x32xf32>
    %1242 = vector.extract_strided_slice %1053 {offsets = [7, 0], sizes = [1, 32], strides = [1, 1]} : vector<22x128xf32> to vector<1x32xf32>
    %1243 = vector.broadcast %1242 : vector<1x32xf32> to vector<8x32xf32>
    %1244 = arith.addf %1241, %1243 : vector<8x32xf32>
    %1245 = vector.extract_strided_slice %1053 {offsets = [8, 0], sizes = [1, 32], strides = [1, 1]} : vector<22x128xf32> to vector<1x32xf32>
    %1246 = vector.extract_strided_slice %1053 {offsets = [9, 0], sizes = [1, 32], strides = [1, 1]} : vector<22x128xf32> to vector<1x32xf32>
    %cst_406 = arith.constant dense<0.000000e+00> : vector<8xf32>
    %1247 = vector.multi_reduction <add>, %1244, %cst_406 [1] : vector<8x32xf32> to vector<8xf32>
    %1248 = vector.shape_cast %1247 : vector<8xf32> to vector<8x1xf32>
    %cst_407 = arith.constant 3.200000e+01 : f32
    %1249 = vector.broadcast %cst_407 : f32 to vector<8x1xf32>
    %1250 = arith.divf %1248, %1249 : vector<8x1xf32>
    %1251 = vector.broadcast %1250 : vector<8x1xf32> to vector<8x32xf32>
    %1252 = arith.subf %1244, %1251 : vector<8x32xf32>
    %1253 = arith.mulf %1252, %1252 : vector<8x32xf32>
    %cst_408 = arith.constant dense<0.000000e+00> : vector<8xf32>
    %1254 = vector.multi_reduction <add>, %1253, %cst_408 [1] : vector<8x32xf32> to vector<8xf32>
    %1255 = vector.shape_cast %1254 : vector<8xf32> to vector<8x1xf32>
    %cst_409 = arith.constant 3.200000e+01 : f32
    %1256 = vector.broadcast %cst_409 : f32 to vector<8x1xf32>
    %1257 = arith.divf %1255, %1256 : vector<8x1xf32>
    %1258 = vector.broadcast %1250 : vector<8x1xf32> to vector<8x32xf32>
    %1259 = arith.subf %1244, %1258 : vector<8x32xf32>
    %cst_410 = arith.constant 9.99999974E-6 : f32
    %1260 = vector.broadcast %cst_410 : f32 to vector<8x1xf32>
    %1261 = arith.addf %1257, %1260 : vector<8x1xf32>
    %1262 = math.rsqrt %1261 : vector<8x1xf32>
    %1263 = vector.broadcast %1262 : vector<8x1xf32> to vector<8x32xf32>
    %1264 = arith.mulf %1259, %1263 : vector<8x32xf32>
    %1265 = vector.broadcast %1245 : vector<1x32xf32> to vector<8x32xf32>
    %1266 = arith.mulf %1264, %1265 : vector<8x32xf32>
    %1267 = vector.broadcast %1246 : vector<1x32xf32> to vector<8x32xf32>
    %1268 = arith.addf %1266, %1267 : vector<8x32xf32>
    %c3_411 = arith.constant 3 : index
    %c0_412 = arith.constant 0 : index
    %c0_413 = arith.constant 0 : index
    %1269 = vector.load %arg10[%c3_411, %c0_412, %c0_413] : memref<4x32x32xbf16, #tpu.memory_space<vmem>>, vector<1x32x32xbf16>
    %1270 = vector.shape_cast %1269 : vector<1x32x32xbf16> to vector<32x32xbf16>
    %1271 = vector.extract_strided_slice %1053 {offsets = [10, 0], sizes = [1, 32], strides = [1, 1]} : vector<22x128xf32> to vector<1x32xf32>
    %1272 = arith.truncf %1268 : vector<8x32xf32> to vector<8x32xbf16>
    %cst_414 = arith.constant dense<0.000000e+00> : vector<8x32xf32>
    %1273 = tpu.matmul %1272, %1270, %cst_414 {dimension_numbers = #tpu.dot_dimension_numbers<[1], [0], [0], [1], [0, 0, 1, 1], [], []>} : vector<8x32xbf16>, vector<32x32xbf16>, vector<8x32xf32> -> vector<8x32xf32>
    %1274 = vector.broadcast %1271 : vector<1x32xf32> to vector<8x32xf32>
    %1275 = arith.addf %1273, %1274 : vector<8x32xf32>
    %c3_415 = arith.constant 3 : index
    %c0_416 = arith.constant 0 : index
    %c0_417 = arith.constant 0 : index
    %1276 = vector.load %arg11[%c3_415, %c0_416, %c0_417] : memref<4x32x32xbf16, #tpu.memory_space<vmem>>, vector<1x32x32xbf16>
    %1277 = vector.shape_cast %1276 : vector<1x32x32xbf16> to vector<32x32xbf16>
    %1278 = vector.extract_strided_slice %1053 {offsets = [11, 0], sizes = [1, 32], strides = [1, 1]} : vector<22x128xf32> to vector<1x32xf32>
    %1279 = arith.truncf %1268 : vector<8x32xf32> to vector<8x32xbf16>
    %cst_418 = arith.constant dense<0.000000e+00> : vector<8x32xf32>
    %1280 = tpu.matmul %1279, %1277, %cst_418 {dimension_numbers = #tpu.dot_dimension_numbers<[1], [0], [0], [1], [0, 0, 1, 1], [], []>} : vector<8x32xbf16>, vector<32x32xbf16>, vector<8x32xf32> -> vector<8x32xf32>
    %1281 = vector.broadcast %1278 : vector<1x32xf32> to vector<8x32xf32>
    %1282 = arith.addf %1280, %1281 : vector<8x32xf32>
    %1283 = arith.negf %1282 : vector<8x32xf32>
    %1284 = math.exp %1283 : vector<8x32xf32>
    %cst_419 = arith.constant 1.000000e+00 : f32
    %1285 = vector.broadcast %cst_419 : f32 to vector<8x32xf32>
    %1286 = arith.addf %1285, %1284 : vector<8x32xf32>
    %1287 = arith.divf %1285, %1286 : vector<8x32xf32>
    %1288 = arith.mulf %1275, %1287 : vector<8x32xf32>
    %1289 = vector.extract_strided_slice %1053 {offsets = [20, 0], sizes = [1, 32], strides = [1, 1]} : vector<22x128xf32> to vector<1x32xf32>
    %1290 = vector.broadcast %1289 : vector<1x32xf32> to vector<8x32xf32>
    %1291 = arith.mulf %1288, %1290 : vector<8x32xf32>
    %cst_420 = arith.constant dense<0.000000e+00> : vector<8x32xf32>
    %1292 = tpu.matmul %41, %1288, %cst_420 {dimension_numbers = #tpu.dot_dimension_numbers<[1], [0], [0], [1], [0, 0, 1, 1], [], []>} : vector<8x8xf32>, vector<8x32xf32>, vector<8x32xf32> -> vector<8x32xf32>
    %1293 = vector.extract_strided_slice %1053 {offsets = [19, 0], sizes = [1, 32], strides = [1, 1]} : vector<22x128xf32> to vector<1x32xf32>
    %1294 = vector.broadcast %1293 : vector<1x32xf32> to vector<8x32xf32>
    %1295 = arith.mulf %1292, %1294 : vector<8x32xf32>
    %1296 = arith.addf %1291, %1295 : vector<8x32xf32>
    %cst_421 = arith.constant dense<0.000000e+00> : vector<8x32xf32>
    %1297 = tpu.matmul %46, %1288, %cst_421 {dimension_numbers = #tpu.dot_dimension_numbers<[1], [0], [0], [1], [0, 0, 1, 1], [], []>} : vector<8x8xf32>, vector<8x32xf32>, vector<8x32xf32> -> vector<8x32xf32>
    %1298 = vector.extract_strided_slice %1053 {offsets = [21, 0], sizes = [1, 32], strides = [1, 1]} : vector<22x128xf32> to vector<1x32xf32>
    %1299 = vector.broadcast %1298 : vector<1x32xf32> to vector<8x32xf32>
    %1300 = arith.mulf %1297, %1299 : vector<8x32xf32>
    %1301 = arith.addf %1296, %1300 : vector<8x32xf32>
    %1302 = arith.negf %1301 : vector<8x32xf32>
    %1303 = math.exp %1302 : vector<8x32xf32>
    %cst_422 = arith.constant 1.000000e+00 : f32
    %1304 = vector.broadcast %cst_422 : f32 to vector<8x32xf32>
    %1305 = arith.addf %1304, %1303 : vector<8x32xf32>
    %1306 = arith.divf %1304, %1305 : vector<8x32xf32>
    %1307 = arith.mulf %1301, %1306 : vector<8x32xf32>
    %c3_423 = arith.constant 3 : index
    %c0_424 = arith.constant 0 : index
    %c0_425 = arith.constant 0 : index
    %1308 = vector.load %arg12[%c3_423, %c0_424, %c0_425] : memref<4x32x32xbf16, #tpu.memory_space<vmem>>, vector<1x32x32xbf16>
    %1309 = vector.shape_cast %1308 : vector<1x32x32xbf16> to vector<32x32xbf16>
    %1310 = vector.extract_strided_slice %1053 {offsets = [12, 0], sizes = [1, 32], strides = [1, 1]} : vector<22x128xf32> to vector<1x32xf32>
    %1311 = arith.truncf %1307 : vector<8x32xf32> to vector<8x32xbf16>
    %cst_426 = arith.constant dense<0.000000e+00> : vector<8x32xf32>
    %1312 = tpu.matmul %1311, %1309, %cst_426 {dimension_numbers = #tpu.dot_dimension_numbers<[1], [0], [0], [1], [0, 0, 1, 1], [], []>} : vector<8x32xbf16>, vector<32x32xbf16>, vector<8x32xf32> -> vector<8x32xf32>
    %1313 = vector.broadcast %1310 : vector<1x32xf32> to vector<8x32xf32>
    %1314 = arith.addf %1312, %1313 : vector<8x32xf32>
    %1315 = arith.addf %1244, %1314 : vector<8x32xf32>
    %1316 = vector.extract_strided_slice %1053 {offsets = [13, 0], sizes = [1, 32], strides = [1, 1]} : vector<22x128xf32> to vector<1x32xf32>
    %1317 = vector.extract_strided_slice %1053 {offsets = [14, 0], sizes = [1, 32], strides = [1, 1]} : vector<22x128xf32> to vector<1x32xf32>
    %cst_427 = arith.constant dense<0.000000e+00> : vector<8xf32>
    %1318 = vector.multi_reduction <add>, %1315, %cst_427 [1] : vector<8x32xf32> to vector<8xf32>
    %1319 = vector.shape_cast %1318 : vector<8xf32> to vector<8x1xf32>
    %cst_428 = arith.constant 3.200000e+01 : f32
    %1320 = vector.broadcast %cst_428 : f32 to vector<8x1xf32>
    %1321 = arith.divf %1319, %1320 : vector<8x1xf32>
    %1322 = vector.broadcast %1321 : vector<8x1xf32> to vector<8x32xf32>
    %1323 = arith.subf %1315, %1322 : vector<8x32xf32>
    %1324 = arith.mulf %1323, %1323 : vector<8x32xf32>
    %cst_429 = arith.constant dense<0.000000e+00> : vector<8xf32>
    %1325 = vector.multi_reduction <add>, %1324, %cst_429 [1] : vector<8x32xf32> to vector<8xf32>
    %1326 = vector.shape_cast %1325 : vector<8xf32> to vector<8x1xf32>
    %cst_430 = arith.constant 3.200000e+01 : f32
    %1327 = vector.broadcast %cst_430 : f32 to vector<8x1xf32>
    %1328 = arith.divf %1326, %1327 : vector<8x1xf32>
    %1329 = vector.broadcast %1321 : vector<8x1xf32> to vector<8x32xf32>
    %1330 = arith.subf %1315, %1329 : vector<8x32xf32>
    %cst_431 = arith.constant 9.99999974E-6 : f32
    %1331 = vector.broadcast %cst_431 : f32 to vector<8x1xf32>
    %1332 = arith.addf %1328, %1331 : vector<8x1xf32>
    %1333 = math.rsqrt %1332 : vector<8x1xf32>
    %1334 = vector.broadcast %1333 : vector<8x1xf32> to vector<8x32xf32>
    %1335 = arith.mulf %1330, %1334 : vector<8x32xf32>
    %1336 = vector.broadcast %1316 : vector<1x32xf32> to vector<8x32xf32>
    %1337 = arith.mulf %1335, %1336 : vector<8x32xf32>
    %1338 = vector.broadcast %1317 : vector<1x32xf32> to vector<8x32xf32>
    %1339 = arith.addf %1337, %1338 : vector<8x32xf32>
    %c3_432 = arith.constant 3 : index
    %c0_433 = arith.constant 0 : index
    %c0_434 = arith.constant 0 : index
    %1340 = vector.load %arg13[%c3_432, %c0_433, %c0_434] : memref<4x32x64xbf16, #tpu.memory_space<vmem>>, vector<1x32x64xbf16>
    %1341 = vector.shape_cast %1340 : vector<1x32x64xbf16> to vector<32x64xbf16>
    %1342 = vector.extract_strided_slice %1053 {offsets = [15, 0], sizes = [1, 64], strides = [1, 1]} : vector<22x128xf32> to vector<1x64xf32>
    %1343 = arith.truncf %1339 : vector<8x32xf32> to vector<8x32xbf16>
    %cst_435 = arith.constant dense<0.000000e+00> : vector<8x64xf32>
    %1344 = tpu.matmul %1343, %1341, %cst_435 {dimension_numbers = #tpu.dot_dimension_numbers<[1], [0], [0], [1], [0, 0, 1, 1], [], []>} : vector<8x32xbf16>, vector<32x64xbf16>, vector<8x64xf32> -> vector<8x64xf32>
    %1345 = vector.broadcast %1342 : vector<1x64xf32> to vector<8x64xf32>
    %1346 = arith.addf %1344, %1345 : vector<8x64xf32>
    %1347 = arith.negf %1346 : vector<8x64xf32>
    %1348 = math.exp %1347 : vector<8x64xf32>
    %cst_436 = arith.constant 1.000000e+00 : f32
    %1349 = vector.broadcast %cst_436 : f32 to vector<8x64xf32>
    %1350 = arith.addf %1349, %1348 : vector<8x64xf32>
    %1351 = arith.divf %1349, %1350 : vector<8x64xf32>
    %1352 = arith.mulf %1346, %1351 : vector<8x64xf32>
    %c3_437 = arith.constant 3 : index
    %c0_438 = arith.constant 0 : index
    %c0_439 = arith.constant 0 : index
    %1353 = vector.load %arg14[%c3_437, %c0_438, %c0_439] : memref<4x64x32xbf16, #tpu.memory_space<vmem>>, vector<1x64x32xbf16>
    %1354 = vector.shape_cast %1353 : vector<1x64x32xbf16> to vector<64x32xbf16>
    %1355 = vector.extract_strided_slice %1053 {offsets = [16, 0], sizes = [1, 32], strides = [1, 1]} : vector<22x128xf32> to vector<1x32xf32>
    %1356 = arith.truncf %1352 : vector<8x64xf32> to vector<8x64xbf16>
    %cst_440 = arith.constant dense<0.000000e+00> : vector<8x32xf32>
    %1357 = tpu.matmul %1356, %1354, %cst_440 {dimension_numbers = #tpu.dot_dimension_numbers<[1], [0], [0], [1], [0, 0, 1, 1], [], []>} : vector<8x64xbf16>, vector<64x32xbf16>, vector<8x32xf32> -> vector<8x32xf32>
    %1358 = vector.broadcast %1355 : vector<1x32xf32> to vector<8x32xf32>
    %1359 = arith.addf %1357, %1358 : vector<8x32xf32>
    %cst_441 = arith.constant 5.000000e-01 : f32
    %1360 = vector.broadcast %cst_441 : f32 to vector<8x32xf32>
    %1361 = arith.mulf %1360, %1359 : vector<8x32xf32>
    %1362 = arith.addf %1315, %1361 : vector<8x32xf32>
    %1363 = vector.extract_strided_slice %1053 {offsets = [17, 0], sizes = [1, 32], strides = [1, 1]} : vector<22x128xf32> to vector<1x32xf32>
    %1364 = vector.extract_strided_slice %1053 {offsets = [18, 0], sizes = [1, 32], strides = [1, 1]} : vector<22x128xf32> to vector<1x32xf32>
    %cst_442 = arith.constant dense<0.000000e+00> : vector<8xf32>
    %1365 = vector.multi_reduction <add>, %1362, %cst_442 [1] : vector<8x32xf32> to vector<8xf32>
    %1366 = vector.shape_cast %1365 : vector<8xf32> to vector<8x1xf32>
    %cst_443 = arith.constant 3.200000e+01 : f32
    %1367 = vector.broadcast %cst_443 : f32 to vector<8x1xf32>
    %1368 = arith.divf %1366, %1367 : vector<8x1xf32>
    %1369 = vector.broadcast %1368 : vector<8x1xf32> to vector<8x32xf32>
    %1370 = arith.subf %1362, %1369 : vector<8x32xf32>
    %1371 = arith.mulf %1370, %1370 : vector<8x32xf32>
    %cst_444 = arith.constant dense<0.000000e+00> : vector<8xf32>
    %1372 = vector.multi_reduction <add>, %1371, %cst_444 [1] : vector<8x32xf32> to vector<8xf32>
    %1373 = vector.shape_cast %1372 : vector<8xf32> to vector<8x1xf32>
    %cst_445 = arith.constant 3.200000e+01 : f32
    %1374 = vector.broadcast %cst_445 : f32 to vector<8x1xf32>
    %1375 = arith.divf %1373, %1374 : vector<8x1xf32>
    %1376 = vector.broadcast %1368 : vector<8x1xf32> to vector<8x32xf32>
    %1377 = arith.subf %1362, %1376 : vector<8x32xf32>
    %cst_446 = arith.constant 9.99999974E-6 : f32
    %1378 = vector.broadcast %cst_446 : f32 to vector<8x1xf32>
    %1379 = arith.addf %1375, %1378 : vector<8x1xf32>
    %1380 = math.rsqrt %1379 : vector<8x1xf32>
    %1381 = vector.broadcast %1380 : vector<8x1xf32> to vector<8x32xf32>
    %1382 = arith.mulf %1377, %1381 : vector<8x32xf32>
    %1383 = vector.broadcast %1363 : vector<1x32xf32> to vector<8x32xf32>
    %1384 = arith.mulf %1382, %1383 : vector<8x32xf32>
    %1385 = vector.broadcast %1364 : vector<1x32xf32> to vector<8x32xf32>
    %1386 = arith.addf %1384, %1385 : vector<8x32xf32>
    %cst_447 = arith.constant dense<0.000000e+00> : vector<32xf32>
    %1387 = vector.multi_reduction <add>, %1386, %cst_447 [0] : vector<8x32xf32> to vector<32xf32>
    %1388 = vector.shape_cast %1387 : vector<32xf32> to vector<1x32xf32>
    %cst_448 = arith.constant 8.000000e+00 : f32
    %1389 = vector.broadcast %cst_448 : f32 to vector<1x32xf32>
    %1390 = arith.divf %1388, %1389 : vector<1x32xf32>
    %1391 = vector.broadcast %1390 : vector<1x32xf32> to vector<8x32xf32>
    %1392 = arith.subf %1386, %1391 : vector<8x32xf32>
    %1393 = arith.mulf %1392, %1392 : vector<8x32xf32>
    %cst_449 = arith.constant dense<0.000000e+00> : vector<32xf32>
    %1394 = vector.multi_reduction <add>, %1393, %cst_449 [0] : vector<8x32xf32> to vector<32xf32>
    %1395 = vector.shape_cast %1394 : vector<32xf32> to vector<1x32xf32>
    %cst_450 = arith.constant 7.000000e+00 : f32
    %1396 = vector.broadcast %cst_450 : f32 to vector<1x32xf32>
    %1397 = arith.divf %1395, %1396 : vector<1x32xf32>
    %1398 = math.sqrt %1397 : vector<1x32xf32>
    %1399 = arith.truncf %1390 : vector<1x32xf32> to vector<1x32xbf16>
    %c0_451 = arith.constant 0 : index
    %c0_452 = arith.constant 0 : index
    %1400 = vector.load %arg15[%c0_451, %c0_452] : memref<64x32xbf16, #tpu.memory_space<vmem>>, vector<32x32xbf16>
    %cst_453 = arith.constant dense<0.000000e+00> : vector<1x32xf32>
    %1401 = tpu.matmul %1399, %1400, %cst_453 {dimension_numbers = #tpu.dot_dimension_numbers<[1], [0], [0], [1], [0, 0, 1, 1], [], []>} : vector<1x32xbf16>, vector<32x32xbf16>, vector<1x32xf32> -> vector<1x32xf32>
    %1402 = arith.truncf %1398 : vector<1x32xf32> to vector<1x32xbf16>
    %c32 = arith.constant 32 : index
    %c0_454 = arith.constant 0 : index
    %1403 = vector.load %arg15[%c32, %c0_454] : memref<64x32xbf16, #tpu.memory_space<vmem>>, vector<32x32xbf16>
    %cst_455 = arith.constant dense<0.000000e+00> : vector<1x32xf32>
    %1404 = tpu.matmul %1402, %1403, %cst_455 {dimension_numbers = #tpu.dot_dimension_numbers<[1], [0], [0], [1], [0, 0, 1, 1], [], []>} : vector<1x32xbf16>, vector<32x32xbf16>, vector<1x32xf32> -> vector<1x32xf32>
    %1405 = arith.addf %1401, %1404 : vector<1x32xf32>
    %1406 = vector.extract_strided_slice %0 {offsets = [3, 0], sizes = [1, 32], strides = [1, 1]} : vector<6x128xf32> to vector<1x32xf32>
    %1407 = arith.addf %1405, %1406 : vector<1x32xf32>
    %cst_456 = arith.constant 0.000000e+00 : f32
    %1408 = vector.broadcast %cst_456 : f32 to vector<1x32xf32>
    %1409 = arith.maximumf %1407, %1408 : vector<1x32xf32>
    %c0_457 = arith.constant 0 : index
    %c0_458 = arith.constant 0 : index
    %1410 = vector.load %arg16[%c0_457, %c0_458] : memref<32x32xbf16, #tpu.memory_space<vmem>>, vector<32x32xbf16>
    %1411 = vector.extract_strided_slice %0 {offsets = [4, 0], sizes = [1, 32], strides = [1, 1]} : vector<6x128xf32> to vector<1x32xf32>
    %1412 = arith.truncf %1409 : vector<1x32xf32> to vector<1x32xbf16>
    %cst_459 = arith.constant dense<0.000000e+00> : vector<1x32xf32>
    %1413 = tpu.matmul %1412, %1410, %cst_459 {dimension_numbers = #tpu.dot_dimension_numbers<[1], [0], [0], [1], [0, 0, 1, 1], [], []>} : vector<1x32xbf16>, vector<32x32xbf16>, vector<1x32xf32> -> vector<1x32xf32>
    %1414 = arith.addf %1413, %1411 : vector<1x32xf32>
    %cst_460 = arith.constant 0.000000e+00 : f32
    %1415 = vector.broadcast %cst_460 : f32 to vector<1x32xf32>
    %1416 = arith.maximumf %1414, %1415 : vector<1x32xf32>
    %c0_461 = arith.constant 0 : index
    %c0_462 = arith.constant 0 : index
    %1417 = vector.load %arg17[%c0_461, %c0_462] : memref<32x6xbf16, #tpu.memory_space<vmem>>, vector<32x6xbf16>
    %1418 = vector.extract_strided_slice %0 {offsets = [5, 0], sizes = [1, 6], strides = [1, 1]} : vector<6x128xf32> to vector<1x6xf32>
    %1419 = arith.truncf %1416 : vector<1x32xf32> to vector<1x32xbf16>
    %cst_463 = arith.constant dense<0.000000e+00> : vector<1x6xf32>
    %1420 = tpu.matmul %1419, %1417, %cst_463 {dimension_numbers = #tpu.dot_dimension_numbers<[1], [0], [0], [1], [0, 0, 1, 1], [], []>} : vector<1x32xbf16>, vector<32x6xbf16>, vector<1x6xf32> -> vector<1x6xf32>
    %1421 = arith.addf %1420, %1418 : vector<1x6xf32>
    %c0_464 = arith.constant 0 : index
    %c0_465 = arith.constant 0 : index
    %c0_466 = arith.constant 0 : index
    %1422 = vector.load %arg18[%c0_464, %c0_465, %c0_466] : memref<1x1x6xf32, #tpu.memory_space<vmem>>, vector<1x1x6xf32>
    %1423 = vector.shape_cast %1422 : vector<1x1x6xf32> to vector<1x6xf32>
    %1424 = vector.shape_cast %1421 : vector<1x6xf32> to vector<1x1x6xf32>
    tpu.vector_store %arg18[%c0_464, %c0_465, %c0_466], %1424 {strides = array<i32>} : memref<1x1x6xf32, #tpu.memory_space<vmem>>, vector<1x1x6xf32>,
    return
  }
  func.func @transform_0(%arg0: i32) -> (i32, i32, i32) {
    %c0_i32 = arith.constant 0 : i32
    %c0_i32_0 = arith.constant 0 : i32
    %c0_i32_1 = arith.constant 0 : i32
    return %arg0, %c0_i32, %c0_i32_0 : i32, i32, i32
  }
  func.func @transform_1(%arg0: i32) -> (i32, i32, i32) {
    %c0_i32 = arith.constant 0 : i32
    %c0_i32_0 = arith.constant 0 : i32
    %c0_i32_1 = arith.constant 0 : i32
    return %arg0, %c0_i32, %c0_i32_0 : i32, i32, i32
  }
  func.func @transform_2(%arg0: i32) -> (i32, i32) {
    %c0_i32 = arith.constant 0 : i32
    %c0_i32_0 = arith.constant 0 : i32
    %c0_i32_1 = arith.constant 0 : i32
    return %c0_i32, %c0_i32_0 : i32, i32
  }
  func.func @transform_3(%arg0: i32) -> (i32, i32) {
    %c0_i32 = arith.constant 0 : i32
    %c0_i32_0 = arith.constant 0 : i32
    %c0_i32_1 = arith.constant 0 : i32
    return %c0_i32, %c0_i32_0 : i32, i32
  }
  func.func @transform_4(%arg0: i32) -> (i32, i32, i32) {
    %c0_i32 = arith.constant 0 : i32
    %c0_i32_0 = arith.constant 0 : i32
    %c0_i32_1 = arith.constant 0 : i32
    %c0_i32_2 = arith.constant 0 : i32
    return %c0_i32, %c0_i32_0, %c0_i32_1 : i32, i32, i32
  }
  func.func @transform_5(%arg0: i32) -> (i32, i32, i32) {
    %c0_i32 = arith.constant 0 : i32
    %c0_i32_0 = arith.constant 0 : i32
    %c0_i32_1 = arith.constant 0 : i32
    %c0_i32_2 = arith.constant 0 : i32
    return %c0_i32, %c0_i32_0, %c0_i32_1 : i32, i32, i32
  }
  func.func @transform_6(%arg0: i32) -> (i32, i32, i32) {
    %c0_i32 = arith.constant 0 : i32
    %c0_i32_0 = arith.constant 0 : i32
    %c0_i32_1 = arith.constant 0 : i32
    %c0_i32_2 = arith.constant 0 : i32
    return %c0_i32, %c0_i32_0, %c0_i32_1 : i32, i32, i32
  }
  func.func @transform_7(%arg0: i32) -> (i32, i32, i32) {
    %c0_i32 = arith.constant 0 : i32
    %c0_i32_0 = arith.constant 0 : i32
    %c0_i32_1 = arith.constant 0 : i32
    %c0_i32_2 = arith.constant 0 : i32
    return %c0_i32, %c0_i32_0, %c0_i32_1 : i32, i32, i32
  }
  func.func @transform_8(%arg0: i32) -> (i32, i32, i32, i32) {
    %c0_i32 = arith.constant 0 : i32
    %c0_i32_0 = arith.constant 0 : i32
    %c0_i32_1 = arith.constant 0 : i32
    %c0_i32_2 = arith.constant 0 : i32
    %c0_i32_3 = arith.constant 0 : i32
    return %c0_i32, %c0_i32_0, %c0_i32_1, %c0_i32_2 : i32, i32, i32, i32
  }
  func.func @transform_9(%arg0: i32) -> (i32, i32, i32) {
    %c0_i32 = arith.constant 0 : i32
    %c0_i32_0 = arith.constant 0 : i32
    %c0_i32_1 = arith.constant 0 : i32
    %c0_i32_2 = arith.constant 0 : i32
    return %c0_i32, %c0_i32_0, %c0_i32_1 : i32, i32, i32
  }
  func.func @transform_10(%arg0: i32) -> (i32, i32, i32) {
    %c0_i32 = arith.constant 0 : i32
    %c0_i32_0 = arith.constant 0 : i32
    %c0_i32_1 = arith.constant 0 : i32
    %c0_i32_2 = arith.constant 0 : i32
    return %c0_i32, %c0_i32_0, %c0_i32_1 : i32, i32, i32
  }
  func.func @transform_11(%arg0: i32) -> (i32, i32, i32) {
    %c0_i32 = arith.constant 0 : i32
    %c0_i32_0 = arith.constant 0 : i32
    %c0_i32_1 = arith.constant 0 : i32
    %c0_i32_2 = arith.constant 0 : i32
    return %c0_i32, %c0_i32_0, %c0_i32_1 : i32, i32, i32
  }
  func.func @transform_12(%arg0: i32) -> (i32, i32, i32) {
    %c0_i32 = arith.constant 0 : i32
    %c0_i32_0 = arith.constant 0 : i32
    %c0_i32_1 = arith.constant 0 : i32
    %c0_i32_2 = arith.constant 0 : i32
    return %c0_i32, %c0_i32_0, %c0_i32_1 : i32, i32, i32
  }
  func.func @transform_13(%arg0: i32) -> (i32, i32, i32) {
    %c0_i32 = arith.constant 0 : i32
    %c0_i32_0 = arith.constant 0 : i32
    %c0_i32_1 = arith.constant 0 : i32
    %c0_i32_2 = arith.constant 0 : i32
    return %c0_i32, %c0_i32_0, %c0_i32_1 : i32, i32, i32
  }
  func.func @transform_14(%arg0: i32) -> (i32, i32) {
    %c0_i32 = arith.constant 0 : i32
    %c0_i32_0 = arith.constant 0 : i32
    %c0_i32_1 = arith.constant 0 : i32
    return %c0_i32, %c0_i32_0 : i32, i32
  }
  func.func @transform_15(%arg0: i32) -> (i32, i32) {
    %c0_i32 = arith.constant 0 : i32
    %c0_i32_0 = arith.constant 0 : i32
    %c0_i32_1 = arith.constant 0 : i32
    return %c0_i32, %c0_i32_0 : i32, i32
  }
  func.func @transform_16(%arg0: i32) -> (i32, i32) {
    %c0_i32 = arith.constant 0 : i32
    %c0_i32_0 = arith.constant 0 : i32
    %c0_i32_1 = arith.constant 0 : i32
    return %c0_i32, %c0_i32_0 : i32, i32
  }
  func.func @transform_17(%arg0: i32) -> (i32, i32, i32) {
    %c0_i32 = arith.constant 0 : i32
    %c0_i32_0 = arith.constant 0 : i32
    %c0_i32_1 = arith.constant 0 : i32
    return %arg0, %c0_i32, %c0_i32_0 : i32, i32, i32
  }
}

</mosaic_0001>

<llo_original>
// kernel: conformer_forward.1
$region0: #{conformer_forward.1}
  #allocation0 [shape = 'u32[]', space=smem, size = 0x4, offset = 0x4, fixed_abs, tag = 'smem constant byte address 0x4 - core index']
  #allocation1 [shape = 'u32[144,128]{1,0:T(1,128)}', space=vmem, size = 0x12000, scoped, tag = 'internal scratch']
  %s0 = inlined_call_operand.vmem [shape: f32[2,8,16], index: 0, kind: input, shape index: {}]
  %s1 = inlined_call_operand.vmem [shape: f32[2,8,8], index: 1, kind: input, shape index: {}]
  %s2 = inlined_call_operand.hbm [shape: bf16[16,32], index: 2, kind: input, shape index: {}]
  %s3 = inlined_call_operand.hbm [shape: f32[6,128], index: 3, kind: input, shape index: {}]
  %s4 = inlined_call_operand.vmem [shape: f32[4,22,128], index: 4, kind: input, shape index: {}]
  %s5 = inlined_call_operand.vmem [shape: bf16[4,32,64], index: 5, kind: input, shape index: {}]
  %s6 = inlined_call_operand.vmem [shape: bf16[4,64,32], index: 6, kind: input, shape index: {}]
  %s7 = inlined_call_operand.vmem [shape: bf16[4,32,96], index: 7, kind: input, shape index: {}]
  %s8 = inlined_call_operand.vmem [shape: bf16[4,4,8,32], index: 8, kind: input, shape index: {}]
  %s9 = inlined_call_operand.vmem [shape: bf16[4,32,32], index: 9, kind: input, shape index: {}]
  %s10 = inlined_call_operand.vmem [shape: bf16[4,32,32], index: 10, kind: input, shape index: {}]
  %s11 = inlined_call_operand.vmem [shape: bf16[4,32,32], index: 11, kind: input, shape index: {}]
  %s12 = inlined_call_operand.vmem [shape: bf16[4,32,64], index: 12, kind: input, shape index: {}]
  %s13 = inlined_call_operand.vmem [shape: bf16[4,64,32], index: 13, kind: input, shape index: {}]
  %s14 = inlined_call_operand.vmem [shape: bf16[64,32], index: 14, kind: input, shape index: {}]
  %s15 = inlined_call_operand.vmem [shape: bf16[32,32], index: 15, kind: input, shape index: {}]
  %s16 = inlined_call_operand.vmem [shape: bf16[32,6], index: 16, kind: input, shape index: {}]
  %s17 = inlined_call_operand.hbm [shape: f32[2,1,6], index: 17, kind: output, shape index: {}]
  %s18 = sld [smem:[#allocation0]]
  $region109: #{conformer_forward.1} parent=0
    _
  %s20 = ssub.s32 1, %s18
  %s21 = scalar_select 0, %s20, %s18
  $region1: #{conformer_forward.1} parent=0
    #allocation2 [shape = 'u8[4096]{0}', space=vmem, size = 0x1000, scoped, tag = 'input window, operand 2, single buffered']
    #allocation3 [shape = 's32[2]{0}', space=sflag, size = 0x8, scoped, tag = 'scoped memory for conformer_forward.1']
    #allocation4 [shape = 's32[2]{0}', space=sflag, size = 0x8, scoped, tag = 'scoped memory for conformer_forward.1']
    #allocation5 [shape = 'u8[4096]{0}', space=vmem, size = 0x1000, scoped, tag = 'input window, operand 3, single buffered']
    #allocation6 [shape = 's32[1]{0}', space=sflag, size = 0x4, scoped, tag = 'scoped memory for conformer_forward.1']
    #allocation7 [shape = 'u8[1024]{0}', space=vmem, size = 0x400, scoped, tag = 'output window, operand 0']
    %22 = vsyncpa [#allocation3], 0
    %23 = vsyncpa [#allocation6], 0
    %24 = vsyncpa [#allocation4], 0
    %s25 = scalar_lea.sflag [#allocation4], 1
    %26 = vsyncpa %s25, 0
    loop: start=0, step=1, limit=4
    $region2: #{conformer_forward.1} parent=1 // loop_pre_header
      _
    $region3: #{conformer_forward.1} parent=1 // loop_header
      %s28 = sphi 0, %s32
      %p29 = scmp.ge.s32.totalorder %s28, 4
      %s38 = sphi 0, %s40
      %s41 = sphi 0, %s38
      %s42 = sphi 0, %s41
      %s58 = sphi 0, %s42
      %s64 = sphi 0, %s66
      %s67 = sphi 0, %s64
      %s68 = sphi 0, %s67
      %s84 = sphi 0, %s68
      %s88 = sphi 0, %s88
      %s90 = sphi 0, %s88
      %s91 = sphi 0, %s90
      %s105 = sphi 0, %s91
      %s109 = sphi 0, %s109
      %s111 = sphi 0, %s109
      %s112 = sphi 0, %s111
      %s126 = sphi 0, %s112
      %s130 = sphi 0, %s130
      %s132 = sphi 0, %s130
      %s133 = sphi 0, %s132
      %s147 = sphi 0, %s133
      %s151 = sphi 0, %s151
      %s153 = sphi 0, %s151
      %s154 = sphi 0, %s153
      %s168 = sphi 0, %s154
      %s172 = sphi 0, %s172
      %s174 = sphi 0, %s172
      %s175 = sphi 0, %s174
      %s189 = sphi 0, %s175
      %s193 = sphi 0, %s193
      %s195 = sphi 0, %s193
      %s196 = sphi 0, %s195
      %s210 = sphi 0, %s196
      %s214 = sphi 0, %s214
      %s216 = sphi 0, %s214
      %s217 = sphi 0, %s216
      %s231 = sphi 0, %s217
      %s235 = sphi 0, %s235
      %s237 = sphi 0, %s235
      %s238 = sphi 0, %s237
      %s252 = sphi 0, %s238
      %s256 = sphi 0, %s256
      %s258 = sphi 0, %s256
      %s259 = sphi 0, %s258
      %s273 = sphi 0, %s259
      %s277 = sphi 0, %s277
      %s279 = sphi 0, %s277
      %s280 = sphi 0, %s279
      %s294 = sphi 0, %s280
      %s298 = sphi 0, %s298
      %s300 = sphi 0, %s298
      %s301 = sphi 0, %s300
      %s315 = sphi 0, %s301
      %s319 = sphi 0, %s319
      %s321 = sphi 0, %s319
      %s322 = sphi 0, %s321
      %s336 = sphi 0, %s322
      %s340 = sphi 0, %s340
      %s342 = sphi 0, %s340
      %s343 = sphi 0, %s342
      %s357 = sphi 0, %s343
      %s361 = sphi 0, %s361
      %s363 = sphi 0, %s361
      %s364 = sphi 0, %s363
      %s378 = sphi 0, %s364
      %s382 = sphi 0, %s382
      %s384 = sphi 0, %s382
      %s385 = sphi 0, %s384
      %s399 = sphi 0, %s385
      %s405 = sphi 0, %s407
      %s408 = sphi 0, %s405
      %s409 = sphi 0, %s408
      %s425 = sphi 0, %s409
    $region4: #{conformer_forward.1} parent=1 // loop_header_branch
      %31 = sbr.rel (%p29) target = $region8
    $region5: #{conformer_forward.1} parent=1 // loop_body
      %s33 = ssub.s32 %s28, 1
      %s34 = ssub.s32 %s28, 2
      %s35 = sadd.s32 %s28, 1
      %s36 = ssub.s32 %s28, %s35
      %p37 = scmp.eq.s32.totalorder %s36, 0
      %s39 = sadd.s32 %s38, 1
      %s40 = scalar_select %p37, %s38, %s39
      %p43 = pneg %p37
      %p44 = scmp.eq.s32.totalorder %s28, 1
      %p45 = por %p43, %p44
      %p46 = scmp.ne.s32.totalorder %s38, %s41
      %p47 = scmp.eq.s32.totalorder %s28, 0
      %p48 = por %p46, %p47
      %p49 = scmp.ne.s32.totalorder %s38, %s41
      %p50 = scmp.eq.s32.totalorder %s33, 1
      %p51 = por %p49, %p50
      %p52 = scmp.ne.s32.totalorder %s41, %s42
      %p53 = scmp.eq.s32.totalorder %s33, 0
      %p54 = por %p52, %p53
      %p55 = scmp.ne.s32.totalorder %s41, %s42
      %p56 = scmp.eq.s32.totalorder %s34, 1
      %p57 = por %p55, %p56
      %p59 = scmp.ne.s32.totalorder %s42, %s58
      %p60 = scmp.eq.s32.totalorder %s34, 0
      %p61 = por %p59, %p60
      %s62 = ssub.s32 %s28, %s35
      %p63 = scmp.eq.s32.totalorder %s62, 0
      %s65 = sadd.s32 %s64, 1
      %s66 = scalar_select %p63, %s64, %s65
      %p69 = pneg %p63
      %p70 = scmp.eq.s32.totalorder %s28, 1
      %p71 = por %p69, %p70
      %p72 = scmp.ne.s32.totalorder %s64, %s67
      %p73 = scmp.eq.s32.totalorder %s28, 0
      %p74 = por %p72, %p73
      %p75 = scmp.ne.s32.totalorder %s64, %s67
      %p76 = scmp.eq.s32.totalorder %s33, 1
      %p77 = por %p75, %p76
      %p78 = scmp.ne.s32.totalorder %s67, %s68
      %p79 = scmp.eq.s32.totalorder %s33, 0
      %p80 = por %p78, %p79
      %p81 = scmp.ne.s32.totalorder %s67, %s68
      %p82 = scmp.eq.s32.totalorder %s34, 1
      %p83 = por %p81, %p82
      %p85 = scmp.ne.s32.totalorder %s68, %s84
      %p86 = scmp.eq.s32.totalorder %s34, 0
      %p87 = por %p85, %p86
      %s89 = sadd.s32 %s88, 1
      %p92 = scmp.eq.s32.totalorder %s28, 1
      %p93 = scmp.ne.s32.totalorder %s88, %s90
      %p94 = scmp.eq.s32.totalorder %s28, 0
      %p95 = por %p93, %p94
      %p96 = scmp.ne.s32.totalorder %s88, %s90
      %p97 = scmp.eq.s32.totalorder %s33, 1
      %p98 = por %p96, %p97
      %p99 = scmp.ne.s32.totalorder %s90, %s91
      %p100 = scmp.eq.s32.totalorder %s33, 0
      %p101 = por %p99, %p100
      %p102 = scmp.ne.s32.totalorder %s90, %s91
      %p103 = scmp.eq.s32.totalorder %s34, 1
      %p104 = por %p102, %p103
      %p106 = scmp.ne.s32.totalorder %s91, %s105
      %p107 = scmp.eq.s32.totalorder %s34, 0
      %p108 = por %p106, %p107
      %s110 = sadd.s32 %s109, 1
      %p113 = scmp.eq.s32.totalorder %s28, 1
      %p114 = scmp.ne.s32.totalorder %s109, %s111
      %p115 = scmp.eq.s32.totalorder %s28, 0
      %p116 = por %p114, %p115
      %p117 = scmp.ne.s32.totalorder %s109, %s111
      %p118 = scmp.eq.s32.totalorder %s33, 1
      %p119 = por %p117, %p118
      %p120 = scmp.ne.s32.totalorder %s111, %s112
      %p121 = scmp.eq.s32.totalorder %s33, 0
      %p122 = por %p120, %p121
      %p123 = scmp.ne.s32.totalorder %s111, %s112
      %p124 = scmp.eq.s32.totalorder %s34, 1
      %p125 = por %p123, %p124
      %p127 = scmp.ne.s32.totalorder %s112, %s126
      %p128 = scmp.eq.s32.totalorder %s34, 0
      %p129 = por %p127, %p128
      %s131 = sadd.s32 %s130, 1
      %p134 = scmp.eq.s32.totalorder %s28, 1
      %p135 = scmp.ne.s32.totalorder %s130, %s132
      %p136 = scmp.eq.s32.totalorder %s28, 0
      %p137 = por %p135, %p136
      %p138 = scmp.ne.s32.totalorder %s130, %s132
      %p139 = scmp.eq.s32.totalorder %s33, 1
      %p140 = por %p138, %p139
      %p141 = scmp.ne.s32.totalorder %s132, %s133
      %p142 = scmp.eq.s32.totalorder %s33, 0
      %p143 = por %p141, %p142
      %p144 = scmp.ne.s32.totalorder %s132, %s133
      %p145 = scmp.eq.s32.totalorder %s34, 1
      %p146 = por %p144, %p145
      %p148 = scmp.ne.s32.totalorder %s133, %s147
      %p149 = scmp.eq.s32.totalorder %s34, 0
      %p150 = por %p148, %p149
      %s152 = sadd.s32 %s151, 1
      %p155 = scmp.eq.s32.totalorder %s28, 1
      %p156 = scmp.ne.s32.totalorder %s151, %s153
      %p157 = scmp.eq.s32.totalorder %s28, 0
      %p158 = por %p156, %p157
      %p159 = scmp.ne.s32.totalorder %s151, %s153
      %p160 = scmp.eq.s32.totalorder %s33, 1
      %p161 = por %p159, %p160
      %p162 = scmp.ne.s32.totalorder %s153, %s154
      %p163 = scmp.eq.s32.totalorder %s33, 0
      %p164 = por %p162, %p163
      %p165 = scmp.ne.s32.totalorder %s153, %s154
      %p166 = scmp.eq.s32.totalorder %s34, 1
      %p167 = por %p165, %p166
      %p169 = scmp.ne.s32.totalorder %s154, %s168
      %p170 = scmp.eq.s32.totalorder %s34, 0
      %p171 = por %p169, %p170
      %s173 = sadd.s32 %s172, 1
      %p176 = scmp.eq.s32.totalorder %s28, 1
      %p177 = scmp.ne.s32.totalorder %s172, %s174
      %p178 = scmp.eq.s32.totalorder %s28, 0
      %p179 = por %p177, %p178
      %p180 = scmp.ne.s32.totalorder %s172, %s174
      %p181 = scmp.eq.s32.totalorder %s33, 1
      %p182 = por %p180, %p181
      %p183 = scmp.ne.s32.totalorder %s174, %s175
      %p184 = scmp.eq.s32.totalorder %s33, 0
      %p185 = por %p183, %p184
      %p186 = scmp.ne.s32.totalorder %s174, %s175
      %p187 = scmp.eq.s32.totalorder %s34, 1
      %p188 = por %p186, %p187
      %p190 = scmp.ne.s32.totalorder %s175, %s189
      %p191 = scmp.eq.s32.totalorder %s34, 0
      %p192 = por %p190, %p191
      %s194 = sadd.s32 %s193, 1
      %p197 = scmp.eq.s32.totalorder %s28, 1
      %p198 = scmp.ne.s32.totalorder %s193, %s195
      %p199 = scmp.eq.s32.totalorder %s28, 0
      %p200 = por %p198, %p199
      %p201 = scmp.ne.s32.totalorder %s193, %s195
      %p202 = scmp.eq.s32.totalorder %s33, 1
      %p203 = por %p201, %p202
      %p204 = scmp.ne.s32.totalorder %s195, %s196
      %p205 = scmp.eq.s32.totalorder %s33, 0
      %p206 = por %p204, %p205
      %p207 = scmp.ne.s32.totalorder %s195, %s196
      %p208 = scmp.eq.s32.totalorder %s34, 1
      %p209 = por %p207, %p208
      %p211 = scmp.ne.s32.totalorder %s196, %s210
      %p212 = scmp.eq.s32.totalorder %s34, 0
      %p213 = por %p211, %p212
      %s215 = sadd.s32 %s214, 1
      %p218 = scmp.eq.s32.totalorder %s28, 1
      %p219 = scmp.ne.s32.totalorder %s214, %s216
      %p220 = scmp.eq.s32.totalorder %s28, 0
      %p221 = por %p219, %p220
      %p222 = scmp.ne.s32.totalorder %s214, %s216
      %p223 = scmp.eq.s32.totalorder %s33, 1
      %p224 = por %p222, %p223
      %p225 = scmp.ne.s32.totalorder %s216, %s217
      %p226 = scmp.eq.s32.totalorder %s33, 0
      %p227 = por %p225, %p226
      %p228 = scmp.ne.s32.totalorder %s216, %s217
      %p229 = scmp.eq.s32.totalorder %s34, 1
      %p230 = por %p228, %p229
      %p232 = scmp.ne.s32.totalorder %s217, %s231
      %p233 = scmp.eq.s32.totalorder %s34, 0
      %p234 = por %p232, %p233
      %s236 = sadd.s32 %s235, 1
      %p239 = scmp.eq.s32.totalorder %s28, 1
      %p240 = scmp.ne.s32.totalorder %s235, %s237
      %p241 = scmp.eq.s32.totalorder %s28, 0
      %p242 = por %p240, %p241
      %p243 = scmp.ne.s32.totalorder %s235, %s237
      %p244 = scmp.eq.s32.totalorder %s33, 1
      %p245 = por %p243, %p244
      %p246 = scmp.ne.s32.totalorder %s237, %s238
      %p247 = scmp.eq.s32.totalorder %s33, 0
      %p248 = por %p246, %p247
      %p249 = scmp.ne.s32.totalorder %s237, %s238
      %p250 = scmp.eq.s32.totalorder %s34, 1
      %p251 = por %p249, %p250
      %p253 = scmp.ne.s32.totalorder %s238, %s252
      %p254 = scmp.eq.s32.totalorder %s34, 0
      %p255 = por %p253, %p254
      %s257 = sadd.s32 %s256, 1
      %p260 = scmp.eq.s32.totalorder %s28, 1
      %p261 = scmp.ne.s32.totalorder %s256, %s258
      %p262 = scmp.eq.s32.totalorder %s28, 0
      %p263 = por %p261, %p262
      %p264 = scmp.ne.s32.totalorder %s256, %s258
      %p265 = scmp.eq.s32.totalorder %s33, 1
      %p266 = por %p264, %p265
      %p267 = scmp.ne.s32.totalorder %s258, %s259
      %p268 = scmp.eq.s32.totalorder %s33, 0
      %p269 = por %p267, %p268
      %p270 = scmp.ne.s32.totalorder %s258, %s259
      %p271 = scmp.eq.s32.totalorder %s34, 1
      %p272 = por %p270, %p271
      %p274 = scmp.ne.s32.totalorder %s259, %s273
      %p275 = scmp.eq.s32.totalorder %s34, 0
      %p276 = por %p274, %p275
      %s278 = sadd.s32 %s277, 1
      %p281 = scmp.eq.s32.totalorder %s28, 1
      %p282 = scmp.ne.s32.totalorder %s277, %s279
      %p283 = scmp.eq.s32.totalorder %s28, 0
      %p284 = por %p282, %p283
      %p285 = scmp.ne.s32.totalorder %s277, %s279
      %p286 = scmp.eq.s32.totalorder %s33, 1
      %p287 = por %p285, %p286
      %p288 = scmp.ne.s32.totalorder %s279, %s280
      %p289 = scmp.eq.s32.totalorder %s33, 0
      %p290 = por %p288, %p289
      %p291 = scmp.ne.s32.totalorder %s279, %s280
      %p292 = scmp.eq.s32.totalorder %s34, 1
      %p293 = por %p291, %p292
      %p295 = scmp.ne.s32.totalorder %s280, %s294
      %p296 = scmp.eq.s32.totalorder %s34, 0
      %p297 = por %p295, %p296
      %s299 = sadd.s32 %s298, 1
      %p302 = scmp.eq.s32.totalorder %s28, 1
      %p303 = scmp.ne.s32.totalorder %s298, %s300
      %p304 = scmp.eq.s32.totalorder %s28, 0
      %p305 = por %p303, %p304
      %p306 = scmp.ne.s32.totalorder %s298, %s300
      %p307 = scmp.eq.s32.totalorder %s33, 1
      %p308 = por %p306, %p307
      %p309 = scmp.ne.s32.totalorder %s300, %s301
      %p310 = scmp.eq.s32.totalorder %s33, 0
      %p311 = por %p309, %p310
      %p312 = scmp.ne.s32.totalorder %s300, %s301
      %p313 = scmp.eq.s32.totalorder %s34, 1
      %p314 = por %p312, %p313
      %p316 = scmp.ne.s32.totalorder %s301, %s315
      %p317 = scmp.eq.s32.totalorder %s34, 0
      %p318 = por %p316, %p317
      %s320 = sadd.s32 %s319, 1
      %p323 = scmp.eq.s32.totalorder %s28, 1
      %p324 = scmp.ne.s32.totalorder %s319, %s321
      %p325 = scmp.eq.s32.totalorder %s28, 0
      %p326 = por %p324, %p325
      %p327 = scmp.ne.s32.totalorder %s319, %s321
      %p328 = scmp.eq.s32.totalorder %s33, 1
      %p329 = por %p327, %p328
      %p330 = scmp.ne.s32.totalorder %s321, %s322
      %p331 = scmp.eq.s32.totalorder %s33, 0
      %p332 = por %p330, %p331
      %p333 = scmp.ne.s32.totalorder %s321, %s322
      %p334 = scmp.eq.s32.totalorder %s34, 1
      %p335 = por %p333, %p334
      %p337 = scmp.ne.s32.totalorder %s322, %s336
      %p338 = scmp.eq.s32.totalorder %s34, 0
      %p339 = por %p337, %p338
      %s341 = sadd.s32 %s340, 1
      %p344 = scmp.eq.s32.totalorder %s28, 1
      %p345 = scmp.ne.s32.totalorder %s340, %s342
      %p346 = scmp.eq.s32.totalorder %s28, 0
      %p347 = por %p345, %p346
      %p348 = scmp.ne.s32.totalorder %s340, %s342
      %p349 = scmp.eq.s32.totalorder %s33, 1
      %p350 = por %p348, %p349
      %p351 = scmp.ne.s32.totalorder %s342, %s343
      %p352 = scmp.eq.s32.totalorder %s33, 0
      %p353 = por %p351, %p352
      %p354 = scmp.ne.s32.totalorder %s342, %s343
      %p355 = scmp.eq.s32.totalorder %s34, 1
      %p356 = por %p354, %p355
      %p358 = scmp.ne.s32.totalorder %s343, %s357
      %p359 = scmp.eq.s32.totalorder %s34, 0
      %p360 = por %p358, %p359
      %s362 = sadd.s32 %s361, 1
      %p365 = scmp.eq.s32.totalorder %s28, 1
      %p366 = scmp.ne.s32.totalorder %s361, %s363
      %p367 = scmp.eq.s32.totalorder %s28, 0
      %p368 = por %p366, %p367
      %p369 = scmp.ne.s32.totalorder %s361, %s363
      %p370 = scmp.eq.s32.totalorder %s33, 1
      %p371 = por %p369, %p370
      %p372 = scmp.ne.s32.totalorder %s363, %s364
      %p373 = scmp.eq.s32.totalorder %s33, 0
      %p374 = por %p372, %p373
      %p375 = scmp.ne.s32.totalorder %s363, %s364
      %p376 = scmp.eq.s32.totalorder %s34, 1
      %p377 = por %p375, %p376
      %p379 = scmp.ne.s32.totalorder %s364, %s378
      %p380 = scmp.eq.s32.totalorder %s34, 0
      %p381 = por %p379, %p380
      %s383 = sadd.s32 %s382, 1
      %p386 = scmp.eq.s32.totalorder %s28, 1
      %p387 = scmp.ne.s32.totalorder %s382, %s384
      %p388 = scmp.eq.s32.totalorder %s28, 0
      %p389 = por %p387, %p388
      %p390 = scmp.ne.s32.totalorder %s382, %s384
      %p391 = scmp.eq.s32.totalorder %s33, 1
      %p392 = por %p390, %p391
      %p393 = scmp.ne.s32.totalorder %s384, %s385
      %p394 = scmp.eq.s32.totalorder %s33, 0
      %p395 = por %p393, %p394
      %p396 = scmp.ne.s32.totalorder %s384, %s385
      %p397 = scmp.eq.s32.totalorder %s34, 1
      %p398 = por %p396, %p397
      %p400 = scmp.ne.s32.totalorder %s385, %s399
      %p401 = scmp.eq.s32.totalorder %s34, 0
      %p402 = por %p400, %p401
      %s403 = ssub.s32 %s28, %s35
      %p404 = scmp.eq.s32.totalorder %s403, 0
      %s406 = sadd.s32 %s405, 1
      %s407 = scalar_select %p404, %s405, %s406
      %p410 = pneg %p404
      %p411 = scmp.eq.s32.totalorder %s28, 1
      %p412 = por %p410, %p411
      %p413 = scmp.ne.s32.totalorder %s405, %s408
      %p414 = scmp.eq.s32.totalorder %s28, 0
      %p415 = por %p413, %p414
      %p416 = scmp.ne.s32.totalorder %s405, %s408
      %p417 = scmp.eq.s32.totalorder %s33, 1
      %p418 = por %p416, %p417
      %p419 = scmp.ne.s32.totalorder %s408, %s409
      %p420 = scmp.eq.s32.totalorder %s33, 0
      %p421 = por %p419, %p420
      %p422 = scmp.ne.s32.totalorder %s408, %s409
      %p423 = scmp.eq.s32.totalorder %s34, 1
      %p424 = por %p422, %p423
      %p426 = scmp.ne.s32.totalorder %s409, %s425
      %p427 = scmp.eq.s32.totalorder %s34, 0
      %p428 = por %p426, %p427
      %p429 = scmp.le.s32.totalorder 1, %s28
      %p430 = scmp.lt.s32.totalorder %s28, 3
      %p431 = pnand %p429, %p430
      %p432 = pneg %p431
      // Predicated region
      $region9: #{conformer_forward.1} parent=5 // pred_check
        _
      $region10: #{conformer_forward.1} parent=5 // pred_check_branch
        %434 = sbr.rel (%p431) target = $region12
      $region11: #{conformer_forward.1} parent=5 // pred_region
        %s435 = ssub.s32 %s28, 1
        // Predicated region
        $region13: #{conformer_forward.1} parent=11 // pred_check
          %p436 = pneg %p101
        $region14: #{conformer_forward.1} parent=11 // pred_check_branch
          %438 = sbr.rel (%p436) target = $region16
        $region15: #{conformer_forward.1} parent=11 // pred_region
          %s440 = ssub.s32 128, 128
          %441 = vsyncadd [#allocation3], %s440
          %s442 = sshll.u32 [#allocation2], 4
          %s443 = int_to_ptr.vmem [resolvable:$true] %s442
          %448 = dma.hbm_to_vmem [thread:$0]  %s2, 128, %s443, [#allocation3], 64, 64, 4
        $region16: #{conformer_forward.1} parent=11 // pred_fallthru
          _
        // Predicated region
        $region17: #{conformer_forward.1} parent=11 // pred_check
          %p449 = pneg %p122
        $region18: #{conformer_forward.1} parent=11 // pred_check_branch
          %451 = sbr.rel (%p449) target = $region20
        $region19: #{conformer_forward.1} parent=11 // pred_region
          %s453 = ssub.s32 128, 128
          %454 = vsyncadd [#allocation6], %s453
          %s456 = sshll.u32 [#allocation5], 4
          %s457 = int_to_ptr.vmem [resolvable:$true] %s456
          %459 = dma.hbm_to_vmem [thread:$0]  %s3, 128, %s457, [#allocation6]
        $region20: #{conformer_forward.1} parent=11 // pred_fallthru
          _
        // Predicated region
        $region21: #{conformer_forward.1} parent=11 // pred_check
          %p460 = pneg %p143
        $region22: #{conformer_forward.1} parent=11 // pred_check_branch
          %462 = sbr.rel (%p460) target = $region24
        $region23: #{conformer_forward.1} parent=11 // pred_region
          _
        $region24: #{conformer_forward.1} parent=11 // pred_fallthru
          _
        // Predicated region
        $region25: #{conformer_forward.1} parent=11 // pred_check
          %p463 = pneg %p164
        $region26: #{conformer_forward.1} parent=11 // pred_check_branch
          %465 = sbr.rel (%p463) target = $region28
        $region27: #{conformer_forward.1} parent=11 // pred_region
          _
        $region28: #{conformer_forward.1} parent=11 // pred_fallthru
          _
        // Predicated region
        $region29: #{conformer_forward.1} parent=11 // pred_check
          %p466 = pneg %p185
        $region30: #{conformer_forward.1} parent=11 // pred_check_branch
          %468 = sbr.rel (%p466) target = $region32
        $region31: #{conformer_forward.1} parent=11 // pred_region
          _
        $region32: #{conformer_forward.1} parent=11 // pred_fallthru
          _
        // Predicated region
        $region33: #{conformer_forward.1} parent=11 // pred_check
          %p469 = pneg %p206
        $region34: #{conformer_forward.1} parent=11 // pred_check_branch
          %471 = sbr.rel (%p469) target = $region36
        $region35: #{conformer_forward.1} parent=11 // pred_region
          _
        $region36: #{conformer_forward.1} parent=11 // pred_fallthru
          _
        // Predicated region
        $region37: #{conformer_forward.1} parent=11 // pred_check
          %p472 = pneg %p227
        $region38: #{conformer_forward.1} parent=11 // pred_check_branch
          %474 = sbr.rel (%p472) target = $region40
        $region39: #{conformer_forward.1} parent=11 // pred_region
          _
        $region40: #{conformer_forward.1} parent=11 // pred_fallthru
          _
        // Predicated region
        $region41: #{conformer_forward.1} parent=11 // pred_check
          %p475 = pneg %p248
        $region42: #{conformer_forward.1} parent=11 // pred_check_branch
          %477 = sbr.rel (%p475) target = $region44
        $region43: #{conformer_forward.1} parent=11 // pred_region
          _
        $region44: #{conformer_forward.1} parent=11 // pred_fallthru
          _
        // Predicated region
        $region45: #{conformer_forward.1} parent=11 // pred_check
          %p478 = pneg %p269
        $region46: #{conformer_forward.1} parent=11 // pred_check_branch
          %480 = sbr.rel (%p478) target = $region48
        $region47: #{conformer_forward.1} parent=11 // pred_region
          _
        $region48: #{conformer_forward.1} parent=11 // pred_fallthru
          _
        // Predicated region
        $region49: #{conformer_forward.1} parent=11 // pred_check
          %p481 = pneg %p290
        $region50: #{conformer_forward.1} parent=11 // pred_check_branch
          %483 = sbr.rel (%p481) target = $region52
        $region51: #{conformer_forward.1} parent=11 // pred_region
          _
        $region52: #{conformer_forward.1} parent=11 // pred_fallthru
          _
        // Predicated region
        $region53: #{conformer_forward.1} parent=11 // pred_check
          %p484 = pneg %p311
        $region54: #{conformer_forward.1} parent=11 // pred_check_branch
          %486 = sbr.rel (%p484) target = $region56
        $region55: #{conformer_forward.1} parent=11 // pred_region
          _
        $region56: #{conformer_forward.1} parent=11 // pred_fallthru
          _
        // Predicated region
        $region57: #{conformer_forward.1} parent=11 // pred_check
          %p487 = pneg %p332
        $region58: #{conformer_forward.1} parent=11 // pred_check_branch
          %489 = sbr.rel (%p487) target = $region60
        $region59: #{conformer_forward.1} parent=11 // pred_region
          _
        $region60: #{conformer_forward.1} parent=11 // pred_fallthru
          _
        // Predicated region
        $region61: #{conformer_forward.1} parent=11 // pred_check
          %p490 = pneg %p353
        $region62: #{conformer_forward.1} parent=11 // pred_check_branch
          %492 = sbr.rel (%p490) target = $region64
        $region63: #{conformer_forward.1} parent=11 // pred_region
          _
        $region64: #{conformer_forward.1} parent=11 // pred_fallthru
          _
        // Predicated region
        $region65: #{conformer_forward.1} parent=11 // pred_check
          %p493 = pneg %p374
        $region66: #{conformer_forward.1} parent=11 // pred_check_branch
          %495 = sbr.rel (%p493) target = $region68
        $region67: #{conformer_forward.1} parent=11 // pred_region
          _
        $region68: #{conformer_forward.1} parent=11 // pred_fallthru
          _
        // Predicated region
        $region69: #{conformer_forward.1} parent=11 // pred_check
          %p496 = pneg %p395
        $region70: #{conformer_forward.1} parent=11 // pred_check_branch
          %498 = sbr.rel (%p496) target = $region72
        $region71: #{conformer_forward.1} parent=11 // pred_region
          _
        $region72: #{conformer_forward.1} parent=11 // pred_fallthru
          _
      $region12: #{conformer_forward.1} parent=5 // pred_fallthru
        _
      %p499 = scmp.lt.s32.totalorder %s28, 2
      // Predicated region
      $region73: #{conformer_forward.1} parent=5 // pred_check
        %p500 = pneg %p499
      $region74: #{conformer_forward.1} parent=5 // pred_check_branch
        %502 = sbr.rel (%p500) target = $region76
      $region75: #{conformer_forward.1} parent=5 // pred_region
        // Predicated region
        $region77: #{conformer_forward.1} parent=75 // pred_check
          %p503 = pneg %p48
        $region78: #{conformer_forward.1} parent=75 // pred_check_branch
          %505 = sbr.rel (%p503) target = $region80
        $region79: #{conformer_forward.1} parent=75 // pred_region
          %p506 = scmp.lt.s32.totalorder %s28, 1
          %s507 = scalar_select %p506, %s28, 1
          %s508 = smul.addr %s507, 8
          %s509 = scalar_lea.vmem %s0, %s508
        $region80: #{conformer_forward.1} parent=75 // pred_fallthru
          _
        // Predicated region
        $region81: #{conformer_forward.1} parent=75 // pred_check
          %p510 = pneg %p74
        $region82: #{conformer_forward.1} parent=75 // pred_check_branch
          %512 = sbr.rel (%p510) target = $region84
        $region83: #{conformer_forward.1} parent=75 // pred_region
          %p513 = scmp.lt.s32.totalorder %s28, 1
          %s514 = scalar_select %p513, %s28, 1
          %s515 = smul.addr %s514, 8
          %s516 = scalar_lea.vmem %s1, %s515
        $region84: #{conformer_forward.1} parent=75 // pred_fallthru
          _
      $region76: #{conformer_forward.1} parent=5 // pred_fallthru
        _
      %p517 = scmp.le.s32.totalorder 1, %s28
      %p518 = scmp.lt.s32.totalorder %s28, 3
      %p519 = pnand %p517, %p518
      %p520 = pneg %p519
      // Predicated region
      $region85: #{conformer_forward.1} parent=5 // pred_check
        _
      $region86: #{conformer_forward.1} parent=5 // pred_check_branch
        %522 = sbr.rel (%p519) target = $region88
      $region87: #{conformer_forward.1} parent=5 // pred_region
        %s523 = ssub.s32 %s28, 1
        // Predicated region
        $region89: #{conformer_forward.1} parent=87 // pred_check
          %p524 = pneg %p101
        $region90: #{conformer_forward.1} parent=87 // pred_check_branch
          %526 = sbr.rel (%p524) target = $region92
        $region91: #{conformer_forward.1} parent=87 // pred_region
          %527 = dma.done [#allocation3], 128
        $region92: #{conformer_forward.1} parent=87 // pred_fallthru
          _
        // Predicated region
        $region93: #{conformer_forward.1} parent=87 // pred_check
          %p528 = pneg %p122
        $region94: #{conformer_forward.1} parent=87 // pred_check_branch
          %530 = sbr.rel (%p528) target = $region96
        $region95: #{conformer_forward.1} parent=87 // pred_region
          %531 = dma.done [#allocation6], 128
        $region96: #{conformer_forward.1} parent=87 // pred_fallthru
          _
        %p532 = scmp.lt.s32.totalorder %s33, 1
        %s533 = scalar_select %p532, %s33, 1
        %s534 = smul.addr %s533, 8
        %s535 = scalar_lea.vmem %s0, %s534
        %p536 = pneg %p54
        %p537 = pneg %p51
        %p538 = scmp.lt.s32.totalorder %s33, 1
        %s539 = scalar_select %p538, %s33, 1
        %s540 = smul.addr %s539, 8
        %s541 = scalar_lea.vmem %s1, %s540
        %p542 = pneg %p80
        %p543 = pneg %p77
        %p544 = pneg %p101
        %p545 = pneg %p98
        %p546 = pneg %p122
        %p547 = pneg %p119
        %p548 = pneg %p143
        %p549 = pneg %p140
        %p550 = pneg %p164
        %p551 = pneg %p161
        %p552 = pneg %p185
        %p553 = pneg %p182
        %p554 = pneg %p206
        %p555 = pneg %p203
        %p556 = pneg %p227
        %p557 = pneg %p224
        %p558 = pneg %p248
        %p559 = pneg %p245
        %p560 = pneg %p269
        %p561 = pneg %p266
        %p562 = pneg %p290
        %p563 = pneg %p287
        %p564 = pneg %p311
        %p565 = pneg %p308
        %p566 = pneg %p332
        %p567 = pneg %p329
        %p568 = pneg %p353
        %p569 = pneg %p350
        %p570 = pneg %p374
        %p571 = pneg %p371
        %p572 = pneg %p395
        %p573 = pneg %p392
        %p574 = pneg %p421
        %p575 = pneg %p418
        %s576 = sand.u32 %s408, 1
        %s577 = scalar_lea.sflag [#allocation4], %s576
        %s578 = sand.u32 %s408, 1
        %s579 = scalar_lea.vmem [#allocation7], %s578
        %p580 = scmp.lt.s32.totalorder %s33, 1
        %s581 = scalar_select %p580, %s33, 1
        %s582 = smul.addr %s581, 8
        %s583 = scalar_lea.vmem %s0, %s582
        %p584 = scmp.lt.s32.totalorder %s33, 1
        %s585 = scalar_select %p584, %s33, 1
        %s586 = smul.addr %s585, 8
        %s587 = scalar_lea.vmem %s1, %s586
        %v589 = vld [vmem:[#allocation5] sm:$0x3f]
        %v590 = vld [vmem:[%s583] sm:$0xff]
        %v591 = vld [vmem:[#allocation2] sm:$0xf]
        %v592 = vld [vmem:[#allocation2 + $0x4] sm:$0xf]
        %v593 = vpack.c.bf16 %v590, %v590
        %v594 = vlaneseq
        %v595 = vshrl.u32 %v594, 7
        %v596 = vsub.s32 0, %v595
        %v597 = vrot.slane %v589, %v596
        %v600 = vunpack.c.l.b16 %v591
        %v601 = vunpack.c.l.b16 %v592
        %v602 = vpack.c.b16 %v601, %v600
        %vm604 = vcmask 130048
        %v606 = vsel %vm604, %v593, 0
        %608 = vmatprep.subr.bf16.mxu0 0
        %609 = vmatpush1.bf16.msra.mxu0 %v602
        %610 = vmatprep.subr.bf16.mxu0 0
        %611 = vmatpush1.bf16.msra.mxu0 0
        %612 = vmatprep.subr.bf16.mxu0 0
        %613 = vmatpush1.bf16.msra.mxu0 0
        %614 = vmatprep.subr.bf16.mxu0 0
        %615 = vmatpush1.bf16.msra.mxu0 0
        %616 = vmatprep.subr.bf16.mxu0 0
        %617 = vmatpush1.bf16.msra.mxu0 0
        %618 = vmatprep.subr.bf16.mxu0 0
        %619 = vmatpush1.bf16.msra.mxu0 0
        %620 = vmatprep.subr.bf16.mxu0 0
        %621 = vmatpush1.bf16.msra.mxu0 0
        %622 = vmatprep.subr.bf16.mxu0 0
        %623 = vmatpush1.bf16.msra.mxu0 0
        %624 = vmatprep.subr.bf16.mxu0 0
        %625 = vmatpush1.bf16.msra.mxu0 0
        %626 = vmatprep.subr.bf16.mxu0 0
        %627 = vmatpush1.bf16.msra.mxu0 0
        %628 = vmatprep.subr.bf16.mxu0 0
        %629 = vmatpush1.bf16.msra.mxu0 0
        %630 = vmatprep.subr.bf16.mxu0 0
        %631 = vmatpush1.bf16.msra.mxu0 0
        %632 = vmatprep.subr.bf16.mxu0 0
        %633 = vmatpush1.bf16.msra.mxu0 0
        %634 = vmatprep.subr.bf16.mxu0 0
        %635 = vmatpush1.bf16.msra.mxu0 0
        %636 = vmatprep.subr.bf16.mxu0 0
        %637 = vmatpush1.bf16.msra.mxu0 0
        %638 = vmatprep.subr.bf16.mxu0 0
        %639 = vmatpush1.bf16.msra.mxu0 0
        %640 = vmatprep.mubr.bf16.mxu0 0
        %641 = vmatmul.mubr.bf16.gmra.mrb[0].mxu0 %v606
        %v642 = vpop.f32.mrb[0].mxu0
        %v643 = vadd.f32 %v597, %v642
        %v644 = vpop.f32.mrb[0].mxu0
        %v645 = vpop.f32.mrb[0].mxu0
        %v646 = vpop.f32.mrb[0].mxu0
        %647 = vdwg.mxu0
        %vm648 = vcmask 261120
        %v649 = vsel %vm648, %v643, 0.0
        %650 = vadd.xlane.f32.xlu0 %v649
        %v651 = vpop.xlane.xlu0 %650
        %v652 = vrcp.pop 32.0
        %v653 = vmul.f32 %v651, %v652
        %v654 = vsub.f32 %v643, %v653
        %v655 = vmul.f32 %v654, %v654
        %v656 = vsel %vm648, %v655, 0.0
        %657 = vadd.xlane.f32.xlu0 %v656
        %v658 = vpop.xlane.xlu0 %657
        %v659 = vmul.f32 %v658, %v652
        %v660 = vadd.f32 %v659, 1e-05
        %v661 = vrsqrt.pop %v660
        %v662 = vmul.f32 %v654, %v661
        %v663 = vlaneseq
        %v664 = vshrl.u32 %v663, 7
        %v665 = vsub.s32 1, %v664
        %v666 = vrot.slane %v589, %v665
        %v667 = vmul.f32 %v662, %v666
        %v668 = vlaneseq
        %v669 = vshrl.u32 %v668, 7
        %v670 = vsub.s32 2, %v669
        %v671 = vrot.slane %v589, %v670
        %v672 = vadd.f32 %v667, %v671
        %v673 = vld [vmem:[%s587] sm:$0xff]
        %v674 = vlaneseq
        %v675 = vshrl.u32 %v674, 7
        %v676 = vlaneseq
        %v677 = vand.u32 %v676, 127
        %v678 = vadd.s32 %v675, 4294967295
        %vm679 = vcmp.eq.s32.totalorder %v677, %v678
        %v680 = vsel %vm679, 1, 0
        %v681 = vcvt.s32.f32 %v680
        %v682 = vadd.s32 %v675, 1
        %vm683 = vcmp.eq.s32.totalorder %v677, %v682
        %v684 = vsel %vm683, 1, 0
        %v685 = vcvt.s32.f32 %v684
        %v686 = vld [vmem:[%s4] sm:$0xff]
        %v687 = vld [vmem:[%s4 + $0x8] sm:$0xff]
        %v688 = vld [vmem:[%s4 + $0x10] sm:$0x3f]
        %v689 = vsel %vm648, %v672, 0.0
        %690 = vadd.xlane.f32.xlu0 %v689
        %v691 = vpop.xlane.xlu0 %690
        %v692 = vmul.f32 %v691, %v652
        %v693 = vsub.f32 %v672, %v692
        %v694 = vmul.f32 %v693, %v693
        %v695 = vsel %vm648, %v694, 0.0
        %696 = vadd.xlane.f32.xlu0 %v695
        %v697 = vpop.xlane.xlu0 %696
        %v698 = vmul.f32 %v697, %v652
        %v699 = vadd.f32 %v698, 1e-05
        %v700 = vrsqrt.pop %v699
        %v701 = vmul.f32 %v693, %v700
        %v702 = vlaneseq
        %v703 = vshrl.u32 %v702, 7
        %v704 = vsub.s32 0, %v703
        %v705 = vrot.slane %v686, %v704
        %v706 = vmul.f32 %v701, %v705
        %v707 = vlaneseq
        %v708 = vshrl.u32 %v707, 7
        %v709 = vsub.s32 1, %v708
        %v710 = vrot.slane %v686, %v709
        %v711 = vadd.f32 %v706, %v710
        %v712 = vld [vmem:[%s5] sm:$0xf]
        %v713 = vld [vmem:[%s5 + $0x4] sm:$0xf]
        %v714 = vld [vmem:[%s5 + $0x8] sm:$0xf]
        %v715 = vld [vmem:[%s5 + $0xc] sm:$0xf]
        %v716 = vpack.c.bf16 %v711, %v711
        %v717 = vlaneseq
        %v718 = vshrl.u32 %v717, 7
        %v719 = vsub.s32 2, %v718
        %v720 = vrot.slane %v686, %v719
        %v725 = vunpack.c.l.b16 %v712
        %v726 = vunpack.c.l.b16 %v713
        %v727 = vunpack.c.l.b16 %v714
        %v728 = vunpack.c.l.b16 %v715
        %v729 = vpack.c.b16 %v726, %v725
        %v730 = vpack.c.b16 %v728, %v727
        %v734 = vsel %vm648, %v716, 0
        %736 = vmatprep.subr.bf16.mxu0 0
        %737 = vmatpush1.bf16.msra.mxu0 %v729
        %738 = vmatprep.subr.bf16.mxu0 0
        %739 = vmatpush1.bf16.msra.mxu0 %v730
        %740 = vmatprep.subr.bf16.mxu0 0
        %741 = vmatpush1.bf16.msra.mxu0 0
        %742 = vmatprep.subr.bf16.mxu0 0
        %743 = vmatpush1.bf16.msra.mxu0 0
        %744 = vmatprep.subr.bf16.mxu0 0
        %745 = vmatpush1.bf16.msra.mxu0 0
        %746 = vmatprep.subr.bf16.mxu0 0
        %747 = vmatpush1.bf16.msra.mxu0 0
        %748 = vmatprep.subr.bf16.mxu0 0
        %749 = vmatpush1.bf16.msra.mxu0 0
        %750 = vmatprep.subr.bf16.mxu0 0
        %751 = vmatpush1.bf16.msra.mxu0 0
        %752 = vmatprep.subr.bf16.mxu0 0
        %753 = vmatpush1.bf16.msra.mxu0 0
        %754 = vmatprep.subr.bf16.mxu0 0
        %755 = vmatpush1.bf16.msra.mxu0 0
        %756 = vmatprep.subr.bf16.mxu0 0
        %757 = vmatpush1.bf16.msra.mxu0 0
        %758 = vmatprep.subr.bf16.mxu0 0
        %759 = vmatpush1.bf16.msra.mxu0 0
        %760 = vmatprep.subr.bf16.mxu0 0
        %761 = vmatpush1.bf16.msra.mxu0 0
        %762 = vmatprep.subr.bf16.mxu0 0
        %763 = vmatpush1.bf16.msra.mxu0 0
        %764 = vmatprep.subr.bf16.mxu0 0
        %765 = vmatpush1.bf16.msra.mxu0 0
        %766 = vmatprep.subr.bf16.mxu0 0
        %767 = vmatpush1.bf16.msra.mxu0 0
        %768 = vmatprep.mubr.bf16.mxu0 0
        %769 = vmatmul.mubr.bf16.gmra.mrb[0].mxu0 %v734
        %v770 = vpop.f32.mrb[0].mxu0
        %v771 = vadd.f32 %v720, %v770
        %v772 = vpop.f32.mrb[0].mxu0
        %v773 = vpop.f32.mrb[0].mxu0
        %v774 = vpop.f32.mrb[0].mxu0
        %775 = vdwg.mxu0
        %v776 = vxor.u32 %v771, 2147483648
        %v777 = vmul.f32 %v776, 1.442695
        %v778 = vpow.pop %v777
        %v779 = vadd.f32 %v778, 1.0
        %v780 = vrcp.pop %v779
        %v781 = vmul.f32 1.0, %v780
        %v782 = vmul.f32 %v771, %v781
        %v783 = vld [vmem:[%s6] sm:$0xf]
        %v784 = vld [vmem:[%s6 + $0x4] sm:$0xf]
        %v785 = vld [vmem:[%s6 + $0x8] sm:$0xf]
        %v786 = vld [vmem:[%s6 + $0xc] sm:$0xf]
        %v787 = vld [vmem:[%s6 + $0x10] sm:$0xf]
        %v788 = vld [vmem:[%s6 + $0x14] sm:$0xf]
        %v789 = vld [vmem:[%s6 + $0x18] sm:$0xf]
        %v790 = vld [vmem:[%s6 + $0x1c] sm:$0xf]
        %v791 = vpack.c.bf16 %v782, %v782
        %v792 = vlaneseq
        %v793 = vshrl.u32 %v792, 7
        %v794 = vsub.s32 3, %v793
        %v795 = vrot.slane %v686, %v794
        %v804 = vunpack.c.l.b16 %v783
        %v805 = vunpack.c.l.b16 %v784
        %v806 = vunpack.c.l.b16 %v785
        %v807 = vunpack.c.l.b16 %v786
        %v808 = vunpack.c.l.b16 %v787
        %v809 = vunpack.c.l.b16 %v788
        %v810 = vunpack.c.l.b16 %v789
        %v811 = vunpack.c.l.b16 %v790
        %v812 = vpack.c.b16 %v805, %v804
        %v813 = vpack.c.b16 %v807, %v806
        %v814 = vpack.c.b16 %v809, %v808
        %v815 = vpack.c.b16 %v811, %v810
        %vm820 = vcmask 523264
        %v822 = vsel %vm820, %v791, 0
        %824 = vmatprep.subr.bf16.mxu0 0
        %825 = vmatpush1.bf16.msra.mxu0 %v812
        %826 = vmatprep.subr.bf16.mxu0 0
        %827 = vmatpush1.bf16.msra.mxu0 %v813
        %828 = vmatprep.subr.bf16.mxu0 0
        %829 = vmatpush1.bf16.msra.mxu0 %v814
        %830 = vmatprep.subr.bf16.mxu0 0
        %831 = vmatpush1.bf16.msra.mxu0 %v815
        %832 = vmatprep.subr.bf16.mxu0 0
        %833 = vmatpush1.bf16.msra.mxu0 0
        %834 = vmatprep.subr.bf16.mxu0 0
        %835 = vmatpush1.bf16.msra.mxu0 0
        %836 = vmatprep.subr.bf16.mxu0 0
        %837 = vmatpush1.bf16.msra.mxu0 0
        %838 = vmatprep.subr.bf16.mxu0 0
        %839 = vmatpush1.bf16.msra.mxu0 0
        %840 = vmatprep.subr.bf16.mxu0 0
        %841 = vmatpush1.bf16.msra.mxu0 0
        %842 = vmatprep.subr.bf16.mxu0 0
        %843 = vmatpush1.bf16.msra.mxu0 0
        %844 = vmatprep.subr.bf16.mxu0 0
        %845 = vmatpush1.bf16.msra.mxu0 0
        %846 = vmatprep.subr.bf16.mxu0 0
        %847 = vmatpush1.bf16.msra.mxu0 0
        %848 = vmatprep.subr.bf16.mxu0 0
        %849 = vmatpush1.bf16.msra.mxu0 0
        %850 = vmatprep.subr.bf16.mxu0 0
        %851 = vmatpush1.bf16.msra.mxu0 0
        %852 = vmatprep.subr.bf16.mxu0 0
        %853 = vmatpush1.bf16.msra.mxu0 0
        %854 = vmatprep.subr.bf16.mxu0 0
        %855 = vmatpush1.bf16.msra.mxu0 0
        %856 = vmatprep.mubr.bf16.mxu0 0
        %857 = vmatmul.mubr.bf16.gmra.mrb[0].mxu0 %v822
        %v858 = vpop.f32.mrb[0].mxu0
        %v859 = vadd.f32 %v795, %v858
        %v860 = vpop.f32.mrb[0].mxu0
        %v861 = vpop.f32.mrb[0].mxu0
        %v862 = vpop.f32.mrb[0].mxu0
        %863 = vdwg.mxu0
        %v864 = vmul.f32 %v859, 0.5
        %v865 = vadd.f32 %v672, %v864
        %v866 = vsel %vm648, %v865, 0.0
        %867 = vadd.xlane.f32.xlu0 %v866
        %v868 = vpop.xlane.xlu0 %867
        %v869 = vmul.f32 %v868, %v652
        %v870 = vsub.f32 %v865, %v869
        %v871 = vmul.f32 %v870, %v870
        %v872 = vsel %vm648, %v871, 0.0
        %873 = vadd.xlane.f32.xlu0 %v872
        %v874 = vpop.xlane.xlu0 %873
        %v875 = vmul.f32 %v874, %v652
        %v876 = vadd.f32 %v875, 1e-05
        %v877 = vrsqrt.pop %v876
        %v878 = vmul.f32 %v870, %v877
        %v879 = vlaneseq
        %v880 = vshrl.u32 %v879, 7
        %v881 = vsub.s32 4, %v880
        %v882 = vrot.slane %v686, %v881
        %v883 = vmul.f32 %v878, %v882
        %v884 = vlaneseq
        %v885 = vshrl.u32 %v884, 7
        %v886 = vsub.s32 5, %v885
        %v887 = vrot.slane %v686, %v886
        %v888 = vadd.f32 %v883, %v887
        %v889 = vld [vmem:[%s7] sm:$0xf]
        %v890 = vld [vmem:[%s7 + $0x4] sm:$0xf]
        %v891 = vld [vmem:[%s7 + $0x8] sm:$0xf]
        %v892 = vld [vmem:[%s7 + $0xc] sm:$0xf]
        %v893 = vpack.c.bf16 %v888, %v888
        %v894 = vlaneseq
        %v895 = vshrl.u32 %v894, 7
        %v896 = vsub.s32 6, %v895
        %v897 = vrot.slane %v686, %v896
        %v902 = vunpack.c.l.b16 %v889
        %v903 = vunpack.c.l.b16 %v890
        %v904 = vunpack.c.l.b16 %v891
        %v905 = vunpack.c.l.b16 %v892
        %v906 = vpack.c.b16 %v903, %v902
        %v907 = vpack.c.b16 %v905, %v904
        %v911 = vsel %vm648, %v893, 0
        %913 = vmatprep.subr.bf16.mxu0 0
        %914 = vmatpush1.bf16.msra.mxu0 %v906
        %915 = vmatprep.subr.bf16.mxu0 0
        %916 = vmatpush1.bf16.msra.mxu0 %v907
        %917 = vmatprep.subr.bf16.mxu0 0
        %918 = vmatpush1.bf16.msra.mxu0 0
        %919 = vmatprep.subr.bf16.mxu0 0
        %920 = vmatpush1.bf16.msra.mxu0 0
        %921 = vmatprep.subr.bf16.mxu0 0
        %922 = vmatpush1.bf16.msra.mxu0 0
        %923 = vmatprep.subr.bf16.mxu0 0
        %924 = vmatpush1.bf16.msra.mxu0 0
        %925 = vmatprep.subr.bf16.mxu0 0
        %926 = vmatpush1.bf16.msra.mxu0 0
        %927 = vmatprep.subr.bf16.mxu0 0
        %928 = vmatpush1.bf16.msra.mxu0 0
        %929 = vmatprep.subr.bf16.mxu0 0
        %930 = vmatpush1.bf16.msra.mxu0 0
        %931 = vmatprep.subr.bf16.mxu0 0
        %932 = vmatpush1.bf16.msra.mxu0 0
        %933 = vmatprep.subr.bf16.mxu0 0
        %934 = vmatpush1.bf16.msra.mxu0 0
        %935 = vmatprep.subr.bf16.mxu0 0
        %936 = vmatpush1.bf16.msra.mxu0 0
        %937 = vmatprep.subr.bf16.mxu0 0
        %938 = vmatpush1.bf16.msra.mxu0 0
        %939 = vmatprep.subr.bf16.mxu0 0
        %940 = vmatpush1.bf16.msra.mxu0 0
        %941 = vmatprep.subr.bf16.mxu0 0
        %942 = vmatpush1.bf16.msra.mxu0 0
        %943 = vmatprep.subr.bf16.mxu0 0
        %944 = vmatpush1.bf16.msra.mxu0 0
        %945 = vmatprep.mubr.bf16.mxu0 0
        %946 = vmatmul.mubr.bf16.gmra.mrb[0].mxu0 %v911
        %v947 = vpop.f32.mrb[0].mxu0
        %v948 = vadd.f32 %v897, %v947
        %v949 = vpop.f32.mrb[0].mxu0
        %v950 = vpop.f32.mrb[0].mxu0
        %v951 = vpop.f32.mrb[0].mxu0
        %952 = vdwg.mxu0
        %v953 = vpack.c.bf16 %v948, %v948
        %955 = vrot.lane.b32.xlu0 %v953, 96
        %v956 = vpop.permute.xlu0 %955
        %vm957 = vcmask 64512
        %v959 = vsel %vm957, %v953, 0
        %v962 = vsel %vm957, %v956, 0
        %964 = vmatprep.subr.bf16.mxu0 0
        %965 = vmatpush1.bf16.xpose.msra.mxu0 %v962
        %966 = vmatprep.subr.bf16.mxu0 0
        %967 = vmatpush1.bf16.xpose.msra.mxu0 0
        %968 = vmatprep.subr.bf16.mxu0 0
        %969 = vmatpush1.bf16.xpose.msra.mxu0 0
        %970 = vmatprep.subr.bf16.mxu0 0
        %971 = vmatpush1.bf16.xpose.msra.mxu0 0
        %972 = vmatprep.subr.bf16.mxu0 0
        %973 = vmatpush1.bf16.xpose.msra.mxu0 0
        %974 = vmatprep.subr.bf16.mxu0 0
        %975 = vmatpush1.bf16.xpose.msra.mxu0 0
        %976 = vmatprep.subr.bf16.mxu0 0
        %977 = vmatpush1.bf16.xpose.msra.mxu0 0
        %978 = vmatprep.subr.bf16.mxu0 0
        %979 = vmatpush1.bf16.xpose.msra.mxu0 0
        %980 = vmatprep.subr.bf16.mxu0 0
        %981 = vmatpush1.bf16.xpose.msra.mxu0 0
        %982 = vmatprep.subr.bf16.mxu0 0
        %983 = vmatpush1.bf16.xpose.msra.mxu0 0
        %984 = vmatprep.subr.bf16.mxu0 0
        %985 = vmatpush1.bf16.xpose.msra.mxu0 0
        %986 = vmatprep.subr.bf16.mxu0 0
        %987 = vmatpush1.bf16.xpose.msra.mxu0 0
        %988 = vmatprep.subr.bf16.mxu0 0
        %989 = vmatpush1.bf16.xpose.msra.mxu0 0
        %990 = vmatprep.subr.bf16.mxu0 0
        %991 = vmatpush1.bf16.xpose.msra.mxu0 0
        %992 = vmatprep.subr.bf16.mxu0 0
        %993 = vmatpush1.bf16.xpose.msra.mxu0 0
        %994 = vmatprep.subr.bf16.mxu0 0
        %995 = vmatpush1.bf16.xpose.msra.mxu0 0
        %996 = vmatprep.mubr.bf16.mxu0 0
        %997 = vmatmul.mubr.bf16.gmra.mrb[0].mxu0 %v959
        %v998 = vpop.f32.mrb[0].mxu0
        %v999 = vadd.f32 0.0, %v998
        %v1000 = vpop.f32.mrb[0].mxu0
        %v1001 = vpop.f32.mrb[0].mxu0
        %v1002 = vpop.f32.mrb[0].mxu0
        %1003 = vdwg.mxu0
        %v1004 = vmul.f32 %v999, 0.35355338
        %v1005 = vadd.f32 %v1004, %v673
        %v1006 = vsel %vm957, %v1005, -inf
        %1007 = vmax.xlane.f32.xlu0 %v1006
        %v1008 = vpop.xlane.xlu0 %1007
        %v1009 = vsub.f32 %v1005, %v1008
        %v1010 = vmul.f32 %v1009, 1.442695
        %v1011 = vpow.pop %v1010
        %v1012 = vsel %vm957, %v1011, 0.0
        %1013 = vadd.xlane.f32.xlu0 %v1012
        %v1014 = vpop.xlane.xlu0 %1013
        %v1015 = vrcp.pop %v1014
        %v1016 = vmul.f32 %v1011, %v1015
        %v1017 = vpack.c.bf16 %v1016, %v1016
        %1018 = vrot.lane.b32.xlu0 %v953, 64
        %v1019 = vpop.permute.xlu0 %1018
        %v1021 = vsel %vm957, %v1017, 0
        %vm1023 = vcmask 1043456
        %v1025 = vsel %vm1023, %v1019, 0
        %1027 = vmatprep.subr.bf16.mxu0 0
        %1028 = vmatpush1.bf16.msra.mxu0 %v1025
        %1029 = vmatprep.subr.bf16.mxu0 0
        %1030 = vmatpush1.bf16.msra.mxu0 0
        %1031 = vmatprep.subr.bf16.mxu0 0
        %1032 = vmatpush1.bf16.msra.mxu0 0
        %1033 = vmatprep.subr.bf16.mxu0 0
        %1034 = vmatpush1.bf16.msra.mxu0 0
        %1035 = vmatprep.subr.bf16.mxu0 0
        %1036 = vmatpush1.bf16.msra.mxu0 0
        %1037 = vmatprep.subr.bf16.mxu0 0
        %1038 = vmatpush1.bf16.msra.mxu0 0
        %1039 = vmatprep.subr.bf16.mxu0 0
        %1040 = vmatpush1.bf16.msra.mxu0 0
        %1041 = vmatprep.subr.bf16.mxu0 0
        %1042 = vmatpush1.bf16.msra.mxu0 0
        %1043 = vmatprep.subr.bf16.mxu0 0
        %1044 = vmatpush1.bf16.msra.mxu0 0
        %1045 = vmatprep.subr.bf16.mxu0 0
        %1046 = vmatpush1.bf16.msra.mxu0 0
        %1047 = vmatprep.subr.bf16.mxu0 0
        %1048 = vmatpush1.bf16.msra.mxu0 0
        %1049 = vmatprep.subr.bf16.mxu0 0
        %1050 = vmatpush1.bf16.msra.mxu0 0
        %1051 = vmatprep.subr.bf16.mxu0 0
        %1052 = vmatpush1.bf16.msra.mxu0 0
        %1053 = vmatprep.subr.bf16.mxu0 0
        %1054 = vmatpush1.bf16.msra.mxu0 0
        %1055 = vmatprep.subr.bf16.mxu0 0
        %1056 = vmatpush1.bf16.msra.mxu0 0
        %1057 = vmatprep.subr.bf16.mxu0 0
        %1058 = vmatpush1.bf16.msra.mxu0 0
        %1059 = vmatprep.mubr.bf16.mxu0 0
        %1060 = vmatmul.mubr.bf16.gmra.mrb[0].mxu0 %v1021
        %v1061 = vpop.f32.mrb[0].mxu0
        %v1062 = vadd.f32 0.0, %v1061
        %v1063 = vpop.f32.mrb[0].mxu0
        %v1064 = vpop.f32.mrb[0].mxu0
        %v1065 = vpop.f32.mrb[0].mxu0
        %1066 = vdwg.mxu0
        %v1067 = vpack.c.bf16 %v1062, %v1062
        %v1068 = vld [vmem:[%s8] sm:$0xf]
        %1069 = vrot.lane.b32.xlu0 %v953, 120
        %v1070 = vpop.permute.xlu0 %1069
        %1071 = vrot.lane.b32.xlu0 %v953, 88
        %v1072 = vpop.permute.xlu0 %1071
        %v1074 = vsel %vm957, %v1070, 0
        %v1077 = vsel %vm957, %v1072, 0
        %1079 = vmatprep.subr.bf16.mxu0 0
        %1080 = vmatpush1.bf16.xpose.msra.mxu0 %v1077
        %1081 = vmatprep.subr.bf16.mxu0 0
        %1082 = vmatpush1.bf16.xpose.msra.mxu0 0
        %1083 = vmatprep.subr.bf16.mxu0 0
        %1084 = vmatpush1.bf16.xpose.msra.mxu0 0
        %1085 = vmatprep.subr.bf16.mxu0 0
        %1086 = vmatpush1.bf16.xpose.msra.mxu0 0
        %1087 = vmatprep.subr.bf16.mxu0 0
        %1088 = vmatpush1.bf16.xpose.msra.mxu0 0
        %1089 = vmatprep.subr.bf16.mxu0 0
        %1090 = vmatpush1.bf16.xpose.msra.mxu0 0
        %1091 = vmatprep.subr.bf16.mxu0 0
        %1092 = vmatpush1.bf16.xpose.msra.mxu0 0
        %1093 = vmatprep.subr.bf16.mxu0 0
        %1094 = vmatpush1.bf16.xpose.msra.mxu0 0
        %1095 = vmatprep.subr.bf16.mxu0 0
        %1096 = vmatpush1.bf16.xpose.msra.mxu0 0
        %1097 = vmatprep.subr.bf16.mxu0 0
        %1098 = vmatpush1.bf16.xpose.msra.mxu0 0
        %1099 = vmatprep.subr.bf16.mxu0 0
        %1100 = vmatpush1.bf16.xpose.msra.mxu0 0
        %1101 = vmatprep.subr.bf16.mxu0 0
        %1102 = vmatpush1.bf16.xpose.msra.mxu0 0
        %1103 = vmatprep.subr.bf16.mxu0 0
        %1104 = vmatpush1.bf16.xpose.msra.mxu0 0
        %1105 = vmatprep.subr.bf16.mxu0 0
        %1106 = vmatpush1.bf16.xpose.msra.mxu0 0
        %1107 = vmatprep.subr.bf16.mxu0 0
        %1108 = vmatpush1.bf16.xpose.msra.mxu0 0
        %1109 = vmatprep.subr.bf16.mxu0 0
        %1110 = vmatpush1.bf16.xpose.msra.mxu0 0
        %1111 = vmatprep.mubr.bf16.mxu0 0
        %1112 = vmatmul.mubr.bf16.gmra.mrb[0].mxu0 %v1074
        %v1113 = vpop.f32.mrb[0].mxu0
        %v1114 = vadd.f32 0.0, %v1113
        %v1115 = vpop.f32.mrb[0].mxu0
        %v1116 = vpop.f32.mrb[0].mxu0
        %v1117 = vpop.f32.mrb[0].mxu0
        %1118 = vdwg.mxu0
        %v1119 = vmul.f32 %v1114, 0.35355338
        %v1120 = vadd.f32 %v1119, %v673
        %v1121 = vsel %vm957, %v1120, -inf
        %1122 = vmax.xlane.f32.xlu0 %v1121
        %v1123 = vpop.xlane.xlu0 %1122
        %v1124 = vsub.f32 %v1120, %v1123
        %v1125 = vmul.f32 %v1124, 1.442695
        %v1126 = vpow.pop %v1125
        %v1127 = vsel %vm957, %v1126, 0.0
        %1128 = vadd.xlane.f32.xlu0 %v1127
        %v1129 = vpop.xlane.xlu0 %1128
        %v1130 = vrcp.pop %v1129
        %v1131 = vmul.f32 %v1126, %v1130
        %v1132 = vpack.c.bf16 %v1131, %v1131
        %1133 = vrot.lane.b32.xlu0 %v953, 56
        %v1134 = vpop.permute.xlu0 %1133
        %v1136 = vsel %vm957, %v1132, 0
        %v1139 = vsel %vm1023, %v1134, 0
        %1141 = vmatprep.subr.bf16.mxu0 0
        %1142 = vmatpush1.bf16.msra.mxu0 %v1139
        %1143 = vmatprep.subr.bf16.mxu0 0
        %1144 = vmatpush1.bf16.msra.mxu0 0
        %1145 = vmatprep.subr.bf16.mxu0 0
        %1146 = vmatpush1.bf16.msra.mxu0 0
        %1147 = vmatprep.subr.bf16.mxu0 0
        %1148 = vmatpush1.bf16.msra.mxu0 0
        %1149 = vmatprep.subr.bf16.mxu0 0
        %1150 = vmatpush1.bf16.msra.mxu0 0
        %1151 = vmatprep.subr.bf16.mxu0 0
        %1152 = vmatpush1.bf16.msra.mxu0 0
        %1153 = vmatprep.subr.bf16.mxu0 0
        %1154 = vmatpush1.bf16.msra.mxu0 0
        %1155 = vmatprep.subr.bf16.mxu0 0
        %1156 = vmatpush1.bf16.msra.mxu0 0
        %1157 = vmatprep.subr.bf16.mxu0 0
        %1158 = vmatpush1.bf16.msra.mxu0 0
        %1159 = vmatprep.subr.bf16.mxu0 0
        %1160 = vmatpush1.bf16.msra.mxu0 0
        %1161 = vmatprep.subr.bf16.mxu0 0
        %1162 = vmatpush1.bf16.msra.mxu0 0
        %1163 = vmatprep.subr.bf16.mxu0 0
        %1164 = vmatpush1.bf16.msra.mxu0 0
        %1165 = vmatprep.subr.bf16.mxu0 0
        %1166 = vmatpush1.bf16.msra.mxu0 0
        %1167 = vmatprep.subr.bf16.mxu0 0
        %1168 = vmatpush1.bf16.msra.mxu0 0
        %1169 = vmatprep.subr.bf16.mxu0 0
        %1170 = vmatpush1.bf16.msra.mxu0 0
        %1171 = vmatprep.subr.bf16.mxu0 0
        %1172 = vmatpush1.bf16.msra.mxu0 0
        %1173 = vmatprep.mubr.bf16.mxu0 0
        %1174 = vmatmul.mubr.bf16.gmra.mrb[0].mxu0 %v1136
        %v1175 = vpop.f32.mrb[0].mxu0
        %v1176 = vadd.f32 0.0, %v1175
        %v1177 = vpop.f32.mrb[0].mxu0
        %v1178 = vpop.f32.mrb[0].mxu0
        %v1179 = vpop.f32.mrb[0].mxu0
        %1180 = vdwg.mxu0
        %v1181 = vpack.c.bf16 %v1176, %v1176
        %s1182 = scalar_lea.vmem %s8, 4
        %v1183 = vld [vmem:[%s1182] sm:$0xf]
        %v1185 = vsel %vm957, %v1181, 0
        %v1188 = vsel %vm1023, %v1183, 0
        %1190 = vmatprep.subr.bf16.mxu0 0
        %1191 = vmatpush1.bf16.msra.mxu0 %v1188
        %1192 = vmatprep.subr.bf16.mxu0 0
        %1193 = vmatpush1.bf16.msra.mxu0 0
        %1194 = vmatprep.subr.bf16.mxu0 0
        %1195 = vmatpush1.bf16.msra.mxu0 0
        %1196 = vmatprep.subr.bf16.mxu0 0
        %1197 = vmatpush1.bf16.msra.mxu0 0
        %1198 = vmatprep.subr.bf16.mxu0 0
        %1199 = vmatpush1.bf16.msra.mxu0 0
        %1200 = vmatprep.subr.bf16.mxu0 0
        %1201 = vmatpush1.bf16.msra.mxu0 0
        %1202 = vmatprep.subr.bf16.mxu0 0
        %1203 = vmatpush1.bf16.msra.mxu0 0
        %1204 = vmatprep.subr.bf16.mxu0 0
        %1205 = vmatpush1.bf16.msra.mxu0 0
        %1206 = vmatprep.subr.bf16.mxu0 0
        %1207 = vmatpush1.bf16.msra.mxu0 0
        %1208 = vmatprep.subr.bf16.mxu0 0
        %1209 = vmatpush1.bf16.msra.mxu0 0
        %1210 = vmatprep.subr.bf16.mxu0 0
        %1211 = vmatpush1.bf16.msra.mxu0 0
        %1212 = vmatprep.subr.bf16.mxu0 0
        %1213 = vmatpush1.bf16.msra.mxu0 0
        %1214 = vmatprep.subr.bf16.mxu0 0
        %1215 = vmatpush1.bf16.msra.mxu0 0
        %1216 = vmatprep.subr.bf16.mxu0 0
        %1217 = vmatpush1.bf16.msra.mxu0 0
        %1218 = vmatprep.subr.bf16.mxu0 0
        %1219 = vmatpush1.bf16.msra.mxu0 0
        %1220 = vmatprep.subr.bf16.mxu0 0
        %1221 = vmatpush1.bf16.msra.mxu0 0
        %1222 = vmatprep.mubr.bf16.mxu0 0
        %1223 = vmatmul.mubr.bf16.gmra.mrb[0].mxu0 %v1185
        %v1224 = vpop.f32.mrb[0].mxu0
        %v1225 = vadd.f32 0.0, %v1224
        %v1226 = vpop.f32.mrb[0].mxu0
        %v1227 = vpop.f32.mrb[0].mxu0
        %v1228 = vpop.f32.mrb[0].mxu0
        %1229 = vdwg.mxu0
        %v1231 = vsel %vm957, %v1067, 0
        %v1234 = vsel %vm1023, %v1068, 0
        %1236 = vmatprep.subr.bf16.mxu0 0
        %1237 = vmatpush1.bf16.msra.mxu0 %v1234
        %1238 = vmatprep.subr.bf16.mxu0 0
        %1239 = vmatpush1.bf16.msra.mxu0 0
        %1240 = vmatprep.subr.bf16.mxu0 0
        %1241 = vmatpush1.bf16.msra.mxu0 0
        %1242 = vmatprep.subr.bf16.mxu0 0
        %1243 = vmatpush1.bf16.msra.mxu0 0
        %1244 = vmatprep.subr.bf16.mxu0 0
        %1245 = vmatpush1.bf16.msra.mxu0 0
        %1246 = vmatprep.subr.bf16.mxu0 0
        %1247 = vmatpush1.bf16.msra.mxu0 0
        %1248 = vmatprep.subr.bf16.mxu0 0
        %1249 = vmatpush1.bf16.msra.mxu0 0
        %1250 = vmatprep.subr.bf16.mxu0 0
        %1251 = vmatpush1.bf16.msra.mxu0 0
        %1252 = vmatprep.subr.bf16.mxu0 0
        %1253 = vmatpush1.bf16.msra.mxu0 0
        %1254 = vmatprep.subr.bf16.mxu0 0
        %1255 = vmatpush1.bf16.msra.mxu0 0
        %1256 = vmatprep.subr.bf16.mxu0 0
        %1257 = vmatpush1.bf16.msra.mxu0 0
        %1258 = vmatprep.subr.bf16.mxu0 0
        %1259 = vmatpush1.bf16.msra.mxu0 0
        %1260 = vmatprep.subr.bf16.mxu0 0
        %1261 = vmatpush1.bf16.msra.mxu0 0
        %1262 = vmatprep.subr.bf16.mxu0 0
        %1263 = vmatpush1.bf16.msra.mxu0 0
        %1264 = vmatprep.subr.bf16.mxu0 0
        %1265 = vmatpush1.bf16.msra.mxu0 0
        %1266 = vmatprep.subr.bf16.mxu0 0
        %1267 = vmatpush1.bf16.msra.mxu0 0
        %1268 = vmatprep.mubr.bf16.mxu0 0
        %1269 = vmatmul.mubr.bf16.gmra.mrb[0].mxu0 %v1231
        %v1270 = vpop.f32.mrb[0].mxu0
        %v1271 = vadd.f32 %v1225, %v1270
        %v1272 = vpop.f32.mrb[0].mxu0
        %v1273 = vpop.f32.mrb[0].mxu0
        %v1274 = vpop.f32.mrb[0].mxu0
        %1275 = vdwg.mxu0
        %1276 = vrot.lane.b32.xlu0 %v953, 112
        %v1277 = vpop.permute.xlu0 %1276
        %1278 = vrot.lane.b32.xlu0 %v953, 80
        %v1279 = vpop.permute.xlu0 %1278
        %v1281 = vsel %vm957, %v1277, 0
        %v1284 = vsel %vm957, %v1279, 0
        %1286 = vmatprep.subr.bf16.mxu0 0
        %1287 = vmatpush1.bf16.xpose.msra.mxu0 %v1284
        %1288 = vmatprep.subr.bf16.mxu0 0
        %1289 = vmatpush1.bf16.xpose.msra.mxu0 0
        %1290 = vmatprep.subr.bf16.mxu0 0
        %1291 = vmatpush1.bf16.xpose.msra.mxu0 0
        %1292 = vmatprep.subr.bf16.mxu0 0
        %1293 = vmatpush1.bf16.xpose.msra.mxu0 0
        %1294 = vmatprep.subr.bf16.mxu0 0
        %1295 = vmatpush1.bf16.xpose.msra.mxu0 0
        %1296 = vmatprep.subr.bf16.mxu0 0
        %1297 = vmatpush1.bf16.xpose.msra.mxu0 0
        %1298 = vmatprep.subr.bf16.mxu0 0
        %1299 = vmatpush1.bf16.xpose.msra.mxu0 0
        %1300 = vmatprep.subr.bf16.mxu0 0
        %1301 = vmatpush1.bf16.xpose.msra.mxu0 0
        %1302 = vmatprep.subr.bf16.mxu0 0
        %1303 = vmatpush1.bf16.xpose.msra.mxu0 0
        %1304 = vmatprep.subr.bf16.mxu0 0
        %1305 = vmatpush1.bf16.xpose.msra.mxu0 0
        %1306 = vmatprep.subr.bf16.mxu0 0
        %1307 = vmatpush1.bf16.xpose.msra.mxu0 0
        %1308 = vmatprep.subr.bf16.mxu0 0
        %1309 = vmatpush1.bf16.xpose.msra.mxu0 0
        %1310 = vmatprep.subr.bf16.mxu0 0
        %1311 = vmatpush1.bf16.xpose.msra.mxu0 0
        %1312 = vmatprep.subr.bf16.mxu0 0
        %1313 = vmatpush1.bf16.xpose.msra.mxu0 0
        %1314 = vmatprep.subr.bf16.mxu0 0
        %1315 = vmatpush1.bf16.xpose.msra.mxu0 0
        %1316 = vmatprep.subr.bf16.mxu0 0
        %1317 = vmatpush1.bf16.xpose.msra.mxu0 0
        %1318 = vmatprep.mubr.bf16.mxu0 0
        %1319 = vmatmul.mubr.bf16.gmra.mrb[0].mxu0 %v1281
        %v1320 = vpop.f32.mrb[0].mxu0
        %v1321 = vadd.f32 0.0, %v1320
        %v1322 = vpop.f32.mrb[0].mxu0
        %v1323 = vpop.f32.mrb[0].mxu0
        %v1324 = vpop.f32.mrb[0].mxu0
        %1325 = vdwg.mxu0
        %v1326 = vmul.f32 %v1321, 0.35355338
        %v1327 = vadd.f32 %v1326, %v673
        %v1328 = vsel %vm957, %v1327, -inf
        %1329 = vmax.xlane.f32.xlu0 %v1328
        %v1330 = vpop.xlane.xlu0 %1329
        %v1331 = vsub.f32 %v1327, %v1330
        %v1332 = vmul.f32 %v1331, 1.442695
        %v1333 = vpow.pop %v1332
        %v1334 = vsel %vm957, %v1333, 0.0
        %1335 = vadd.xlane.f32.xlu0 %v1334
        %v1336 = vpop.xlane.xlu0 %1335
        %v1337 = vrcp.pop %v1336
        %v1338 = vmul.f32 %v1333, %v1337
        %v1339 = vpack.c.bf16 %v1338, %v1338
        %1340 = vrot.lane.b32.xlu0 %v953, 48
        %v1341 = vpop.permute.xlu0 %1340
        %v1343 = vsel %vm957, %v1339, 0
        %v1346 = vsel %vm1023, %v1341, 0
        %1348 = vmatprep.subr.bf16.mxu0 0
        %1349 = vmatpush1.bf16.msra.mxu0 %v1346
        %1350 = vmatprep.subr.bf16.mxu0 0
        %1351 = vmatpush1.bf16.msra.mxu0 0
        %1352 = vmatprep.subr.bf16.mxu0 0
        %1353 = vmatpush1.bf16.msra.mxu0 0
        %1354 = vmatprep.subr.bf16.mxu0 0
        %1355 = vmatpush1.bf16.msra.mxu0 0
        %1356 = vmatprep.subr.bf16.mxu0 0
        %1357 = vmatpush1.bf16.msra.mxu0 0
        %1358 = vmatprep.subr.bf16.mxu0 0
        %1359 = vmatpush1.bf16.msra.mxu0 0
        %1360 = vmatprep.subr.bf16.mxu0 0
        %1361 = vmatpush1.bf16.msra.mxu0 0
        %1362 = vmatprep.subr.bf16.mxu0 0
        %1363 = vmatpush1.bf16.msra.mxu0 0
        %1364 = vmatprep.subr.bf16.mxu0 0
        %1365 = vmatpush1.bf16.msra.mxu0 0
        %1366 = vmatprep.subr.bf16.mxu0 0
        %1367 = vmatpush1.bf16.msra.mxu0 0
        %1368 = vmatprep.subr.bf16.mxu0 0
        %1369 = vmatpush1.bf16.msra.mxu0 0
        %1370 = vmatprep.subr.bf16.mxu0 0
        %1371 = vmatpush1.bf16.msra.mxu0 0
        %1372 = vmatprep.subr.bf16.mxu0 0
        %1373 = vmatpush1.bf16.msra.mxu0 0
        %1374 = vmatprep.subr.bf16.mxu0 0
        %1375 = vmatpush1.bf16.msra.mxu0 0
        %1376 = vmatprep.subr.bf16.mxu0 0
        %1377 = vmatpush1.bf16.msra.mxu0 0
        %1378 = vmatprep.subr.bf16.mxu0 0
        %1379 = vmatpush1.bf16.msra.mxu0 0
        %1380 = vmatprep.mubr.bf16.mxu0 0
        %1381 = vmatmul.mubr.bf16.gmra.mrb[0].mxu0 %v1343
        %v1382 = vpop.f32.mrb[0].mxu0
        %v1383 = vadd.f32 0.0, %v1382
        %v1384 = vpop.f32.mrb[0].mxu0
        %v1385 = vpop.f32.mrb[0].mxu0
        %v1386 = vpop.f32.mrb[0].mxu0
        %1387 = vdwg.mxu0
        %v1388 = vpack.c.bf16 %v1383, %v1383
        %s1389 = scalar_lea.vmem %s8, 8
        %v1390 = vld [vmem:[%s1389] sm:$0xf]
        %v1392 = vsel %vm957, %v1388, 0
        %v1395 = vsel %vm1023, %v1390, 0
        %1397 = vmatprep.subr.bf16.mxu0 0
        %1398 = vmatpush1.bf16.msra.mxu0 %v1395
        %1399 = vmatprep.subr.bf16.mxu0 0
        %1400 = vmatpush1.bf16.msra.mxu0 0
        %1401 = vmatprep.subr.bf16.mxu0 0
        %1402 = vmatpush1.bf16.msra.mxu0 0
        %1403 = vmatprep.subr.bf16.mxu0 0
        %1404 = vmatpush1.bf16.msra.mxu0 0
        %1405 = vmatprep.subr.bf16.mxu0 0
        %1406 = vmatpush1.bf16.msra.mxu0 0
        %1407 = vmatprep.subr.bf16.mxu0 0
        %1408 = vmatpush1.bf16.msra.mxu0 0
        %1409 = vmatprep.subr.bf16.mxu0 0
        %1410 = vmatpush1.bf16.msra.mxu0 0
        %1411 = vmatprep.subr.bf16.mxu0 0
        %1412 = vmatpush1.bf16.msra.mxu0 0
        %1413 = vmatprep.subr.bf16.mxu0 0
        %1414 = vmatpush1.bf16.msra.mxu0 0
        %1415 = vmatprep.subr.bf16.mxu0 0
        %1416 = vmatpush1.bf16.msra.mxu0 0
        %1417 = vmatprep.subr.bf16.mxu0 0
        %1418 = vmatpush1.bf16.msra.mxu0 0
        %1419 = vmatprep.subr.bf16.mxu0 0
        %1420 = vmatpush1.bf16.msra.mxu0 0
        %1421 = vmatprep.subr.bf16.mxu0 0
        %1422 = vmatpush1.bf16.msra.mxu0 0
        %1423 = vmatprep.subr.bf16.mxu0 0
        %1424 = vmatpush1.bf16.msra.mxu0 0
        %1425 = vmatprep.subr.bf16.mxu0 0
        %1426 = vmatpush1.bf16.msra.mxu0 0
        %1427 = vmatprep.subr.bf16.mxu0 0
        %1428 = vmatpush1.bf16.msra.mxu0 0
        %1429 = vmatprep.mubr.bf16.mxu0 0
        %1430 = vmatmul.mubr.bf16.gmra.mrb[0].mxu0 %v1392
        %v1431 = vpop.f32.mrb[0].mxu0
        %v1432 = vadd.f32 0.0, %v1431
        %v1433 = vpop.f32.mrb[0].mxu0
        %v1434 = vpop.f32.mrb[0].mxu0
        %v1435 = vpop.f32.mrb[0].mxu0
        %1436 = vdwg.mxu0
        %v1437 = vadd.f32 %v1271, %v1432
        %1438 = vrot.lane.b32.xlu0 %v953, 104
        %v1439 = vpop.permute.xlu0 %1438
        %1440 = vrot.lane.b32.xlu0 %v953, 72
        %v1441 = vpop.permute.xlu0 %1440
        %v1443 = vsel %vm957, %v1439, 0
        %v1446 = vsel %vm957, %v1441, 0
        %1448 = vmatprep.subr.bf16.mxu0 0
        %1449 = vmatpush1.bf16.xpose.msra.mxu0 %v1446
        %1450 = vmatprep.subr.bf16.mxu0 0
        %1451 = vmatpush1.bf16.xpose.msra.mxu0 0
        %1452 = vmatprep.subr.bf16.mxu0 0
        %1453 = vmatpush1.bf16.xpose.msra.mxu0 0
        %1454 = vmatprep.subr.bf16.mxu0 0
        %1455 = vmatpush1.bf16.xpose.msra.mxu0 0
        %1456 = vmatprep.subr.bf16.mxu0 0
        %1457 = vmatpush1.bf16.xpose.msra.mxu0 0
        %1458 = vmatprep.subr.bf16.mxu0 0
        %1459 = vmatpush1.bf16.xpose.msra.mxu0 0
        %1460 = vmatprep.subr.bf16.mxu0 0
        %1461 = vmatpush1.bf16.xpose.msra.mxu0 0
        %1462 = vmatprep.subr.bf16.mxu0 0
        %1463 = vmatpush1.bf16.xpose.msra.mxu0 0
        %1464 = vmatprep.subr.bf16.mxu0 0
        %1465 = vmatpush1.bf16.xpose.msra.mxu0 0
        %1466 = vmatprep.subr.bf16.mxu0 0
        %1467 = vmatpush1.bf16.xpose.msra.mxu0 0
        %1468 = vmatprep.subr.bf16.mxu0 0
        %1469 = vmatpush1.bf16.xpose.msra.mxu0 0
        %1470 = vmatprep.subr.bf16.mxu0 0
        %1471 = vmatpush1.bf16.xpose.msra.mxu0 0
        %1472 = vmatprep.subr.bf16.mxu0 0
        %1473 = vmatpush1.bf16.xpose.msra.mxu0 0
        %1474 = vmatprep.subr.bf16.mxu0 0
        %1475 = vmatpush1.bf16.xpose.msra.mxu0 0
        %1476 = vmatprep.subr.bf16.mxu0 0
        %1477 = vmatpush1.bf16.xpose.msra.mxu0 0
        %1478 = vmatprep.subr.bf16.mxu0 0
        %1479 = vmatpush1.bf16.xpose.msra.mxu0 0
        %1480 = vmatprep.mubr.bf16.mxu0 0
        %1481 = vmatmul.mubr.bf16.gmra.mrb[0].mxu0 %v1443
        %v1482 = vpop.f32.mrb[0].mxu0
        %v1483 = vadd.f32 0.0, %v1482
        %v1484 = vpop.f32.mrb[0].mxu0
        %v1485 = vpop.f32.mrb[0].mxu0
        %v1486 = vpop.f32.mrb[0].mxu0
        %1487 = vdwg.mxu0
        %v1488 = vmul.f32 %v1483, 0.35355338
        %v1489 = vadd.f32 %v1488, %v673
        %v1490 = vsel %vm957, %v1489, -inf
        %1491 = vmax.xlane.f32.xlu0 %v1490
        %v1492 = vpop.xlane.xlu0 %1491
        %v1493 = vsub.f32 %v1489, %v1492
        %v1494 = vmul.f32 %v1493, 1.442695
        %v1495 = vpow.pop %v1494
        %v1496 = vsel %vm957, %v1495, 0.0
        %1497 = vadd.xlane.f32.xlu0 %v1496
        %v1498 = vpop.xlane.xlu0 %1497
        %v1499 = vrcp.pop %v1498
        %v1500 = vmul.f32 %v1495, %v1499
        %v1501 = vpack.c.bf16 %v1500, %v1500
        %1502 = vrot.lane.b32.xlu0 %v953, 40
        %v1503 = vpop.permute.xlu0 %1502
        %v1505 = vsel %vm957, %v1501, 0
        %v1508 = vsel %vm1023, %v1503, 0
        %1510 = vmatprep.subr.bf16.mxu0 0
        %1511 = vmatpush1.bf16.msra.mxu0 %v1508
        %1512 = vmatprep.subr.bf16.mxu0 0
        %1513 = vmatpush1.bf16.msra.mxu0 0
        %1514 = vmatprep.subr.bf16.mxu0 0
        %1515 = vmatpush1.bf16.msra.mxu0 0
        %1516 = vmatprep.subr.bf16.mxu0 0
        %1517 = vmatpush1.bf16.msra.mxu0 0
        %1518 = vmatprep.subr.bf16.mxu0 0
        %1519 = vmatpush1.bf16.msra.mxu0 0
        %1520 = vmatprep.subr.bf16.mxu0 0
        %1521 = vmatpush1.bf16.msra.mxu0 0
        %1522 = vmatprep.subr.bf16.mxu0 0
        %1523 = vmatpush1.bf16.msra.mxu0 0
        %1524 = vmatprep.subr.bf16.mxu0 0
        %1525 = vmatpush1.bf16.msra.mxu0 0
        %1526 = vmatprep.subr.bf16.mxu0 0
        %1527 = vmatpush1.bf16.msra.mxu0 0
        %1528 = vmatprep.subr.bf16.mxu0 0
        %1529 = vmatpush1.bf16.msra.mxu0 0
        %1530 = vmatprep.subr.bf16.mxu0 0
        %1531 = vmatpush1.bf16.msra.mxu0 0
        %1532 = vmatprep.subr.bf16.mxu0 0
        %1533 = vmatpush1.bf16.msra.mxu0 0
        %1534 = vmatprep.subr.bf16.mxu0 0
        %1535 = vmatpush1.bf16.msra.mxu0 0
        %1536 = vmatprep.subr.bf16.mxu0 0
        %1537 = vmatpush1.bf16.msra.mxu0 0
        %1538 = vmatprep.subr.bf16.mxu0 0
        %1539 = vmatpush1.bf16.msra.mxu0 0
        %1540 = vmatprep.subr.bf16.mxu0 0
        %1541 = vmatpush1.bf16.msra.mxu0 0
        %1542 = vmatprep.mubr.bf16.mxu0 0
        %1543 = vmatmul.mubr.bf16.gmra.mrb[0].mxu0 %v1505
        %v1544 = vpop.f32.mrb[0].mxu0
        %v1545 = vadd.f32 0.0, %v1544
        %v1546 = vpop.f32.mrb[0].mxu0
        %v1547 = vpop.f32.mrb[0].mxu0
        %v1548 = vpop.f32.mrb[0].mxu0
        %1549 = vdwg.mxu0
        %v1550 = vpack.c.bf16 %v1545, %v1545
        %s1551 = scalar_lea.vmem %s8, 12
        %v1552 = vld [vmem:[%s1551] sm:$0xf]
        %v1554 = vsel %vm957, %v1550, 0
        %v1557 = vsel %vm1023, %v1552, 0
        %1559 = vmatprep.subr.bf16.mxu0 0
        %1560 = vmatpush1.bf16.msra.mxu0 %v1557
        %1561 = vmatprep.subr.bf16.mxu0 0
        %1562 = vmatpush1.bf16.msra.mxu0 0
        %1563 = vmatprep.subr.bf16.mxu0 0
        %1564 = vmatpush1.bf16.msra.mxu0 0
        %1565 = vmatprep.subr.bf16.mxu0 0
        %1566 = vmatpush1.bf16.msra.mxu0 0
        %1567 = vmatprep.subr.bf16.mxu0 0
        %1568 = vmatpush1.bf16.msra.mxu0 0
        %1569 = vmatprep.subr.bf16.mxu0 0
        %1570 = vmatpush1.bf16.msra.mxu0 0
        %1571 = vmatprep.subr.bf16.mxu0 0
        %1572 = vmatpush1.bf16.msra.mxu0 0
        %1573 = vmatprep.subr.bf16.mxu0 0
        %1574 = vmatpush1.bf16.msra.mxu0 0
        %1575 = vmatprep.subr.bf16.mxu0 0
        %1576 = vmatpush1.bf16.msra.mxu0 0
        %1577 = vmatprep.subr.bf16.mxu0 0
        %1578 = vmatpush1.bf16.msra.mxu0 0
        %1579 = vmatprep.subr.bf16.mxu0 0
        %1580 = vmatpush1.bf16.msra.mxu0 0
        %1581 = vmatprep.subr.bf16.mxu0 0
        %1582 = vmatpush1.bf16.msra.mxu0 0
        %1583 = vmatprep.subr.bf16.mxu0 0
        %1584 = vmatpush1.bf16.msra.mxu0 0
        %1585 = vmatprep.subr.bf16.mxu0 0
        %1586 = vmatpush1.bf16.msra.mxu0 0
        %1587 = vmatprep.subr.bf16.mxu0 0
        %1588 = vmatpush1.bf16.msra.mxu0 0
        %1589 = vmatprep.subr.bf16.mxu0 0
        %1590 = vmatpush1.bf16.msra.mxu0 0
        %1591 = vmatprep.mubr.bf16.mxu0 0
        %1592 = vmatmul.mubr.bf16.gmra.mrb[0].mxu0 %v1554
        %v1593 = vpop.f32.mrb[0].mxu0
        %v1594 = vadd.f32 0.0, %v1593
        %v1595 = vpop.f32.mrb[0].mxu0
        %v1596 = vpop.f32.mrb[0].mxu0
        %v1597 = vpop.f32.mrb[0].mxu0
        %1598 = vdwg.mxu0
        %v1599 = vadd.f32 %v1437, %v1594
        %v1600 = vadd.f32 %v865, %v1599
        %v1601 = vlaneseq
        %v1602 = vshrl.u32 %v1601, 7
        %v1603 = vsub.s32 7, %v1602
        %v1604 = vrot.slane %v686, %v1603
        %v1605 = vadd.f32 %v1600, %v1604
        %v1606 = vsel %vm648, %v1605, 0.0
        %1607 = vadd.xlane.f32.xlu0 %v1606
        %v1608 = vpop.xlane.xlu0 %1607
        %v1609 = vmul.f32 %v1608, %v652
        %v1610 = vsub.f32 %v1605, %v1609
        %v1611 = vmul.f32 %v1610, %v1610
        %v1612 = vsel %vm648, %v1611, 0.0
        %1613 = vadd.xlane.f32.xlu0 %v1612
        %v1614 = vpop.xlane.xlu0 %1613
        %v1615 = vmul.f32 %v1614, %v652
        %v1616 = vadd.f32 %v1615, 1e-05
        %v1617 = vrsqrt.pop %v1616
        %v1618 = vmul.f32 %v1610, %v1617
        %v1619 = vlaneseq
        %v1620 = vshrl.u32 %v1619, 7
        %v1621 = vsub.s32 0, %v1620
        %v1622 = vrot.slane %v687, %v1621
        %v1623 = vmul.f32 %v1618, %v1622
        %v1624 = vlaneseq
        %v1625 = vshrl.u32 %v1624, 7
        %v1626 = vsub.s32 1, %v1625
        %v1627 = vrot.slane %v687, %v1626
        %v1628 = vadd.f32 %v1623, %v1627
        %v1629 = vld [vmem:[%s9] sm:$0xf]
        %v1630 = vld [vmem:[%s9 + $0x4] sm:$0xf]
        %v1631 = vld [vmem:[%s9 + $0x8] sm:$0xf]
        %v1632 = vld [vmem:[%s9 + $0xc] sm:$0xf]
        %v1633 = vpack.c.bf16 %v1628, %v1628
        %v1634 = vlaneseq
        %v1635 = vshrl.u32 %v1634, 7
        %v1636 = vsub.s32 2, %v1635
        %v1637 = vrot.slane %v687, %v1636
        %v1642 = vunpack.c.l.b16 %v1629
        %v1643 = vunpack.c.l.b16 %v1630
        %v1644 = vunpack.c.l.b16 %v1631
        %v1645 = vunpack.c.l.b16 %v1632
        %v1646 = vpack.c.b16 %v1643, %v1642
        %v1647 = vpack.c.b16 %v1645, %v1644
        %v1651 = vsel %vm648, %v1633, 0
        %1653 = vmatprep.subr.bf16.mxu0 0
        %1654 = vmatpush1.bf16.msra.mxu0 %v1646
        %1655 = vmatprep.subr.bf16.mxu0 0
        %1656 = vmatpush1.bf16.msra.mxu0 %v1647
        %1657 = vmatprep.subr.bf16.mxu0 0
        %1658 = vmatpush1.bf16.msra.mxu0 0
        %1659 = vmatprep.subr.bf16.mxu0 0
        %1660 = vmatpush1.bf16.msra.mxu0 0
        %1661 = vmatprep.subr.bf16.mxu0 0
        %1662 = vmatpush1.bf16.msra.mxu0 0
        %1663 = vmatprep.subr.bf16.mxu0 0
        %1664 = vmatpush1.bf16.msra.mxu0 0
        %1665 = vmatprep.subr.bf16.mxu0 0
        %1666 = vmatpush1.bf16.msra.mxu0 0
        %1667 = vmatprep.subr.bf16.mxu0 0
        %1668 = vmatpush1.bf16.msra.mxu0 0
        %1669 = vmatprep.subr.bf16.mxu0 0
        %1670 = vmatpush1.bf16.msra.mxu0 0
        %1671 = vmatprep.subr.bf16.mxu0 0
        %1672 = vmatpush1.bf16.msra.mxu0 0
        %1673 = vmatprep.subr.bf16.mxu0 0
        %1674 = vmatpush1.bf16.msra.mxu0 0
        %1675 = vmatprep.subr.bf16.mxu0 0
        %1676 = vmatpush1.bf16.msra.mxu0 0
        %1677 = vmatprep.subr.bf16.mxu0 0
        %1678 = vmatpush1.bf16.msra.mxu0 0
        %1679 = vmatprep.subr.bf16.mxu0 0
        %1680 = vmatpush1.bf16.msra.mxu0 0
        %1681 = vmatprep.subr.bf16.mxu0 0
        %1682 = vmatpush1.bf16.msra.mxu0 0
        %1683 = vmatprep.subr.bf16.mxu0 0
        %1684 = vmatpush1.bf16.msra.mxu0 0
        %1685 = vmatprep.mubr.bf16.mxu0 0
        %1686 = vmatmul.mubr.bf16.gmra.mrb[0].mxu0 %v1651
        %v1687 = vpop.f32.mrb[0].mxu0
        %v1688 = vadd.f32 %v1637, %v1687
        %v1689 = vpop.f32.mrb[0].mxu0
        %v1690 = vpop.f32.mrb[0].mxu0
        %v1691 = vpop.f32.mrb[0].mxu0
        %1692 = vdwg.mxu0
        %v1693 = vld [vmem:[%s10] sm:$0xf]
        %v1694 = vld [vmem:[%s10 + $0x4] sm:$0xf]
        %v1695 = vld [vmem:[%s10 + $0x8] sm:$0xf]
        %v1696 = vld [vmem:[%s10 + $0xc] sm:$0xf]
        %v1697 = vlaneseq
        %v1698 = vshrl.u32 %v1697, 7
        %v1699 = vsub.s32 3, %v1698
        %v1700 = vrot.slane %v687, %v1699
        %v1705 = vunpack.c.l.b16 %v1693
        %v1706 = vunpack.c.l.b16 %v1694
        %v1707 = vunpack.c.l.b16 %v1695
        %v1708 = vunpack.c.l.b16 %v1696
        %v1709 = vpack.c.b16 %v1706, %v1705
        %v1710 = vpack.c.b16 %v1708, %v1707
        %1713 = vmatprep.subr.bf16.mxu0 0
        %1714 = vmatpush1.bf16.msra.mxu0 %v1709
        %1715 = vmatprep.subr.bf16.mxu0 0
        %1716 = vmatpush1.bf16.msra.mxu0 %v1710
        %1717 = vmatprep.subr.bf16.mxu0 0
        %1718 = vmatpush1.bf16.msra.mxu0 0
        %1719 = vmatprep.subr.bf16.mxu0 0
        %1720 = vmatpush1.bf16.msra.mxu0 0
        %1721 = vmatprep.subr.bf16.mxu0 0
        %1722 = vmatpush1.bf16.msra.mxu0 0
        %1723 = vmatprep.subr.bf16.mxu0 0
        %1724 = vmatpush1.bf16.msra.mxu0 0
        %1725 = vmatprep.subr.bf16.mxu0 0
        %1726 = vmatpush1.bf16.msra.mxu0 0
        %1727 = vmatprep.subr.bf16.mxu0 0
        %1728 = vmatpush1.bf16.msra.mxu0 0
        %1729 = vmatprep.subr.bf16.mxu0 0
        %1730 = vmatpush1.bf16.msra.mxu0 0
        %1731 = vmatprep.subr.bf16.mxu0 0
        %1732 = vmatpush1.bf16.msra.mxu0 0
        %1733 = vmatprep.subr.bf16.mxu0 0
        %1734 = vmatpush1.bf16.msra.mxu0 0
        %1735 = vmatprep.subr.bf16.mxu0 0
        %1736 = vmatpush1.bf16.msra.mxu0 0
        %1737 = vmatprep.subr.bf16.mxu0 0
        %1738 = vmatpush1.bf16.msra.mxu0 0
        %1739 = vmatprep.subr.bf16.mxu0 0
        %1740 = vmatpush1.bf16.msra.mxu0 0
        %1741 = vmatprep.subr.bf16.mxu0 0
        %1742 = vmatpush1.bf16.msra.mxu0 0
        %1743 = vmatprep.subr.bf16.mxu0 0
        %1744 = vmatpush1.bf16.msra.mxu0 0
        %1745 = vmatprep.mubr.bf16.mxu0 0
        %1746 = vmatmul.mubr.bf16.gmra.mrb[0].mxu0 %v1651
        %v1747 = vpop.f32.mrb[0].mxu0
        %v1748 = vadd.f32 %v1700, %v1747
        %v1749 = vpop.f32.mrb[0].mxu0
        %v1750 = vpop.f32.mrb[0].mxu0
        %v1751 = vpop.f32.mrb[0].mxu0
        %1752 = vdwg.mxu0
        %v1753 = vxor.u32 %v1748, 2147483648
        %v1754 = vmul.f32 %v1753, 1.442695
        %v1755 = vpow.pop %v1754
        %v1756 = vadd.f32 %v1755, 1.0
        %v1757 = vrcp.pop %v1756
        %v1758 = vmul.f32 1.0, %v1757
        %v1759 = vmul.f32 %v1688, %v1758
        %v1760 = vlaneseq
        %v1761 = vshrl.u32 %v1760, 7
        %v1762 = vsub.s32 4, %v1761
        %v1763 = vrot.slane %v688, %v1762
        %v1764 = vmul.f32 %v1759, %v1763
        %v1766 = vsel %vm957, %v681, 0
        %1768 = vmatprep.subr.mxu0 0.0
        %1769 = vmatpush1.msra.mxu0 %v1759
        %1770 = vmatprep.subr.mxu0 0.0
        %1771 = vmatpush1.msra.mxu0 0.0
        %1772 = vmatprep.subr.mxu0 0.0
        %1773 = vmatpush1.msra.mxu0 0.0
        %1774 = vmatprep.subr.mxu0 0.0
        %1775 = vmatpush1.msra.mxu0 0.0
        %1776 = vmatprep.subr.mxu0 0.0
        %1777 = vmatpush1.msra.mxu0 0.0
        %1778 = vmatprep.subr.mxu0 0.0
        %1779 = vmatpush1.msra.mxu0 0.0
        %1780 = vmatprep.subr.mxu0 0.0
        %1781 = vmatpush1.msra.mxu0 0.0
        %1782 = vmatprep.subr.mxu0 0.0
        %1783 = vmatpush1.msra.mxu0 0.0
        %1784 = vmatprep.subr.mxu0 0.0
        %1785 = vmatpush1.msra.mxu0 0.0
        %1786 = vmatprep.subr.mxu0 0.0
        %1787 = vmatpush1.msra.mxu0 0.0
        %1788 = vmatprep.subr.mxu0 0.0
        %1789 = vmatpush1.msra.mxu0 0.0
        %1790 = vmatprep.subr.mxu0 0.0
        %1791 = vmatpush1.msra.mxu0 0.0
        %1792 = vmatprep.subr.mxu0 0.0
        %1793 = vmatpush1.msra.mxu0 0.0
        %1794 = vmatprep.subr.mxu0 0.0
        %1795 = vmatpush1.msra.mxu0 0.0
        %1796 = vmatprep.subr.mxu0 0.0
        %1797 = vmatpush1.msra.mxu0 0.0
        %1798 = vmatprep.subr.mxu0 0.0
        %1799 = vmatpush1.msra.mxu0 0.0
        %1800 = vmatprep.subr.mxu0 0.0
        %1801 = vmatpush1.msra.mxu0 0.0
        %1802 = vmatprep.subr.mxu0 0.0
        %1803 = vmatpush1.msra.mxu0 0.0
        %1804 = vmatprep.subr.mxu0 0.0
        %1805 = vmatpush1.msra.mxu0 0.0
        %1806 = vmatprep.subr.mxu0 0.0
        %1807 = vmatpush1.msra.mxu0 0.0
        %1808 = vmatprep.subr.mxu0 0.0
        %1809 = vmatpush1.msra.mxu0 0.0
        %1810 = vmatprep.subr.mxu0 0.0
        %1811 = vmatpush1.msra.mxu0 0.0
        %1812 = vmatprep.subr.mxu0 0.0
        %1813 = vmatpush1.msra.mxu0 0.0
        %1814 = vmatprep.subr.mxu0 0.0
        %1815 = vmatpush1.msra.mxu0 0.0
        %1816 = vmatprep.subr.mxu0 0.0
        %1817 = vmatpush1.msra.mxu0 0.0
        %1818 = vmatprep.subr.mxu0 0.0
        %1819 = vmatpush1.msra.mxu0 0.0
        %1820 = vmatprep.subr.mxu0 0.0
        %1821 = vmatpush1.msra.mxu0 0.0
        %1822 = vmatprep.subr.mxu0 0.0
        %1823 = vmatpush1.msra.mxu0 0.0
        %1824 = vmatprep.subr.mxu0 0.0
        %1825 = vmatpush1.msra.mxu0 0.0
        %1826 = vmatprep.subr.mxu0 0.0
        %1827 = vmatpush1.msra.mxu0 0.0
        %1828 = vmatprep.subr.mxu0 0.0
        %1829 = vmatpush1.msra.mxu0 0.0
        %1830 = vmatprep.subr.mxu0 0.0
        %1831 = vmatpush1.msra.mxu0 0.0
        %1832 = vmatprep.mubr.f32.mxu0 0.0
        %1833 = vmatmul.mubr.f32.gmra.mrb[0].mxu0 %v1766
        %v1834 = vpop.f32.mrb[0].mxu0
        %v1835 = vadd.f32 0.0, %v1834
        %v1836 = vpop.f32.mrb[0].mxu0
        %1837 = vdwg.mxu0
        %v1838 = vlaneseq
        %v1839 = vshrl.u32 %v1838, 7
        %v1840 = vsub.s32 3, %v1839
        %v1841 = vrot.slane %v688, %v1840
        %v1842 = vmul.f32 %v1835, %v1841
        %v1843 = vadd.f32 %v1764, %v1842
        %v1845 = vsel %vm957, %v685, 0
        %1847 = vmatprep.subr.mxu0 0.0
        %1848 = vmatpush1.msra.mxu0 %v1759
        %1849 = vmatprep.subr.mxu0 0.0
        %1850 = vmatpush1.msra.mxu0 0.0
        %1851 = vmatprep.subr.mxu0 0.0
        %1852 = vmatpush1.msra.mxu0 0.0
        %1853 = vmatprep.subr.mxu0 0.0
        %1854 = vmatpush1.msra.mxu0 0.0
        %1855 = vmatprep.subr.mxu0 0.0
        %1856 = vmatpush1.msra.mxu0 0.0
        %1857 = vmatprep.subr.mxu0 0.0
        %1858 = vmatpush1.msra.mxu0 0.0
        %1859 = vmatprep.subr.mxu0 0.0
        %1860 = vmatpush1.msra.mxu0 0.0
        %1861 = vmatprep.subr.mxu0 0.0
        %1862 = vmatpush1.msra.mxu0 0.0
        %1863 = vmatprep.subr.mxu0 0.0
        %1864 = vmatpush1.msra.mxu0 0.0
        %1865 = vmatprep.subr.mxu0 0.0
        %1866 = vmatpush1.msra.mxu0 0.0
        %1867 = vmatprep.subr.mxu0 0.0
        %1868 = vmatpush1.msra.mxu0 0.0
        %1869 = vmatprep.subr.mxu0 0.0
        %1870 = vmatpush1.msra.mxu0 0.0
        %1871 = vmatprep.subr.mxu0 0.0
        %1872 = vmatpush1.msra.mxu0 0.0
        %1873 = vmatprep.subr.mxu0 0.0
        %1874 = vmatpush1.msra.mxu0 0.0
        %1875 = vmatprep.subr.mxu0 0.0
        %1876 = vmatpush1.msra.mxu0 0.0
        %1877 = vmatprep.subr.mxu0 0.0
        %1878 = vmatpush1.msra.mxu0 0.0
        %1879 = vmatprep.subr.mxu0 0.0
        %1880 = vmatpush1.msra.mxu0 0.0
        %1881 = vmatprep.subr.mxu0 0.0
        %1882 = vmatpush1.msra.mxu0 0.0
        %1883 = vmatprep.subr.mxu0 0.0
        %1884 = vmatpush1.msra.mxu0 0.0
        %1885 = vmatprep.subr.mxu0 0.0
        %1886 = vmatpush1.msra.mxu0 0.0
        %1887 = vmatprep.subr.mxu0 0.0
        %1888 = vmatpush1.msra.mxu0 0.0
        %1889 = vmatprep.subr.mxu0 0.0
        %1890 = vmatpush1.msra.mxu0 0.0
        %1891 = vmatprep.subr.mxu0 0.0
        %1892 = vmatpush1.msra.mxu0 0.0
        %1893 = vmatprep.subr.mxu0 0.0
        %1894 = vmatpush1.msra.mxu0 0.0
        %1895 = vmatprep.subr.mxu0 0.0
        %1896 = vmatpush1.msra.mxu0 0.0
        %1897 = vmatprep.subr.mxu0 0.0
        %1898 = vmatpush1.msra.mxu0 0.0
        %1899 = vmatprep.subr.mxu0 0.0
        %1900 = vmatpush1.msra.mxu0 0.0
        %1901 = vmatprep.subr.mxu0 0.0
        %1902 = vmatpush1.msra.mxu0 0.0
        %1903 = vmatprep.subr.mxu0 0.0
        %1904 = vmatpush1.msra.mxu0 0.0
        %1905 = vmatprep.subr.mxu0 0.0
        %1906 = vmatpush1.msra.mxu0 0.0
        %1907 = vmatprep.subr.mxu0 0.0
        %1908 = vmatpush1.msra.mxu0 0.0
        %1909 = vmatprep.subr.mxu0 0.0
        %1910 = vmatpush1.msra.mxu0 0.0
        %1911 = vmatprep.mubr.f32.mxu0 0.0
        %1912 = vmatmul.mubr.f32.gmra.mrb[0].mxu0 %v1845
        %v1913 = vpop.f32.mrb[0].mxu0
        %v1914 = vadd.f32 0.0, %v1913
        %v1915 = vpop.f32.mrb[0].mxu0
        %1916 = vdwg.mxu0
        %v1917 = vlaneseq
        %v1918 = vshrl.u32 %v1917, 7
        %v1919 = vsub.s32 5, %v1918
        %v1920 = vrot.slane %v688, %v1919
        %v1921 = vmul.f32 %v1914, %v1920
        %v1922 = vadd.f32 %v1843, %v1921
        %v1923 = vxor.u32 %v1922, 2147483648
        %v1924 = vmul.f32 %v1923, 1.442695
        %v1925 = vpow.pop %v1924
        %v1926 = vadd.f32 %v1925, 1.0
        %v1927 = vrcp.pop %v1926
        %v1928 = vmul.f32 1.0, %v1927
        %v1929 = vmul.f32 %v1922, %v1928
        %v1930 = vld [vmem:[%s11] sm:$0xf]
        %v1931 = vld [vmem:[%s11 + $0x4] sm:$0xf]
        %v1932 = vld [vmem:[%s11 + $0x8] sm:$0xf]
        %v1933 = vld [vmem:[%s11 + $0xc] sm:$0xf]
        %v1934 = vpack.c.bf16 %v1929, %v1929
        %v1935 = vlaneseq
        %v1936 = vshrl.u32 %v1935, 7
        %v1937 = vsub.s32 4, %v1936
        %v1938 = vrot.slane %v687, %v1937
        %v1943 = vunpack.c.l.b16 %v1930
        %v1944 = vunpack.c.l.b16 %v1931
        %v1945 = vunpack.c.l.b16 %v1932
        %v1946 = vunpack.c.l.b16 %v1933
        %v1947 = vpack.c.b16 %v1944, %v1943
        %v1948 = vpack.c.b16 %v1946, %v1945
        %v1952 = vsel %vm648, %v1934, 0
        %1954 = vmatprep.subr.bf16.mxu0 0
        %1955 = vmatpush1.bf16.msra.mxu0 %v1947
        %1956 = vmatprep.subr.bf16.mxu0 0
        %1957 = vmatpush1.bf16.msra.mxu0 %v1948
        %1958 = vmatprep.subr.bf16.mxu0 0
        %1959 = vmatpush1.bf16.msra.mxu0 0
        %1960 = vmatprep.subr.bf16.mxu0 0
        %1961 = vmatpush1.bf16.msra.mxu0 0
        %1962 = vmatprep.subr.bf16.mxu0 0
        %1963 = vmatpush1.bf16.msra.mxu0 0
        %1964 = vmatprep.subr.bf16.mxu0 0
        %1965 = vmatpush1.bf16.msra.mxu0 0
        %1966 = vmatprep.subr.bf16.mxu0 0
        %1967 = vmatpush1.bf16.msra.mxu0 0
        %1968 = vmatprep.subr.bf16.mxu0 0
        %1969 = vmatpush1.bf16.msra.mxu0 0
        %1970 = vmatprep.subr.bf16.mxu0 0
        %1971 = vmatpush1.bf16.msra.mxu0 0
        %1972 = vmatprep.subr.bf16.mxu0 0
        %1973 = vmatpush1.bf16.msra.mxu0 0
        %1974 = vmatprep.subr.bf16.mxu0 0
        %1975 = vmatpush1.bf16.msra.mxu0 0
        %1976 = vmatprep.subr.bf16.mxu0 0
        %1977 = vmatpush1.bf16.msra.mxu0 0
        %1978 = vmatprep.subr.bf16.mxu0 0
        %1979 = vmatpush1.bf16.msra.mxu0 0
        %1980 = vmatprep.subr.bf16.mxu0 0
        %1981 = vmatpush1.bf16.msra.mxu0 0
        %1982 = vmatprep.subr.bf16.mxu0 0
        %1983 = vmatpush1.bf16.msra.mxu0 0
        %1984 = vmatprep.subr.bf16.mxu0 0
        %1985 = vmatpush1.bf16.msra.mxu0 0
        %1986 = vmatprep.mubr.bf16.mxu0 0
        %1987 = vmatmul.mubr.bf16.gmra.mrb[0].mxu0 %v1952
        %v1988 = vpop.f32.mrb[0].mxu0
        %v1989 = vadd.f32 %v1938, %v1988
        %v1990 = vpop.f32.mrb[0].mxu0
        %v1991 = vpop.f32.mrb[0].mxu0
        %v1992 = vpop.f32.mrb[0].mxu0
        %1993 = vdwg.mxu0
        %v1994 = vadd.f32 %v1605, %v1989
        %v1995 = vsel %vm648, %v1994, 0.0
        %1996 = vadd.xlane.f32.xlu0 %v1995
        %v1997 = vpop.xlane.xlu0 %1996
        %v1998 = vmul.f32 %v1997, %v652
        %v1999 = vsub.f32 %v1994, %v1998
        %v2000 = vmul.f32 %v1999, %v1999
        %v2001 = vsel %vm648, %v2000, 0.0
        %2002 = vadd.xlane.f32.xlu0 %v2001
        %v2003 = vpop.xlane.xlu0 %2002
        %v2004 = vmul.f32 %v2003, %v652
        %v2005 = vadd.f32 %v2004, 1e-05
        %v2006 = vrsqrt.pop %v2005
        %v2007 = vmul.f32 %v1999, %v2006
        %v2008 = vlaneseq
        %v2009 = vshrl.u32 %v2008, 7
        %v2010 = vsub.s32 5, %v2009
        %v2011 = vrot.slane %v687, %v2010
        %v2012 = vmul.f32 %v2007, %v2011
        %v2013 = vlaneseq
        %v2014 = vshrl.u32 %v2013, 7
        %v2015 = vsub.s32 6, %v2014
        %v2016 = vrot.slane %v687, %v2015
        %v2017 = vadd.f32 %v2012, %v2016
        %v2018 = vld [vmem:[%s12] sm:$0xf]
        %v2019 = vld [vmem:[%s12 + $0x4] sm:$0xf]
        %v2020 = vld [vmem:[%s12 + $0x8] sm:$0xf]
        %v2021 = vld [vmem:[%s12 + $0xc] sm:$0xf]
        %v2022 = vpack.c.bf16 %v2017, %v2017
        %v2023 = vlaneseq
        %v2024 = vshrl.u32 %v2023, 7
        %v2025 = vsub.s32 7, %v2024
        %v2026 = vrot.slane %v687, %v2025
        %v2031 = vunpack.c.l.b16 %v2018
        %v2032 = vunpack.c.l.b16 %v2019
        %v2033 = vunpack.c.l.b16 %v2020
        %v2034 = vunpack.c.l.b16 %v2021
        %v2035 = vpack.c.b16 %v2032, %v2031
        %v2036 = vpack.c.b16 %v2034, %v2033
        %v2040 = vsel %vm648, %v2022, 0
        %2042 = vmatprep.subr.bf16.mxu0 0
        %2043 = vmatpush1.bf16.msra.mxu0 %v2035
        %2044 = vmatprep.subr.bf16.mxu0 0
        %2045 = vmatpush1.bf16.msra.mxu0 %v2036
        %2046 = vmatprep.subr.bf16.mxu0 0
        %2047 = vmatpush1.bf16.msra.mxu0 0
        %2048 = vmatprep.subr.bf16.mxu0 0
        %2049 = vmatpush1.bf16.msra.mxu0 0
        %2050 = vmatprep.subr.bf16.mxu0 0
        %2051 = vmatpush1.bf16.msra.mxu0 0
        %2052 = vmatprep.subr.bf16.mxu0 0
        %2053 = vmatpush1.bf16.msra.mxu0 0
        %2054 = vmatprep.subr.bf16.mxu0 0
        %2055 = vmatpush1.bf16.msra.mxu0 0
        %2056 = vmatprep.subr.bf16.mxu0 0
        %2057 = vmatpush1.bf16.msra.mxu0 0
        %2058 = vmatprep.subr.bf16.mxu0 0
        %2059 = vmatpush1.bf16.msra.mxu0 0
        %2060 = vmatprep.subr.bf16.mxu0 0
        %2061 = vmatpush1.bf16.msra.mxu0 0
        %2062 = vmatprep.subr.bf16.mxu0 0
        %2063 = vmatpush1.bf16.msra.mxu0 0
        %2064 = vmatprep.subr.bf16.mxu0 0
        %2065 = vmatpush1.bf16.msra.mxu0 0
        %2066 = vmatprep.subr.bf16.mxu0 0
        %2067 = vmatpush1.bf16.msra.mxu0 0
        %2068 = vmatprep.subr.bf16.mxu0 0
        %2069 = vmatpush1.bf16.msra.mxu0 0
        %2070 = vmatprep.subr.bf16.mxu0 0
        %2071 = vmatpush1.bf16.msra.mxu0 0
        %2072 = vmatprep.subr.bf16.mxu0 0
        %2073 = vmatpush1.bf16.msra.mxu0 0
        %2074 = vmatprep.mubr.bf16.mxu0 0
        %2075 = vmatmul.mubr.bf16.gmra.mrb[0].mxu0 %v2040
        %v2076 = vpop.f32.mrb[0].mxu0
        %v2077 = vadd.f32 %v2026, %v2076
        %v2078 = vpop.f32.mrb[0].mxu0
        %v2079 = vpop.f32.mrb[0].mxu0
        %v2080 = vpop.f32.mrb[0].mxu0
        %2081 = vdwg.mxu0
        %v2082 = vxor.u32 %v2077, 2147483648
        %v2083 = vmul.f32 %v2082, 1.442695
        %v2084 = vpow.pop %v2083
        %v2085 = vadd.f32 %v2084, 1.0
        %v2086 = vrcp.pop %v2085
        %v2087 = vmul.f32 1.0, %v2086
        %v2088 = vmul.f32 %v2077, %v2087
        %v2089 = vld [vmem:[%s13] sm:$0xf]
        %v2090 = vld [vmem:[%s13 + $0x4] sm:$0xf]
        %v2091 = vld [vmem:[%s13 + $0x8] sm:$0xf]
        %v2092 = vld [vmem:[%s13 + $0xc] sm:$0xf]
        %v2093 = vld [vmem:[%s13 + $0x10] sm:$0xf]
        %v2094 = vld [vmem:[%s13 + $0x14] sm:$0xf]
        %v2095 = vld [vmem:[%s13 + $0x18] sm:$0xf]
        %v2096 = vld [vmem:[%s13 + $0x1c] sm:$0xf]
        %v2097 = vpack.c.bf16 %v2088, %v2088
        %v2098 = vlaneseq
        %v2099 = vshrl.u32 %v2098, 7
        %v2100 = vsub.s32 0, %v2099
        %v2101 = vrot.slane %v688, %v2100
        %v2110 = vunpack.c.l.b16 %v2089
        %v2111 = vunpack.c.l.b16 %v2090
        %v2112 = vunpack.c.l.b16 %v2091
        %v2113 = vunpack.c.l.b16 %v2092
        %v2114 = vunpack.c.l.b16 %v2093
        %v2115 = vunpack.c.l.b16 %v2094
        %v2116 = vunpack.c.l.b16 %v2095
        %v2117 = vunpack.c.l.b16 %v2096
        %v2118 = vpack.c.b16 %v2111, %v2110
        %v2119 = vpack.c.b16 %v2113, %v2112
        %v2120 = vpack.c.b16 %v2115, %v2114
        %v2121 = vpack.c.b16 %v2117, %v2116
        %v2127 = vsel %vm820, %v2097, 0
        %2129 = vmatprep.subr.bf16.mxu0 0
        %2130 = vmatpush1.bf16.msra.mxu0 %v2118
        %2131 = vmatprep.subr.bf16.mxu0 0
        %2132 = vmatpush1.bf16.msra.mxu0 %v2119
        %2133 = vmatprep.subr.bf16.mxu0 0
        %2134 = vmatpush1.bf16.msra.mxu0 %v2120
        %2135 = vmatprep.subr.bf16.mxu0 0
        %2136 = vmatpush1.bf16.msra.mxu0 %v2121
        %2137 = vmatprep.subr.bf16.mxu0 0
        %2138 = vmatpush1.bf16.msra.mxu0 0
        %2139 = vmatprep.subr.bf16.mxu0 0
        %2140 = vmatpush1.bf16.msra.mxu0 0
        %2141 = vmatprep.subr.bf16.mxu0 0
        %2142 = vmatpush1.bf16.msra.mxu0 0
        %2143 = vmatprep.subr.bf16.mxu0 0
        %2144 = vmatpush1.bf16.msra.mxu0 0
        %2145 = vmatprep.subr.bf16.mxu0 0
        %2146 = vmatpush1.bf16.msra.mxu0 0
        %2147 = vmatprep.subr.bf16.mxu0 0
        %2148 = vmatpush1.bf16.msra.mxu0 0
        %2149 = vmatprep.subr.bf16.mxu0 0
        %2150 = vmatpush1.bf16.msra.mxu0 0
        %2151 = vmatprep.subr.bf16.mxu0 0
        %2152 = vmatpush1.bf16.msra.mxu0 0
        %2153 = vmatprep.subr.bf16.mxu0 0
        %2154 = vmatpush1.bf16.msra.mxu0 0
        %2155 = vmatprep.subr.bf16.mxu0 0
        %2156 = vmatpush1.bf16.msra.mxu0 0
        %2157 = vmatprep.subr.bf16.mxu0 0
        %2158 = vmatpush1.bf16.msra.mxu0 0
        %2159 = vmatprep.subr.bf16.mxu0 0
        %2160 = vmatpush1.bf16.msra.mxu0 0
        %2161 = vmatprep.mubr.bf16.mxu0 0
        %2162 = vmatmul.mubr.bf16.gmra.mrb[0].mxu0 %v2127
        %v2163 = vpop.f32.mrb[0].mxu0
        %v2164 = vadd.f32 %v2101, %v2163
        %v2165 = vpop.f32.mrb[0].mxu0
        %v2166 = vpop.f32.mrb[0].mxu0
        %v2167 = vpop.f32.mrb[0].mxu0
        %2168 = vdwg.mxu0
        %v2169 = vmul.f32 %v2164, 0.5
        %v2170 = vadd.f32 %v1994, %v2169
        %v2171 = vsel %vm648, %v2170, 0.0
        %2172 = vadd.xlane.f32.xlu0 %v2171
        %v2173 = vpop.xlane.xlu0 %2172
        %v2174 = vmul.f32 %v2173, %v652
        %v2175 = vsub.f32 %v2170, %v2174
        %v2176 = vmul.f32 %v2175, %v2175
        %v2177 = vsel %vm648, %v2176, 0.0
        %2178 = vadd.xlane.f32.xlu0 %v2177
        %v2179 = vpop.xlane.xlu0 %2178
        %v2180 = vmul.f32 %v2179, %v652
        %v2181 = vadd.f32 %v2180, 1e-05
        %v2182 = vrsqrt.pop %v2181
        %v2183 = vmul.f32 %v2175, %v2182
        %v2184 = vlaneseq
        %v2185 = vshrl.u32 %v2184, 7
        %v2186 = vsub.s32 1, %v2185
        %v2187 = vrot.slane %v688, %v2186
        %v2188 = vmul.f32 %v2183, %v2187
        %v2189 = vlaneseq
        %v2190 = vshrl.u32 %v2189, 7
        %v2191 = vsub.s32 2, %v2190
        %v2192 = vrot.slane %v688, %v2191
        %v2193 = vadd.f32 %v2188, %v2192
        %s2194 = scalar_lea.vmem %s4, 24
        %v2195 = vld [vmem:[%s2194] sm:$0xff]
        %v2196 = vld [vmem:[%s2194 + $0x8] sm:$0xff]
        %v2197 = vld [vmem:[%s2194 + $0x10] sm:$0x3f]
        %v2198 = vsel %vm648, %v2193, 0.0
        %2199 = vadd.xlane.f32.xlu0 %v2198
        %v2200 = vpop.xlane.xlu0 %2199
        %v2201 = vmul.f32 %v2200, %v652
        %v2202 = vsub.f32 %v2193, %v2201
        %v2203 = vmul.f32 %v2202, %v2202
        %v2204 = vsel %vm648, %v2203, 0.0
        %2205 = vadd.xlane.f32.xlu0 %v2204
        %v2206 = vpop.xlane.xlu0 %2205
        %v2207 = vmul.f32 %v2206, %v652
        %v2208 = vadd.f32 %v2207, 1e-05
        %v2209 = vrsqrt.pop %v2208
        %v2210 = vmul.f32 %v2202, %v2209
        %v2211 = vlaneseq
        %v2212 = vshrl.u32 %v2211, 7
        %v2213 = vsub.s32 0, %v2212
        %v2214 = vrot.slane %v2195, %v2213
        %v2215 = vmul.f32 %v2210, %v2214
        %v2216 = vlaneseq
        %v2217 = vshrl.u32 %v2216, 7
        %v2218 = vsub.s32 1, %v2217
        %v2219 = vrot.slane %v2195, %v2218
        %v2220 = vadd.f32 %v2215, %v2219
        %s2221 = scalar_lea.vmem %s5, 16
        %v2222 = vld [vmem:[%s2221] sm:$0xf]
        %v2223 = vld [vmem:[%s2221 + $0x4] sm:$0xf]
        %v2224 = vld [vmem:[%s2221 + $0x8] sm:$0xf]
        %v2225 = vld [vmem:[%s2221 + $0xc] sm:$0xf]
        %v2226 = vpack.c.bf16 %v2220, %v2220
        %v2227 = vlaneseq
        %v2228 = vshrl.u32 %v2227, 7
        %v2229 = vsub.s32 2, %v2228
        %v2230 = vrot.slane %v2195, %v2229
        %v2235 = vunpack.c.l.b16 %v2222
        %v2236 = vunpack.c.l.b16 %v2223
        %v2237 = vunpack.c.l.b16 %v2224
        %v2238 = vunpack.c.l.b16 %v2225
        %v2239 = vpack.c.b16 %v2236, %v2235
        %v2240 = vpack.c.b16 %v2238, %v2237
        %v2244 = vsel %vm648, %v2226, 0
        %2246 = vmatprep.subr.bf16.mxu0 0
        %2247 = vmatpush1.bf16.msra.mxu0 %v2239
        %2248 = vmatprep.subr.bf16.mxu0 0
        %2249 = vmatpush1.bf16.msra.mxu0 %v2240
        %2250 = vmatprep.subr.bf16.mxu0 0
        %2251 = vmatpush1.bf16.msra.mxu0 0
        %2252 = vmatprep.subr.bf16.mxu0 0
        %2253 = vmatpush1.bf16.msra.mxu0 0
        %2254 = vmatprep.subr.bf16.mxu0 0
        %2255 = vmatpush1.bf16.msra.mxu0 0
        %2256 = vmatprep.subr.bf16.mxu0 0
        %2257 = vmatpush1.bf16.msra.mxu0 0
        %2258 = vmatprep.subr.bf16.mxu0 0
        %2259 = vmatpush1.bf16.msra.mxu0 0
        %2260 = vmatprep.subr.bf16.mxu0 0
        %2261 = vmatpush1.bf16.msra.mxu0 0
        %2262 = vmatprep.subr.bf16.mxu0 0
        %2263 = vmatpush1.bf16.msra.mxu0 0
        %2264 = vmatprep.subr.bf16.mxu0 0
        %2265 = vmatpush1.bf16.msra.mxu0 0
        %2266 = vmatprep.subr.bf16.mxu0 0
        %2267 = vmatpush1.bf16.msra.mxu0 0
        %2268 = vmatprep.subr.bf16.mxu0 0
        %2269 = vmatpush1.bf16.msra.mxu0 0
        %2270 = vmatprep.subr.bf16.mxu0 0
        %2271 = vmatpush1.bf16.msra.mxu0 0
        %2272 = vmatprep.subr.bf16.mxu0 0
        %2273 = vmatpush1.bf16.msra.mxu0 0
        %2274 = vmatprep.subr.bf16.mxu0 0
        %2275 = vmatpush1.bf16.msra.mxu0 0
        %2276 = vmatprep.subr.bf16.mxu0 0
        %2277 = vmatpush1.bf16.msra.mxu0 0
        %2278 = vmatprep.mubr.bf16.mxu0 0
        %2279 = vmatmul.mubr.bf16.gmra.mrb[0].mxu0 %v2244
        %v2280 = vpop.f32.mrb[0].mxu0
        %v2281 = vadd.f32 %v2230, %v2280
        %v2282 = vpop.f32.mrb[0].mxu0
        %v2283 = vpop.f32.mrb[0].mxu0
        %v2284 = vpop.f32.mrb[0].mxu0
        %2285 = vdwg.mxu0
        %v2286 = vxor.u32 %v2281, 2147483648
        %v2287 = vmul.f32 %v2286, 1.442695
        %v2288 = vpow.pop %v2287
        %v2289 = vadd.f32 %v2288, 1.0
        %v2290 = vrcp.pop %v2289
        %v2291 = vmul.f32 1.0, %v2290
        %v2292 = vmul.f32 %v2281, %v2291
        %s2293 = scalar_lea.vmem %s6, 32
        %v2294 = vld [vmem:[%s2293] sm:$0xf]
        %v2295 = vld [vmem:[%s2293 + $0x4] sm:$0xf]
        %v2296 = vld [vmem:[%s2293 + $0x8] sm:$0xf]
        %v2297 = vld [vmem:[%s2293 + $0xc] sm:$0xf]
        %v2298 = vld [vmem:[%s2293 + $0x10] sm:$0xf]
        %v2299 = vld [vmem:[%s2293 + $0x14] sm:$0xf]
        %v2300 = vld [vmem:[%s2293 + $0x18] sm:$0xf]
        %v2301 = vld [vmem:[%s2293 + $0x1c] sm:$0xf]
        %v2302 = vpack.c.bf16 %v2292, %v2292
        %v2303 = vlaneseq
        %v2304 = vshrl.u32 %v2303, 7
        %v2305 = vsub.s32 3, %v2304
        %v2306 = vrot.slane %v2195, %v2305
        %v2315 = vunpack.c.l.b16 %v2294
        %v2316 = vunpack.c.l.b16 %v2295
        %v2317 = vunpack.c.l.b16 %v2296
        %v2318 = vunpack.c.l.b16 %v2297
        %v2319 = vunpack.c.l.b16 %v2298
        %v2320 = vunpack.c.l.b16 %v2299
        %v2321 = vunpack.c.l.b16 %v2300
        %v2322 = vunpack.c.l.b16 %v2301
        %v2323 = vpack.c.b16 %v2316, %v2315
        %v2324 = vpack.c.b16 %v2318, %v2317
        %v2325 = vpack.c.b16 %v2320, %v2319
        %v2326 = vpack.c.b16 %v2322, %v2321
        %v2332 = vsel %vm820, %v2302, 0
        %2334 = vmatprep.subr.bf16.mxu0 0
        %2335 = vmatpush1.bf16.msra.mxu0 %v2323
        %2336 = vmatprep.subr.bf16.mxu0 0
        %2337 = vmatpush1.bf16.msra.mxu0 %v2324
        %2338 = vmatprep.subr.bf16.mxu0 0
        %2339 = vmatpush1.bf16.msra.mxu0 %v2325
        %2340 = vmatprep.subr.bf16.mxu0 0
        %2341 = vmatpush1.bf16.msra.mxu0 %v2326
        %2342 = vmatprep.subr.bf16.mxu0 0
        %2343 = vmatpush1.bf16.msra.mxu0 0
        %2344 = vmatprep.subr.bf16.mxu0 0
        %2345 = vmatpush1.bf16.msra.mxu0 0
        %2346 = vmatprep.subr.bf16.mxu0 0
        %2347 = vmatpush1.bf16.msra.mxu0 0
        %2348 = vmatprep.subr.bf16.mxu0 0
        %2349 = vmatpush1.bf16.msra.mxu0 0
        %2350 = vmatprep.subr.bf16.mxu0 0
        %2351 = vmatpush1.bf16.msra.mxu0 0
        %2352 = vmatprep.subr.bf16.mxu0 0
        %2353 = vmatpush1.bf16.msra.mxu0 0
        %2354 = vmatprep.subr.bf16.mxu0 0
        %2355 = vmatpush1.bf16.msra.mxu0 0
        %2356 = vmatprep.subr.bf16.mxu0 0
        %2357 = vmatpush1.bf16.msra.mxu0 0
        %2358 = vmatprep.subr.bf16.mxu0 0
        %2359 = vmatpush1.bf16.msra.mxu0 0
        %2360 = vmatprep.subr.bf16.mxu0 0
        %2361 = vmatpush1.bf16.msra.mxu0 0
        %2362 = vmatprep.subr.bf16.mxu0 0
        %2363 = vmatpush1.bf16.msra.mxu0 0
        %2364 = vmatprep.subr.bf16.mxu0 0
        %2365 = vmatpush1.bf16.msra.mxu0 0
        %2366 = vmatprep.mubr.bf16.mxu0 0
        %2367 = vmatmul.mubr.bf16.gmra.mrb[0].mxu0 %v2332
        %v2368 = vpop.f32.mrb[0].mxu0
        %v2369 = vadd.f32 %v2306, %v2368
        %v2370 = vpop.f32.mrb[0].mxu0
        %v2371 = vpop.f32.mrb[0].mxu0
        %v2372 = vpop.f32.mrb[0].mxu0
        %2373 = vdwg.mxu0
        %v2374 = vmul.f32 %v2369, 0.5
        %v2375 = vadd.f32 %v2193, %v2374
        %v2376 = vsel %vm648, %v2375, 0.0
        %2377 = vadd.xlane.f32.xlu0 %v2376
        %v2378 = vpop.xlane.xlu0 %2377
        %v2379 = vmul.f32 %v2378, %v652
        %v2380 = vsub.f32 %v2375, %v2379
        %v2381 = vmul.f32 %v2380, %v2380
        %v2382 = vsel %vm648, %v2381, 0.0
        %2383 = vadd.xlane.f32.xlu0 %v2382
        %v2384 = vpop.xlane.xlu0 %2383
        %v2385 = vmul.f32 %v2384, %v652
        %v2386 = vadd.f32 %v2385, 1e-05
        %v2387 = vrsqrt.pop %v2386
        %v2388 = vmul.f32 %v2380, %v2387
        %v2389 = vlaneseq
        %v2390 = vshrl.u32 %v2389, 7
        %v2391 = vsub.s32 4, %v2390
        %v2392 = vrot.slane %v2195, %v2391
        %v2393 = vmul.f32 %v2388, %v2392
        %v2394 = vlaneseq
        %v2395 = vshrl.u32 %v2394, 7
        %v2396 = vsub.s32 5, %v2395
        %v2397 = vrot.slane %v2195, %v2396
        %v2398 = vadd.f32 %v2393, %v2397
        %s2399 = scalar_lea.vmem %s7, 16
        %v2400 = vld [vmem:[%s2399] sm:$0xf]
        %v2401 = vld [vmem:[%s2399 + $0x4] sm:$0xf]
        %v2402 = vld [vmem:[%s2399 + $0x8] sm:$0xf]
        %v2403 = vld [vmem:[%s2399 + $0xc] sm:$0xf]
        %v2404 = vpack.c.bf16 %v2398, %v2398
        %v2405 = vlaneseq
        %v2406 = vshrl.u32 %v2405, 7
        %v2407 = vsub.s32 6, %v2406
        %v2408 = vrot.slane %v2195, %v2407
        %v2413 = vunpack.c.l.b16 %v2400
        %v2414 = vunpack.c.l.b16 %v2401
        %v2415 = vunpack.c.l.b16 %v2402
        %v2416 = vunpack.c.l.b16 %v2403
        %v2417 = vpack.c.b16 %v2414, %v2413
        %v2418 = vpack.c.b16 %v2416, %v2415
        %v2422 = vsel %vm648, %v2404, 0
        %2424 = vmatprep.subr.bf16.mxu0 0
        %2425 = vmatpush1.bf16.msra.mxu0 %v2417
        %2426 = vmatprep.subr.bf16.mxu0 0
        %2427 = vmatpush1.bf16.msra.mxu0 %v2418
        %2428 = vmatprep.subr.bf16.mxu0 0
        %2429 = vmatpush1.bf16.msra.mxu0 0
        %2430 = vmatprep.subr.bf16.mxu0 0
        %2431 = vmatpush1.bf16.msra.mxu0 0
        %2432 = vmatprep.subr.bf16.mxu0 0
        %2433 = vmatpush1.bf16.msra.mxu0 0
        %2434 = vmatprep.subr.bf16.mxu0 0
        %2435 = vmatpush1.bf16.msra.mxu0 0
        %2436 = vmatprep.subr.bf16.mxu0 0
        %2437 = vmatpush1.bf16.msra.mxu0 0
        %2438 = vmatprep.subr.bf16.mxu0 0
        %2439 = vmatpush1.bf16.msra.mxu0 0
        %2440 = vmatprep.subr.bf16.mxu0 0
        %2441 = vmatpush1.bf16.msra.mxu0 0
        %2442 = vmatprep.subr.bf16.mxu0 0
        %2443 = vmatpush1.bf16.msra.mxu0 0
        %2444 = vmatprep.subr.bf16.mxu0 0
        %2445 = vmatpush1.bf16.msra.mxu0 0
        %2446 = vmatprep.subr.bf16.mxu0 0
        %2447 = vmatpush1.bf16.msra.mxu0 0
        %2448 = vmatprep.subr.bf16.mxu0 0
        %2449 = vmatpush1.bf16.msra.mxu0 0
        %2450 = vmatprep.subr.bf16.mxu0 0
        %2451 = vmatpush1.bf16.msra.mxu0 0
        %2452 = vmatprep.subr.bf16.mxu0 0
        %2453 = vmatpush1.bf16.msra.mxu0 0
        %2454 = vmatprep.subr.bf16.mxu0 0
        %2455 = vmatpush1.bf16.msra.mxu0 0
        %2456 = vmatprep.mubr.bf16.mxu0 0
        %2457 = vmatmul.mubr.bf16.gmra.mrb[0].mxu0 %v2422
        %v2458 = vpop.f32.mrb[0].mxu0
        %v2459 = vadd.f32 %v2408, %v2458
        %v2460 = vpop.f32.mrb[0].mxu0
        %v2461 = vpop.f32.mrb[0].mxu0
        %v2462 = vpop.f32.mrb[0].mxu0
        %2463 = vdwg.mxu0
        %v2464 = vpack.c.bf16 %v2459, %v2459
        %2466 = vrot.lane.b32.xlu0 %v2464, 96
        %v2467 = vpop.permute.xlu0 %2466
        %v2469 = vsel %vm957, %v2464, 0
        %v2472 = vsel %vm957, %v2467, 0
        %2474 = vmatprep.subr.bf16.mxu0 0
        %2475 = vmatpush1.bf16.xpose.msra.mxu0 %v2472
        %2476 = vmatprep.subr.bf16.mxu0 0
        %2477 = vmatpush1.bf16.xpose.msra.mxu0 0
        %2478 = vmatprep.subr.bf16.mxu0 0
        %2479 = vmatpush1.bf16.xpose.msra.mxu0 0
        %2480 = vmatprep.subr.bf16.mxu0 0
        %2481 = vmatpush1.bf16.xpose.msra.mxu0 0
        %2482 = vmatprep.subr.bf16.mxu0 0
        %2483 = vmatpush1.bf16.xpose.msra.mxu0 0
        %2484 = vmatprep.subr.bf16.mxu0 0
        %2485 = vmatpush1.bf16.xpose.msra.mxu0 0
        %2486 = vmatprep.subr.bf16.mxu0 0
        %2487 = vmatpush1.bf16.xpose.msra.mxu0 0
        %2488 = vmatprep.subr.bf16.mxu0 0
        %2489 = vmatpush1.bf16.xpose.msra.mxu0 0
        %2490 = vmatprep.subr.bf16.mxu0 0
        %2491 = vmatpush1.bf16.xpose.msra.mxu0 0
        %2492 = vmatprep.subr.bf16.mxu0 0
        %2493 = vmatpush1.bf16.xpose.msra.mxu0 0
        %2494 = vmatprep.subr.bf16.mxu0 0
        %2495 = vmatpush1.bf16.xpose.msra.mxu0 0
        %2496 = vmatprep.subr.bf16.mxu0 0
        %2497 = vmatpush1.bf16.xpose.msra.mxu0 0
        %2498 = vmatprep.subr.bf16.mxu0 0
        %2499 = vmatpush1.bf16.xpose.msra.mxu0 0
        %2500 = vmatprep.subr.bf16.mxu0 0
        %2501 = vmatpush1.bf16.xpose.msra.mxu0 0
        %2502 = vmatprep.subr.bf16.mxu0 0
        %2503 = vmatpush1.bf16.xpose.msra.mxu0 0
        %2504 = vmatprep.subr.bf16.mxu0 0
        %2505 = vmatpush1.bf16.xpose.msra.mxu0 0
        %2506 = vmatprep.mubr.bf16.mxu0 0
        %2507 = vmatmul.mubr.bf16.gmra.mrb[0].mxu0 %v2469
        %v2508 = vpop.f32.mrb[0].mxu0
        %v2509 = vadd.f32 0.0, %v2508
        %v2510 = vpop.f32.mrb[0].mxu0
        %v2511 = vpop.f32.mrb[0].mxu0
        %v2512 = vpop.f32.mrb[0].mxu0
        %2513 = vdwg.mxu0
        %v2514 = vmul.f32 %v2509, 0.35355338
        %v2515 = vadd.f32 %v2514, %v673
        %v2516 = vsel %vm957, %v2515, -inf
        %2517 = vmax.xlane.f32.xlu0 %v2516
        %v2518 = vpop.xlane.xlu0 %2517
        %v2519 = vsub.f32 %v2515, %v2518
        %v2520 = vmul.f32 %v2519, 1.442695
        %v2521 = vpow.pop %v2520
        %v2522 = vsel %vm957, %v2521, 0.0
        %2523 = vadd.xlane.f32.xlu0 %v2522
        %v2524 = vpop.xlane.xlu0 %2523
        %v2525 = vrcp.pop %v2524
        %v2526 = vmul.f32 %v2521, %v2525
        %v2527 = vpack.c.bf16 %v2526, %v2526
        %2528 = vrot.lane.b32.xlu0 %v2464, 64
        %v2529 = vpop.permute.xlu0 %2528
        %v2531 = vsel %vm957, %v2527, 0
        %v2534 = vsel %vm1023, %v2529, 0
        %2536 = vmatprep.subr.bf16.mxu0 0
        %2537 = vmatpush1.bf16.msra.mxu0 %v2534
        %2538 = vmatprep.subr.bf16.mxu0 0
        %2539 = vmatpush1.bf16.msra.mxu0 0
        %2540 = vmatprep.subr.bf16.mxu0 0
        %2541 = vmatpush1.bf16.msra.mxu0 0
        %2542 = vmatprep.subr.bf16.mxu0 0
        %2543 = vmatpush1.bf16.msra.mxu0 0
        %2544 = vmatprep.subr.bf16.mxu0 0
        %2545 = vmatpush1.bf16.msra.mxu0 0
        %2546 = vmatprep.subr.bf16.mxu0 0
        %2547 = vmatpush1.bf16.msra.mxu0 0
        %2548 = vmatprep.subr.bf16.mxu0 0
        %2549 = vmatpush1.bf16.msra.mxu0 0
        %2550 = vmatprep.subr.bf16.mxu0 0
        %2551 = vmatpush1.bf16.msra.mxu0 0
        %2552 = vmatprep.subr.bf16.mxu0 0
        %2553 = vmatpush1.bf16.msra.mxu0 0
        %2554 = vmatprep.subr.bf16.mxu0 0
        %2555 = vmatpush1.bf16.msra.mxu0 0
        %2556 = vmatprep.subr.bf16.mxu0 0
        %2557 = vmatpush1.bf16.msra.mxu0 0
        %2558 = vmatprep.subr.bf16.mxu0 0
        %2559 = vmatpush1.bf16.msra.mxu0 0
        %2560 = vmatprep.subr.bf16.mxu0 0
        %2561 = vmatpush1.bf16.msra.mxu0 0
        %2562 = vmatprep.subr.bf16.mxu0 0
        %2563 = vmatpush1.bf16.msra.mxu0 0
        %2564 = vmatprep.subr.bf16.mxu0 0
        %2565 = vmatpush1.bf16.msra.mxu0 0
        %2566 = vmatprep.subr.bf16.mxu0 0
        %2567 = vmatpush1.bf16.msra.mxu0 0
        %2568 = vmatprep.mubr.bf16.mxu0 0
        %2569 = vmatmul.mubr.bf16.gmra.mrb[0].mxu0 %v2531
        %v2570 = vpop.f32.mrb[0].mxu0
        %v2571 = vadd.f32 0.0, %v2570
        %v2572 = vpop.f32.mrb[0].mxu0
        %v2573 = vpop.f32.mrb[0].mxu0
        %v2574 = vpop.f32.mrb[0].mxu0
        %2575 = vdwg.mxu0
        %v2576 = vpack.c.bf16 %v2571, %v2571
        %s2577 = scalar_lea.vmem %s8, 16
        %v2578 = vld [vmem:[%s2577] sm:$0xf]
        %2579 = vrot.lane.b32.xlu0 %v2464, 120
        %v2580 = vpop.permute.xlu0 %2579
        %2581 = vrot.lane.b32.xlu0 %v2464, 88
        %v2582 = vpop.permute.xlu0 %2581
        %v2584 = vsel %vm957, %v2580, 0
        %v2587 = vsel %vm957, %v2582, 0
        %2589 = vmatprep.subr.bf16.mxu0 0
        %2590 = vmatpush1.bf16.xpose.msra.mxu0 %v2587
        %2591 = vmatprep.subr.bf16.mxu0 0
        %2592 = vmatpush1.bf16.xpose.msra.mxu0 0
        %2593 = vmatprep.subr.bf16.mxu0 0
        %2594 = vmatpush1.bf16.xpose.msra.mxu0 0
        %2595 = vmatprep.subr.bf16.mxu0 0
        %2596 = vmatpush1.bf16.xpose.msra.mxu0 0
        %2597 = vmatprep.subr.bf16.mxu0 0
        %2598 = vmatpush1.bf16.xpose.msra.mxu0 0
        %2599 = vmatprep.subr.bf16.mxu0 0
        %2600 = vmatpush1.bf16.xpose.msra.mxu0 0
        %2601 = vmatprep.subr.bf16.mxu0 0
        %2602 = vmatpush1.bf16.xpose.msra.mxu0 0
        %2603 = vmatprep.subr.bf16.mxu0 0
        %2604 = vmatpush1.bf16.xpose.msra.mxu0 0
        %2605 = vmatprep.subr.bf16.mxu0 0
        %2606 = vmatpush1.bf16.xpose.msra.mxu0 0
        %2607 = vmatprep.subr.bf16.mxu0 0
        %2608 = vmatpush1.bf16.xpose.msra.mxu0 0
        %2609 = vmatprep.subr.bf16.mxu0 0
        %2610 = vmatpush1.bf16.xpose.msra.mxu0 0
        %2611 = vmatprep.subr.bf16.mxu0 0
        %2612 = vmatpush1.bf16.xpose.msra.mxu0 0
        %2613 = vmatprep.subr.bf16.mxu0 0
        %2614 = vmatpush1.bf16.xpose.msra.mxu0 0
        %2615 = vmatprep.subr.bf16.mxu0 0
        %2616 = vmatpush1.bf16.xpose.msra.mxu0 0
        %2617 = vmatprep.subr.bf16.mxu0 0
        %2618 = vmatpush1.bf16.xpose.msra.mxu0 0
        %2619 = vmatprep.subr.bf16.mxu0 0
        %2620 = vmatpush1.bf16.xpose.msra.mxu0 0
        %2621 = vmatprep.mubr.bf16.mxu0 0
        %2622 = vmatmul.mubr.bf16.gmra.mrb[0].mxu0 %v2584
        %v2623 = vpop.f32.mrb[0].mxu0
        %v2624 = vadd.f32 0.0, %v2623
        %v2625 = vpop.f32.mrb[0].mxu0
        %v2626 = vpop.f32.mrb[0].mxu0
        %v2627 = vpop.f32.mrb[0].mxu0
        %2628 = vdwg.mxu0
        %v2629 = vmul.f32 %v2624, 0.35355338
        %v2630 = vadd.f32 %v2629, %v673
        %v2631 = vsel %vm957, %v2630, -inf
        %2632 = vmax.xlane.f32.xlu0 %v2631
        %v2633 = vpop.xlane.xlu0 %2632
        %v2634 = vsub.f32 %v2630, %v2633
        %v2635 = vmul.f32 %v2634, 1.442695
        %v2636 = vpow.pop %v2635
        %v2637 = vsel %vm957, %v2636, 0.0
        %2638 = vadd.xlane.f32.xlu0 %v2637
        %v2639 = vpop.xlane.xlu0 %2638
        %v2640 = vrcp.pop %v2639
        %v2641 = vmul.f32 %v2636, %v2640
        %v2642 = vpack.c.bf16 %v2641, %v2641
        %2643 = vrot.lane.b32.xlu0 %v2464, 56
        %v2644 = vpop.permute.xlu0 %2643
        %v2646 = vsel %vm957, %v2642, 0
        %v2649 = vsel %vm1023, %v2644, 0
        %2651 = vmatprep.subr.bf16.mxu0 0
        %2652 = vmatpush1.bf16.msra.mxu0 %v2649
        %2653 = vmatprep.subr.bf16.mxu0 0
        %2654 = vmatpush1.bf16.msra.mxu0 0
        %2655 = vmatprep.subr.bf16.mxu0 0
        %2656 = vmatpush1.bf16.msra.mxu0 0
        %2657 = vmatprep.subr.bf16.mxu0 0
        %2658 = vmatpush1.bf16.msra.mxu0 0
        %2659 = vmatprep.subr.bf16.mxu0 0
        %2660 = vmatpush1.bf16.msra.mxu0 0
        %2661 = vmatprep.subr.bf16.mxu0 0
        %2662 = vmatpush1.bf16.msra.mxu0 0
        %2663 = vmatprep.subr.bf16.mxu0 0
        %2664 = vmatpush1.bf16.msra.mxu0 0
        %2665 = vmatprep.subr.bf16.mxu0 0
        %2666 = vmatpush1.bf16.msra.mxu0 0
        %2667 = vmatprep.subr.bf16.mxu0 0
        %2668 = vmatpush1.bf16.msra.mxu0 0
        %2669 = vmatprep.subr.bf16.mxu0 0
        %2670 = vmatpush1.bf16.msra.mxu0 0
        %2671 = vmatprep.subr.bf16.mxu0 0
        %2672 = vmatpush1.bf16.msra.mxu0 0
        %2673 = vmatprep.subr.bf16.mxu0 0
        %2674 = vmatpush1.bf16.msra.mxu0 0
        %2675 = vmatprep.subr.bf16.mxu0 0
        %2676 = vmatpush1.bf16.msra.mxu0 0
        %2677 = vmatprep.subr.bf16.mxu0 0
        %2678 = vmatpush1.bf16.msra.mxu0 0
        %2679 = vmatprep.subr.bf16.mxu0 0
        %2680 = vmatpush1.bf16.msra.mxu0 0
        %2681 = vmatprep.subr.bf16.mxu0 0
        %2682 = vmatpush1.bf16.msra.mxu0 0
        %2683 = vmatprep.mubr.bf16.mxu0 0
        %2684 = vmatmul.mubr.bf16.gmra.mrb[0].mxu0 %v2646
        %v2685 = vpop.f32.mrb[0].mxu0
        %v2686 = vadd.f32 0.0, %v2685
        %v2687 = vpop.f32.mrb[0].mxu0
        %v2688 = vpop.f32.mrb[0].mxu0
        %v2689 = vpop.f32.mrb[0].mxu0
        %2690 = vdwg.mxu0
        %v2691 = vpack.c.bf16 %v2686, %v2686
        %s2692 = scalar_lea.vmem %s8, 20
        %v2693 = vld [vmem:[%s2692] sm:$0xf]
        %v2695 = vsel %vm957, %v2691, 0
        %v2698 = vsel %vm1023, %v2693, 0
        %2700 = vmatprep.subr.bf16.mxu0 0
        %2701 = vmatpush1.bf16.msra.mxu0 %v2698
        %2702 = vmatprep.subr.bf16.mxu0 0
        %2703 = vmatpush1.bf16.msra.mxu0 0
        %2704 = vmatprep.subr.bf16.mxu0 0
        %2705 = vmatpush1.bf16.msra.mxu0 0
        %2706 = vmatprep.subr.bf16.mxu0 0
        %2707 = vmatpush1.bf16.msra.mxu0 0
        %2708 = vmatprep.subr.bf16.mxu0 0
        %2709 = vmatpush1.bf16.msra.mxu0 0
        %2710 = vmatprep.subr.bf16.mxu0 0
        %2711 = vmatpush1.bf16.msra.mxu0 0
        %2712 = vmatprep.subr.bf16.mxu0 0
        %2713 = vmatpush1.bf16.msra.mxu0 0
        %2714 = vmatprep.subr.bf16.mxu0 0
        %2715 = vmatpush1.bf16.msra.mxu0 0
        %2716 = vmatprep.subr.bf16.mxu0 0
        %2717 = vmatpush1.bf16.msra.mxu0 0
        %2718 = vmatprep.subr.bf16.mxu0 0
        %2719 = vmatpush1.bf16.msra.mxu0 0
        %2720 = vmatprep.subr.bf16.mxu0 0
        %2721 = vmatpush1.bf16.msra.mxu0 0
        %2722 = vmatprep.subr.bf16.mxu0 0
        %2723 = vmatpush1.bf16.msra.mxu0 0
        %2724 = vmatprep.subr.bf16.mxu0 0
        %2725 = vmatpush1.bf16.msra.mxu0 0
        %2726 = vmatprep.subr.bf16.mxu0 0
        %2727 = vmatpush1.bf16.msra.mxu0 0
        %2728 = vmatprep.subr.bf16.mxu0 0
        %2729 = vmatpush1.bf16.msra.mxu0 0
        %2730 = vmatprep.subr.bf16.mxu0 0
        %2731 = vmatpush1.bf16.msra.mxu0 0
        %2732 = vmatprep.mubr.bf16.mxu0 0
        %2733 = vmatmul.mubr.bf16.gmra.mrb[0].mxu0 %v2695
        %v2734 = vpop.f32.mrb[0].mxu0
        %v2735 = vadd.f32 0.0, %v2734
        %v2736 = vpop.f32.mrb[0].mxu0
        %v2737 = vpop.f32.mrb[0].mxu0
        %v2738 = vpop.f32.mrb[0].mxu0
        %2739 = vdwg.mxu0
        %v2741 = vsel %vm957, %v2576, 0
        %v2744 = vsel %vm1023, %v2578, 0
        %2746 = vmatprep.subr.bf16.mxu0 0
        %2747 = vmatpush1.bf16.msra.mxu0 %v2744
        %2748 = vmatprep.subr.bf16.mxu0 0
        %2749 = vmatpush1.bf16.msra.mxu0 0
        %2750 = vmatprep.subr.bf16.mxu0 0
        %2751 = vmatpush1.bf16.msra.mxu0 0
        %2752 = vmatprep.subr.bf16.mxu0 0
        %2753 = vmatpush1.bf16.msra.mxu0 0
        %2754 = vmatprep.subr.bf16.mxu0 0
        %2755 = vmatpush1.bf16.msra.mxu0 0
        %2756 = vmatprep.subr.bf16.mxu0 0
        %2757 = vmatpush1.bf16.msra.mxu0 0
        %2758 = vmatprep.subr.bf16.mxu0 0
        %2759 = vmatpush1.bf16.msra.mxu0 0
        %2760 = vmatprep.subr.bf16.mxu0 0
        %2761 = vmatpush1.bf16.msra.mxu0 0
        %2762 = vmatprep.subr.bf16.mxu0 0
        %2763 = vmatpush1.bf16.msra.mxu0 0
        %2764 = vmatprep.subr.bf16.mxu0 0
        %2765 = vmatpush1.bf16.msra.mxu0 0
        %2766 = vmatprep.subr.bf16.mxu0 0
        %2767 = vmatpush1.bf16.msra.mxu0 0
        %2768 = vmatprep.subr.bf16.mxu0 0
        %2769 = vmatpush1.bf16.msra.mxu0 0
        %2770 = vmatprep.subr.bf16.mxu0 0
        %2771 = vmatpush1.bf16.msra.mxu0 0
        %2772 = vmatprep.subr.bf16.mxu0 0
        %2773 = vmatpush1.bf16.msra.mxu0 0
        %2774 = vmatprep.subr.bf16.mxu0 0
        %2775 = vmatpush1.bf16.msra.mxu0 0
        %2776 = vmatprep.subr.bf16.mxu0 0
        %2777 = vmatpush1.bf16.msra.mxu0 0
        %2778 = vmatprep.mubr.bf16.mxu0 0
        %2779 = vmatmul.mubr.bf16.gmra.mrb[0].mxu0 %v2741
        %v2780 = vpop.f32.mrb[0].mxu0
        %v2781 = vadd.f32 %v2735, %v2780
        %v2782 = vpop.f32.mrb[0].mxu0
        %v2783 = vpop.f32.mrb[0].mxu0
        %v2784 = vpop.f32.mrb[0].mxu0
        %2785 = vdwg.mxu0
        %2786 = vrot.lane.b32.xlu0 %v2464, 112
        %v2787 = vpop.permute.xlu0 %2786
        %2788 = vrot.lane.b32.xlu0 %v2464, 80
        %v2789 = vpop.permute.xlu0 %2788
        %v2791 = vsel %vm957, %v2787, 0
        %v2794 = vsel %vm957, %v2789, 0
        %2796 = vmatprep.subr.bf16.mxu0 0
        %2797 = vmatpush1.bf16.xpose.msra.mxu0 %v2794
        %2798 = vmatprep.subr.bf16.mxu0 0
        %2799 = vmatpush1.bf16.xpose.msra.mxu0 0
        %2800 = vmatprep.subr.bf16.mxu0 0
        %2801 = vmatpush1.bf16.xpose.msra.mxu0 0
        %2802 = vmatprep.subr.bf16.mxu0 0
        %2803 = vmatpush1.bf16.xpose.msra.mxu0 0
        %2804 = vmatprep.subr.bf16.mxu0 0
        %2805 = vmatpush1.bf16.xpose.msra.mxu0 0
        %2806 = vmatprep.subr.bf16.mxu0 0
        %2807 = vmatpush1.bf16.xpose.msra.mxu0 0
        %2808 = vmatprep.subr.bf16.mxu0 0
        %2809 = vmatpush1.bf16.xpose.msra.mxu0 0
        %2810 = vmatprep.subr.bf16.mxu0 0
        %2811 = vmatpush1.bf16.xpose.msra.mxu0 0
        %2812 = vmatprep.subr.bf16.mxu0 0
        %2813 = vmatpush1.bf16.xpose.msra.mxu0 0
        %2814 = vmatprep.subr.bf16.mxu0 0
        %2815 = vmatpush1.bf16.xpose.msra.mxu0 0
        %2816 = vmatprep.subr.bf16.mxu0 0
        %2817 = vmatpush1.bf16.xpose.msra.mxu0 0
        %2818 = vmatprep.subr.bf16.mxu0 0
        %2819 = vmatpush1.bf16.xpose.msra.mxu0 0
        %2820 = vmatprep.subr.bf16.mxu0 0
        %2821 = vmatpush1.bf16.xpose.msra.mxu0 0
        %2822 = vmatprep.subr.bf16.mxu0 0
        %2823 = vmatpush1.bf16.xpose.msra.mxu0 0
        %2824 = vmatprep.subr.bf16.mxu0 0
        %2825 = vmatpush1.bf16.xpose.msra.mxu0 0
        %2826 = vmatprep.subr.bf16.mxu0 0
        %2827 = vmatpush1.bf16.xpose.msra.mxu0 0
        %2828 = vmatprep.mubr.bf16.mxu0 0
        %2829 = vmatmul.mubr.bf16.gmra.mrb[0].mxu0 %v2791
        %v2830 = vpop.f32.mrb[0].mxu0
        %v2831 = vadd.f32 0.0, %v2830
        %v2832 = vpop.f32.mrb[0].mxu0
        %v2833 = vpop.f32.mrb[0].mxu0
        %v2834 = vpop.f32.mrb[0].mxu0
        %2835 = vdwg.mxu0
        %v2836 = vmul.f32 %v2831, 0.35355338
        %v2837 = vadd.f32 %v2836, %v673
        %v2838 = vsel %vm957, %v2837, -inf
        %2839 = vmax.xlane.f32.xlu0 %v2838
        %v2840 = vpop.xlane.xlu0 %2839
        %v2841 = vsub.f32 %v2837, %v2840
        %v2842 = vmul.f32 %v2841, 1.442695
        %v2843 = vpow.pop %v2842
        %v2844 = vsel %vm957, %v2843, 0.0
        %2845 = vadd.xlane.f32.xlu0 %v2844
        %v2846 = vpop.xlane.xlu0 %2845
        %v2847 = vrcp.pop %v2846
        %v2848 = vmul.f32 %v2843, %v2847
        %v2849 = vpack.c.bf16 %v2848, %v2848
        %2850 = vrot.lane.b32.xlu0 %v2464, 48
        %v2851 = vpop.permute.xlu0 %2850
        %v2853 = vsel %vm957, %v2849, 0
        %v2856 = vsel %vm1023, %v2851, 0
        %2858 = vmatprep.subr.bf16.mxu0 0
        %2859 = vmatpush1.bf16.msra.mxu0 %v2856
        %2860 = vmatprep.subr.bf16.mxu0 0
        %2861 = vmatpush1.bf16.msra.mxu0 0
        %2862 = vmatprep.subr.bf16.mxu0 0
        %2863 = vmatpush1.bf16.msra.mxu0 0
        %2864 = vmatprep.subr.bf16.mxu0 0
        %2865 = vmatpush1.bf16.msra.mxu0 0
        %2866 = vmatprep.subr.bf16.mxu0 0
        %2867 = vmatpush1.bf16.msra.mxu0 0
        %2868 = vmatprep.subr.bf16.mxu0 0
        %2869 = vmatpush1.bf16.msra.mxu0 0
        %2870 = vmatprep.subr.bf16.mxu0 0
        %2871 = vmatpush1.bf16.msra.mxu0 0
        %2872 = vmatprep.subr.bf16.mxu0 0
        %2873 = vmatpush1.bf16.msra.mxu0 0
        %2874 = vmatprep.subr.bf16.mxu0 0
        %2875 = vmatpush1.bf16.msra.mxu0 0
        %2876 = vmatprep.subr.bf16.mxu0 0
        %2877 = vmatpush1.bf16.msra.mxu0 0
        %2878 = vmatprep.subr.bf16.mxu0 0
        %2879 = vmatpush1.bf16.msra.mxu0 0
        %2880 = vmatprep.subr.bf16.mxu0 0
        %2881 = vmatpush1.bf16.msra.mxu0 0
        %2882 = vmatprep.subr.bf16.mxu0 0
        %2883 = vmatpush1.bf16.msra.mxu0 0
        %2884 = vmatprep.subr.bf16.mxu0 0
        %2885 = vmatpush1.bf16.msra.mxu0 0
        %2886 = vmatprep.subr.bf16.mxu0 0
        %2887 = vmatpush1.bf16.msra.mxu0 0
        %2888 = vmatprep.subr.bf16.mxu0 0
        %2889 = vmatpush1.bf16.msra.mxu0 0
        %2890 = vmatprep.mubr.bf16.mxu0 0
        %2891 = vmatmul.mubr.bf16.gmra.mrb[0].mxu0 %v2853
        %v2892 = vpop.f32.mrb[0].mxu0
        %v2893 = vadd.f32 0.0, %v2892
        %v2894 = vpop.f32.mrb[0].mxu0
        %v2895 = vpop.f32.mrb[0].mxu0
        %v2896 = vpop.f32.mrb[0].mxu0
        %2897 = vdwg.mxu0
        %v2898 = vpack.c.bf16 %v2893, %v2893
        %s2899 = scalar_lea.vmem %s8, 24
        %v2900 = vld [vmem:[%s2899] sm:$0xf]
        %v2902 = vsel %vm957, %v2898, 0
        %v2905 = vsel %vm1023, %v2900, 0
        %2907 = vmatprep.subr.bf16.mxu0 0
        %2908 = vmatpush1.bf16.msra.mxu0 %v2905
        %2909 = vmatprep.subr.bf16.mxu0 0
        %2910 = vmatpush1.bf16.msra.mxu0 0
        %2911 = vmatprep.subr.bf16.mxu0 0
        %2912 = vmatpush1.bf16.msra.mxu0 0
        %2913 = vmatprep.subr.bf16.mxu0 0
        %2914 = vmatpush1.bf16.msra.mxu0 0
        %2915 = vmatprep.subr.bf16.mxu0 0
        %2916 = vmatpush1.bf16.msra.mxu0 0
        %2917 = vmatprep.subr.bf16.mxu0 0
        %2918 = vmatpush1.bf16.msra.mxu0 0
        %2919 = vmatprep.subr.bf16.mxu0 0
        %2920 = vmatpush1.bf16.msra.mxu0 0
        %2921 = vmatprep.subr.bf16.mxu0 0
        %2922 = vmatpush1.bf16.msra.mxu0 0
        %2923 = vmatprep.subr.bf16.mxu0 0
        %2924 = vmatpush1.bf16.msra.mxu0 0
        %2925 = vmatprep.subr.bf16.mxu0 0
        %2926 = vmatpush1.bf16.msra.mxu0 0
        %2927 = vmatprep.subr.bf16.mxu0 0
        %2928 = vmatpush1.bf16.msra.mxu0 0
        %2929 = vmatprep.subr.bf16.mxu0 0
        %2930 = vmatpush1.bf16.msra.mxu0 0
        %2931 = vmatprep.subr.bf16.mxu0 0
        %2932 = vmatpush1.bf16.msra.mxu0 0
        %2933 = vmatprep.subr.bf16.mxu0 0
        %2934 = vmatpush1.bf16.msra.mxu0 0
        %2935 = vmatprep.subr.bf16.mxu0 0
        %2936 = vmatpush1.bf16.msra.mxu0 0
        %2937 = vmatprep.subr.bf16.mxu0 0
        %2938 = vmatpush1.bf16.msra.mxu0 0
        %2939 = vmatprep.mubr.bf16.mxu0 0
        %2940 = vmatmul.mubr.bf16.gmra.mrb[0].mxu0 %v2902
        %v2941 = vpop.f32.mrb[0].mxu0
        %v2942 = vadd.f32 0.0, %v2941
        %v2943 = vpop.f32.mrb[0].mxu0
        %v2944 = vpop.f32.mrb[0].mxu0
        %v2945 = vpop.f32.mrb[0].mxu0
        %2946 = vdwg.mxu0
        %v2947 = vadd.f32 %v2781, %v2942
        %2948 = vrot.lane.b32.xlu0 %v2464, 104
        %v2949 = vpop.permute.xlu0 %2948
        %2950 = vrot.lane.b32.xlu0 %v2464, 72
        %v2951 = vpop.permute.xlu0 %2950
        %v2953 = vsel %vm957, %v2949, 0
        %v2956 = vsel %vm957, %v2951, 0
        %2958 = vmatprep.subr.bf16.mxu0 0
        %2959 = vmatpush1.bf16.xpose.msra.mxu0 %v2956
        %2960 = vmatprep.subr.bf16.mxu0 0
        %2961 = vmatpush1.bf16.xpose.msra.mxu0 0
        %2962 = vmatprep.subr.bf16.mxu0 0
        %2963 = vmatpush1.bf16.xpose.msra.mxu0 0
        %2964 = vmatprep.subr.bf16.mxu0 0
        %2965 = vmatpush1.bf16.xpose.msra.mxu0 0
        %2966 = vmatprep.subr.bf16.mxu0 0
        %2967 = vmatpush1.bf16.xpose.msra.mxu0 0
        %2968 = vmatprep.subr.bf16.mxu0 0
        %2969 = vmatpush1.bf16.xpose.msra.mxu0 0
        %2970 = vmatprep.subr.bf16.mxu0 0
        %2971 = vmatpush1.bf16.xpose.msra.mxu0 0
        %2972 = vmatprep.subr.bf16.mxu0 0
        %2973 = vmatpush1.bf16.xpose.msra.mxu0 0
        %2974 = vmatprep.subr.bf16.mxu0 0
        %2975 = vmatpush1.bf16.xpose.msra.mxu0 0
        %2976 = vmatprep.subr.bf16.mxu0 0
        %2977 = vmatpush1.bf16.xpose.msra.mxu0 0
        %2978 = vmatprep.subr.bf16.mxu0 0
        %2979 = vmatpush1.bf16.xpose.msra.mxu0 0
        %2980 = vmatprep.subr.bf16.mxu0 0
        %2981 = vmatpush1.bf16.xpose.msra.mxu0 0
        %2982 = vmatprep.subr.bf16.mxu0 0
        %2983 = vmatpush1.bf16.xpose.msra.mxu0 0
        %2984 = vmatprep.subr.bf16.mxu0 0
        %2985 = vmatpush1.bf16.xpose.msra.mxu0 0
        %2986 = vmatprep.subr.bf16.mxu0 0
        %2987 = vmatpush1.bf16.xpose.msra.mxu0 0
        %2988 = vmatprep.subr.bf16.mxu0 0
        %2989 = vmatpush1.bf16.xpose.msra.mxu0 0
        %2990 = vmatprep.mubr.bf16.mxu0 0
        %2991 = vmatmul.mubr.bf16.gmra.mrb[0].mxu0 %v2953
        %v2992 = vpop.f32.mrb[0].mxu0
        %v2993 = vadd.f32 0.0, %v2992
        %v2994 = vpop.f32.mrb[0].mxu0
        %v2995 = vpop.f32.mrb[0].mxu0
        %v2996 = vpop.f32.mrb[0].mxu0
        %2997 = vdwg.mxu0
        %v2998 = vmul.f32 %v2993, 0.35355338
        %v2999 = vadd.f32 %v2998, %v673
        %v3000 = vsel %vm957, %v2999, -inf
        %3001 = vmax.xlane.f32.xlu0 %v3000
        %v3002 = vpop.xlane.xlu0 %3001
        %v3003 = vsub.f32 %v2999, %v3002
        %v3004 = vmul.f32 %v3003, 1.442695
        %v3005 = vpow.pop %v3004
        %v3006 = vsel %vm957, %v3005, 0.0
        %3007 = vadd.xlane.f32.xlu0 %v3006
        %v3008 = vpop.xlane.xlu0 %3007
        %v3009 = vrcp.pop %v3008
        %v3010 = vmul.f32 %v3005, %v3009
        %v3011 = vpack.c.bf16 %v3010, %v3010
        %3012 = vrot.lane.b32.xlu0 %v2464, 40
        %v3013 = vpop.permute.xlu0 %3012
        %v3015 = vsel %vm957, %v3011, 0
        %v3018 = vsel %vm1023, %v3013, 0
        %3020 = vmatprep.subr.bf16.mxu0 0
        %3021 = vmatpush1.bf16.msra.mxu0 %v3018
        %3022 = vmatprep.subr.bf16.mxu0 0
        %3023 = vmatpush1.bf16.msra.mxu0 0
        %3024 = vmatprep.subr.bf16.mxu0 0
        %3025 = vmatpush1.bf16.msra.mxu0 0
        %3026 = vmatprep.subr.bf16.mxu0 0
        %3027 = vmatpush1.bf16.msra.mxu0 0
        %3028 = vmatprep.subr.bf16.mxu0 0
        %3029 = vmatpush1.bf16.msra.mxu0 0
        %3030 = vmatprep.subr.bf16.mxu0 0
        %3031 = vmatpush1.bf16.msra.mxu0 0
        %3032 = vmatprep.subr.bf16.mxu0 0
        %3033 = vmatpush1.bf16.msra.mxu0 0
        %3034 = vmatprep.subr.bf16.mxu0 0
        %3035 = vmatpush1.bf16.msra.mxu0 0
        %3036 = vmatprep.subr.bf16.mxu0 0
        %3037 = vmatpush1.bf16.msra.mxu0 0
        %3038 = vmatprep.subr.bf16.mxu0 0
        %3039 = vmatpush1.bf16.msra.mxu0 0
        %3040 = vmatprep.subr.bf16.mxu0 0
        %3041 = vmatpush1.bf16.msra.mxu0 0
        %3042 = vmatprep.subr.bf16.mxu0 0
        %3043 = vmatpush1.bf16.msra.mxu0 0
        %3044 = vmatprep.subr.bf16.mxu0 0
        %3045 = vmatpush1.bf16.msra.mxu0 0
        %3046 = vmatprep.subr.bf16.mxu0 0
        %3047 = vmatpush1.bf16.msra.mxu0 0
        %3048 = vmatprep.subr.bf16.mxu0 0
        %3049 = vmatpush1.bf16.msra.mxu0 0
        %3050 = vmatprep.subr.bf16.mxu0 0
        %3051 = vmatpush1.bf16.msra.mxu0 0
        %3052 = vmatprep.mubr.bf16.mxu0 0
        %3053 = vmatmul.mubr.bf16.gmra.mrb[0].mxu0 %v3015
        %v3054 = vpop.f32.mrb[0].mxu0
        %v3055 = vadd.f32 0.0, %v3054
        %v3056 = vpop.f32.mrb[0].mxu0
        %v3057 = vpop.f32.mrb[0].mxu0
        %v3058 = vpop.f32.mrb[0].mxu0
        %3059 = vdwg.mxu0
        %v3060 = vpack.c.bf16 %v3055, %v3055
        %s3061 = scalar_lea.vmem %s8, 28
        %v3062 = vld [vmem:[%s3061] sm:$0xf]
        %v3064 = vsel %vm957, %v3060, 0
        %v3067 = vsel %vm1023, %v3062, 0
        %3069 = vmatprep.subr.bf16.mxu0 0
        %3070 = vmatpush1.bf16.msra.mxu0 %v3067
        %3071 = vmatprep.subr.bf16.mxu0 0
        %3072 = vmatpush1.bf16.msra.mxu0 0
        %3073 = vmatprep.subr.bf16.mxu0 0
        %3074 = vmatpush1.bf16.msra.mxu0 0
        %3075 = vmatprep.subr.bf16.mxu0 0
        %3076 = vmatpush1.bf16.msra.mxu0 0
        %3077 = vmatprep.subr.bf16.mxu0 0
        %3078 = vmatpush1.bf16.msra.mxu0 0
        %3079 = vmatprep.subr.bf16.mxu0 0
        %3080 = vmatpush1.bf16.msra.mxu0 0
        %3081 = vmatprep.subr.bf16.mxu0 0
        %3082 = vmatpush1.bf16.msra.mxu0 0
        %3083 = vmatprep.subr.bf16.mxu0 0
        %3084 = vmatpush1.bf16.msra.mxu0 0
        %3085 = vmatprep.subr.bf16.mxu0 0
        %3086 = vmatpush1.bf16.msra.mxu0 0
        %3087 = vmatprep.subr.bf16.mxu0 0
        %3088 = vmatpush1.bf16.msra.mxu0 0
        %3089 = vmatprep.subr.bf16.mxu0 0
        %3090 = vmatpush1.bf16.msra.mxu0 0
        %3091 = vmatprep.subr.bf16.mxu0 0
        %3092 = vmatpush1.bf16.msra.mxu0 0
        %3093 = vmatprep.subr.bf16.mxu0 0
        %3094 = vmatpush1.bf16.msra.mxu0 0
        %3095 = vmatprep.subr.bf16.mxu0 0
        %3096 = vmatpush1.bf16.msra.mxu0 0
        %3097 = vmatprep.subr.bf16.mxu0 0
        %3098 = vmatpush1.bf16.msra.mxu0 0
        %3099 = vmatprep.subr.bf16.mxu0 0
        %3100 = vmatpush1.bf16.msra.mxu0 0
        %3101 = vmatprep.mubr.bf16.mxu0 0
        %3102 = vmatmul.mubr.bf16.gmra.mrb[0].mxu0 %v3064
        %v3103 = vpop.f32.mrb[0].mxu0
        %v3104 = vadd.f32 0.0, %v3103
        %v3105 = vpop.f32.mrb[0].mxu0
        %v3106 = vpop.f32.mrb[0].mxu0
        %v3107 = vpop.f32.mrb[0].mxu0
        %3108 = vdwg.mxu0
        %v3109 = vadd.f32 %v2947, %v3104
        %v3110 = vadd.f32 %v2375, %v3109
        %v3111 = vlaneseq
        %v3112 = vshrl.u32 %v3111, 7
        %v3113 = vsub.s32 7, %v3112
        %v3114 = vrot.slane %v2195, %v3113
        %v3115 = vadd.f32 %v3110, %v3114
        %v3116 = vsel %vm648, %v3115, 0.0
        %3117 = vadd.xlane.f32.xlu0 %v3116
        %v3118 = vpop.xlane.xlu0 %3117
        %v3119 = vmul.f32 %v3118, %v652
        %v3120 = vsub.f32 %v3115, %v3119
        %v3121 = vmul.f32 %v3120, %v3120
        %v3122 = vsel %vm648, %v3121, 0.0
        %3123 = vadd.xlane.f32.xlu0 %v3122
        %v3124 = vpop.xlane.xlu0 %3123
        %v3125 = vmul.f32 %v3124, %v652
        %v3126 = vadd.f32 %v3125, 1e-05
        %v3127 = vrsqrt.pop %v3126
        %v3128 = vmul.f32 %v3120, %v3127
        %v3129 = vlaneseq
        %v3130 = vshrl.u32 %v3129, 7
        %v3131 = vsub.s32 0, %v3130
        %v3132 = vrot.slane %v2196, %v3131
        %v3133 = vmul.f32 %v3128, %v3132
        %v3134 = vlaneseq
        %v3135 = vshrl.u32 %v3134, 7
        %v3136 = vsub.s32 1, %v3135
        %v3137 = vrot.slane %v2196, %v3136
        %v3138 = vadd.f32 %v3133, %v3137
        %s3139 = scalar_lea.vmem %s9, 16
        %v3140 = vld [vmem:[%s3139] sm:$0xf]
        %v3141 = vld [vmem:[%s3139 + $0x4] sm:$0xf]
        %v3142 = vld [vmem:[%s3139 + $0x8] sm:$0xf]
        %v3143 = vld [vmem:[%s3139 + $0xc] sm:$0xf]
        %v3144 = vpack.c.bf16 %v3138, %v3138
        %v3145 = vlaneseq
        %v3146 = vshrl.u32 %v3145, 7
        %v3147 = vsub.s32 2, %v3146
        %v3148 = vrot.slane %v2196, %v3147
        %v3153 = vunpack.c.l.b16 %v3140
        %v3154 = vunpack.c.l.b16 %v3141
        %v3155 = vunpack.c.l.b16 %v3142
        %v3156 = vunpack.c.l.b16 %v3143
        %v3157 = vpack.c.b16 %v3154, %v3153
        %v3158 = vpack.c.b16 %v3156, %v3155
        %v3162 = vsel %vm648, %v3144, 0
        %3164 = vmatprep.subr.bf16.mxu0 0
        %3165 = vmatpush1.bf16.msra.mxu0 %v3157
        %3166 = vmatprep.subr.bf16.mxu0 0
        %3167 = vmatpush1.bf16.msra.mxu0 %v3158
        %3168 = vmatprep.subr.bf16.mxu0 0
        %3169 = vmatpush1.bf16.msra.mxu0 0
        %3170 = vmatprep.subr.bf16.mxu0 0
        %3171 = vmatpush1.bf16.msra.mxu0 0
        %3172 = vmatprep.subr.bf16.mxu0 0
        %3173 = vmatpush1.bf16.msra.mxu0 0
        %3174 = vmatprep.subr.bf16.mxu0 0
        %3175 = vmatpush1.bf16.msra.mxu0 0
        %3176 = vmatprep.subr.bf16.mxu0 0
        %3177 = vmatpush1.bf16.msra.mxu0 0
        %3178 = vmatprep.subr.bf16.mxu0 0
        %3179 = vmatpush1.bf16.msra.mxu0 0
        %3180 = vmatprep.subr.bf16.mxu0 0
        %3181 = vmatpush1.bf16.msra.mxu0 0
        %3182 = vmatprep.subr.bf16.mxu0 0
        %3183 = vmatpush1.bf16.msra.mxu0 0
        %3184 = vmatprep.subr.bf16.mxu0 0
        %3185 = vmatpush1.bf16.msra.mxu0 0
        %3186 = vmatprep.subr.bf16.mxu0 0
        %3187 = vmatpush1.bf16.msra.mxu0 0
        %3188 = vmatprep.subr.bf16.mxu0 0
        %3189 = vmatpush1.bf16.msra.mxu0 0
        %3190 = vmatprep.subr.bf16.mxu0 0
        %3191 = vmatpush1.bf16.msra.mxu0 0
        %3192 = vmatprep.subr.bf16.mxu0 0
        %3193 = vmatpush1.bf16.msra.mxu0 0
        %3194 = vmatprep.subr.bf16.mxu0 0
        %3195 = vmatpush1.bf16.msra.mxu0 0
        %3196 = vmatprep.mubr.bf16.mxu0 0
        %3197 = vmatmul.mubr.bf16.gmra.mrb[0].mxu0 %v3162
        %v3198 = vpop.f32.mrb[0].mxu0
        %v3199 = vadd.f32 %v3148, %v3198
        %v3200 = vpop.f32.mrb[0].mxu0
        %v3201 = vpop.f32.mrb[0].mxu0
        %v3202 = vpop.f32.mrb[0].mxu0
        %3203 = vdwg.mxu0
        %s3204 = scalar_lea.vmem %s10, 16
        %v3205 = vld [vmem:[%s3204] sm:$0xf]
        %v3206 = vld [vmem:[%s3204 + $0x4] sm:$0xf]
        %v3207 = vld [vmem:[%s3204 + $0x8] sm:$0xf]
        %v3208 = vld [vmem:[%s3204 + $0xc] sm:$0xf]
        %v3209 = vlaneseq
        %v3210 = vshrl.u32 %v3209, 7
        %v3211 = vsub.s32 3, %v3210
        %v3212 = vrot.slane %v2196, %v3211
        %v3217 = vunpack.c.l.b16 %v3205
        %v3218 = vunpack.c.l.b16 %v3206
        %v3219 = vunpack.c.l.b16 %v3207
        %v3220 = vunpack.c.l.b16 %v3208
        %v3221 = vpack.c.b16 %v3218, %v3217
        %v3222 = vpack.c.b16 %v3220, %v3219
        %3225 = vmatprep.subr.bf16.mxu0 0
        %3226 = vmatpush1.bf16.msra.mxu0 %v3221
        %3227 = vmatprep.subr.bf16.mxu0 0
        %3228 = vmatpush1.bf16.msra.mxu0 %v3222
        %3229 = vmatprep.subr.bf16.mxu0 0
        %3230 = vmatpush1.bf16.msra.mxu0 0
        %3231 = vmatprep.subr.bf16.mxu0 0
        %3232 = vmatpush1.bf16.msra.mxu0 0
        %3233 = vmatprep.subr.bf16.mxu0 0
        %3234 = vmatpush1.bf16.msra.mxu0 0
        %3235 = vmatprep.subr.bf16.mxu0 0
        %3236 = vmatpush1.bf16.msra.mxu0 0
        %3237 = vmatprep.subr.bf16.mxu0 0
        %3238 = vmatpush1.bf16.msra.mxu0 0
        %3239 = vmatprep.subr.bf16.mxu0 0
        %3240 = vmatpush1.bf16.msra.mxu0 0
        %3241 = vmatprep.subr.bf16.mxu0 0
        %3242 = vmatpush1.bf16.msra.mxu0 0
        %3243 = vmatprep.subr.bf16.mxu0 0
        %3244 = vmatpush1.bf16.msra.mxu0 0
        %3245 = vmatprep.subr.bf16.mxu0 0
        %3246 = vmatpush1.bf16.msra.mxu0 0
        %3247 = vmatprep.subr.bf16.mxu0 0
        %3248 = vmatpush1.bf16.msra.mxu0 0
        %3249 = vmatprep.subr.bf16.mxu0 0
        %3250 = vmatpush1.bf16.msra.mxu0 0
        %3251 = vmatprep.subr.bf16.mxu0 0
        %3252 = vmatpush1.bf16.msra.mxu0 0
        %3253 = vmatprep.subr.bf16.mxu0 0
        %3254 = vmatpush1.bf16.msra.mxu0 0
        %3255 = vmatprep.subr.bf16.mxu0 0
        %3256 = vmatpush1.bf16.msra.mxu0 0
        %3257 = vmatprep.mubr.bf16.mxu0 0
        %3258 = vmatmul.mubr.bf16.gmra.mrb[0].mxu0 %v3162
        %v3259 = vpop.f32.mrb[0].mxu0
        %v3260 = vadd.f32 %v3212, %v3259
        %v3261 = vpop.f32.mrb[0].mxu0
        %v3262 = vpop.f32.mrb[0].mxu0
        %v3263 = vpop.f32.mrb[0].mxu0
        %3264 = vdwg.mxu0
        %v3265 = vxor.u32 %v3260, 2147483648
        %v3266 = vmul.f32 %v3265, 1.442695
        %v3267 = vpow.pop %v3266
        %v3268 = vadd.f32 %v3267, 1.0
        %v3269 = vrcp.pop %v3268
        %v3270 = vmul.f32 1.0, %v3269
        %v3271 = vmul.f32 %v3199, %v3270
        %v3272 = vlaneseq
        %v3273 = vshrl.u32 %v3272, 7
        %v3274 = vsub.s32 4, %v3273
        %v3275 = vrot.slane %v2197, %v3274
        %v3276 = vmul.f32 %v3271, %v3275
        %3277 = vmatprep.subr.mxu0 0.0
        %3278 = vmatpush1.msra.mxu0 %v3271
        %3279 = vmatprep.subr.mxu0 0.0
        %3280 = vmatpush1.msra.mxu0 0.0
        %3281 = vmatprep.subr.mxu0 0.0
        %3282 = vmatpush1.msra.mxu0 0.0
        %3283 = vmatprep.subr.mxu0 0.0
        %3284 = vmatpush1.msra.mxu0 0.0
        %3285 = vmatprep.subr.mxu0 0.0
        %3286 = vmatpush1.msra.mxu0 0.0
        %3287 = vmatprep.subr.mxu0 0.0
        %3288 = vmatpush1.msra.mxu0 0.0
        %3289 = vmatprep.subr.mxu0 0.0
        %3290 = vmatpush1.msra.mxu0 0.0
        %3291 = vmatprep.subr.mxu0 0.0
        %3292 = vmatpush1.msra.mxu0 0.0
        %3293 = vmatprep.subr.mxu0 0.0
        %3294 = vmatpush1.msra.mxu0 0.0
        %3295 = vmatprep.subr.mxu0 0.0
        %3296 = vmatpush1.msra.mxu0 0.0
        %3297 = vmatprep.subr.mxu0 0.0
        %3298 = vmatpush1.msra.mxu0 0.0
        %3299 = vmatprep.subr.mxu0 0.0
        %3300 = vmatpush1.msra.mxu0 0.0
        %3301 = vmatprep.subr.mxu0 0.0
        %3302 = vmatpush1.msra.mxu0 0.0
        %3303 = vmatprep.subr.mxu0 0.0
        %3304 = vmatpush1.msra.mxu0 0.0
        %3305 = vmatprep.subr.mxu0 0.0
        %3306 = vmatpush1.msra.mxu0 0.0
        %3307 = vmatprep.subr.mxu0 0.0
        %3308 = vmatpush1.msra.mxu0 0.0
        %3309 = vmatprep.subr.mxu0 0.0
        %3310 = vmatpush1.msra.mxu0 0.0
        %3311 = vmatprep.subr.mxu0 0.0
        %3312 = vmatpush1.msra.mxu0 0.0
        %3313 = vmatprep.subr.mxu0 0.0
        %3314 = vmatpush1.msra.mxu0 0.0
        %3315 = vmatprep.subr.mxu0 0.0
        %3316 = vmatpush1.msra.mxu0 0.0
        %3317 = vmatprep.subr.mxu0 0.0
        %3318 = vmatpush1.msra.mxu0 0.0
        %3319 = vmatprep.subr.mxu0 0.0
        %3320 = vmatpush1.msra.mxu0 0.0
        %3321 = vmatprep.subr.mxu0 0.0
        %3322 = vmatpush1.msra.mxu0 0.0
        %3323 = vmatprep.subr.mxu0 0.0
        %3324 = vmatpush1.msra.mxu0 0.0
        %3325 = vmatprep.subr.mxu0 0.0
        %3326 = vmatpush1.msra.mxu0 0.0
        %3327 = vmatprep.subr.mxu0 0.0
        %3328 = vmatpush1.msra.mxu0 0.0
        %3329 = vmatprep.subr.mxu0 0.0
        %3330 = vmatpush1.msra.mxu0 0.0
        %3331 = vmatprep.subr.mxu0 0.0
        %3332 = vmatpush1.msra.mxu0 0.0
        %3333 = vmatprep.subr.mxu0 0.0
        %3334 = vmatpush1.msra.mxu0 0.0
        %3335 = vmatprep.subr.mxu0 0.0
        %3336 = vmatpush1.msra.mxu0 0.0
        %3337 = vmatprep.subr.mxu0 0.0
        %3338 = vmatpush1.msra.mxu0 0.0
        %3339 = vmatprep.subr.mxu0 0.0
        %3340 = vmatpush1.msra.mxu0 0.0
        %3341 = vmatprep.mubr.f32.mxu0 0.0
        %3342 = vmatmul.mubr.f32.gmra.mrb[0].mxu0 %v1766
        %v3343 = vpop.f32.mrb[0].mxu0
        %v3344 = vadd.f32 0.0, %v3343
        %v3345 = vpop.f32.mrb[0].mxu0
        %3346 = vdwg.mxu0
        %v3347 = vlaneseq
        %v3348 = vshrl.u32 %v3347, 7
        %v3349 = vsub.s32 3, %v3348
        %v3350 = vrot.slane %v2197, %v3349
        %v3351 = vmul.f32 %v3344, %v3350
        %v3352 = vadd.f32 %v3276, %v3351
        %3353 = vmatprep.subr.mxu0 0.0
        %3354 = vmatpush1.msra.mxu0 %v3271
        %3355 = vmatprep.subr.mxu0 0.0
        %3356 = vmatpush1.msra.mxu0 0.0
        %3357 = vmatprep.subr.mxu0 0.0
        %3358 = vmatpush1.msra.mxu0 0.0
        %3359 = vmatprep.subr.mxu0 0.0
        %3360 = vmatpush1.msra.mxu0 0.0
        %3361 = vmatprep.subr.mxu0 0.0
        %3362 = vmatpush1.msra.mxu0 0.0
        %3363 = vmatprep.subr.mxu0 0.0
        %3364 = vmatpush1.msra.mxu0 0.0
        %3365 = vmatprep.subr.mxu0 0.0
        %3366 = vmatpush1.msra.mxu0 0.0
        %3367 = vmatprep.subr.mxu0 0.0
        %3368 = vmatpush1.msra.mxu0 0.0
        %3369 = vmatprep.subr.mxu0 0.0
        %3370 = vmatpush1.msra.mxu0 0.0
        %3371 = vmatprep.subr.mxu0 0.0
        %3372 = vmatpush1.msra.mxu0 0.0
        %3373 = vmatprep.subr.mxu0 0.0
        %3374 = vmatpush1.msra.mxu0 0.0
        %3375 = vmatprep.subr.mxu0 0.0
        %3376 = vmatpush1.msra.mxu0 0.0
        %3377 = vmatprep.subr.mxu0 0.0
        %3378 = vmatpush1.msra.mxu0 0.0
        %3379 = vmatprep.subr.mxu0 0.0
        %3380 = vmatpush1.msra.mxu0 0.0
        %3381 = vmatprep.subr.mxu0 0.0
        %3382 = vmatpush1.msra.mxu0 0.0
        %3383 = vmatprep.subr.mxu0 0.0
        %3384 = vmatpush1.msra.mxu0 0.0
        %3385 = vmatprep.subr.mxu0 0.0
        %3386 = vmatpush1.msra.mxu0 0.0
        %3387 = vmatprep.subr.mxu0 0.0
        %3388 = vmatpush1.msra.mxu0 0.0
        %3389 = vmatprep.subr.mxu0 0.0
        %3390 = vmatpush1.msra.mxu0 0.0
        %3391 = vmatprep.subr.mxu0 0.0
        %3392 = vmatpush1.msra.mxu0 0.0
        %3393 = vmatprep.subr.mxu0 0.0
        %3394 = vmatpush1.msra.mxu0 0.0
        %3395 = vmatprep.subr.mxu0 0.0
        %3396 = vmatpush1.msra.mxu0 0.0
        %3397 = vmatprep.subr.mxu0 0.0
        %3398 = vmatpush1.msra.mxu0 0.0
        %3399 = vmatprep.subr.mxu0 0.0
        %3400 = vmatpush1.msra.mxu0 0.0
        %3401 = vmatprep.subr.mxu0 0.0
        %3402 = vmatpush1.msra.mxu0 0.0
        %3403 = vmatprep.subr.mxu0 0.0
        %3404 = vmatpush1.msra.mxu0 0.0
        %3405 = vmatprep.subr.mxu0 0.0
        %3406 = vmatpush1.msra.mxu0 0.0
        %3407 = vmatprep.subr.mxu0 0.0
        %3408 = vmatpush1.msra.mxu0 0.0
        %3409 = vmatprep.subr.mxu0 0.0
        %3410 = vmatpush1.msra.mxu0 0.0
        %3411 = vmatprep.subr.mxu0 0.0
        %3412 = vmatpush1.msra.mxu0 0.0
        %3413 = vmatprep.subr.mxu0 0.0
        %3414 = vmatpush1.msra.mxu0 0.0
        %3415 = vmatprep.subr.mxu0 0.0
        %3416 = vmatpush1.msra.mxu0 0.0
        %3417 = vmatprep.mubr.f32.mxu0 0.0
        %3418 = vmatmul.mubr.f32.gmra.mrb[0].mxu0 %v1845
        %v3419 = vpop.f32.mrb[0].mxu0
        %v3420 = vadd.f32 0.0, %v3419
        %v3421 = vpop.f32.mrb[0].mxu0
        %3422 = vdwg.mxu0
        %v3423 = vlaneseq
        %v3424 = vshrl.u32 %v3423, 7
        %v3425 = vsub.s32 5, %v3424
        %v3426 = vrot.slane %v2197, %v3425
        %v3427 = vmul.f32 %v3420, %v3426
        %v3428 = vadd.f32 %v3352, %v3427
        %v3429 = vxor.u32 %v3428, 2147483648
        %v3430 = vmul.f32 %v3429, 1.442695
        %v3431 = vpow.pop %v3430
        %v3432 = vadd.f32 %v3431, 1.0
        %v3433 = vrcp.pop %v3432
        %v3434 = vmul.f32 1.0, %v3433
        %v3435 = vmul.f32 %v3428, %v3434
        %s3436 = scalar_lea.vmem %s11, 16
        %v3437 = vld [vmem:[%s3436] sm:$0xf]
        %v3438 = vld [vmem:[%s3436 + $0x4] sm:$0xf]
        %v3439 = vld [vmem:[%s3436 + $0x8] sm:$0xf]
        %v3440 = vld [vmem:[%s3436 + $0xc] sm:$0xf]
        %v3441 = vpack.c.bf16 %v3435, %v3435
        %v3442 = vlaneseq
        %v3443 = vshrl.u32 %v3442, 7
        %v3444 = vsub.s32 4, %v3443
        %v3445 = vrot.slane %v2196, %v3444
        %v3450 = vunpack.c.l.b16 %v3437
        %v3451 = vunpack.c.l.b16 %v3438
        %v3452 = vunpack.c.l.b16 %v3439
        %v3453 = vunpack.c.l.b16 %v3440
        %v3454 = vpack.c.b16 %v3451, %v3450
        %v3455 = vpack.c.b16 %v3453, %v3452
        %v3459 = vsel %vm648, %v3441, 0
        %3461 = vmatprep.subr.bf16.mxu0 0
        %3462 = vmatpush1.bf16.msra.mxu0 %v3454
        %3463 = vmatprep.subr.bf16.mxu0 0
        %3464 = vmatpush1.bf16.msra.mxu0 %v3455
        %3465 = vmatprep.subr.bf16.mxu0 0
        %3466 = vmatpush1.bf16.msra.mxu0 0
        %3467 = vmatprep.subr.bf16.mxu0 0
        %3468 = vmatpush1.bf16.msra.mxu0 0
        %3469 = vmatprep.subr.bf16.mxu0 0
        %3470 = vmatpush1.bf16.msra.mxu0 0
        %3471 = vmatprep.subr.bf16.mxu0 0
        %3472 = vmatpush1.bf16.msra.mxu0 0
        %3473 = vmatprep.subr.bf16.mxu0 0
        %3474 = vmatpush1.bf16.msra.mxu0 0
        %3475 = vmatprep.subr.bf16.mxu0 0
        %3476 = vmatpush1.bf16.msra.mxu0 0
        %3477 = vmatprep.subr.bf16.mxu0 0
        %3478 = vmatpush1.bf16.msra.mxu0 0
        %3479 = vmatprep.subr.bf16.mxu0 0
        %3480 = vmatpush1.bf16.msra.mxu0 0
        %3481 = vmatprep.subr.bf16.mxu0 0
        %3482 = vmatpush1.bf16.msra.mxu0 0
        %3483 = vmatprep.subr.bf16.mxu0 0
        %3484 = vmatpush1.bf16.msra.mxu0 0
        %3485 = vmatprep.subr.bf16.mxu0 0
        %3486 = vmatpush1.bf16.msra.mxu0 0
        %3487 = vmatprep.subr.bf16.mxu0 0
        %3488 = vmatpush1.bf16.msra.mxu0 0
        %3489 = vmatprep.subr.bf16.mxu0 0
        %3490 = vmatpush1.bf16.msra.mxu0 0
        %3491 = vmatprep.subr.bf16.mxu0 0
        %3492 = vmatpush1.bf16.msra.mxu0 0
        %3493 = vmatprep.mubr.bf16.mxu0 0
        %3494 = vmatmul.mubr.bf16.gmra.mrb[0].mxu0 %v3459
        %v3495 = vpop.f32.mrb[0].mxu0
        %v3496 = vadd.f32 %v3445, %v3495
        %v3497 = vpop.f32.mrb[0].mxu0
        %v3498 = vpop.f32.mrb[0].mxu0
        %v3499 = vpop.f32.mrb[0].mxu0
        %3500 = vdwg.mxu0
        %v3501 = vadd.f32 %v3115, %v3496
        %v3502 = vsel %vm648, %v3501, 0.0
        %3503 = vadd.xlane.f32.xlu0 %v3502
        %v3504 = vpop.xlane.xlu0 %3503
        %v3505 = vmul.f32 %v3504, %v652
        %v3506 = vsub.f32 %v3501, %v3505
        %v3507 = vmul.f32 %v3506, %v3506
        %v3508 = vsel %vm648, %v3507, 0.0
        %3509 = vadd.xlane.f32.xlu0 %v3508
        %v3510 = vpop.xlane.xlu0 %3509
        %v3511 = vmul.f32 %v3510, %v652
        %v3512 = vadd.f32 %v3511, 1e-05
        %v3513 = vrsqrt.pop %v3512
        %v3514 = vmul.f32 %v3506, %v3513
        %v3515 = vlaneseq
        %v3516 = vshrl.u32 %v3515, 7
        %v3517 = vsub.s32 5, %v3516
        %v3518 = vrot.slane %v2196, %v3517
        %v3519 = vmul.f32 %v3514, %v3518
        %v3520 = vlaneseq
        %v3521 = vshrl.u32 %v3520, 7
        %v3522 = vsub.s32 6, %v3521
        %v3523 = vrot.slane %v2196, %v3522
        %v3524 = vadd.f32 %v3519, %v3523
        %s3525 = scalar_lea.vmem %s12, 16
        %v3526 = vld [vmem:[%s3525] sm:$0xf]
        %v3527 = vld [vmem:[%s3525 + $0x4] sm:$0xf]
        %v3528 = vld [vmem:[%s3525 + $0x8] sm:$0xf]
        %v3529 = vld [vmem:[%s3525 + $0xc] sm:$0xf]
        %v3530 = vpack.c.bf16 %v3524, %v3524
        %v3531 = vlaneseq
        %v3532 = vshrl.u32 %v3531, 7
        %v3533 = vsub.s32 7, %v3532
        %v3534 = vrot.slane %v2196, %v3533
        %v3539 = vunpack.c.l.b16 %v3526
        %v3540 = vunpack.c.l.b16 %v3527
        %v3541 = vunpack.c.l.b16 %v3528
        %v3542 = vunpack.c.l.b16 %v3529
        %v3543 = vpack.c.b16 %v3540, %v3539
        %v3544 = vpack.c.b16 %v3542, %v3541
        %v3548 = vsel %vm648, %v3530, 0
        %3550 = vmatprep.subr.bf16.mxu0 0
        %3551 = vmatpush1.bf16.msra.mxu0 %v3543
        %3552 = vmatprep.subr.bf16.mxu0 0
        %3553 = vmatpush1.bf16.msra.mxu0 %v3544
        %3554 = vmatprep.subr.bf16.mxu0 0
        %3555 = vmatpush1.bf16.msra.mxu0 0
        %3556 = vmatprep.subr.bf16.mxu0 0
        %3557 = vmatpush1.bf16.msra.mxu0 0
        %3558 = vmatprep.subr.bf16.mxu0 0
        %3559 = vmatpush1.bf16.msra.mxu0 0
        %3560 = vmatprep.subr.bf16.mxu0 0
        %3561 = vmatpush1.bf16.msra.mxu0 0
        %3562 = vmatprep.subr.bf16.mxu0 0
        %3563 = vmatpush1.bf16.msra.mxu0 0
        %3564 = vmatprep.subr.bf16.mxu0 0
        %3565 = vmatpush1.bf16.msra.mxu0 0
        %3566 = vmatprep.subr.bf16.mxu0 0
        %3567 = vmatpush1.bf16.msra.mxu0 0
        %3568 = vmatprep.subr.bf16.mxu0 0
        %3569 = vmatpush1.bf16.msra.mxu0 0
        %3570 = vmatprep.subr.bf16.mxu0 0
        %3571 = vmatpush1.bf16.msra.mxu0 0
        %3572 = vmatprep.subr.bf16.mxu0 0
        %3573 = vmatpush1.bf16.msra.mxu0 0
        %3574 = vmatprep.subr.bf16.mxu0 0
        %3575 = vmatpush1.bf16.msra.mxu0 0
        %3576 = vmatprep.subr.bf16.mxu0 0
        %3577 = vmatpush1.bf16.msra.mxu0 0
        %3578 = vmatprep.subr.bf16.mxu0 0
        %3579 = vmatpush1.bf16.msra.mxu0 0
        %3580 = vmatprep.subr.bf16.mxu0 0
        %3581 = vmatpush1.bf16.msra.mxu0 0
        %3582 = vmatprep.mubr.bf16.mxu0 0
        %3583 = vmatmul.mubr.bf16.gmra.mrb[0].mxu0 %v3548
        %v3584 = vpop.f32.mrb[0].mxu0
        %v3585 = vadd.f32 %v3534, %v3584
        %v3586 = vpop.f32.mrb[0].mxu0
        %v3587 = vpop.f32.mrb[0].mxu0
        %v3588 = vpop.f32.mrb[0].mxu0
        %3589 = vdwg.mxu0
        %v3590 = vxor.u32 %v3585, 2147483648
        %v3591 = vmul.f32 %v3590, 1.442695
        %v3592 = vpow.pop %v3591
        %v3593 = vadd.f32 %v3592, 1.0
        %v3594 = vrcp.pop %v3593
        %v3595 = vmul.f32 1.0, %v3594
        %v3596 = vmul.f32 %v3585, %v3595
        %s3597 = scalar_lea.vmem %s13, 32
        %v3598 = vld [vmem:[%s3597] sm:$0xf]
        %v3599 = vld [vmem:[%s3597 + $0x4] sm:$0xf]
        %v3600 = vld [vmem:[%s3597 + $0x8] sm:$0xf]
        %v3601 = vld [vmem:[%s3597 + $0xc] sm:$0xf]
        %v3602 = vld [vmem:[%s3597 + $0x10] sm:$0xf]
        %v3603 = vld [vmem:[%s3597 + $0x14] sm:$0xf]
        %v3604 = vld [vmem:[%s3597 + $0x18] sm:$0xf]
        %v3605 = vld [vmem:[%s3597 + $0x1c] sm:$0xf]
        %v3606 = vpack.c.bf16 %v3596, %v3596
        %v3607 = vlaneseq
        %v3608 = vshrl.u32 %v3607, 7
        %v3609 = vsub.s32 0, %v3608
        %v3610 = vrot.slane %v2197, %v3609
        %v3619 = vunpack.c.l.b16 %v3598
        %v3620 = vunpack.c.l.b16 %v3599
        %v3621 = vunpack.c.l.b16 %v3600
        %v3622 = vunpack.c.l.b16 %v3601
        %v3623 = vunpack.c.l.b16 %v3602
        %v3624 = vunpack.c.l.b16 %v3603
        %v3625 = vunpack.c.l.b16 %v3604
        %v3626 = vunpack.c.l.b16 %v3605
        %v3627 = vpack.c.b16 %v3620, %v3619
        %v3628 = vpack.c.b16 %v3622, %v3621
        %v3629 = vpack.c.b16 %v3624, %v3623
        %v3630 = vpack.c.b16 %v3626, %v3625
        %v3636 = vsel %vm820, %v3606, 0
        %3638 = vmatprep.subr.bf16.mxu0 0
        %3639 = vmatpush1.bf16.msra.mxu0 %v3627
        %3640 = vmatprep.subr.bf16.mxu0 0
        %3641 = vmatpush1.bf16.msra.mxu0 %v3628
        %3642 = vmatprep.subr.bf16.mxu0 0
        %3643 = vmatpush1.bf16.msra.mxu0 %v3629
        %3644 = vmatprep.subr.bf16.mxu0 0
        %3645 = vmatpush1.bf16.msra.mxu0 %v3630
        %3646 = vmatprep.subr.bf16.mxu0 0
        %3647 = vmatpush1.bf16.msra.mxu0 0
        %3648 = vmatprep.subr.bf16.mxu0 0
        %3649 = vmatpush1.bf16.msra.mxu0 0
        %3650 = vmatprep.subr.bf16.mxu0 0
        %3651 = vmatpush1.bf16.msra.mxu0 0
        %3652 = vmatprep.subr.bf16.mxu0 0
        %3653 = vmatpush1.bf16.msra.mxu0 0
        %3654 = vmatprep.subr.bf16.mxu0 0
        %3655 = vmatpush1.bf16.msra.mxu0 0
        %3656 = vmatprep.subr.bf16.mxu0 0
        %3657 = vmatpush1.bf16.msra.mxu0 0
        %3658 = vmatprep.subr.bf16.mxu0 0
        %3659 = vmatpush1.bf16.msra.mxu0 0
        %3660 = vmatprep.subr.bf16.mxu0 0
        %3661 = vmatpush1.bf16.msra.mxu0 0
        %3662 = vmatprep.subr.bf16.mxu0 0
        %3663 = vmatpush1.bf16.msra.mxu0 0
        %3664 = vmatprep.subr.bf16.mxu0 0
        %3665 = vmatpush1.bf16.msra.mxu0 0
        %3666 = vmatprep.subr.bf16.mxu0 0
        %3667 = vmatpush1.bf16.msra.mxu0 0
        %3668 = vmatprep.subr.bf16.mxu0 0
        %3669 = vmatpush1.bf16.msra.mxu0 0
        %3670 = vmatprep.mubr.bf16.mxu0 0
        %3671 = vmatmul.mubr.bf16.gmra.mrb[0].mxu0 %v3636
        %v3672 = vpop.f32.mrb[0].mxu0
        %v3673 = vadd.f32 %v3610, %v3672
        %v3674 = vpop.f32.mrb[0].mxu0
        %v3675 = vpop.f32.mrb[0].mxu0
        %v3676 = vpop.f32.mrb[0].mxu0
        %3677 = vdwg.mxu0
        %v3678 = vmul.f32 %v3673, 0.5
        %v3679 = vadd.f32 %v3501, %v3678
        %v3680 = vsel %vm648, %v3679, 0.0
        %3681 = vadd.xlane.f32.xlu0 %v3680
        %v3682 = vpop.xlane.xlu0 %3681
        %v3683 = vmul.f32 %v3682, %v652
        %v3684 = vsub.f32 %v3679, %v3683
        %v3685 = vmul.f32 %v3684, %v3684
        %v3686 = vsel %vm648, %v3685, 0.0
        %3687 = vadd.xlane.f32.xlu0 %v3686
        %v3688 = vpop.xlane.xlu0 %3687
        %v3689 = vmul.f32 %v3688, %v652
        %v3690 = vadd.f32 %v3689, 1e-05
        %v3691 = vrsqrt.pop %v3690
        %v3692 = vmul.f32 %v3684, %v3691
        %v3693 = vlaneseq
        %v3694 = vshrl.u32 %v3693, 7
        %v3695 = vsub.s32 1, %v3694
        %v3696 = vrot.slane %v2197, %v3695
        %v3697 = vmul.f32 %v3692, %v3696
        %v3698 = vlaneseq
        %v3699 = vshrl.u32 %v3698, 7
        %v3700 = vsub.s32 2, %v3699
        %v3701 = vrot.slane %v2197, %v3700
        %v3702 = vadd.f32 %v3697, %v3701
        %s3703 = scalar_lea.vmem %s4, 48
        %v3704 = vld [vmem:[%s3703] sm:$0xff]
        %v3705 = vld [vmem:[%s3703 + $0x8] sm:$0xff]
        %v3706 = vld [vmem:[%s3703 + $0x10] sm:$0x3f]
        %v3707 = vsel %vm648, %v3702, 0.0
        %3708 = vadd.xlane.f32.xlu0 %v3707
        %v3709 = vpop.xlane.xlu0 %3708
        %v3710 = vmul.f32 %v3709, %v652
        %v3711 = vsub.f32 %v3702, %v3710
        %v3712 = vmul.f32 %v3711, %v3711
        %v3713 = vsel %vm648, %v3712, 0.0
        %3714 = vadd.xlane.f32.xlu0 %v3713
        %v3715 = vpop.xlane.xlu0 %3714
        %v3716 = vmul.f32 %v3715, %v652
        %v3717 = vadd.f32 %v3716, 1e-05
        %v3718 = vrsqrt.pop %v3717
        %v3719 = vmul.f32 %v3711, %v3718
        %v3720 = vlaneseq
        %v3721 = vshrl.u32 %v3720, 7
        %v3722 = vsub.s32 0, %v3721
        %v3723 = vrot.slane %v3704, %v3722
        %v3724 = vmul.f32 %v3719, %v3723
        %v3725 = vlaneseq
        %v3726 = vshrl.u32 %v3725, 7
        %v3727 = vsub.s32 1, %v3726
        %v3728 = vrot.slane %v3704, %v3727
        %v3729 = vadd.f32 %v3724, %v3728
        %s3730 = scalar_lea.vmem %s5, 32
        %v3731 = vld [vmem:[%s3730] sm:$0xf]
        %v3732 = vld [vmem:[%s3730 + $0x4] sm:$0xf]
        %v3733 = vld [vmem:[%s3730 + $0x8] sm:$0xf]
        %v3734 = vld [vmem:[%s3730 + $0xc] sm:$0xf]
        %v3735 = vpack.c.bf16 %v3729, %v3729
        %v3736 = vlaneseq
        %v3737 = vshrl.u32 %v3736, 7
        %v3738 = vsub.s32 2, %v3737
        %v3739 = vrot.slane %v3704, %v3738
        %v3744 = vunpack.c.l.b16 %v3731
        %v3745 = vunpack.c.l.b16 %v3732
        %v3746 = vunpack.c.l.b16 %v3733
        %v3747 = vunpack.c.l.b16 %v3734
        %v3748 = vpack.c.b16 %v3745, %v3744
        %v3749 = vpack.c.b16 %v3747, %v3746
        %v3753 = vsel %vm648, %v3735, 0
        %3755 = vmatprep.subr.bf16.mxu0 0
        %3756 = vmatpush1.bf16.msra.mxu0 %v3748
        %3757 = vmatprep.subr.bf16.mxu0 0
        %3758 = vmatpush1.bf16.msra.mxu0 %v3749
        %3759 = vmatprep.subr.bf16.mxu0 0
        %3760 = vmatpush1.bf16.msra.mxu0 0
        %3761 = vmatprep.subr.bf16.mxu0 0
        %3762 = vmatpush1.bf16.msra.mxu0 0
        %3763 = vmatprep.subr.bf16.mxu0 0
        %3764 = vmatpush1.bf16.msra.mxu0 0
        %3765 = vmatprep.subr.bf16.mxu0 0
        %3766 = vmatpush1.bf16.msra.mxu0 0
        %3767 = vmatprep.subr.bf16.mxu0 0
        %3768 = vmatpush1.bf16.msra.mxu0 0
        %3769 = vmatprep.subr.bf16.mxu0 0
        %3770 = vmatpush1.bf16.msra.mxu0 0
        %3771 = vmatprep.subr.bf16.mxu0 0
        %3772 = vmatpush1.bf16.msra.mxu0 0
        %3773 = vmatprep.subr.bf16.mxu0 0
        %3774 = vmatpush1.bf16.msra.mxu0 0
        %3775 = vmatprep.subr.bf16.mxu0 0
        %3776 = vmatpush1.bf16.msra.mxu0 0
        %3777 = vmatprep.subr.bf16.mxu0 0
        %3778 = vmatpush1.bf16.msra.mxu0 0
        %3779 = vmatprep.subr.bf16.mxu0 0
        %3780 = vmatpush1.bf16.msra.mxu0 0
        %3781 = vmatprep.subr.bf16.mxu0 0
        %3782 = vmatpush1.bf16.msra.mxu0 0
        %3783 = vmatprep.subr.bf16.mxu0 0
        %3784 = vmatpush1.bf16.msra.mxu0 0
        %3785 = vmatprep.subr.bf16.mxu0 0
        %3786 = vmatpush1.bf16.msra.mxu0 0
        %3787 = vmatprep.mubr.bf16.mxu0 0
        %3788 = vmatmul.mubr.bf16.gmra.mrb[0].mxu0 %v3753
        %v3789 = vpop.f32.mrb[0].mxu0
        %v3790 = vadd.f32 %v3739, %v3789
        %v3791 = vpop.f32.mrb[0].mxu0
        %v3792 = vpop.f32.mrb[0].mxu0
        %v3793 = vpop.f32.mrb[0].mxu0
        %3794 = vdwg.mxu0
        %v3795 = vxor.u32 %v3790, 2147483648
        %v3796 = vmul.f32 %v3795, 1.442695
        %v3797 = vpow.pop %v3796
        %v3798 = vadd.f32 %v3797, 1.0
        %v3799 = vrcp.pop %v3798
        %v3800 = vmul.f32 1.0, %v3799
        %v3801 = vmul.f32 %v3790, %v3800
        %s3802 = scalar_lea.vmem %s6, 64
        %v3803 = vld [vmem:[%s3802] sm:$0xf]
        %v3804 = vld [vmem:[%s3802 + $0x4] sm:$0xf]
        %v3805 = vld [vmem:[%s3802 + $0x8] sm:$0xf]
        %v3806 = vld [vmem:[%s3802 + $0xc] sm:$0xf]
        %v3807 = vld [vmem:[%s3802 + $0x10] sm:$0xf]
        %v3808 = vld [vmem:[%s3802 + $0x14] sm:$0xf]
        %v3809 = vld [vmem:[%s3802 + $0x18] sm:$0xf]
        %v3810 = vld [vmem:[%s3802 + $0x1c] sm:$0xf]
        %v3811 = vpack.c.bf16 %v3801, %v3801
        %v3812 = vlaneseq
        %v3813 = vshrl.u32 %v3812, 7
        %v3814 = vsub.s32 3, %v3813
        %v3815 = vrot.slane %v3704, %v3814
        %v3824 = vunpack.c.l.b16 %v3803
        %v3825 = vunpack.c.l.b16 %v3804
        %v3826 = vunpack.c.l.b16 %v3805
        %v3827 = vunpack.c.l.b16 %v3806
        %v3828 = vunpack.c.l.b16 %v3807
        %v3829 = vunpack.c.l.b16 %v3808
        %v3830 = vunpack.c.l.b16 %v3809
        %v3831 = vunpack.c.l.b16 %v3810
        %v3832 = vpack.c.b16 %v3825, %v3824
        %v3833 = vpack.c.b16 %v3827, %v3826
        %v3834 = vpack.c.b16 %v3829, %v3828
        %v3835 = vpack.c.b16 %v3831, %v3830
        %v3841 = vsel %vm820, %v3811, 0
        %3843 = vmatprep.subr.bf16.mxu0 0
        %3844 = vmatpush1.bf16.msra.mxu0 %v3832
        %3845 = vmatprep.subr.bf16.mxu0 0
        %3846 = vmatpush1.bf16.msra.mxu0 %v3833
        %3847 = vmatprep.subr.bf16.mxu0 0
        %3848 = vmatpush1.bf16.msra.mxu0 %v3834
        %3849 = vmatprep.subr.bf16.mxu0 0
        %3850 = vmatpush1.bf16.msra.mxu0 %v3835
        %3851 = vmatprep.subr.bf16.mxu0 0
        %3852 = vmatpush1.bf16.msra.mxu0 0
        %3853 = vmatprep.subr.bf16.mxu0 0
        %3854 = vmatpush1.bf16.msra.mxu0 0
        %3855 = vmatprep.subr.bf16.mxu0 0
        %3856 = vmatpush1.bf16.msra.mxu0 0
        %3857 = vmatprep.subr.bf16.mxu0 0
        %3858 = vmatpush1.bf16.msra.mxu0 0
        %3859 = vmatprep.subr.bf16.mxu0 0
        %3860 = vmatpush1.bf16.msra.mxu0 0
        %3861 = vmatprep.subr.bf16.mxu0 0
        %3862 = vmatpush1.bf16.msra.mxu0 0
        %3863 = vmatprep.subr.bf16.mxu0 0
        %3864 = vmatpush1.bf16.msra.mxu0 0
        %3865 = vmatprep.subr.bf16.mxu0 0
        %3866 = vmatpush1.bf16.msra.mxu0 0
        %3867 = vmatprep.subr.bf16.mxu0 0
        %3868 = vmatpush1.bf16.msra.mxu0 0
        %3869 = vmatprep.subr.bf16.mxu0 0
        %3870 = vmatpush1.bf16.msra.mxu0 0
        %3871 = vmatprep.subr.bf16.mxu0 0
        %3872 = vmatpush1.bf16.msra.mxu0 0
        %3873 = vmatprep.subr.bf16.mxu0 0
        %3874 = vmatpush1.bf16.msra.mxu0 0
        %3875 = vmatprep.mubr.bf16.mxu0 0
        %3876 = vmatmul.mubr.bf16.gmra.mrb[0].mxu0 %v3841
        %v3877 = vpop.f32.mrb[0].mxu0
        %v3878 = vadd.f32 %v3815, %v3877
        %v3879 = vpop.f32.mrb[0].mxu0
        %v3880 = vpop.f32.mrb[0].mxu0
        %v3881 = vpop.f32.mrb[0].mxu0
        %3882 = vdwg.mxu0
        %v3883 = vmul.f32 %v3878, 0.5
        %v3884 = vadd.f32 %v3702, %v3883
        %v3885 = vsel %vm648, %v3884, 0.0
        %3886 = vadd.xlane.f32.xlu0 %v3885
        %v3887 = vpop.xlane.xlu0 %3886
        %v3888 = vmul.f32 %v3887, %v652
        %v3889 = vsub.f32 %v3884, %v3888
        %v3890 = vmul.f32 %v3889, %v3889
        %v3891 = vsel %vm648, %v3890, 0.0
        %3892 = vadd.xlane.f32.xlu0 %v3891
        %v3893 = vpop.xlane.xlu0 %3892
        %v3894 = vmul.f32 %v3893, %v652
        %v3895 = vadd.f32 %v3894, 1e-05
        %v3896 = vrsqrt.pop %v3895
        %v3897 = vmul.f32 %v3889, %v3896
        %v3898 = vlaneseq
        %v3899 = vshrl.u32 %v3898, 7
        %v3900 = vsub.s32 4, %v3899
        %v3901 = vrot.slane %v3704, %v3900
        %v3902 = vmul.f32 %v3897, %v3901
        %v3903 = vlaneseq
        %v3904 = vshrl.u32 %v3903, 7
        %v3905 = vsub.s32 5, %v3904
        %v3906 = vrot.slane %v3704, %v3905
        %v3907 = vadd.f32 %v3902, %v3906
        %s3908 = scalar_lea.vmem %s7, 32
        %v3909 = vld [vmem:[%s3908] sm:$0xf]
        %v3910 = vld [vmem:[%s3908 + $0x4] sm:$0xf]
        %v3911 = vld [vmem:[%s3908 + $0x8] sm:$0xf]
        %v3912 = vld [vmem:[%s3908 + $0xc] sm:$0xf]
        %v3913 = vpack.c.bf16 %v3907, %v3907
        %v3914 = vlaneseq
        %v3915 = vshrl.u32 %v3914, 7
        %v3916 = vsub.s32 6, %v3915
        %v3917 = vrot.slane %v3704, %v3916
        %v3922 = vunpack.c.l.b16 %v3909
        %v3923 = vunpack.c.l.b16 %v3910
        %v3924 = vunpack.c.l.b16 %v3911
        %v3925 = vunpack.c.l.b16 %v3912
        %v3926 = vpack.c.b16 %v3923, %v3922
        %v3927 = vpack.c.b16 %v3925, %v3924
        %v3931 = vsel %vm648, %v3913, 0
        %3933 = vmatprep.subr.bf16.mxu0 0
        %3934 = vmatpush1.bf16.msra.mxu0 %v3926
        %3935 = vmatprep.subr.bf16.mxu0 0
        %3936 = vmatpush1.bf16.msra.mxu0 %v3927
        %3937 = vmatprep.subr.bf16.mxu0 0
        %3938 = vmatpush1.bf16.msra.mxu0 0
        %3939 = vmatprep.subr.bf16.mxu0 0
        %3940 = vmatpush1.bf16.msra.mxu0 0
        %3941 = vmatprep.subr.bf16.mxu0 0
        %3942 = vmatpush1.bf16.msra.mxu0 0
        %3943 = vmatprep.subr.bf16.mxu0 0
        %3944 = vmatpush1.bf16.msra.mxu0 0
        %3945 = vmatprep.subr.bf16.mxu0 0
        %3946 = vmatpush1.bf16.msra.mxu0 0
        %3947 = vmatprep.subr.bf16.mxu0 0
        %3948 = vmatpush1.bf16.msra.mxu0 0
        %3949 = vmatprep.subr.bf16.mxu0 0
        %3950 = vmatpush1.bf16.msra.mxu0 0
        %3951 = vmatprep.subr.bf16.mxu0 0
        %3952 = vmatpush1.bf16.msra.mxu0 0
        %3953 = vmatprep.subr.bf16.mxu0 0
        %3954 = vmatpush1.bf16.msra.mxu0 0
        %3955 = vmatprep.subr.bf16.mxu0 0
        %3956 = vmatpush1.bf16.msra.mxu0 0
        %3957 = vmatprep.subr.bf16.mxu0 0
        %3958 = vmatpush1.bf16.msra.mxu0 0
        %3959 = vmatprep.subr.bf16.mxu0 0
        %3960 = vmatpush1.bf16.msra.mxu0 0
        %3961 = vmatprep.subr.bf16.mxu0 0
        %3962 = vmatpush1.bf16.msra.mxu0 0
        %3963 = vmatprep.subr.bf16.mxu0 0
        %3964 = vmatpush1.bf16.msra.mxu0 0
        %3965 = vmatprep.mubr.bf16.mxu0 0
        %3966 = vmatmul.mubr.bf16.gmra.mrb[0].mxu0 %v3931
        %v3967 = vpop.f32.mrb[0].mxu0
        %v3968 = vadd.f32 %v3917, %v3967
        %v3969 = vpop.f32.mrb[0].mxu0
        %v3970 = vpop.f32.mrb[0].mxu0
        %v3971 = vpop.f32.mrb[0].mxu0
        %3972 = vdwg.mxu0
        %v3973 = vpack.c.bf16 %v3968, %v3968
        %3975 = vrot.lane.b32.xlu0 %v3973, 96
        %v3976 = vpop.permute.xlu0 %3975
        %v3978 = vsel %vm957, %v3973, 0
        %v3981 = vsel %vm957, %v3976, 0
        %3983 = vmatprep.subr.bf16.mxu0 0
        %3984 = vmatpush1.bf16.xpose.msra.mxu0 %v3981
        %3985 = vmatprep.subr.bf16.mxu0 0
        %3986 = vmatpush1.bf16.xpose.msra.mxu0 0
        %3987 = vmatprep.subr.bf16.mxu0 0
        %3988 = vmatpush1.bf16.xpose.msra.mxu0 0
        %3989 = vmatprep.subr.bf16.mxu0 0
        %3990 = vmatpush1.bf16.xpose.msra.mxu0 0
        %3991 = vmatprep.subr.bf16.mxu0 0
        %3992 = vmatpush1.bf16.xpose.msra.mxu0 0
        %3993 = vmatprep.subr.bf16.mxu0 0
        %3994 = vmatpush1.bf16.xpose.msra.mxu0 0
        %3995 = vmatprep.subr.bf16.mxu0 0
        %3996 = vmatpush1.bf16.xpose.msra.mxu0 0
        %3997 = vmatprep.subr.bf16.mxu0 0
        %3998 = vmatpush1.bf16.xpose.msra.mxu0 0
        %3999 = vmatprep.subr.bf16.mxu0 0
        %4000 = vmatpush1.bf16.xpose.msra.mxu0 0
        %4001 = vmatprep.subr.bf16.mxu0 0
        %4002 = vmatpush1.bf16.xpose.msra.mxu0 0
        %4003 = vmatprep.subr.bf16.mxu0 0
        %4004 = vmatpush1.bf16.xpose.msra.mxu0 0
        %4005 = vmatprep.subr.bf16.mxu0 0
        %4006 = vmatpush1.bf16.xpose.msra.mxu0 0
        %4007 = vmatprep.subr.bf16.mxu0 0
        %4008 = vmatpush1.bf16.xpose.msra.mxu0 0
        %4009 = vmatprep.subr.bf16.mxu0 0
        %4010 = vmatpush1.bf16.xpose.msra.mxu0 0
        %4011 = vmatprep.subr.bf16.mxu0 0
        %4012 = vmatpush1.bf16.xpose.msra.mxu0 0
        %4013 = vmatprep.subr.bf16.mxu0 0
        %4014 = vmatpush1.bf16.xpose.msra.mxu0 0
        %4015 = vmatprep.mubr.bf16.mxu0 0
        %4016 = vmatmul.mubr.bf16.gmra.mrb[0].mxu0 %v3978
        %v4017 = vpop.f32.mrb[0].mxu0
        %v4018 = vadd.f32 0.0, %v4017
        %v4019 = vpop.f32.mrb[0].mxu0
        %v4020 = vpop.f32.mrb[0].mxu0
        %v4021 = vpop.f32.mrb[0].mxu0
        %4022 = vdwg.mxu0
        %v4023 = vmul.f32 %v4018, 0.35355338
        %v4024 = vadd.f32 %v4023, %v673
        %v4025 = vsel %vm957, %v4024, -inf
        %4026 = vmax.xlane.f32.xlu0 %v4025
        %v4027 = vpop.xlane.xlu0 %4026
        %v4028 = vsub.f32 %v4024, %v4027
        %v4029 = vmul.f32 %v4028, 1.442695
        %v4030 = vpow.pop %v4029
        %v4031 = vsel %vm957, %v4030, 0.0
        %4032 = vadd.xlane.f32.xlu0 %v4031
        %v4033 = vpop.xlane.xlu0 %4032
        %v4034 = vrcp.pop %v4033
        %v4035 = vmul.f32 %v4030, %v4034
        %v4036 = vpack.c.bf16 %v4035, %v4035
        %4037 = vrot.lane.b32.xlu0 %v3973, 64
        %v4038 = vpop.permute.xlu0 %4037
        %v4040 = vsel %vm957, %v4036, 0
        %v4043 = vsel %vm1023, %v4038, 0
        %4045 = vmatprep.subr.bf16.mxu0 0
        %4046 = vmatpush1.bf16.msra.mxu0 %v4043
        %4047 = vmatprep.subr.bf16.mxu0 0
        %4048 = vmatpush1.bf16.msra.mxu0 0
        %4049 = vmatprep.subr.bf16.mxu0 0
        %4050 = vmatpush1.bf16.msra.mxu0 0
        %4051 = vmatprep.subr.bf16.mxu0 0
        %4052 = vmatpush1.bf16.msra.mxu0 0
        %4053 = vmatprep.subr.bf16.mxu0 0
        %4054 = vmatpush1.bf16.msra.mxu0 0
        %4055 = vmatprep.subr.bf16.mxu0 0
        %4056 = vmatpush1.bf16.msra.mxu0 0
        %4057 = vmatprep.subr.bf16.mxu0 0
        %4058 = vmatpush1.bf16.msra.mxu0 0
        %4059 = vmatprep.subr.bf16.mxu0 0
        %4060 = vmatpush1.bf16.msra.mxu0 0
        %4061 = vmatprep.subr.bf16.mxu0 0
        %4062 = vmatpush1.bf16.msra.mxu0 0
        %4063 = vmatprep.subr.bf16.mxu0 0
        %4064 = vmatpush1.bf16.msra.mxu0 0
        %4065 = vmatprep.subr.bf16.mxu0 0
        %4066 = vmatpush1.bf16.msra.mxu0 0
        %4067 = vmatprep.subr.bf16.mxu0 0
        %4068 = vmatpush1.bf16.msra.mxu0 0
        %4069 = vmatprep.subr.bf16.mxu0 0
        %4070 = vmatpush1.bf16.msra.mxu0 0
        %4071 = vmatprep.subr.bf16.mxu0 0
        %4072 = vmatpush1.bf16.msra.mxu0 0
        %4073 = vmatprep.subr.bf16.mxu0 0
        %4074 = vmatpush1.bf16.msra.mxu0 0
        %4075 = vmatprep.subr.bf16.mxu0 0
        %4076 = vmatpush1.bf16.msra.mxu0 0
        %4077 = vmatprep.mubr.bf16.mxu0 0
        %4078 = vmatmul.mubr.bf16.gmra.mrb[0].mxu0 %v4040
        %v4079 = vpop.f32.mrb[0].mxu0
        %v4080 = vadd.f32 0.0, %v4079
        %v4081 = vpop.f32.mrb[0].mxu0
        %v4082 = vpop.f32.mrb[0].mxu0
        %v4083 = vpop.f32.mrb[0].mxu0
        %4084 = vdwg.mxu0
        %v4085 = vpack.c.bf16 %v4080, %v4080
        %s4086 = scalar_lea.vmem %s8, 32
        %v4087 = vld [vmem:[%s4086] sm:$0xf]
        %4088 = vrot.lane.b32.xlu0 %v3973, 120
        %v4089 = vpop.permute.xlu0 %4088
        %4090 = vrot.lane.b32.xlu0 %v3973, 88
        %v4091 = vpop.permute.xlu0 %4090
        %v4093 = vsel %vm957, %v4089, 0
        %v4096 = vsel %vm957, %v4091, 0
        %4098 = vmatprep.subr.bf16.mxu0 0
        %4099 = vmatpush1.bf16.xpose.msra.mxu0 %v4096
        %4100 = vmatprep.subr.bf16.mxu0 0
        %4101 = vmatpush1.bf16.xpose.msra.mxu0 0
        %4102 = vmatprep.subr.bf16.mxu0 0
        %4103 = vmatpush1.bf16.xpose.msra.mxu0 0
        %4104 = vmatprep.subr.bf16.mxu0 0
        %4105 = vmatpush1.bf16.xpose.msra.mxu0 0
        %4106 = vmatprep.subr.bf16.mxu0 0
        %4107 = vmatpush1.bf16.xpose.msra.mxu0 0
        %4108 = vmatprep.subr.bf16.mxu0 0
        %4109 = vmatpush1.bf16.xpose.msra.mxu0 0
        %4110 = vmatprep.subr.bf16.mxu0 0
        %4111 = vmatpush1.bf16.xpose.msra.mxu0 0
        %4112 = vmatprep.subr.bf16.mxu0 0
        %4113 = vmatpush1.bf16.xpose.msra.mxu0 0
        %4114 = vmatprep.subr.bf16.mxu0 0
        %4115 = vmatpush1.bf16.xpose.msra.mxu0 0
        %4116 = vmatprep.subr.bf16.mxu0 0
        %4117 = vmatpush1.bf16.xpose.msra.mxu0 0
        %4118 = vmatprep.subr.bf16.mxu0 0
        %4119 = vmatpush1.bf16.xpose.msra.mxu0 0
        %4120 = vmatprep.subr.bf16.mxu0 0
        %4121 = vmatpush1.bf16.xpose.msra.mxu0 0
        %4122 = vmatprep.subr.bf16.mxu0 0
        %4123 = vmatpush1.bf16.xpose.msra.mxu0 0
        %4124 = vmatprep.subr.bf16.mxu0 0
        %4125 = vmatpush1.bf16.xpose.msra.mxu0 0
        %4126 = vmatprep.subr.bf16.mxu0 0
        %4127 = vmatpush1.bf16.xpose.msra.mxu0 0
        %4128 = vmatprep.subr.bf16.mxu0 0
        %4129 = vmatpush1.bf16.xpose.msra.mxu0 0
        %4130 = vmatprep.mubr.bf16.mxu0 0
        %4131 = vmatmul.mubr.bf16.gmra.mrb[0].mxu0 %v4093
        %v4132 = vpop.f32.mrb[0].mxu0
        %v4133 = vadd.f32 0.0, %v4132
        %v4134 = vpop.f32.mrb[0].mxu0
        %v4135 = vpop.f32.mrb[0].mxu0
        %v4136 = vpop.f32.mrb[0].mxu0
        %4137 = vdwg.mxu0
        %v4138 = vmul.f32 %v4133, 0.35355338
        %v4139 = vadd.f32 %v4138, %v673
        %v4140 = vsel %vm957, %v4139, -inf
        %4141 = vmax.xlane.f32.xlu0 %v4140
        %v4142 = vpop.xlane.xlu0 %4141
        %v4143 = vsub.f32 %v4139, %v4142
        %v4144 = vmul.f32 %v4143, 1.442695
        %v4145 = vpow.pop %v4144
        %v4146 = vsel %vm957, %v4145, 0.0
        %4147 = vadd.xlane.f32.xlu0 %v4146
        %v4148 = vpop.xlane.xlu0 %4147
        %v4149 = vrcp.pop %v4148
        %v4150 = vmul.f32 %v4145, %v4149
        %v4151 = vpack.c.bf16 %v4150, %v4150
        %4152 = vrot.lane.b32.xlu0 %v3973, 56
        %v4153 = vpop.permute.xlu0 %4152
        %v4155 = vsel %vm957, %v4151, 0
        %v4158 = vsel %vm1023, %v4153, 0
        %4160 = vmatprep.subr.bf16.mxu0 0
        %4161 = vmatpush1.bf16.msra.mxu0 %v4158
        %4162 = vmatprep.subr.bf16.mxu0 0
        %4163 = vmatpush1.bf16.msra.mxu0 0
        %4164 = vmatprep.subr.bf16.mxu0 0
        %4165 = vmatpush1.bf16.msra.mxu0 0
        %4166 = vmatprep.subr.bf16.mxu0 0
        %4167 = vmatpush1.bf16.msra.mxu0 0
        %4168 = vmatprep.subr.bf16.mxu0 0
        %4169 = vmatpush1.bf16.msra.mxu0 0
        %4170 = vmatprep.subr.bf16.mxu0 0
        %4171 = vmatpush1.bf16.msra.mxu0 0
        %4172 = vmatprep.subr.bf16.mxu0 0
        %4173 = vmatpush1.bf16.msra.mxu0 0
        %4174 = vmatprep.subr.bf16.mxu0 0
        %4175 = vmatpush1.bf16.msra.mxu0 0
        %4176 = vmatprep.subr.bf16.mxu0 0
        %4177 = vmatpush1.bf16.msra.mxu0 0
        %4178 = vmatprep.subr.bf16.mxu0 0
        %4179 = vmatpush1.bf16.msra.mxu0 0
        %4180 = vmatprep.subr.bf16.mxu0 0
        %4181 = vmatpush1.bf16.msra.mxu0 0
        %4182 = vmatprep.subr.bf16.mxu0 0
        %4183 = vmatpush1.bf16.msra.mxu0 0
        %4184 = vmatprep.subr.bf16.mxu0 0
        %4185 = vmatpush1.bf16.msra.mxu0 0
        %4186 = vmatprep.subr.bf16.mxu0 0
        %4187 = vmatpush1.bf16.msra.mxu0 0
        %4188 = vmatprep.subr.bf16.mxu0 0
        %4189 = vmatpush1.bf16.msra.mxu0 0
        %4190 = vmatprep.subr.bf16.mxu0 0
        %4191 = vmatpush1.bf16.msra.mxu0 0
        %4192 = vmatprep.mubr.bf16.mxu0 0
        %4193 = vmatmul.mubr.bf16.gmra.mrb[0].mxu0 %v4155
        %v4194 = vpop.f32.mrb[0].mxu0
        %v4195 = vadd.f32 0.0, %v4194
        %v4196 = vpop.f32.mrb[0].mxu0
        %v4197 = vpop.f32.mrb[0].mxu0
        %v4198 = vpop.f32.mrb[0].mxu0
        %4199 = vdwg.mxu0
        %v4200 = vpack.c.bf16 %v4195, %v4195
        %s4201 = scalar_lea.vmem %s8, 36
        %v4202 = vld [vmem:[%s4201] sm:$0xf]
        %v4204 = vsel %vm957, %v4200, 0
        %v4207 = vsel %vm1023, %v4202, 0
        %4209 = vmatprep.subr.bf16.mxu0 0
        %4210 = vmatpush1.bf16.msra.mxu0 %v4207
        %4211 = vmatprep.subr.bf16.mxu0 0
        %4212 = vmatpush1.bf16.msra.mxu0 0
        %4213 = vmatprep.subr.bf16.mxu0 0
        %4214 = vmatpush1.bf16.msra.mxu0 0
        %4215 = vmatprep.subr.bf16.mxu0 0
        %4216 = vmatpush1.bf16.msra.mxu0 0
        %4217 = vmatprep.subr.bf16.mxu0 0
        %4218 = vmatpush1.bf16.msra.mxu0 0
        %4219 = vmatprep.subr.bf16.mxu0 0
        %4220 = vmatpush1.bf16.msra.mxu0 0
        %4221 = vmatprep.subr.bf16.mxu0 0
        %4222 = vmatpush1.bf16.msra.mxu0 0
        %4223 = vmatprep.subr.bf16.mxu0 0
        %4224 = vmatpush1.bf16.msra.mxu0 0
        %4225 = vmatprep.subr.bf16.mxu0 0
        %4226 = vmatpush1.bf16.msra.mxu0 0
        %4227 = vmatprep.subr.bf16.mxu0 0
        %4228 = vmatpush1.bf16.msra.mxu0 0
        %4229 = vmatprep.subr.bf16.mxu0 0
        %4230 = vmatpush1.bf16.msra.mxu0 0
        %4231 = vmatprep.subr.bf16.mxu0 0
        %4232 = vmatpush1.bf16.msra.mxu0 0
        %4233 = vmatprep.subr.bf16.mxu0 0
        %4234 = vmatpush1.bf16.msra.mxu0 0
        %4235 = vmatprep.subr.bf16.mxu0 0
        %4236 = vmatpush1.bf16.msra.mxu0 0
        %4237 = vmatprep.subr.bf16.mxu0 0
        %4238 = vmatpush1.bf16.msra.mxu0 0
        %4239 = vmatprep.subr.bf16.mxu0 0
        %4240 = vmatpush1.bf16.msra.mxu0 0
        %4241 = vmatprep.mubr.bf16.mxu0 0
        %4242 = vmatmul.mubr.bf16.gmra.mrb[0].mxu0 %v4204
        %v4243 = vpop.f32.mrb[0].mxu0
        %v4244 = vadd.f32 0.0, %v4243
        %v4245 = vpop.f32.mrb[0].mxu0
        %v4246 = vpop.f32.mrb[0].mxu0
        %v4247 = vpop.f32.mrb[0].mxu0
        %4248 = vdwg.mxu0
        %v4250 = vsel %vm957, %v4085, 0
        %v4253 = vsel %vm1023, %v4087, 0
        %4255 = vmatprep.subr.bf16.mxu0 0
        %4256 = vmatpush1.bf16.msra.mxu0 %v4253
        %4257 = vmatprep.subr.bf16.mxu0 0
        %4258 = vmatpush1.bf16.msra.mxu0 0
        %4259 = vmatprep.subr.bf16.mxu0 0
        %4260 = vmatpush1.bf16.msra.mxu0 0
        %4261 = vmatprep.subr.bf16.mxu0 0
        %4262 = vmatpush1.bf16.msra.mxu0 0
        %4263 = vmatprep.subr.bf16.mxu0 0
        %4264 = vmatpush1.bf16.msra.mxu0 0
        %4265 = vmatprep.subr.bf16.mxu0 0
        %4266 = vmatpush1.bf16.msra.mxu0 0
        %4267 = vmatprep.subr.bf16.mxu0 0
        %4268 = vmatpush1.bf16.msra.mxu0 0
        %4269 = vmatprep.subr.bf16.mxu0 0
        %4270 = vmatpush1.bf16.msra.mxu0 0
        %4271 = vmatprep.subr.bf16.mxu0 0
        %4272 = vmatpush1.bf16.msra.mxu0 0
        %4273 = vmatprep.subr.bf16.mxu0 0
        %4274 = vmatpush1.bf16.msra.mxu0 0
        %4275 = vmatprep.subr.bf16.mxu0 0
        %4276 = vmatpush1.bf16.msra.mxu0 0
        %4277 = vmatprep.subr.bf16.mxu0 0
        %4278 = vmatpush1.bf16.msra.mxu0 0
        %4279 = vmatprep.subr.bf16.mxu0 0
        %4280 = vmatpush1.bf16.msra.mxu0 0
        %4281 = vmatprep.subr.bf16.mxu0 0
        %4282 = vmatpush1.bf16.msra.mxu0 0
        %4283 = vmatprep.subr.bf16.mxu0 0
        %4284 = vmatpush1.bf16.msra.mxu0 0
        %4285 = vmatprep.subr.bf16.mxu0 0
        %4286 = vmatpush1.bf16.msra.mxu0 0
        %4287 = vmatprep.mubr.bf16.mxu0 0
        %4288 = vmatmul.mubr.bf16.gmra.mrb[0].mxu0 %v4250
        %v4289 = vpop.f32.mrb[0].mxu0
        %v4290 = vadd.f32 %v4244, %v4289
        %v4291 = vpop.f32.mrb[0].mxu0
        %v4292 = vpop.f32.mrb[0].mxu0
        %v4293 = vpop.f32.mrb[0].mxu0
        %4294 = vdwg.mxu0
        %4295 = vrot.lane.b32.xlu0 %v3973, 112
        %v4296 = vpop.permute.xlu0 %4295
        %4297 = vrot.lane.b32.xlu0 %v3973, 80
        %v4298 = vpop.permute.xlu0 %4297
        %v4300 = vsel %vm957, %v4296, 0
        %v4303 = vsel %vm957, %v4298, 0
        %4305 = vmatprep.subr.bf16.mxu0 0
        %4306 = vmatpush1.bf16.xpose.msra.mxu0 %v4303
        %4307 = vmatprep.subr.bf16.mxu0 0
        %4308 = vmatpush1.bf16.xpose.msra.mxu0 0
        %4309 = vmatprep.subr.bf16.mxu0 0
        %4310 = vmatpush1.bf16.xpose.msra.mxu0 0
        %4311 = vmatprep.subr.bf16.mxu0 0
        %4312 = vmatpush1.bf16.xpose.msra.mxu0 0
        %4313 = vmatprep.subr.bf16.mxu0 0
        %4314 = vmatpush1.bf16.xpose.msra.mxu0 0
        %4315 = vmatprep.subr.bf16.mxu0 0
        %4316 = vmatpush1.bf16.xpose.msra.mxu0 0
        %4317 = vmatprep.subr.bf16.mxu0 0
        %4318 = vmatpush1.bf16.xpose.msra.mxu0 0
        %4319 = vmatprep.subr.bf16.mxu0 0
        %4320 = vmatpush1.bf16.xpose.msra.mxu0 0
        %4321 = vmatprep.subr.bf16.mxu0 0
        %4322 = vmatpush1.bf16.xpose.msra.mxu0 0
        %4323 = vmatprep.subr.bf16.mxu0 0
        %4324 = vmatpush1.bf16.xpose.msra.mxu0 0
        %4325 = vmatprep.subr.bf16.mxu0 0
        %4326 = vmatpush1.bf16.xpose.msra.mxu0 0
        %4327 = vmatprep.subr.bf16.mxu0 0
        %4328 = vmatpush1.bf16.xpose.msra.mxu0 0
        %4329 = vmatprep.subr.bf16.mxu0 0
        %4330 = vmatpush1.bf16.xpose.msra.mxu0 0
        %4331 = vmatprep.subr.bf16.mxu0 0
        %4332 = vmatpush1.bf16.xpose.msra.mxu0 0
        %4333 = vmatprep.subr.bf16.mxu0 0
        %4334 = vmatpush1.bf16.xpose.msra.mxu0 0
        %4335 = vmatprep.subr.bf16.mxu0 0
        %4336 = vmatpush1.bf16.xpose.msra.mxu0 0
        %4337 = vmatprep.mubr.bf16.mxu0 0
        %4338 = vmatmul.mubr.bf16.gmra.mrb[0].mxu0 %v4300
        %v4339 = vpop.f32.mrb[0].mxu0
        %v4340 = vadd.f32 0.0, %v4339
        %v4341 = vpop.f32.mrb[0].mxu0
        %v4342 = vpop.f32.mrb[0].mxu0
        %v4343 = vpop.f32.mrb[0].mxu0
        %4344 = vdwg.mxu0
        %v4345 = vmul.f32 %v4340, 0.35355338
        %v4346 = vadd.f32 %v4345, %v673
        %v4347 = vsel %vm957, %v4346, -inf
        %4348 = vmax.xlane.f32.xlu0 %v4347
        %v4349 = vpop.xlane.xlu0 %4348
        %v4350 = vsub.f32 %v4346, %v4349
        %v4351 = vmul.f32 %v4350, 1.442695
        %v4352 = vpow.pop %v4351
        %v4353 = vsel %vm957, %v4352, 0.0
        %4354 = vadd.xlane.f32.xlu0 %v4353
        %v4355 = vpop.xlane.xlu0 %4354
        %v4356 = vrcp.pop %v4355
        %v4357 = vmul.f32 %v4352, %v4356
        %v4358 = vpack.c.bf16 %v4357, %v4357
        %4359 = vrot.lane.b32.xlu0 %v3973, 48
        %v4360 = vpop.permute.xlu0 %4359
        %v4362 = vsel %vm957, %v4358, 0
        %v4365 = vsel %vm1023, %v4360, 0
        %4367 = vmatprep.subr.bf16.mxu0 0
        %4368 = vmatpush1.bf16.msra.mxu0 %v4365
        %4369 = vmatprep.subr.bf16.mxu0 0
        %4370 = vmatpush1.bf16.msra.mxu0 0
        %4371 = vmatprep.subr.bf16.mxu0 0
        %4372 = vmatpush1.bf16.msra.mxu0 0
        %4373 = vmatprep.subr.bf16.mxu0 0
        %4374 = vmatpush1.bf16.msra.mxu0 0
        %4375 = vmatprep.subr.bf16.mxu0 0
        %4376 = vmatpush1.bf16.msra.mxu0 0
        %4377 = vmatprep.subr.bf16.mxu0 0
        %4378 = vmatpush1.bf16.msra.mxu0 0
        %4379 = vmatprep.subr.bf16.mxu0 0
        %4380 = vmatpush1.bf16.msra.mxu0 0
        %4381 = vmatprep.subr.bf16.mxu0 0
        %4382 = vmatpush1.bf16.msra.mxu0 0
        %4383 = vmatprep.subr.bf16.mxu0 0
        %4384 = vmatpush1.bf16.msra.mxu0 0
        %4385 = vmatprep.subr.bf16.mxu0 0
        %4386 = vmatpush1.bf16.msra.mxu0 0
        %4387 = vmatprep.subr.bf16.mxu0 0
        %4388 = vmatpush1.bf16.msra.mxu0 0
        %4389 = vmatprep.subr.bf16.mxu0 0
        %4390 = vmatpush1.bf16.msra.mxu0 0
        %4391 = vmatprep.subr.bf16.mxu0 0
        %4392 = vmatpush1.bf16.msra.mxu0 0
        %4393 = vmatprep.subr.bf16.mxu0 0
        %4394 = vmatpush1.bf16.msra.mxu0 0
        %4395 = vmatprep.subr.bf16.mxu0 0
        %4396 = vmatpush1.bf16.msra.mxu0 0
        %4397 = vmatprep.subr.bf16.mxu0 0
        %4398 = vmatpush1.bf16.msra.mxu0 0
        %4399 = vmatprep.mubr.bf16.mxu0 0
        %4400 = vmatmul.mubr.bf16.gmra.mrb[0].mxu0 %v4362
        %v4401 = vpop.f32.mrb[0].mxu0
        %v4402 = vadd.f32 0.0, %v4401
        %v4403 = vpop.f32.mrb[0].mxu0
        %v4404 = vpop.f32.mrb[0].mxu0
        %v4405 = vpop.f32.mrb[0].mxu0
        %4406 = vdwg.mxu0
        %v4407 = vpack.c.bf16 %v4402, %v4402
        %s4408 = scalar_lea.vmem %s8, 40
        %v4409 = vld [vmem:[%s4408] sm:$0xf]
        %v4411 = vsel %vm957, %v4407, 0
        %v4414 = vsel %vm1023, %v4409, 0
        %4416 = vmatprep.subr.bf16.mxu0 0
        %4417 = vmatpush1.bf16.msra.mxu0 %v4414
        %4418 = vmatprep.subr.bf16.mxu0 0
        %4419 = vmatpush1.bf16.msra.mxu0 0
        %4420 = vmatprep.subr.bf16.mxu0 0
        %4421 = vmatpush1.bf16.msra.mxu0 0
        %4422 = vmatprep.subr.bf16.mxu0 0
        %4423 = vmatpush1.bf16.msra.mxu0 0
        %4424 = vmatprep.subr.bf16.mxu0 0
        %4425 = vmatpush1.bf16.msra.mxu0 0
        %4426 = vmatprep.subr.bf16.mxu0 0
        %4427 = vmatpush1.bf16.msra.mxu0 0
        %4428 = vmatprep.subr.bf16.mxu0 0
        %4429 = vmatpush1.bf16.msra.mxu0 0
        %4430 = vmatprep.subr.bf16.mxu0 0
        %4431 = vmatpush1.bf16.msra.mxu0 0
        %4432 = vmatprep.subr.bf16.mxu0 0
        %4433 = vmatpush1.bf16.msra.mxu0 0
        %4434 = vmatprep.subr.bf16.mxu0 0
        %4435 = vmatpush1.bf16.msra.mxu0 0
        %4436 = vmatprep.subr.bf16.mxu0 0
        %4437 = vmatpush1.bf16.msra.mxu0 0
        %4438 = vmatprep.subr.bf16.mxu0 0
        %4439 = vmatpush1.bf16.msra.mxu0 0
        %4440 = vmatprep.subr.bf16.mxu0 0
        %4441 = vmatpush1.bf16.msra.mxu0 0
        %4442 = vmatprep.subr.bf16.mxu0 0
        %4443 = vmatpush1.bf16.msra.mxu0 0
        %4444 = vmatprep.subr.bf16.mxu0 0
        %4445 = vmatpush1.bf16.msra.mxu0 0
        %4446 = vmatprep.subr.bf16.mxu0 0
        %4447 = vmatpush1.bf16.msra.mxu0 0
        %4448 = vmatprep.mubr.bf16.mxu0 0
        %4449 = vmatmul.mubr.bf16.gmra.mrb[0].mxu0 %v4411
        %v4450 = vpop.f32.mrb[0].mxu0
        %v4451 = vadd.f32 0.0, %v4450
        %v4452 = vpop.f32.mrb[0].mxu0
        %v4453 = vpop.f32.mrb[0].mxu0
        %v4454 = vpop.f32.mrb[0].mxu0
        %4455 = vdwg.mxu0
        %v4456 = vadd.f32 %v4290, %v4451
        %4457 = vrot.lane.b32.xlu0 %v3973, 104
        %v4458 = vpop.permute.xlu0 %4457
        %4459 = vrot.lane.b32.xlu0 %v3973, 72
        %v4460 = vpop.permute.xlu0 %4459
        %v4462 = vsel %vm957, %v4458, 0
        %v4465 = vsel %vm957, %v4460, 0
        %4467 = vmatprep.subr.bf16.mxu0 0
        %4468 = vmatpush1.bf16.xpose.msra.mxu0 %v4465
        %4469 = vmatprep.subr.bf16.mxu0 0
        %4470 = vmatpush1.bf16.xpose.msra.mxu0 0
        %4471 = vmatprep.subr.bf16.mxu0 0
        %4472 = vmatpush1.bf16.xpose.msra.mxu0 0
        %4473 = vmatprep.subr.bf16.mxu0 0
        %4474 = vmatpush1.bf16.xpose.msra.mxu0 0
        %4475 = vmatprep.subr.bf16.mxu0 0
        %4476 = vmatpush1.bf16.xpose.msra.mxu0 0
        %4477 = vmatprep.subr.bf16.mxu0 0
        %4478 = vmatpush1.bf16.xpose.msra.mxu0 0
        %4479 = vmatprep.subr.bf16.mxu0 0
        %4480 = vmatpush1.bf16.xpose.msra.mxu0 0
        %4481 = vmatprep.subr.bf16.mxu0 0
        %4482 = vmatpush1.bf16.xpose.msra.mxu0 0
        %4483 = vmatprep.subr.bf16.mxu0 0
        %4484 = vmatpush1.bf16.xpose.msra.mxu0 0
        %4485 = vmatprep.subr.bf16.mxu0 0
        %4486 = vmatpush1.bf16.xpose.msra.mxu0 0
        %4487 = vmatprep.subr.bf16.mxu0 0
        %4488 = vmatpush1.bf16.xpose.msra.mxu0 0
        %4489 = vmatprep.subr.bf16.mxu0 0
        %4490 = vmatpush1.bf16.xpose.msra.mxu0 0
        %4491 = vmatprep.subr.bf16.mxu0 0
        %4492 = vmatpush1.bf16.xpose.msra.mxu0 0
        %4493 = vmatprep.subr.bf16.mxu0 0
        %4494 = vmatpush1.bf16.xpose.msra.mxu0 0
        %4495 = vmatprep.subr.bf16.mxu0 0
        %4496 = vmatpush1.bf16.xpose.msra.mxu0 0
        %4497 = vmatprep.subr.bf16.mxu0 0
        %4498 = vmatpush1.bf16.xpose.msra.mxu0 0
        %4499 = vmatprep.mubr.bf16.mxu0 0
        %4500 = vmatmul.mubr.bf16.gmra.mrb[0].mxu0 %v4462
        %v4501 = vpop.f32.mrb[0].mxu0
        %v4502 = vadd.f32 0.0, %v4501
        %v4503 = vpop.f32.mrb[0].mxu0
        %v4504 = vpop.f32.mrb[0].mxu0
        %v4505 = vpop.f32.mrb[0].mxu0
        %4506 = vdwg.mxu0
        %v4507 = vmul.f32 %v4502, 0.35355338
        %v4508 = vadd.f32 %v4507, %v673
        %v4509 = vsel %vm957, %v4508, -inf
        %4510 = vmax.xlane.f32.xlu0 %v4509
        %v4511 = vpop.xlane.xlu0 %4510
        %v4512 = vsub.f32 %v4508, %v4511
        %v4513 = vmul.f32 %v4512, 1.442695
        %v4514 = vpow.pop %v4513
        %v4515 = vsel %vm957, %v4514, 0.0
        %4516 = vadd.xlane.f32.xlu0 %v4515
        %v4517 = vpop.xlane.xlu0 %4516
        %v4518 = vrcp.pop %v4517
        %v4519 = vmul.f32 %v4514, %v4518
        %v4520 = vpack.c.bf16 %v4519, %v4519
        %4521 = vrot.lane.b32.xlu0 %v3973, 40
        %v4522 = vpop.permute.xlu0 %4521
        %v4524 = vsel %vm957, %v4520, 0
        %v4527 = vsel %vm1023, %v4522, 0
        %4529 = vmatprep.subr.bf16.mxu0 0
        %4530 = vmatpush1.bf16.msra.mxu0 %v4527
        %4531 = vmatprep.subr.bf16.mxu0 0
        %4532 = vmatpush1.bf16.msra.mxu0 0
        %4533 = vmatprep.subr.bf16.mxu0 0
        %4534 = vmatpush1.bf16.msra.mxu0 0
        %4535 = vmatprep.subr.bf16.mxu0 0
        %4536 = vmatpush1.bf16.msra.mxu0 0
        %4537 = vmatprep.subr.bf16.mxu0 0
        %4538 = vmatpush1.bf16.msra.mxu0 0
        %4539 = vmatprep.subr.bf16.mxu0 0
        %4540 = vmatpush1.bf16.msra.mxu0 0
        %4541 = vmatprep.subr.bf16.mxu0 0
        %4542 = vmatpush1.bf16.msra.mxu0 0
        %4543 = vmatprep.subr.bf16.mxu0 0
        %4544 = vmatpush1.bf16.msra.mxu0 0
        %4545 = vmatprep.subr.bf16.mxu0 0
        %4546 = vmatpush1.bf16.msra.mxu0 0
        %4547 = vmatprep.subr.bf16.mxu0 0
        %4548 = vmatpush1.bf16.msra.mxu0 0
        %4549 = vmatprep.subr.bf16.mxu0 0
        %4550 = vmatpush1.bf16.msra.mxu0 0
        %4551 = vmatprep.subr.bf16.mxu0 0
        %4552 = vmatpush1.bf16.msra.mxu0 0
        %4553 = vmatprep.subr.bf16.mxu0 0
        %4554 = vmatpush1.bf16.msra.mxu0 0
        %4555 = vmatprep.subr.bf16.mxu0 0
        %4556 = vmatpush1.bf16.msra.mxu0 0
        %4557 = vmatprep.subr.bf16.mxu0 0
        %4558 = vmatpush1.bf16.msra.mxu0 0
        %4559 = vmatprep.subr.bf16.mxu0 0
        %4560 = vmatpush1.bf16.msra.mxu0 0
        %4561 = vmatprep.mubr.bf16.mxu0 0
        %4562 = vmatmul.mubr.bf16.gmra.mrb[0].mxu0 %v4524
        %v4563 = vpop.f32.mrb[0].mxu0
        %v4564 = vadd.f32 0.0, %v4563
        %v4565 = vpop.f32.mrb[0].mxu0
        %v4566 = vpop.f32.mrb[0].mxu0
        %v4567 = vpop.f32.mrb[0].mxu0
        %4568 = vdwg.mxu0
        %v4569 = vpack.c.bf16 %v4564, %v4564
        %s4570 = scalar_lea.vmem %s8, 44
        %v4571 = vld [vmem:[%s4570] sm:$0xf]
        %v4573 = vsel %vm957, %v4569, 0
        %v4576 = vsel %vm1023, %v4571, 0
        %4578 = vmatprep.subr.bf16.mxu0 0
        %4579 = vmatpush1.bf16.msra.mxu0 %v4576
        %4580 = vmatprep.subr.bf16.mxu0 0
        %4581 = vmatpush1.bf16.msra.mxu0 0
        %4582 = vmatprep.subr.bf16.mxu0 0
        %4583 = vmatpush1.bf16.msra.mxu0 0
        %4584 = vmatprep.subr.bf16.mxu0 0
        %4585 = vmatpush1.bf16.msra.mxu0 0
        %4586 = vmatprep.subr.bf16.mxu0 0
        %4587 = vmatpush1.bf16.msra.mxu0 0
        %4588 = vmatprep.subr.bf16.mxu0 0
        %4589 = vmatpush1.bf16.msra.mxu0 0
        %4590 = vmatprep.subr.bf16.mxu0 0
        %4591 = vmatpush1.bf16.msra.mxu0 0
        %4592 = vmatprep.subr.bf16.mxu0 0
        %4593 = vmatpush1.bf16.msra.mxu0 0
        %4594 = vmatprep.subr.bf16.mxu0 0
        %4595 = vmatpush1.bf16.msra.mxu0 0
        %4596 = vmatprep.subr.bf16.mxu0 0
        %4597 = vmatpush1.bf16.msra.mxu0 0
        %4598 = vmatprep.subr.bf16.mxu0 0
        %4599 = vmatpush1.bf16.msra.mxu0 0
        %4600 = vmatprep.subr.bf16.mxu0 0
        %4601 = vmatpush1.bf16.msra.mxu0 0
        %4602 = vmatprep.subr.bf16.mxu0 0
        %4603 = vmatpush1.bf16.msra.mxu0 0
        %4604 = vmatprep.subr.bf16.mxu0 0
        %4605 = vmatpush1.bf16.msra.mxu0 0
        %4606 = vmatprep.subr.bf16.mxu0 0
        %4607 = vmatpush1.bf16.msra.mxu0 0
        %4608 = vmatprep.subr.bf16.mxu0 0
        %4609 = vmatpush1.bf16.msra.mxu0 0
        %4610 = vmatprep.mubr.bf16.mxu0 0
        %4611 = vmatmul.mubr.bf16.gmra.mrb[0].mxu0 %v4573
        %v4612 = vpop.f32.mrb[0].mxu0
        %v4613 = vadd.f32 0.0, %v4612
        %v4614 = vpop.f32.mrb[0].mxu0
        %v4615 = vpop.f32.mrb[0].mxu0
        %v4616 = vpop.f32.mrb[0].mxu0
        %4617 = vdwg.mxu0
        %v4618 = vadd.f32 %v4456, %v4613
        %v4619 = vadd.f32 %v3884, %v4618
        %v4620 = vlaneseq
        %v4621 = vshrl.u32 %v4620, 7
        %v4622 = vsub.s32 7, %v4621
        %v4623 = vrot.slane %v3704, %v4622
        %v4624 = vadd.f32 %v4619, %v4623
        %v4625 = vsel %vm648, %v4624, 0.0
        %4626 = vadd.xlane.f32.xlu0 %v4625
        %v4627 = vpop.xlane.xlu0 %4626
        %v4628 = vmul.f32 %v4627, %v652
        %v4629 = vsub.f32 %v4624, %v4628
        %v4630 = vmul.f32 %v4629, %v4629
        %v4631 = vsel %vm648, %v4630, 0.0
        %4632 = vadd.xlane.f32.xlu0 %v4631
        %v4633 = vpop.xlane.xlu0 %4632
        %v4634 = vmul.f32 %v4633, %v652
        %v4635 = vadd.f32 %v4634, 1e-05
        %v4636 = vrsqrt.pop %v4635
        %v4637 = vmul.f32 %v4629, %v4636
        %v4638 = vlaneseq
        %v4639 = vshrl.u32 %v4638, 7
        %v4640 = vsub.s32 0, %v4639
        %v4641 = vrot.slane %v3705, %v4640
        %v4642 = vmul.f32 %v4637, %v4641
        %v4643 = vlaneseq
        %v4644 = vshrl.u32 %v4643, 7
        %v4645 = vsub.s32 1, %v4644
        %v4646 = vrot.slane %v3705, %v4645
        %v4647 = vadd.f32 %v4642, %v4646
        %s4648 = scalar_lea.vmem %s9, 32
        %v4649 = vld [vmem:[%s4648] sm:$0xf]
        %v4650 = vld [vmem:[%s4648 + $0x4] sm:$0xf]
        %v4651 = vld [vmem:[%s4648 + $0x8] sm:$0xf]
        %v4652 = vld [vmem:[%s4648 + $0xc] sm:$0xf]
        %v4653 = vpack.c.bf16 %v4647, %v4647
        %v4654 = vlaneseq
        %v4655 = vshrl.u32 %v4654, 7
        %v4656 = vsub.s32 2, %v4655
        %v4657 = vrot.slane %v3705, %v4656
        %v4662 = vunpack.c.l.b16 %v4649
        %v4663 = vunpack.c.l.b16 %v4650
        %v4664 = vunpack.c.l.b16 %v4651
        %v4665 = vunpack.c.l.b16 %v4652
        %v4666 = vpack.c.b16 %v4663, %v4662
        %v4667 = vpack.c.b16 %v4665, %v4664
        %v4671 = vsel %vm648, %v4653, 0
        %4673 = vmatprep.subr.bf16.mxu0 0
        %4674 = vmatpush1.bf16.msra.mxu0 %v4666
        %4675 = vmatprep.subr.bf16.mxu0 0
        %4676 = vmatpush1.bf16.msra.mxu0 %v4667
        %4677 = vmatprep.subr.bf16.mxu0 0
        %4678 = vmatpush1.bf16.msra.mxu0 0
        %4679 = vmatprep.subr.bf16.mxu0 0
        %4680 = vmatpush1.bf16.msra.mxu0 0
        %4681 = vmatprep.subr.bf16.mxu0 0
        %4682 = vmatpush1.bf16.msra.mxu0 0
        %4683 = vmatprep.subr.bf16.mxu0 0
        %4684 = vmatpush1.bf16.msra.mxu0 0
        %4685 = vmatprep.subr.bf16.mxu0 0
        %4686 = vmatpush1.bf16.msra.mxu0 0
        %4687 = vmatprep.subr.bf16.mxu0 0
        %4688 = vmatpush1.bf16.msra.mxu0 0
        %4689 = vmatprep.subr.bf16.mxu0 0
        %4690 = vmatpush1.bf16.msra.mxu0 0
        %4691 = vmatprep.subr.bf16.mxu0 0
        %4692 = vmatpush1.bf16.msra.mxu0 0
        %4693 = vmatprep.subr.bf16.mxu0 0
        %4694 = vmatpush1.bf16.msra.mxu0 0
        %4695 = vmatprep.subr.bf16.mxu0 0
        %4696 = vmatpush1.bf16.msra.mxu0 0
        %4697 = vmatprep.subr.bf16.mxu0 0
        %4698 = vmatpush1.bf16.msra.mxu0 0
        %4699 = vmatprep.subr.bf16.mxu0 0
        %4700 = vmatpush1.bf16.msra.mxu0 0
        %4701 = vmatprep.subr.bf16.mxu0 0
        %4702 = vmatpush1.bf16.msra.mxu0 0
        %4703 = vmatprep.subr.bf16.mxu0 0
        %4704 = vmatpush1.bf16.msra.mxu0 0
        %4705 = vmatprep.mubr.bf16.mxu0 0
        %4706 = vmatmul.mubr.bf16.gmra.mrb[0].mxu0 %v4671
        %v4707 = vpop.f32.mrb[0].mxu0
        %v4708 = vadd.f32 %v4657, %v4707
        %v4709 = vpop.f32.mrb[0].mxu0
        %v4710 = vpop.f32.mrb[0].mxu0
        %v4711 = vpop.f32.mrb[0].mxu0
        %4712 = vdwg.mxu0
        %s4713 = scalar_lea.vmem %s10, 32
        %v4714 = vld [vmem:[%s4713] sm:$0xf]
        %v4715 = vld [vmem:[%s4713 + $0x4] sm:$0xf]
        %v4716 = vld [vmem:[%s4713 + $0x8] sm:$0xf]
        %v4717 = vld [vmem:[%s4713 + $0xc] sm:$0xf]
        %v4718 = vlaneseq
        %v4719 = vshrl.u32 %v4718, 7
        %v4720 = vsub.s32 3, %v4719
        %v4721 = vrot.slane %v3705, %v4720
        %v4726 = vunpack.c.l.b16 %v4714
        %v4727 = vunpack.c.l.b16 %v4715
        %v4728 = vunpack.c.l.b16 %v4716
        %v4729 = vunpack.c.l.b16 %v4717
        %v4730 = vpack.c.b16 %v4727, %v4726
        %v4731 = vpack.c.b16 %v4729, %v4728
        %4734 = vmatprep.subr.bf16.mxu0 0
        %4735 = vmatpush1.bf16.msra.mxu0 %v4730
        %4736 = vmatprep.subr.bf16.mxu0 0
        %4737 = vmatpush1.bf16.msra.mxu0 %v4731
        %4738 = vmatprep.subr.bf16.mxu0 0
        %4739 = vmatpush1.bf16.msra.mxu0 0
        %4740 = vmatprep.subr.bf16.mxu0 0
        %4741 = vmatpush1.bf16.msra.mxu0 0
        %4742 = vmatprep.subr.bf16.mxu0 0
        %4743 = vmatpush1.bf16.msra.mxu0 0
        %4744 = vmatprep.subr.bf16.mxu0 0
        %4745 = vmatpush1.bf16.msra.mxu0 0
        %4746 = vmatprep.subr.bf16.mxu0 0
        %4747 = vmatpush1.bf16.msra.mxu0 0
        %4748 = vmatprep.subr.bf16.mxu0 0
        %4749 = vmatpush1.bf16.msra.mxu0 0
        %4750 = vmatprep.subr.bf16.mxu0 0
        %4751 = vmatpush1.bf16.msra.mxu0 0
        %4752 = vmatprep.subr.bf16.mxu0 0
        %4753 = vmatpush1.bf16.msra.mxu0 0
        %4754 = vmatprep.subr.bf16.mxu0 0
        %4755 = vmatpush1.bf16.msra.mxu0 0
        %4756 = vmatprep.subr.bf16.mxu0 0
        %4757 = vmatpush1.bf16.msra.mxu0 0
        %4758 = vmatprep.subr.bf16.mxu0 0
        %4759 = vmatpush1.bf16.msra.mxu0 0
        %4760 = vmatprep.subr.bf16.mxu0 0
        %4761 = vmatpush1.bf16.msra.mxu0 0
        %4762 = vmatprep.subr.bf16.mxu0 0
        %4763 = vmatpush1.bf16.msra.mxu0 0
        %4764 = vmatprep.subr.bf16.mxu0 0
        %4765 = vmatpush1.bf16.msra.mxu0 0
        %4766 = vmatprep.mubr.bf16.mxu0 0
        %4767 = vmatmul.mubr.bf16.gmra.mrb[0].mxu0 %v4671
        %v4768 = vpop.f32.mrb[0].mxu0
        %v4769 = vadd.f32 %v4721, %v4768
        %v4770 = vpop.f32.mrb[0].mxu0
        %v4771 = vpop.f32.mrb[0].mxu0
        %v4772 = vpop.f32.mrb[0].mxu0
        %4773 = vdwg.mxu0
        %v4774 = vxor.u32 %v4769, 2147483648
        %v4775 = vmul.f32 %v4774, 1.442695
        %v4776 = vpow.pop %v4775
        %v4777 = vadd.f32 %v4776, 1.0
        %v4778 = vrcp.pop %v4777
        %v4779 = vmul.f32 1.0, %v4778
        %v4780 = vmul.f32 %v4708, %v4779
        %v4781 = vlaneseq
        %v4782 = vshrl.u32 %v4781, 7
        %v4783 = vsub.s32 4, %v4782
        %v4784 = vrot.slane %v3706, %v4783
        %v4785 = vmul.f32 %v4780, %v4784
        %4786 = vmatprep.subr.mxu0 0.0
        %4787 = vmatpush1.msra.mxu0 %v4780
        %4788 = vmatprep.subr.mxu0 0.0
        %4789 = vmatpush1.msra.mxu0 0.0
        %4790 = vmatprep.subr.mxu0 0.0
        %4791 = vmatpush1.msra.mxu0 0.0
        %4792 = vmatprep.subr.mxu0 0.0
        %4793 = vmatpush1.msra.mxu0 0.0
        %4794 = vmatprep.subr.mxu0 0.0
        %4795 = vmatpush1.msra.mxu0 0.0
        %4796 = vmatprep.subr.mxu0 0.0
        %4797 = vmatpush1.msra.mxu0 0.0
        %4798 = vmatprep.subr.mxu0 0.0
        %4799 = vmatpush1.msra.mxu0 0.0
        %4800 = vmatprep.subr.mxu0 0.0
        %4801 = vmatpush1.msra.mxu0 0.0
        %4802 = vmatprep.subr.mxu0 0.0
        %4803 = vmatpush1.msra.mxu0 0.0
        %4804 = vmatprep.subr.mxu0 0.0
        %4805 = vmatpush1.msra.mxu0 0.0
        %4806 = vmatprep.subr.mxu0 0.0
        %4807 = vmatpush1.msra.mxu0 0.0
        %4808 = vmatprep.subr.mxu0 0.0
        %4809 = vmatpush1.msra.mxu0 0.0
        %4810 = vmatprep.subr.mxu0 0.0
        %4811 = vmatpush1.msra.mxu0 0.0
        %4812 = vmatprep.subr.mxu0 0.0
        %4813 = vmatpush1.msra.mxu0 0.0
        %4814 = vmatprep.subr.mxu0 0.0
        %4815 = vmatpush1.msra.mxu0 0.0
        %4816 = vmatprep.subr.mxu0 0.0
        %4817 = vmatpush1.msra.mxu0 0.0
        %4818 = vmatprep.subr.mxu0 0.0
        %4819 = vmatpush1.msra.mxu0 0.0
        %4820 = vmatprep.subr.mxu0 0.0
        %4821 = vmatpush1.msra.mxu0 0.0
        %4822 = vmatprep.subr.mxu0 0.0
        %4823 = vmatpush1.msra.mxu0 0.0
        %4824 = vmatprep.subr.mxu0 0.0
        %4825 = vmatpush1.msra.mxu0 0.0
        %4826 = vmatprep.subr.mxu0 0.0
        %4827 = vmatpush1.msra.mxu0 0.0
        %4828 = vmatprep.subr.mxu0 0.0
        %4829 = vmatpush1.msra.mxu0 0.0
        %4830 = vmatprep.subr.mxu0 0.0
        %4831 = vmatpush1.msra.mxu0 0.0
        %4832 = vmatprep.subr.mxu0 0.0
        %4833 = vmatpush1.msra.mxu0 0.0
        %4834 = vmatprep.subr.mxu0 0.0
        %4835 = vmatpush1.msra.mxu0 0.0
        %4836 = vmatprep.subr.mxu0 0.0
        %4837 = vmatpush1.msra.mxu0 0.0
        %4838 = vmatprep.subr.mxu0 0.0
        %4839 = vmatpush1.msra.mxu0 0.0
        %4840 = vmatprep.subr.mxu0 0.0
        %4841 = vmatpush1.msra.mxu0 0.0
        %4842 = vmatprep.subr.mxu0 0.0
        %4843 = vmatpush1.msra.mxu0 0.0
        %4844 = vmatprep.subr.mxu0 0.0
        %4845 = vmatpush1.msra.mxu0 0.0
        %4846 = vmatprep.subr.mxu0 0.0
        %4847 = vmatpush1.msra.mxu0 0.0
        %4848 = vmatprep.subr.mxu0 0.0
        %4849 = vmatpush1.msra.mxu0 0.0
        %4850 = vmatprep.mubr.f32.mxu0 0.0
        %4851 = vmatmul.mubr.f32.gmra.mrb[0].mxu0 %v1766
        %v4852 = vpop.f32.mrb[0].mxu0
        %v4853 = vadd.f32 0.0, %v4852
        %v4854 = vpop.f32.mrb[0].mxu0
        %4855 = vdwg.mxu0
        %v4856 = vlaneseq
        %v4857 = vshrl.u32 %v4856, 7
        %v4858 = vsub.s32 3, %v4857
        %v4859 = vrot.slane %v3706, %v4858
        %v4860 = vmul.f32 %v4853, %v4859
        %v4861 = vadd.f32 %v4785, %v4860
        %4862 = vmatprep.subr.mxu0 0.0
        %4863 = vmatpush1.msra.mxu0 %v4780
        %4864 = vmatprep.subr.mxu0 0.0
        %4865 = vmatpush1.msra.mxu0 0.0
        %4866 = vmatprep.subr.mxu0 0.0
        %4867 = vmatpush1.msra.mxu0 0.0
        %4868 = vmatprep.subr.mxu0 0.0
        %4869 = vmatpush1.msra.mxu0 0.0
        %4870 = vmatprep.subr.mxu0 0.0
        %4871 = vmatpush1.msra.mxu0 0.0
        %4872 = vmatprep.subr.mxu0 0.0
        %4873 = vmatpush1.msra.mxu0 0.0
        %4874 = vmatprep.subr.mxu0 0.0
        %4875 = vmatpush1.msra.mxu0 0.0
        %4876 = vmatprep.subr.mxu0 0.0
        %4877 = vmatpush1.msra.mxu0 0.0
        %4878 = vmatprep.subr.mxu0 0.0
        %4879 = vmatpush1.msra.mxu0 0.0
        %4880 = vmatprep.subr.mxu0 0.0
        %4881 = vmatpush1.msra.mxu0 0.0
        %4882 = vmatprep.subr.mxu0 0.0
        %4883 = vmatpush1.msra.mxu0 0.0
        %4884 = vmatprep.subr.mxu0 0.0
        %4885 = vmatpush1.msra.mxu0 0.0
        %4886 = vmatprep.subr.mxu0 0.0
        %4887 = vmatpush1.msra.mxu0 0.0
        %4888 = vmatprep.subr.mxu0 0.0
        %4889 = vmatpush1.msra.mxu0 0.0
        %4890 = vmatprep.subr.mxu0 0.0
        %4891 = vmatpush1.msra.mxu0 0.0
        %4892 = vmatprep.subr.mxu0 0.0
        %4893 = vmatpush1.msra.mxu0 0.0
        %4894 = vmatprep.subr.mxu0 0.0
        %4895 = vmatpush1.msra.mxu0 0.0
        %4896 = vmatprep.subr.mxu0 0.0
        %4897 = vmatpush1.msra.mxu0 0.0
        %4898 = vmatprep.subr.mxu0 0.0
        %4899 = vmatpush1.msra.mxu0 0.0
        %4900 = vmatprep.subr.mxu0 0.0
        %4901 = vmatpush1.msra.mxu0 0.0
        %4902 = vmatprep.subr.mxu0 0.0
        %4903 = vmatpush1.msra.mxu0 0.0
        %4904 = vmatprep.subr.mxu0 0.0
        %4905 = vmatpush1.msra.mxu0 0.0
        %4906 = vmatprep.subr.mxu0 0.0
        %4907 = vmatpush1.msra.mxu0 0.0
        %4908 = vmatprep.subr.mxu0 0.0
        %4909 = vmatpush1.msra.mxu0 0.0
        %4910 = vmatprep.subr.mxu0 0.0
        %4911 = vmatpush1.msra.mxu0 0.0
        %4912 = vmatprep.subr.mxu0 0.0
        %4913 = vmatpush1.msra.mxu0 0.0
        %4914 = vmatprep.subr.mxu0 0.0
        %4915 = vmatpush1.msra.mxu0 0.0
        %4916 = vmatprep.subr.mxu0 0.0
        %4917 = vmatpush1.msra.mxu0 0.0
        %4918 = vmatprep.subr.mxu0 0.0
        %4919 = vmatpush1.msra.mxu0 0.0
        %4920 = vmatprep.subr.mxu0 0.0
        %4921 = vmatpush1.msra.mxu0 0.0
        %4922 = vmatprep.subr.mxu0 0.0
        %4923 = vmatpush1.msra.mxu0 0.0
        %4924 = vmatprep.subr.mxu0 0.0
        %4925 = vmatpush1.msra.mxu0 0.0
        %4926 = vmatprep.mubr.f32.mxu0 0.0
        %4927 = vmatmul.mubr.f32.gmra.mrb[0].mxu0 %v1845
        %v4928 = vpop.f32.mrb[0].mxu0
        %v4929 = vadd.f32 0.0, %v4928
        %v4930 = vpop.f32.mrb[0].mxu0
        %4931 = vdwg.mxu0
        %v4932 = vlaneseq
        %v4933 = vshrl.u32 %v4932, 7
        %v4934 = vsub.s32 5, %v4933
        %v4935 = vrot.slane %v3706, %v4934
        %v4936 = vmul.f32 %v4929, %v4935
        %v4937 = vadd.f32 %v4861, %v4936
        %v4938 = vxor.u32 %v4937, 2147483648
        %v4939 = vmul.f32 %v4938, 1.442695
        %v4940 = vpow.pop %v4939
        %v4941 = vadd.f32 %v4940, 1.0
        %v4942 = vrcp.pop %v4941
        %v4943 = vmul.f32 1.0, %v4942
        %v4944 = vmul.f32 %v4937, %v4943
        %s4945 = scalar_lea.vmem %s11, 32
        %v4946 = vld [vmem:[%s4945] sm:$0xf]
        %v4947 = vld [vmem:[%s4945 + $0x4] sm:$0xf]
        %v4948 = vld [vmem:[%s4945 + $0x8] sm:$0xf]
        %v4949 = vld [vmem:[%s4945 + $0xc] sm:$0xf]
        %v4950 = vpack.c.bf16 %v4944, %v4944
        %v4951 = vlaneseq
        %v4952 = vshrl.u32 %v4951, 7
        %v4953 = vsub.s32 4, %v4952
        %v4954 = vrot.slane %v3705, %v4953
        %v4959 = vunpack.c.l.b16 %v4946
        %v4960 = vunpack.c.l.b16 %v4947
        %v4961 = vunpack.c.l.b16 %v4948
        %v4962 = vunpack.c.l.b16 %v4949
        %v4963 = vpack.c.b16 %v4960, %v4959
        %v4964 = vpack.c.b16 %v4962, %v4961
        %v4968 = vsel %vm648, %v4950, 0
        %4970 = vmatprep.subr.bf16.mxu0 0
        %4971 = vmatpush1.bf16.msra.mxu0 %v4963
        %4972 = vmatprep.subr.bf16.mxu0 0
        %4973 = vmatpush1.bf16.msra.mxu0 %v4964
        %4974 = vmatprep.subr.bf16.mxu0 0
        %4975 = vmatpush1.bf16.msra.mxu0 0
        %4976 = vmatprep.subr.bf16.mxu0 0
        %4977 = vmatpush1.bf16.msra.mxu0 0
        %4978 = vmatprep.subr.bf16.mxu0 0
        %4979 = vmatpush1.bf16.msra.mxu0 0
        %4980 = vmatprep.subr.bf16.mxu0 0
        %4981 = vmatpush1.bf16.msra.mxu0 0
        %4982 = vmatprep.subr.bf16.mxu0 0
        %4983 = vmatpush1.bf16.msra.mxu0 0
        %4984 = vmatprep.subr.bf16.mxu0 0
        %4985 = vmatpush1.bf16.msra.mxu0 0
        %4986 = vmatprep.subr.bf16.mxu0 0
        %4987 = vmatpush1.bf16.msra.mxu0 0
        %4988 = vmatprep.subr.bf16.mxu0 0
        %4989 = vmatpush1.bf16.msra.mxu0 0
        %4990 = vmatprep.subr.bf16.mxu0 0
        %4991 = vmatpush1.bf16.msra.mxu0 0
        %4992 = vmatprep.subr.bf16.mxu0 0
        %4993 = vmatpush1.bf16.msra.mxu0 0
        %4994 = vmatprep.subr.bf16.mxu0 0
        %4995 = vmatpush1.bf16.msra.mxu0 0
        %4996 = vmatprep.subr.bf16.mxu0 0
        %4997 = vmatpush1.bf16.msra.mxu0 0
        %4998 = vmatprep.subr.bf16.mxu0 0
        %4999 = vmatpush1.bf16.msra.mxu0 0
        %5000 = vmatprep.subr.bf16.mxu0 0
        %5001 = vmatpush1.bf16.msra.mxu0 0
        %5002 = vmatprep.mubr.bf16.mxu0 0
        %5003 = vmatmul.mubr.bf16.gmra.mrb[0].mxu0 %v4968
        %v5004 = vpop.f32.mrb[0].mxu0
        %v5005 = vadd.f32 %v4954, %v5004
        %v5006 = vpop.f32.mrb[0].mxu0
        %v5007 = vpop.f32.mrb[0].mxu0
        %v5008 = vpop.f32.mrb[0].mxu0
        %5009 = vdwg.mxu0
        %v5010 = vadd.f32 %v4624, %v5005
        %v5011 = vsel %vm648, %v5010, 0.0
        %5012 = vadd.xlane.f32.xlu0 %v5011
        %v5013 = vpop.xlane.xlu0 %5012
        %v5014 = vmul.f32 %v5013, %v652
        %v5015 = vsub.f32 %v5010, %v5014
        %v5016 = vmul.f32 %v5015, %v5015
        %v5017 = vsel %vm648, %v5016, 0.0
        %5018 = vadd.xlane.f32.xlu0 %v5017
        %v5019 = vpop.xlane.xlu0 %5018
        %v5020 = vmul.f32 %v5019, %v652
        %v5021 = vadd.f32 %v5020, 1e-05
        %v5022 = vrsqrt.pop %v5021
        %v5023 = vmul.f32 %v5015, %v5022
        %v5024 = vlaneseq
        %v5025 = vshrl.u32 %v5024, 7
        %v5026 = vsub.s32 5, %v5025
        %v5027 = vrot.slane %v3705, %v5026
        %v5028 = vmul.f32 %v5023, %v5027
        %v5029 = vlaneseq
        %v5030 = vshrl.u32 %v5029, 7
        %v5031 = vsub.s32 6, %v5030
        %v5032 = vrot.slane %v3705, %v5031
        %v5033 = vadd.f32 %v5028, %v5032
        %s5034 = scalar_lea.vmem %s12, 32
        %v5035 = vld [vmem:[%s5034] sm:$0xf]
        %v5036 = vld [vmem:[%s5034 + $0x4] sm:$0xf]
        %v5037 = vld [vmem:[%s5034 + $0x8] sm:$0xf]
        %v5038 = vld [vmem:[%s5034 + $0xc] sm:$0xf]
        %v5039 = vpack.c.bf16 %v5033, %v5033
        %v5040 = vlaneseq
        %v5041 = vshrl.u32 %v5040, 7
        %v5042 = vsub.s32 7, %v5041
        %v5043 = vrot.slane %v3705, %v5042
        %v5048 = vunpack.c.l.b16 %v5035
        %v5049 = vunpack.c.l.b16 %v5036
        %v5050 = vunpack.c.l.b16 %v5037
        %v5051 = vunpack.c.l.b16 %v5038
        %v5052 = vpack.c.b16 %v5049, %v5048
        %v5053 = vpack.c.b16 %v5051, %v5050
        %v5057 = vsel %vm648, %v5039, 0
        %5059 = vmatprep.subr.bf16.mxu0 0
        %5060 = vmatpush1.bf16.msra.mxu0 %v5052
        %5061 = vmatprep.subr.bf16.mxu0 0
        %5062 = vmatpush1.bf16.msra.mxu0 %v5053
        %5063 = vmatprep.subr.bf16.mxu0 0
        %5064 = vmatpush1.bf16.msra.mxu0 0
        %5065 = vmatprep.subr.bf16.mxu0 0
        %5066 = vmatpush1.bf16.msra.mxu0 0
        %5067 = vmatprep.subr.bf16.mxu0 0
        %5068 = vmatpush1.bf16.msra.mxu0 0
        %5069 = vmatprep.subr.bf16.mxu0 0
        %5070 = vmatpush1.bf16.msra.mxu0 0
        %5071 = vmatprep.subr.bf16.mxu0 0
        %5072 = vmatpush1.bf16.msra.mxu0 0
        %5073 = vmatprep.subr.bf16.mxu0 0
        %5074 = vmatpush1.bf16.msra.mxu0 0
        %5075 = vmatprep.subr.bf16.mxu0 0
        %5076 = vmatpush1.bf16.msra.mxu0 0
        %5077 = vmatprep.subr.bf16.mxu0 0
        %5078 = vmatpush1.bf16.msra.mxu0 0
        %5079 = vmatprep.subr.bf16.mxu0 0
        %5080 = vmatpush1.bf16.msra.mxu0 0
        %5081 = vmatprep.subr.bf16.mxu0 0
        %5082 = vmatpush1.bf16.msra.mxu0 0
        %5083 = vmatprep.subr.bf16.mxu0 0
        %5084 = vmatpush1.bf16.msra.mxu0 0
        %5085 = vmatprep.subr.bf16.mxu0 0
        %5086 = vmatpush1.bf16.msra.mxu0 0
        %5087 = vmatprep.subr.bf16.mxu0 0
        %5088 = vmatpush1.bf16.msra.mxu0 0
        %5089 = vmatprep.subr.bf16.mxu0 0
        %5090 = vmatpush1.bf16.msra.mxu0 0
        %5091 = vmatprep.mubr.bf16.mxu0 0
        %5092 = vmatmul.mubr.bf16.gmra.mrb[0].mxu0 %v5057
        %v5093 = vpop.f32.mrb[0].mxu0
        %v5094 = vadd.f32 %v5043, %v5093
        %v5095 = vpop.f32.mrb[0].mxu0
        %v5096 = vpop.f32.mrb[0].mxu0
        %v5097 = vpop.f32.mrb[0].mxu0
        %5098 = vdwg.mxu0
        %v5099 = vxor.u32 %v5094, 2147483648
        %v5100 = vmul.f32 %v5099, 1.442695
        %v5101 = vpow.pop %v5100
        %v5102 = vadd.f32 %v5101, 1.0
        %v5103 = vrcp.pop %v5102
        %v5104 = vmul.f32 1.0, %v5103
        %v5105 = vmul.f32 %v5094, %v5104
        %s5106 = scalar_lea.vmem %s13, 64
        %v5107 = vld [vmem:[%s5106] sm:$0xf]
        %v5108 = vld [vmem:[%s5106 + $0x4] sm:$0xf]
        %v5109 = vld [vmem:[%s5106 + $0x8] sm:$0xf]
        %v5110 = vld [vmem:[%s5106 + $0xc] sm:$0xf]
        %v5111 = vld [vmem:[%s5106 + $0x10] sm:$0xf]
        %v5112 = vld [vmem:[%s5106 + $0x14] sm:$0xf]
        %v5113 = vld [vmem:[%s5106 + $0x18] sm:$0xf]
        %v5114 = vld [vmem:[%s5106 + $0x1c] sm:$0xf]
        %v5115 = vpack.c.bf16 %v5105, %v5105
        %v5116 = vlaneseq
        %v5117 = vshrl.u32 %v5116, 7
        %v5118 = vsub.s32 0, %v5117
        %v5119 = vrot.slane %v3706, %v5118
        %v5128 = vunpack.c.l.b16 %v5107
        %v5129 = vunpack.c.l.b16 %v5108
        %v5130 = vunpack.c.l.b16 %v5109
        %v5131 = vunpack.c.l.b16 %v5110
        %v5132 = vunpack.c.l.b16 %v5111
        %v5133 = vunpack.c.l.b16 %v5112
        %v5134 = vunpack.c.l.b16 %v5113
        %v5135 = vunpack.c.l.b16 %v5114
        %v5136 = vpack.c.b16 %v5129, %v5128
        %v5137 = vpack.c.b16 %v5131, %v5130
        %v5138 = vpack.c.b16 %v5133, %v5132
        %v5139 = vpack.c.b16 %v5135, %v5134
        %v5145 = vsel %vm820, %v5115, 0
        %5147 = vmatprep.subr.bf16.mxu0 0
        %5148 = vmatpush1.bf16.msra.mxu0 %v5136
        %5149 = vmatprep.subr.bf16.mxu0 0
        %5150 = vmatpush1.bf16.msra.mxu0 %v5137
        %5151 = vmatprep.subr.bf16.mxu0 0
        %5152 = vmatpush1.bf16.msra.mxu0 %v5138
        %5153 = vmatprep.subr.bf16.mxu0 0
        %5154 = vmatpush1.bf16.msra.mxu0 %v5139
        %5155 = vmatprep.subr.bf16.mxu0 0
        %5156 = vmatpush1.bf16.msra.mxu0 0
        %5157 = vmatprep.subr.bf16.mxu0 0
        %5158 = vmatpush1.bf16.msra.mxu0 0
        %5159 = vmatprep.subr.bf16.mxu0 0
        %5160 = vmatpush1.bf16.msra.mxu0 0
        %5161 = vmatprep.subr.bf16.mxu0 0
        %5162 = vmatpush1.bf16.msra.mxu0 0
        %5163 = vmatprep.subr.bf16.mxu0 0
        %5164 = vmatpush1.bf16.msra.mxu0 0
        %5165 = vmatprep.subr.bf16.mxu0 0
        %5166 = vmatpush1.bf16.msra.mxu0 0
        %5167 = vmatprep.subr.bf16.mxu0 0
        %5168 = vmatpush1.bf16.msra.mxu0 0
        %5169 = vmatprep.subr.bf16.mxu0 0
        %5170 = vmatpush1.bf16.msra.mxu0 0
        %5171 = vmatprep.subr.bf16.mxu0 0
        %5172 = vmatpush1.bf16.msra.mxu0 0
        %5173 = vmatprep.subr.bf16.mxu0 0
        %5174 = vmatpush1.bf16.msra.mxu0 0
        %5175 = vmatprep.subr.bf16.mxu0 0
        %5176 = vmatpush1.bf16.msra.mxu0 0
        %5177 = vmatprep.subr.bf16.mxu0 0
        %5178 = vmatpush1.bf16.msra.mxu0 0
        %5179 = vmatprep.mubr.bf16.mxu0 0
        %5180 = vmatmul.mubr.bf16.gmra.mrb[0].mxu0 %v5145
        %v5181 = vpop.f32.mrb[0].mxu0
        %v5182 = vadd.f32 %v5119, %v5181
        %v5183 = vpop.f32.mrb[0].mxu0
        %v5184 = vpop.f32.mrb[0].mxu0
        %v5185 = vpop.f32.mrb[0].mxu0
        %5186 = vdwg.mxu0
        %v5187 = vmul.f32 %v5182, 0.5
        %v5188 = vadd.f32 %v5010, %v5187
        %v5189 = vsel %vm648, %v5188, 0.0
        %5190 = vadd.xlane.f32.xlu0 %v5189
        %v5191 = vpop.xlane.xlu0 %5190
        %v5192 = vmul.f32 %v5191, %v652
        %v5193 = vsub.f32 %v5188, %v5192
        %v5194 = vmul.f32 %v5193, %v5193
        %v5195 = vsel %vm648, %v5194, 0.0
        %5196 = vadd.xlane.f32.xlu0 %v5195
        %v5197 = vpop.xlane.xlu0 %5196
        %v5198 = vmul.f32 %v5197, %v652
        %v5199 = vadd.f32 %v5198, 1e-05
        %v5200 = vrsqrt.pop %v5199
        %v5201 = vmul.f32 %v5193, %v5200
        %v5202 = vlaneseq
        %v5203 = vshrl.u32 %v5202, 7
        %v5204 = vsub.s32 1, %v5203
        %v5205 = vrot.slane %v3706, %v5204
        %v5206 = vmul.f32 %v5201, %v5205
        %v5207 = vlaneseq
        %v5208 = vshrl.u32 %v5207, 7
        %v5209 = vsub.s32 2, %v5208
        %v5210 = vrot.slane %v3706, %v5209
        %v5211 = vadd.f32 %v5206, %v5210
        %s5212 = scalar_lea.vmem %s4, 72
        %v5213 = vld [vmem:[%s5212] sm:$0xff]
        %v5214 = vld [vmem:[%s5212 + $0x8] sm:$0xff]
        %v5215 = vld [vmem:[%s5212 + $0x10] sm:$0x3f]
        %v5216 = vsel %vm648, %v5211, 0.0
        %5217 = vadd.xlane.f32.xlu0 %v5216
        %v5218 = vpop.xlane.xlu0 %5217
        %v5219 = vmul.f32 %v5218, %v652
        %v5220 = vsub.f32 %v5211, %v5219
        %v5221 = vmul.f32 %v5220, %v5220
        %v5222 = vsel %vm648, %v5221, 0.0
        %5223 = vadd.xlane.f32.xlu0 %v5222
        %v5224 = vpop.xlane.xlu0 %5223
        %v5225 = vmul.f32 %v5224, %v652
        %v5226 = vadd.f32 %v5225, 1e-05
        %v5227 = vrsqrt.pop %v5226
        %v5228 = vmul.f32 %v5220, %v5227
        %v5229 = vlaneseq
        %v5230 = vshrl.u32 %v5229, 7
        %v5231 = vsub.s32 0, %v5230
        %v5232 = vrot.slane %v5213, %v5231
        %v5233 = vmul.f32 %v5228, %v5232
        %v5234 = vlaneseq
        %v5235 = vshrl.u32 %v5234, 7
        %v5236 = vsub.s32 1, %v5235
        %v5237 = vrot.slane %v5213, %v5236
        %v5238 = vadd.f32 %v5233, %v5237
        %s5239 = scalar_lea.vmem %s5, 48
        %v5240 = vld [vmem:[%s5239] sm:$0xf]
        %v5241 = vld [vmem:[%s5239 + $0x4] sm:$0xf]
        %v5242 = vld [vmem:[%s5239 + $0x8] sm:$0xf]
        %v5243 = vld [vmem:[%s5239 + $0xc] sm:$0xf]
        %v5244 = vpack.c.bf16 %v5238, %v5238
        %v5245 = vlaneseq
        %v5246 = vshrl.u32 %v5245, 7
        %v5247 = vsub.s32 2, %v5246
        %v5248 = vrot.slane %v5213, %v5247
        %v5253 = vunpack.c.l.b16 %v5240
        %v5254 = vunpack.c.l.b16 %v5241
        %v5255 = vunpack.c.l.b16 %v5242
        %v5256 = vunpack.c.l.b16 %v5243
        %v5257 = vpack.c.b16 %v5254, %v5253
        %v5258 = vpack.c.b16 %v5256, %v5255
        %v5262 = vsel %vm648, %v5244, 0
        %5264 = vmatprep.subr.bf16.mxu0 0
        %5265 = vmatpush1.bf16.msra.mxu0 %v5257
        %5266 = vmatprep.subr.bf16.mxu0 0
        %5267 = vmatpush1.bf16.msra.mxu0 %v5258
        %5268 = vmatprep.subr.bf16.mxu0 0
        %5269 = vmatpush1.bf16.msra.mxu0 0
        %5270 = vmatprep.subr.bf16.mxu0 0
        %5271 = vmatpush1.bf16.msra.mxu0 0
        %5272 = vmatprep.subr.bf16.mxu0 0
        %5273 = vmatpush1.bf16.msra.mxu0 0
        %5274 = vmatprep.subr.bf16.mxu0 0
        %5275 = vmatpush1.bf16.msra.mxu0 0
        %5276 = vmatprep.subr.bf16.mxu0 0
        %5277 = vmatpush1.bf16.msra.mxu0 0
        %5278 = vmatprep.subr.bf16.mxu0 0
        %5279 = vmatpush1.bf16.msra.mxu0 0
        %5280 = vmatprep.subr.bf16.mxu0 0
        %5281 = vmatpush1.bf16.msra.mxu0 0
        %5282 = vmatprep.subr.bf16.mxu0 0
        %5283 = vmatpush1.bf16.msra.mxu0 0
        %5284 = vmatprep.subr.bf16.mxu0 0
        %5285 = vmatpush1.bf16.msra.mxu0 0
        %5286 = vmatprep.subr.bf16.mxu0 0
        %5287 = vmatpush1.bf16.msra.mxu0 0
        %5288 = vmatprep.subr.bf16.mxu0 0
        %5289 = vmatpush1.bf16.msra.mxu0 0
        %5290 = vmatprep.subr.bf16.mxu0 0
        %5291 = vmatpush1.bf16.msra.mxu0 0
        %5292 = vmatprep.subr.bf16.mxu0 0
        %5293 = vmatpush1.bf16.msra.mxu0 0
        %5294 = vmatprep.subr.bf16.mxu0 0
        %5295 = vmatpush1.bf16.msra.mxu0 0
        %5296 = vmatprep.mubr.bf16.mxu0 0
        %5297 = vmatmul.mubr.bf16.gmra.mrb[0].mxu0 %v5262
        %v5298 = vpop.f32.mrb[0].mxu0
        %v5299 = vadd.f32 %v5248, %v5298
        %v5300 = vpop.f32.mrb[0].mxu0
        %v5301 = vpop.f32.mrb[0].mxu0
        %v5302 = vpop.f32.mrb[0].mxu0
        %5303 = vdwg.mxu0
        %v5304 = vxor.u32 %v5299, 2147483648
        %v5305 = vmul.f32 %v5304, 1.442695
        %v5306 = vpow.pop %v5305
        %v5307 = vadd.f32 %v5306, 1.0
        %v5308 = vrcp.pop %v5307
        %v5309 = vmul.f32 1.0, %v5308
        %v5310 = vmul.f32 %v5299, %v5309
        %s5311 = scalar_lea.vmem %s6, 96
        %v5312 = vld [vmem:[%s5311] sm:$0xf]
        %v5313 = vld [vmem:[%s5311 + $0x4] sm:$0xf]
        %v5314 = vld [vmem:[%s5311 + $0x8] sm:$0xf]
        %v5315 = vld [vmem:[%s5311 + $0xc] sm:$0xf]
        %v5316 = vld [vmem:[%s5311 + $0x10] sm:$0xf]
        %v5317 = vld [vmem:[%s5311 + $0x14] sm:$0xf]
        %v5318 = vld [vmem:[%s5311 + $0x18] sm:$0xf]
        %v5319 = vld [vmem:[%s5311 + $0x1c] sm:$0xf]
        %v5320 = vpack.c.bf16 %v5310, %v5310
        %v5321 = vlaneseq
        %v5322 = vshrl.u32 %v5321, 7
        %v5323 = vsub.s32 3, %v5322
        %v5324 = vrot.slane %v5213, %v5323
        %v5333 = vunpack.c.l.b16 %v5312
        %v5334 = vunpack.c.l.b16 %v5313
        %v5335 = vunpack.c.l.b16 %v5314
        %v5336 = vunpack.c.l.b16 %v5315
        %v5337 = vunpack.c.l.b16 %v5316
        %v5338 = vunpack.c.l.b16 %v5317
        %v5339 = vunpack.c.l.b16 %v5318
        %v5340 = vunpack.c.l.b16 %v5319
        %v5341 = vpack.c.b16 %v5334, %v5333
        %v5342 = vpack.c.b16 %v5336, %v5335
        %v5343 = vpack.c.b16 %v5338, %v5337
        %v5344 = vpack.c.b16 %v5340, %v5339
        %v5350 = vsel %vm820, %v5320, 0
        %5352 = vmatprep.subr.bf16.mxu0 0
        %5353 = vmatpush1.bf16.msra.mxu0 %v5341
        %5354 = vmatprep.subr.bf16.mxu0 0
        %5355 = vmatpush1.bf16.msra.mxu0 %v5342
        %5356 = vmatprep.subr.bf16.mxu0 0
        %5357 = vmatpush1.bf16.msra.mxu0 %v5343
        %5358 = vmatprep.subr.bf16.mxu0 0
        %5359 = vmatpush1.bf16.msra.mxu0 %v5344
        %5360 = vmatprep.subr.bf16.mxu0 0
        %5361 = vmatpush1.bf16.msra.mxu0 0
        %5362 = vmatprep.subr.bf16.mxu0 0
        %5363 = vmatpush1.bf16.msra.mxu0 0
        %5364 = vmatprep.subr.bf16.mxu0 0
        %5365 = vmatpush1.bf16.msra.mxu0 0
        %5366 = vmatprep.subr.bf16.mxu0 0
        %5367 = vmatpush1.bf16.msra.mxu0 0
        %5368 = vmatprep.subr.bf16.mxu0 0
        %5369 = vmatpush1.bf16.msra.mxu0 0
        %5370 = vmatprep.subr.bf16.mxu0 0
        %5371 = vmatpush1.bf16.msra.mxu0 0
        %5372 = vmatprep.subr.bf16.mxu0 0
        %5373 = vmatpush1.bf16.msra.mxu0 0
        %5374 = vmatprep.subr.bf16.mxu0 0
        %5375 = vmatpush1.bf16.msra.mxu0 0
        %5376 = vmatprep.subr.bf16.mxu0 0
        %5377 = vmatpush1.bf16.msra.mxu0 0
        %5378 = vmatprep.subr.bf16.mxu0 0
        %5379 = vmatpush1.bf16.msra.mxu0 0
        %5380 = vmatprep.subr.bf16.mxu0 0
        %5381 = vmatpush1.bf16.msra.mxu0 0
        %5382 = vmatprep.subr.bf16.mxu0 0
        %5383 = vmatpush1.bf16.msra.mxu0 0
        %5384 = vmatprep.mubr.bf16.mxu0 0
        %5385 = vmatmul.mubr.bf16.gmra.mrb[0].mxu0 %v5350
        %v5386 = vpop.f32.mrb[0].mxu0
        %v5387 = vadd.f32 %v5324, %v5386
        %v5388 = vpop.f32.mrb[0].mxu0
        %v5389 = vpop.f32.mrb[0].mxu0
        %v5390 = vpop.f32.mrb[0].mxu0
        %5391 = vdwg.mxu0
        %v5392 = vmul.f32 %v5387, 0.5
        %v5393 = vadd.f32 %v5211, %v5392
        %v5394 = vsel %vm648, %v5393, 0.0
        %5395 = vadd.xlane.f32.xlu0 %v5394
        %v5396 = vpop.xlane.xlu0 %5395
        %v5397 = vmul.f32 %v5396, %v652
        %v5398 = vsub.f32 %v5393, %v5397
        %v5399 = vmul.f32 %v5398, %v5398
        %v5400 = vsel %vm648, %v5399, 0.0
        %5401 = vadd.xlane.f32.xlu0 %v5400
        %v5402 = vpop.xlane.xlu0 %5401
        %v5403 = vmul.f32 %v5402, %v652
        %v5404 = vadd.f32 %v5403, 1e-05
        %v5405 = vrsqrt.pop %v5404
        %v5406 = vmul.f32 %v5398, %v5405
        %v5407 = vlaneseq
        %v5408 = vshrl.u32 %v5407, 7
        %v5409 = vsub.s32 4, %v5408
        %v5410 = vrot.slane %v5213, %v5409
        %v5411 = vmul.f32 %v5406, %v5410
        %v5412 = vlaneseq
        %v5413 = vshrl.u32 %v5412, 7
        %v5414 = vsub.s32 5, %v5413
        %v5415 = vrot.slane %v5213, %v5414
        %v5416 = vadd.f32 %v5411, %v5415
        %s5417 = scalar_lea.vmem %s7, 48
        %v5418 = vld [vmem:[%s5417] sm:$0xf]
        %v5419 = vld [vmem:[%s5417 + $0x4] sm:$0xf]
        %v5420 = vld [vmem:[%s5417 + $0x8] sm:$0xf]
        %v5421 = vld [vmem:[%s5417 + $0xc] sm:$0xf]
        %v5422 = vpack.c.bf16 %v5416, %v5416
        %v5423 = vlaneseq
        %v5424 = vshrl.u32 %v5423, 7
        %v5425 = vsub.s32 6, %v5424
        %v5426 = vrot.slane %v5213, %v5425
        %v5431 = vunpack.c.l.b16 %v5418
        %v5432 = vunpack.c.l.b16 %v5419
        %v5433 = vunpack.c.l.b16 %v5420
        %v5434 = vunpack.c.l.b16 %v5421
        %v5435 = vpack.c.b16 %v5432, %v5431
        %v5436 = vpack.c.b16 %v5434, %v5433
        %v5440 = vsel %vm648, %v5422, 0
        %5442 = vmatprep.subr.bf16.mxu0 0
        %5443 = vmatpush1.bf16.msra.mxu0 %v5435
        %5444 = vmatprep.subr.bf16.mxu0 0
        %5445 = vmatpush1.bf16.msra.mxu0 %v5436
        %5446 = vmatprep.subr.bf16.mxu0 0
        %5447 = vmatpush1.bf16.msra.mxu0 0
        %5448 = vmatprep.subr.bf16.mxu0 0
        %5449 = vmatpush1.bf16.msra.mxu0 0
        %5450 = vmatprep.subr.bf16.mxu0 0
        %5451 = vmatpush1.bf16.msra.mxu0 0
        %5452 = vmatprep.subr.bf16.mxu0 0
        %5453 = vmatpush1.bf16.msra.mxu0 0
        %5454 = vmatprep.subr.bf16.mxu0 0
        %5455 = vmatpush1.bf16.msra.mxu0 0
        %5456 = vmatprep.subr.bf16.mxu0 0
        %5457 = vmatpush1.bf16.msra.mxu0 0
        %5458 = vmatprep.subr.bf16.mxu0 0
        %5459 = vmatpush1.bf16.msra.mxu0 0
        %5460 = vmatprep.subr.bf16.mxu0 0
        %5461 = vmatpush1.bf16.msra.mxu0 0
        %5462 = vmatprep.subr.bf16.mxu0 0
        %5463 = vmatpush1.bf16.msra.mxu0 0
        %5464 = vmatprep.subr.bf16.mxu0 0
        %5465 = vmatpush1.bf16.msra.mxu0 0
        %5466 = vmatprep.subr.bf16.mxu0 0
        %5467 = vmatpush1.bf16.msra.mxu0 0
        %5468 = vmatprep.subr.bf16.mxu0 0
        %5469 = vmatpush1.bf16.msra.mxu0 0
        %5470 = vmatprep.subr.bf16.mxu0 0
        %5471 = vmatpush1.bf16.msra.mxu0 0
        %5472 = vmatprep.subr.bf16.mxu0 0
        %5473 = vmatpush1.bf16.msra.mxu0 0
        %5474 = vmatprep.mubr.bf16.mxu0 0
        %5475 = vmatmul.mubr.bf16.gmra.mrb[0].mxu0 %v5440
        %v5476 = vpop.f32.mrb[0].mxu0
        %v5477 = vadd.f32 %v5426, %v5476
        %v5478 = vpop.f32.mrb[0].mxu0
        %v5479 = vpop.f32.mrb[0].mxu0
        %v5480 = vpop.f32.mrb[0].mxu0
        %5481 = vdwg.mxu0
        %v5482 = vpack.c.bf16 %v5477, %v5477
        %5484 = vrot.lane.b32.xlu0 %v5482, 96
        %v5485 = vpop.permute.xlu0 %5484
        %v5487 = vsel %vm957, %v5482, 0
        %v5490 = vsel %vm957, %v5485, 0
        %5492 = vmatprep.subr.bf16.mxu0 0
        %5493 = vmatpush1.bf16.xpose.msra.mxu0 %v5490
        %5494 = vmatprep.subr.bf16.mxu0 0
        %5495 = vmatpush1.bf16.xpose.msra.mxu0 0
        %5496 = vmatprep.subr.bf16.mxu0 0
        %5497 = vmatpush1.bf16.xpose.msra.mxu0 0
        %5498 = vmatprep.subr.bf16.mxu0 0
        %5499 = vmatpush1.bf16.xpose.msra.mxu0 0
        %5500 = vmatprep.subr.bf16.mxu0 0
        %5501 = vmatpush1.bf16.xpose.msra.mxu0 0
        %5502 = vmatprep.subr.bf16.mxu0 0
        %5503 = vmatpush1.bf16.xpose.msra.mxu0 0
        %5504 = vmatprep.subr.bf16.mxu0 0
        %5505 = vmatpush1.bf16.xpose.msra.mxu0 0
        %5506 = vmatprep.subr.bf16.mxu0 0
        %5507 = vmatpush1.bf16.xpose.msra.mxu0 0
        %5508 = vmatprep.subr.bf16.mxu0 0
        %5509 = vmatpush1.bf16.xpose.msra.mxu0 0
        %5510 = vmatprep.subr.bf16.mxu0 0
        %5511 = vmatpush1.bf16.xpose.msra.mxu0 0
        %5512 = vmatprep.subr.bf16.mxu0 0
        %5513 = vmatpush1.bf16.xpose.msra.mxu0 0
        %5514 = vmatprep.subr.bf16.mxu0 0
        %5515 = vmatpush1.bf16.xpose.msra.mxu0 0
        %5516 = vmatprep.subr.bf16.mxu0 0
        %5517 = vmatpush1.bf16.xpose.msra.mxu0 0
        %5518 = vmatprep.subr.bf16.mxu0 0
        %5519 = vmatpush1.bf16.xpose.msra.mxu0 0
        %5520 = vmatprep.subr.bf16.mxu0 0
        %5521 = vmatpush1.bf16.xpose.msra.mxu0 0
        %5522 = vmatprep.subr.bf16.mxu0 0
        %5523 = vmatpush1.bf16.xpose.msra.mxu0 0
        %5524 = vmatprep.mubr.bf16.mxu0 0
        %5525 = vmatmul.mubr.bf16.gmra.mrb[0].mxu0 %v5487
        %v5526 = vpop.f32.mrb[0].mxu0
        %v5527 = vadd.f32 0.0, %v5526
        %v5528 = vpop.f32.mrb[0].mxu0
        %v5529 = vpop.f32.mrb[0].mxu0
        %v5530 = vpop.f32.mrb[0].mxu0
        %5531 = vdwg.mxu0
        %v5532 = vmul.f32 %v5527, 0.35355338
        %v5533 = vadd.f32 %v5532, %v673
        %v5534 = vsel %vm957, %v5533, -inf
        %5535 = vmax.xlane.f32.xlu0 %v5534
        %v5536 = vpop.xlane.xlu0 %5535
        %v5537 = vsub.f32 %v5533, %v5536
        %v5538 = vmul.f32 %v5537, 1.442695
        %v5539 = vpow.pop %v5538
        %v5540 = vsel %vm957, %v5539, 0.0
        %5541 = vadd.xlane.f32.xlu0 %v5540
        %v5542 = vpop.xlane.xlu0 %5541
        %v5543 = vrcp.pop %v5542
        %v5544 = vmul.f32 %v5539, %v5543
        %v5545 = vpack.c.bf16 %v5544, %v5544
        %5546 = vrot.lane.b32.xlu0 %v5482, 64
        %v5547 = vpop.permute.xlu0 %5546
        %v5549 = vsel %vm957, %v5545, 0
        %v5552 = vsel %vm1023, %v5547, 0
        %5554 = vmatprep.subr.bf16.mxu0 0
        %5555 = vmatpush1.bf16.msra.mxu0 %v5552
        %5556 = vmatprep.subr.bf16.mxu0 0
        %5557 = vmatpush1.bf16.msra.mxu0 0
        %5558 = vmatprep.subr.bf16.mxu0 0
        %5559 = vmatpush1.bf16.msra.mxu0 0
        %5560 = vmatprep.subr.bf16.mxu0 0
        %5561 = vmatpush1.bf16.msra.mxu0 0
        %5562 = vmatprep.subr.bf16.mxu0 0
        %5563 = vmatpush1.bf16.msra.mxu0 0
        %5564 = vmatprep.subr.bf16.mxu0 0
        %5565 = vmatpush1.bf16.msra.mxu0 0
        %5566 = vmatprep.subr.bf16.mxu0 0
        %5567 = vmatpush1.bf16.msra.mxu0 0
        %5568 = vmatprep.subr.bf16.mxu0 0
        %5569 = vmatpush1.bf16.msra.mxu0 0
        %5570 = vmatprep.subr.bf16.mxu0 0
        %5571 = vmatpush1.bf16.msra.mxu0 0
        %5572 = vmatprep.subr.bf16.mxu0 0
        %5573 = vmatpush1.bf16.msra.mxu0 0
        %5574 = vmatprep.subr.bf16.mxu0 0
        %5575 = vmatpush1.bf16.msra.mxu0 0
        %5576 = vmatprep.subr.bf16.mxu0 0
        %5577 = vmatpush1.bf16.msra.mxu0 0
        %5578 = vmatprep.subr.bf16.mxu0 0
        %5579 = vmatpush1.bf16.msra.mxu0 0
        %5580 = vmatprep.subr.bf16.mxu0 0
        %5581 = vmatpush1.bf16.msra.mxu0 0
        %5582 = vmatprep.subr.bf16.mxu0 0
        %5583 = vmatpush1.bf16.msra.mxu0 0
        %5584 = vmatprep.subr.bf16.mxu0 0
        %5585 = vmatpush1.bf16.msra.mxu0 0
        %5586 = vmatprep.mubr.bf16.mxu0 0
        %5587 = vmatmul.mubr.bf16.gmra.mrb[0].mxu0 %v5549
        %v5588 = vpop.f32.mrb[0].mxu0
        %v5589 = vadd.f32 0.0, %v5588
        %v5590 = vpop.f32.mrb[0].mxu0
        %v5591 = vpop.f32.mrb[0].mxu0
        %v5592 = vpop.f32.mrb[0].mxu0
        %5593 = vdwg.mxu0
        %v5594 = vpack.c.bf16 %v5589, %v5589
        %s5595 = scalar_lea.vmem %s8, 48
        %v5596 = vld [vmem:[%s5595] sm:$0xf]
        %5597 = vrot.lane.b32.xlu0 %v5482, 120
        %v5598 = vpop.permute.xlu0 %5597
        %5599 = vrot.lane.b32.xlu0 %v5482, 88
        %v5600 = vpop.permute.xlu0 %5599
        %v5602 = vsel %vm957, %v5598, 0
        %v5605 = vsel %vm957, %v5600, 0
        %5607 = vmatprep.subr.bf16.mxu0 0
        %5608 = vmatpush1.bf16.xpose.msra.mxu0 %v5605
        %5609 = vmatprep.subr.bf16.mxu0 0
        %5610 = vmatpush1.bf16.xpose.msra.mxu0 0
        %5611 = vmatprep.subr.bf16.mxu0 0
        %5612 = vmatpush1.bf16.xpose.msra.mxu0 0
        %5613 = vmatprep.subr.bf16.mxu0 0
        %5614 = vmatpush1.bf16.xpose.msra.mxu0 0
        %5615 = vmatprep.subr.bf16.mxu0 0
        %5616 = vmatpush1.bf16.xpose.msra.mxu0 0
        %5617 = vmatprep.subr.bf16.mxu0 0
        %5618 = vmatpush1.bf16.xpose.msra.mxu0 0
        %5619 = vmatprep.subr.bf16.mxu0 0
        %5620 = vmatpush1.bf16.xpose.msra.mxu0 0
        %5621 = vmatprep.subr.bf16.mxu0 0
        %5622 = vmatpush1.bf16.xpose.msra.mxu0 0
        %5623 = vmatprep.subr.bf16.mxu0 0
        %5624 = vmatpush1.bf16.xpose.msra.mxu0 0
        %5625 = vmatprep.subr.bf16.mxu0 0
        %5626 = vmatpush1.bf16.xpose.msra.mxu0 0
        %5627 = vmatprep.subr.bf16.mxu0 0
        %5628 = vmatpush1.bf16.xpose.msra.mxu0 0
        %5629 = vmatprep.subr.bf16.mxu0 0
        %5630 = vmatpush1.bf16.xpose.msra.mxu0 0
        %5631 = vmatprep.subr.bf16.mxu0 0
        %5632 = vmatpush1.bf16.xpose.msra.mxu0 0
        %5633 = vmatprep.subr.bf16.mxu0 0
        %5634 = vmatpush1.bf16.xpose.msra.mxu0 0
        %5635 = vmatprep.subr.bf16.mxu0 0
        %5636 = vmatpush1.bf16.xpose.msra.mxu0 0
        %5637 = vmatprep.subr.bf16.mxu0 0
        %5638 = vmatpush1.bf16.xpose.msra.mxu0 0
        %5639 = vmatprep.mubr.bf16.mxu0 0
        %5640 = vmatmul.mubr.bf16.gmra.mrb[0].mxu0 %v5602
        %v5641 = vpop.f32.mrb[0].mxu0
        %v5642 = vadd.f32 0.0, %v5641
        %v5643 = vpop.f32.mrb[0].mxu0
        %v5644 = vpop.f32.mrb[0].mxu0
        %v5645 = vpop.f32.mrb[0].mxu0
        %5646 = vdwg.mxu0
        %v5647 = vmul.f32 %v5642, 0.35355338
        %v5648 = vadd.f32 %v5647, %v673
        %v5649 = vsel %vm957, %v5648, -inf
        %5650 = vmax.xlane.f32.xlu0 %v5649
        %v5651 = vpop.xlane.xlu0 %5650
        %v5652 = vsub.f32 %v5648, %v5651
        %v5653 = vmul.f32 %v5652, 1.442695
        %v5654 = vpow.pop %v5653
        %v5655 = vsel %vm957, %v5654, 0.0
        %5656 = vadd.xlane.f32.xlu0 %v5655
        %v5657 = vpop.xlane.xlu0 %5656
        %v5658 = vrcp.pop %v5657
        %v5659 = vmul.f32 %v5654, %v5658
        %v5660 = vpack.c.bf16 %v5659, %v5659
        %5661 = vrot.lane.b32.xlu0 %v5482, 56
        %v5662 = vpop.permute.xlu0 %5661
        %v5664 = vsel %vm957, %v5660, 0
        %v5667 = vsel %vm1023, %v5662, 0
        %5669 = vmatprep.subr.bf16.mxu0 0
        %5670 = vmatpush1.bf16.msra.mxu0 %v5667
        %5671 = vmatprep.subr.bf16.mxu0 0
        %5672 = vmatpush1.bf16.msra.mxu0 0
        %5673 = vmatprep.subr.bf16.mxu0 0
        %5674 = vmatpush1.bf16.msra.mxu0 0
        %5675 = vmatprep.subr.bf16.mxu0 0
        %5676 = vmatpush1.bf16.msra.mxu0 0
        %5677 = vmatprep.subr.bf16.mxu0 0
        %5678 = vmatpush1.bf16.msra.mxu0 0
        %5679 = vmatprep.subr.bf16.mxu0 0
        %5680 = vmatpush1.bf16.msra.mxu0 0
        %5681 = vmatprep.subr.bf16.mxu0 0
        %5682 = vmatpush1.bf16.msra.mxu0 0
        %5683 = vmatprep.subr.bf16.mxu0 0
        %5684 = vmatpush1.bf16.msra.mxu0 0
        %5685 = vmatprep.subr.bf16.mxu0 0
        %5686 = vmatpush1.bf16.msra.mxu0 0
        %5687 = vmatprep.subr.bf16.mxu0 0
        %5688 = vmatpush1.bf16.msra.mxu0 0
        %5689 = vmatprep.subr.bf16.mxu0 0
        %5690 = vmatpush1.bf16.msra.mxu0 0
        %5691 = vmatprep.subr.bf16.mxu0 0
        %5692 = vmatpush1.bf16.msra.mxu0 0
        %5693 = vmatprep.subr.bf16.mxu0 0
        %5694 = vmatpush1.bf16.msra.mxu0 0
        %5695 = vmatprep.subr.bf16.mxu0 0
        %5696 = vmatpush1.bf16.msra.mxu0 0
        %5697 = vmatprep.subr.bf16.mxu0 0
        %5698 = vmatpush1.bf16.msra.mxu0 0
        %5699 = vmatprep.subr.bf16.mxu0 0
        %5700 = vmatpush1.bf16.msra.mxu0 0
        %5701 = vmatprep.mubr.bf16.mxu0 0
        %5702 = vmatmul.mubr.bf16.gmra.mrb[0].mxu0 %v5664
        %v5703 = vpop.f32.mrb[0].mxu0
        %v5704 = vadd.f32 0.0, %v5703
        %v5705 = vpop.f32.mrb[0].mxu0
        %v5706 = vpop.f32.mrb[0].mxu0
        %v5707 = vpop.f32.mrb[0].mxu0
        %5708 = vdwg.mxu0
        %v5709 = vpack.c.bf16 %v5704, %v5704
        %s5710 = scalar_lea.vmem %s8, 52
        %v5711 = vld [vmem:[%s5710] sm:$0xf]
        %v5713 = vsel %vm957, %v5709, 0
        %v5716 = vsel %vm1023, %v5711, 0
        %5718 = vmatprep.subr.bf16.mxu0 0
        %5719 = vmatpush1.bf16.msra.mxu0 %v5716
        %5720 = vmatprep.subr.bf16.mxu0 0
        %5721 = vmatpush1.bf16.msra.mxu0 0
        %5722 = vmatprep.subr.bf16.mxu0 0
        %5723 = vmatpush1.bf16.msra.mxu0 0
        %5724 = vmatprep.subr.bf16.mxu0 0
        %5725 = vmatpush1.bf16.msra.mxu0 0
        %5726 = vmatprep.subr.bf16.mxu0 0
        %5727 = vmatpush1.bf16.msra.mxu0 0
        %5728 = vmatprep.subr.bf16.mxu0 0
        %5729 = vmatpush1.bf16.msra.mxu0 0
        %5730 = vmatprep.subr.bf16.mxu0 0
        %5731 = vmatpush1.bf16.msra.mxu0 0
        %5732 = vmatprep.subr.bf16.mxu0 0
        %5733 = vmatpush1.bf16.msra.mxu0 0
        %5734 = vmatprep.subr.bf16.mxu0 0
        %5735 = vmatpush1.bf16.msra.mxu0 0
        %5736 = vmatprep.subr.bf16.mxu0 0
        %5737 = vmatpush1.bf16.msra.mxu0 0
        %5738 = vmatprep.subr.bf16.mxu0 0
        %5739 = vmatpush1.bf16.msra.mxu0 0
        %5740 = vmatprep.subr.bf16.mxu0 0
        %5741 = vmatpush1.bf16.msra.mxu0 0
        %5742 = vmatprep.subr.bf16.mxu0 0
        %5743 = vmatpush1.bf16.msra.mxu0 0
        %5744 = vmatprep.subr.bf16.mxu0 0
        %5745 = vmatpush1.bf16.msra.mxu0 0
        %5746 = vmatprep.subr.bf16.mxu0 0
        %5747 = vmatpush1.bf16.msra.mxu0 0
        %5748 = vmatprep.subr.bf16.mxu0 0
        %5749 = vmatpush1.bf16.msra.mxu0 0
        %5750 = vmatprep.mubr.bf16.mxu0 0
        %5751 = vmatmul.mubr.bf16.gmra.mrb[0].mxu0 %v5713
        %v5752 = vpop.f32.mrb[0].mxu0
        %v5753 = vadd.f32 0.0, %v5752
        %v5754 = vpop.f32.mrb[0].mxu0
        %v5755 = vpop.f32.mrb[0].mxu0
        %v5756 = vpop.f32.mrb[0].mxu0
        %5757 = vdwg.mxu0
        %v5759 = vsel %vm957, %v5594, 0
        %v5762 = vsel %vm1023, %v5596, 0
        %5764 = vmatprep.subr.bf16.mxu0 0
        %5765 = vmatpush1.bf16.msra.mxu0 %v5762
        %5766 = vmatprep.subr.bf16.mxu0 0
        %5767 = vmatpush1.bf16.msra.mxu0 0
        %5768 = vmatprep.subr.bf16.mxu0 0
        %5769 = vmatpush1.bf16.msra.mxu0 0
        %5770 = vmatprep.subr.bf16.mxu0 0
        %5771 = vmatpush1.bf16.msra.mxu0 0
        %5772 = vmatprep.subr.bf16.mxu0 0
        %5773 = vmatpush1.bf16.msra.mxu0 0
        %5774 = vmatprep.subr.bf16.mxu0 0
        %5775 = vmatpush1.bf16.msra.mxu0 0
        %5776 = vmatprep.subr.bf16.mxu0 0
        %5777 = vmatpush1.bf16.msra.mxu0 0
        %5778 = vmatprep.subr.bf16.mxu0 0
        %5779 = vmatpush1.bf16.msra.mxu0 0
        %5780 = vmatprep.subr.bf16.mxu0 0
        %5781 = vmatpush1.bf16.msra.mxu0 0
        %5782 = vmatprep.subr.bf16.mxu0 0
        %5783 = vmatpush1.bf16.msra.mxu0 0
        %5784 = vmatprep.subr.bf16.mxu0 0
        %5785 = vmatpush1.bf16.msra.mxu0 0
        %5786 = vmatprep.subr.bf16.mxu0 0
        %5787 = vmatpush1.bf16.msra.mxu0 0
        %5788 = vmatprep.subr.bf16.mxu0 0
        %5789 = vmatpush1.bf16.msra.mxu0 0
        %5790 = vmatprep.subr.bf16.mxu0 0
        %5791 = vmatpush1.bf16.msra.mxu0 0
        %5792 = vmatprep.subr.bf16.mxu0 0
        %5793 = vmatpush1.bf16.msra.mxu0 0
        %5794 = vmatprep.subr.bf16.mxu0 0
        %5795 = vmatpush1.bf16.msra.mxu0 0
        %5796 = vmatprep.mubr.bf16.mxu0 0
        %5797 = vmatmul.mubr.bf16.gmra.mrb[0].mxu0 %v5759
        %v5798 = vpop.f32.mrb[0].mxu0
        %v5799 = vadd.f32 %v5753, %v5798
        %v5800 = vpop.f32.mrb[0].mxu0
        %v5801 = vpop.f32.mrb[0].mxu0
        %v5802 = vpop.f32.mrb[0].mxu0
        %5803 = vdwg.mxu0
        %5804 = vrot.lane.b32.xlu0 %v5482, 112
        %v5805 = vpop.permute.xlu0 %5804
        %5806 = vrot.lane.b32.xlu0 %v5482, 80
        %v5807 = vpop.permute.xlu0 %5806
        %v5809 = vsel %vm957, %v5805, 0
        %v5812 = vsel %vm957, %v5807, 0
        %5814 = vmatprep.subr.bf16.mxu0 0
        %5815 = vmatpush1.bf16.xpose.msra.mxu0 %v5812
        %5816 = vmatprep.subr.bf16.mxu0 0
        %5817 = vmatpush1.bf16.xpose.msra.mxu0 0
        %5818 = vmatprep.subr.bf16.mxu0 0
        %5819 = vmatpush1.bf16.xpose.msra.mxu0 0
        %5820 = vmatprep.subr.bf16.mxu0 0
        %5821 = vmatpush1.bf16.xpose.msra.mxu0 0
        %5822 = vmatprep.subr.bf16.mxu0 0
        %5823 = vmatpush1.bf16.xpose.msra.mxu0 0
        %5824 = vmatprep.subr.bf16.mxu0 0
        %5825 = vmatpush1.bf16.xpose.msra.mxu0 0
        %5826 = vmatprep.subr.bf16.mxu0 0
        %5827 = vmatpush1.bf16.xpose.msra.mxu0 0
        %5828 = vmatprep.subr.bf16.mxu0 0
        %5829 = vmatpush1.bf16.xpose.msra.mxu0 0
        %5830 = vmatprep.subr.bf16.mxu0 0
        %5831 = vmatpush1.bf16.xpose.msra.mxu0 0
        %5832 = vmatprep.subr.bf16.mxu0 0
        %5833 = vmatpush1.bf16.xpose.msra.mxu0 0
        %5834 = vmatprep.subr.bf16.mxu0 0
        %5835 = vmatpush1.bf16.xpose.msra.mxu0 0
        %5836 = vmatprep.subr.bf16.mxu0 0
        %5837 = vmatpush1.bf16.xpose.msra.mxu0 0
        %5838 = vmatprep.subr.bf16.mxu0 0
        %5839 = vmatpush1.bf16.xpose.msra.mxu0 0
        %5840 = vmatprep.subr.bf16.mxu0 0
        %5841 = vmatpush1.bf16.xpose.msra.mxu0 0
        %5842 = vmatprep.subr.bf16.mxu0 0
        %5843 = vmatpush1.bf16.xpose.msra.mxu0 0
        %5844 = vmatprep.subr.bf16.mxu0 0
        %5845 = vmatpush1.bf16.xpose.msra.mxu0 0
        %5846 = vmatprep.mubr.bf16.mxu0 0
        %5847 = vmatmul.mubr.bf16.gmra.mrb[0].mxu0 %v5809
        %v5848 = vpop.f32.mrb[0].mxu0
        %v5849 = vadd.f32 0.0, %v5848
        %v5850 = vpop.f32.mrb[0].mxu0
        %v5851 = vpop.f32.mrb[0].mxu0
        %v5852 = vpop.f32.mrb[0].mxu0
        %5853 = vdwg.mxu0
        %v5854 = vmul.f32 %v5849, 0.35355338
        %v5855 = vadd.f32 %v5854, %v673
        %v5856 = vsel %vm957, %v5855, -inf
        %5857 = vmax.xlane.f32.xlu0 %v5856
        %v5858 = vpop.xlane.xlu0 %5857
        %v5859 = vsub.f32 %v5855, %v5858
        %v5860 = vmul.f32 %v5859, 1.442695
        %v5861 = vpow.pop %v5860
        %v5862 = vsel %vm957, %v5861, 0.0
        %5863 = vadd.xlane.f32.xlu0 %v5862
        %v5864 = vpop.xlane.xlu0 %5863
        %v5865 = vrcp.pop %v5864
        %v5866 = vmul.f32 %v5861, %v5865
        %v5867 = vpack.c.bf16 %v5866, %v5866
        %5868 = vrot.lane.b32.xlu0 %v5482, 48
        %v5869 = vpop.permute.xlu0 %5868
        %v5871 = vsel %vm957, %v5867, 0
        %v5874 = vsel %vm1023, %v5869, 0
        %5876 = vmatprep.subr.bf16.mxu0 0
        %5877 = vmatpush1.bf16.msra.mxu0 %v5874
        %5878 = vmatprep.subr.bf16.mxu0 0
        %5879 = vmatpush1.bf16.msra.mxu0 0
        %5880 = vmatprep.subr.bf16.mxu0 0
        %5881 = vmatpush1.bf16.msra.mxu0 0
        %5882 = vmatprep.subr.bf16.mxu0 0
        %5883 = vmatpush1.bf16.msra.mxu0 0
        %5884 = vmatprep.subr.bf16.mxu0 0
        %5885 = vmatpush1.bf16.msra.mxu0 0
        %5886 = vmatprep.subr.bf16.mxu0 0
        %5887 = vmatpush1.bf16.msra.mxu0 0
        %5888 = vmatprep.subr.bf16.mxu0 0
        %5889 = vmatpush1.bf16.msra.mxu0 0
        %5890 = vmatprep.subr.bf16.mxu0 0
        %5891 = vmatpush1.bf16.msra.mxu0 0
        %5892 = vmatprep.subr.bf16.mxu0 0
        %5893 = vmatpush1.bf16.msra.mxu0 0
        %5894 = vmatprep.subr.bf16.mxu0 0
        %5895 = vmatpush1.bf16.msra.mxu0 0
        %5896 = vmatprep.subr.bf16.mxu0 0
        %5897 = vmatpush1.bf16.msra.mxu0 0
        %5898 = vmatprep.subr.bf16.mxu0 0
        %5899 = vmatpush1.bf16.msra.mxu0 0
        %5900 = vmatprep.subr.bf16.mxu0 0
        %5901 = vmatpush1.bf16.msra.mxu0 0
        %5902 = vmatprep.subr.bf16.mxu0 0
        %5903 = vmatpush1.bf16.msra.mxu0 0
        %5904 = vmatprep.subr.bf16.mxu0 0
        %5905 = vmatpush1.bf16.msra.mxu0 0
        %5906 = vmatprep.subr.bf16.mxu0 0
        %5907 = vmatpush1.bf16.msra.mxu0 0
        %5908 = vmatprep.mubr.bf16.mxu0 0
        %5909 = vmatmul.mubr.bf16.gmra.mrb[0].mxu0 %v5871
        %v5910 = vpop.f32.mrb[0].mxu0
        %v5911 = vadd.f32 0.0, %v5910
        %v5912 = vpop.f32.mrb[0].mxu0
        %v5913 = vpop.f32.mrb[0].mxu0
        %v5914 = vpop.f32.mrb[0].mxu0
        %5915 = vdwg.mxu0
        %v5916 = vpack.c.bf16 %v5911, %v5911
        %s5917 = scalar_lea.vmem %s8, 56
        %v5918 = vld [vmem:[%s5917] sm:$0xf]
        %v5920 = vsel %vm957, %v5916, 0
        %v5923 = vsel %vm1023, %v5918, 0
        %5925 = vmatprep.subr.bf16.mxu0 0
        %5926 = vmatpush1.bf16.msra.mxu0 %v5923
        %5927 = vmatprep.subr.bf16.mxu0 0
        %5928 = vmatpush1.bf16.msra.mxu0 0
        %5929 = vmatprep.subr.bf16.mxu0 0
        %5930 = vmatpush1.bf16.msra.mxu0 0
        %5931 = vmatprep.subr.bf16.mxu0 0
        %5932 = vmatpush1.bf16.msra.mxu0 0
        %5933 = vmatprep.subr.bf16.mxu0 0
        %5934 = vmatpush1.bf16.msra.mxu0 0
        %5935 = vmatprep.subr.bf16.mxu0 0
        %5936 = vmatpush1.bf16.msra.mxu0 0
        %5937 = vmatprep.subr.bf16.mxu0 0
        %5938 = vmatpush1.bf16.msra.mxu0 0
        %5939 = vmatprep.subr.bf16.mxu0 0
        %5940 = vmatpush1.bf16.msra.mxu0 0
        %5941 = vmatprep.subr.bf16.mxu0 0
        %5942 = vmatpush1.bf16.msra.mxu0 0
        %5943 = vmatprep.subr.bf16.mxu0 0
        %5944 = vmatpush1.bf16.msra.mxu0 0
        %5945 = vmatprep.subr.bf16.mxu0 0
        %5946 = vmatpush1.bf16.msra.mxu0 0
        %5947 = vmatprep.subr.bf16.mxu0 0
        %5948 = vmatpush1.bf16.msra.mxu0 0
        %5949 = vmatprep.subr.bf16.mxu0 0
        %5950 = vmatpush1.bf16.msra.mxu0 0
        %5951 = vmatprep.subr.bf16.mxu0 0
        %5952 = vmatpush1.bf16.msra.mxu0 0
        %5953 = vmatprep.subr.bf16.mxu0 0
        %5954 = vmatpush1.bf16.msra.mxu0 0
        %5955 = vmatprep.subr.bf16.mxu0 0
        %5956 = vmatpush1.bf16.msra.mxu0 0
        %5957 = vmatprep.mubr.bf16.mxu0 0
        %5958 = vmatmul.mubr.bf16.gmra.mrb[0].mxu0 %v5920
        %v5959 = vpop.f32.mrb[0].mxu0
        %v5960 = vadd.f32 0.0, %v5959
        %v5961 = vpop.f32.mrb[0].mxu0
        %v5962 = vpop.f32.mrb[0].mxu0
        %v5963 = vpop.f32.mrb[0].mxu0
        %5964 = vdwg.mxu0
        %v5965 = vadd.f32 %v5799, %v5960
        %5966 = vrot.lane.b32.xlu0 %v5482, 104
        %v5967 = vpop.permute.xlu0 %5966
        %5968 = vrot.lane.b32.xlu0 %v5482, 72
        %v5969 = vpop.permute.xlu0 %5968
        %v5971 = vsel %vm957, %v5967, 0
        %v5974 = vsel %vm957, %v5969, 0
        %5976 = vmatprep.subr.bf16.mxu0 0
        %5977 = vmatpush1.bf16.xpose.msra.mxu0 %v5974
        %5978 = vmatprep.subr.bf16.mxu0 0
        %5979 = vmatpush1.bf16.xpose.msra.mxu0 0
        %5980 = vmatprep.subr.bf16.mxu0 0
        %5981 = vmatpush1.bf16.xpose.msra.mxu0 0
        %5982 = vmatprep.subr.bf16.mxu0 0
        %5983 = vmatpush1.bf16.xpose.msra.mxu0 0
        %5984 = vmatprep.subr.bf16.mxu0 0
        %5985 = vmatpush1.bf16.xpose.msra.mxu0 0
        %5986 = vmatprep.subr.bf16.mxu0 0
        %5987 = vmatpush1.bf16.xpose.msra.mxu0 0
        %5988 = vmatprep.subr.bf16.mxu0 0
        %5989 = vmatpush1.bf16.xpose.msra.mxu0 0
        %5990 = vmatprep.subr.bf16.mxu0 0
        %5991 = vmatpush1.bf16.xpose.msra.mxu0 0
        %5992 = vmatprep.subr.bf16.mxu0 0
        %5993 = vmatpush1.bf16.xpose.msra.mxu0 0
        %5994 = vmatprep.subr.bf16.mxu0 0
        %5995 = vmatpush1.bf16.xpose.msra.mxu0 0
        %5996 = vmatprep.subr.bf16.mxu0 0
        %5997 = vmatpush1.bf16.xpose.msra.mxu0 0
        %5998 = vmatprep.subr.bf16.mxu0 0
        %5999 = vmatpush1.bf16.xpose.msra.mxu0 0
        %6000 = vmatprep.subr.bf16.mxu0 0
        %6001 = vmatpush1.bf16.xpose.msra.mxu0 0
        %6002 = vmatprep.subr.bf16.mxu0 0
        %6003 = vmatpush1.bf16.xpose.msra.mxu0 0
        %6004 = vmatprep.subr.bf16.mxu0 0
        %6005 = vmatpush1.bf16.xpose.msra.mxu0 0
        %6006 = vmatprep.subr.bf16.mxu0 0
        %6007 = vmatpush1.bf16.xpose.msra.mxu0 0
        %6008 = vmatprep.mubr.bf16.mxu0 0
        %6009 = vmatmul.mubr.bf16.gmra.mrb[0].mxu0 %v5971
        %v6010 = vpop.f32.mrb[0].mxu0
        %v6011 = vadd.f32 0.0, %v6010
        %v6012 = vpop.f32.mrb[0].mxu0
        %v6013 = vpop.f32.mrb[0].mxu0
        %v6014 = vpop.f32.mrb[0].mxu0
        %6015 = vdwg.mxu0
        %v6016 = vmul.f32 %v6011, 0.35355338
        %v6017 = vadd.f32 %v6016, %v673
        %v6018 = vsel %vm957, %v6017, -inf
        %6019 = vmax.xlane.f32.xlu0 %v6018
        %v6020 = vpop.xlane.xlu0 %6019
        %v6021 = vsub.f32 %v6017, %v6020
        %v6022 = vmul.f32 %v6021, 1.442695
        %v6023 = vpow.pop %v6022
        %v6024 = vsel %vm957, %v6023, 0.0
        %6025 = vadd.xlane.f32.xlu0 %v6024
        %v6026 = vpop.xlane.xlu0 %6025
        %v6027 = vrcp.pop %v6026
        %v6028 = vmul.f32 %v6023, %v6027
        %v6029 = vpack.c.bf16 %v6028, %v6028
        %6030 = vrot.lane.b32.xlu0 %v5482, 40
        %v6031 = vpop.permute.xlu0 %6030
        %v6033 = vsel %vm957, %v6029, 0
        %v6036 = vsel %vm1023, %v6031, 0
        %6038 = vmatprep.subr.bf16.mxu0 0
        %6039 = vmatpush1.bf16.msra.mxu0 %v6036
        %6040 = vmatprep.subr.bf16.mxu0 0
        %6041 = vmatpush1.bf16.msra.mxu0 0
        %6042 = vmatprep.subr.bf16.mxu0 0
        %6043 = vmatpush1.bf16.msra.mxu0 0
        %6044 = vmatprep.subr.bf16.mxu0 0
        %6045 = vmatpush1.bf16.msra.mxu0 0
        %6046 = vmatprep.subr.bf16.mxu0 0
        %6047 = vmatpush1.bf16.msra.mxu0 0
        %6048 = vmatprep.subr.bf16.mxu0 0
        %6049 = vmatpush1.bf16.msra.mxu0 0
        %6050 = vmatprep.subr.bf16.mxu0 0
        %6051 = vmatpush1.bf16.msra.mxu0 0
        %6052 = vmatprep.subr.bf16.mxu0 0
        %6053 = vmatpush1.bf16.msra.mxu0 0
        %6054 = vmatprep.subr.bf16.mxu0 0
        %6055 = vmatpush1.bf16.msra.mxu0 0
        %6056 = vmatprep.subr.bf16.mxu0 0
        %6057 = vmatpush1.bf16.msra.mxu0 0
        %6058 = vmatprep.subr.bf16.mxu0 0
        %6059 = vmatpush1.bf16.msra.mxu0 0
        %6060 = vmatprep.subr.bf16.mxu0 0
        %6061 = vmatpush1.bf16.msra.mxu0 0
        %6062 = vmatprep.subr.bf16.mxu0 0
        %6063 = vmatpush1.bf16.msra.mxu0 0
        %6064 = vmatprep.subr.bf16.mxu0 0
        %6065 = vmatpush1.bf16.msra.mxu0 0
        %6066 = vmatprep.subr.bf16.mxu0 0
        %6067 = vmatpush1.bf16.msra.mxu0 0
        %6068 = vmatprep.subr.bf16.mxu0 0
        %6069 = vmatpush1.bf16.msra.mxu0 0
        %6070 = vmatprep.mubr.bf16.mxu0 0
        %6071 = vmatmul.mubr.bf16.gmra.mrb[0].mxu0 %v6033
        %v6072 = vpop.f32.mrb[0].mxu0
        %v6073 = vadd.f32 0.0, %v6072
        %v6074 = vpop.f32.mrb[0].mxu0
        %v6075 = vpop.f32.mrb[0].mxu0
        %v6076 = vpop.f32.mrb[0].mxu0
        %6077 = vdwg.mxu0
        %v6078 = vpack.c.bf16 %v6073, %v6073
        %s6079 = scalar_lea.vmem %s8, 60
        %v6080 = vld [vmem:[%s6079] sm:$0xf]
        %v6082 = vsel %vm957, %v6078, 0
        %v6085 = vsel %vm1023, %v6080, 0
        %6087 = vmatprep.subr.bf16.mxu0 0
        %6088 = vmatpush1.bf16.msra.mxu0 %v6085
        %6089 = vmatprep.subr.bf16.mxu0 0
        %6090 = vmatpush1.bf16.msra.mxu0 0
        %6091 = vmatprep.subr.bf16.mxu0 0
        %6092 = vmatpush1.bf16.msra.mxu0 0
        %6093 = vmatprep.subr.bf16.mxu0 0
        %6094 = vmatpush1.bf16.msra.mxu0 0
        %6095 = vmatprep.subr.bf16.mxu0 0
        %6096 = vmatpush1.bf16.msra.mxu0 0
        %6097 = vmatprep.subr.bf16.mxu0 0
        %6098 = vmatpush1.bf16.msra.mxu0 0
        %6099 = vmatprep.subr.bf16.mxu0 0
        %6100 = vmatpush1.bf16.msra.mxu0 0
        %6101 = vmatprep.subr.bf16.mxu0 0
        %6102 = vmatpush1.bf16.msra.mxu0 0
        %6103 = vmatprep.subr.bf16.mxu0 0
        %6104 = vmatpush1.bf16.msra.mxu0 0
        %6105 = vmatprep.subr.bf16.mxu0 0
        %6106 = vmatpush1.bf16.msra.mxu0 0
        %6107 = vmatprep.subr.bf16.mxu0 0
        %6108 = vmatpush1.bf16.msra.mxu0 0
        %6109 = vmatprep.subr.bf16.mxu0 0
        %6110 = vmatpush1.bf16.msra.mxu0 0
        %6111 = vmatprep.subr.bf16.mxu0 0
        %6112 = vmatpush1.bf16.msra.mxu0 0
        %6113 = vmatprep.subr.bf16.mxu0 0
        %6114 = vmatpush1.bf16.msra.mxu0 0
        %6115 = vmatprep.subr.bf16.mxu0 0
        %6116 = vmatpush1.bf16.msra.mxu0 0
        %6117 = vmatprep.subr.bf16.mxu0 0
        %6118 = vmatpush1.bf16.msra.mxu0 0
        %6119 = vmatprep.mubr.bf16.mxu0 0
        %6120 = vmatmul.mubr.bf16.gmra.mrb[0].mxu0 %v6082
        %v6121 = vpop.f32.mrb[0].mxu0
        %v6122 = vadd.f32 0.0, %v6121
        %v6123 = vpop.f32.mrb[0].mxu0
        %v6124 = vpop.f32.mrb[0].mxu0
        %v6125 = vpop.f32.mrb[0].mxu0
        %6126 = vdwg.mxu0
        %v6127 = vadd.f32 %v5965, %v6122
        %v6128 = vadd.f32 %v5393, %v6127
        %v6129 = vlaneseq
        %v6130 = vshrl.u32 %v6129, 7
        %v6131 = vsub.s32 7, %v6130
        %v6132 = vrot.slane %v5213, %v6131
        %v6133 = vadd.f32 %v6128, %v6132
        %v6134 = vsel %vm648, %v6133, 0.0
        %6135 = vadd.xlane.f32.xlu0 %v6134
        %v6136 = vpop.xlane.xlu0 %6135
        %v6137 = vmul.f32 %v6136, %v652
        %v6138 = vsub.f32 %v6133, %v6137
        %v6139 = vmul.f32 %v6138, %v6138
        %v6140 = vsel %vm648, %v6139, 0.0
        %6141 = vadd.xlane.f32.xlu0 %v6140
        %v6142 = vpop.xlane.xlu0 %6141
        %v6143 = vmul.f32 %v6142, %v652
        %v6144 = vadd.f32 %v6143, 1e-05
        %v6145 = vrsqrt.pop %v6144
        %v6146 = vmul.f32 %v6138, %v6145
        %v6147 = vlaneseq
        %v6148 = vshrl.u32 %v6147, 7
        %v6149 = vsub.s32 0, %v6148
        %v6150 = vrot.slane %v5214, %v6149
        %v6151 = vmul.f32 %v6146, %v6150
        %v6152 = vlaneseq
        %v6153 = vshrl.u32 %v6152, 7
        %v6154 = vsub.s32 1, %v6153
        %v6155 = vrot.slane %v5214, %v6154
        %v6156 = vadd.f32 %v6151, %v6155
        %s6157 = scalar_lea.vmem %s9, 48
        %v6158 = vld [vmem:[%s6157] sm:$0xf]
        %v6159 = vld [vmem:[%s6157 + $0x4] sm:$0xf]
        %v6160 = vld [vmem:[%s6157 + $0x8] sm:$0xf]
        %v6161 = vld [vmem:[%s6157 + $0xc] sm:$0xf]
        %v6162 = vpack.c.bf16 %v6156, %v6156
        %v6163 = vlaneseq
        %v6164 = vshrl.u32 %v6163, 7
        %v6165 = vsub.s32 2, %v6164
        %v6166 = vrot.slane %v5214, %v6165
        %v6171 = vunpack.c.l.b16 %v6158
        %v6172 = vunpack.c.l.b16 %v6159
        %v6173 = vunpack.c.l.b16 %v6160
        %v6174 = vunpack.c.l.b16 %v6161
        %v6175 = vpack.c.b16 %v6172, %v6171
        %v6176 = vpack.c.b16 %v6174, %v6173
        %v6180 = vsel %vm648, %v6162, 0
        %6182 = vmatprep.subr.bf16.mxu0 0
        %6183 = vmatpush1.bf16.msra.mxu0 %v6175
        %6184 = vmatprep.subr.bf16.mxu0 0
        %6185 = vmatpush1.bf16.msra.mxu0 %v6176
        %6186 = vmatprep.subr.bf16.mxu0 0
        %6187 = vmatpush1.bf16.msra.mxu0 0
        %6188 = vmatprep.subr.bf16.mxu0 0
        %6189 = vmatpush1.bf16.msra.mxu0 0
        %6190 = vmatprep.subr.bf16.mxu0 0
        %6191 = vmatpush1.bf16.msra.mxu0 0
        %6192 = vmatprep.subr.bf16.mxu0 0
        %6193 = vmatpush1.bf16.msra.mxu0 0
        %6194 = vmatprep.subr.bf16.mxu0 0
        %6195 = vmatpush1.bf16.msra.mxu0 0
        %6196 = vmatprep.subr.bf16.mxu0 0
        %6197 = vmatpush1.bf16.msra.mxu0 0
        %6198 = vmatprep.subr.bf16.mxu0 0
        %6199 = vmatpush1.bf16.msra.mxu0 0
        %6200 = vmatprep.subr.bf16.mxu0 0
        %6201 = vmatpush1.bf16.msra.mxu0 0
        %6202 = vmatprep.subr.bf16.mxu0 0
        %6203 = vmatpush1.bf16.msra.mxu0 0
        %6204 = vmatprep.subr.bf16.mxu0 0
        %6205 = vmatpush1.bf16.msra.mxu0 0
        %6206 = vmatprep.subr.bf16.mxu0 0
        %6207 = vmatpush1.bf16.msra.mxu0 0
        %6208 = vmatprep.subr.bf16.mxu0 0
        %6209 = vmatpush1.bf16.msra.mxu0 0
        %6210 = vmatprep.subr.bf16.mxu0 0
        %6211 = vmatpush1.bf16.msra.mxu0 0
        %6212 = vmatprep.subr.bf16.mxu0 0
        %6213 = vmatpush1.bf16.msra.mxu0 0
        %6214 = vmatprep.mubr.bf16.mxu0 0
        %6215 = vmatmul.mubr.bf16.gmra.mrb[0].mxu0 %v6180
        %v6216 = vpop.f32.mrb[0].mxu0
        %v6217 = vadd.f32 %v6166, %v6216
        %v6218 = vpop.f32.mrb[0].mxu0
        %v6219 = vpop.f32.mrb[0].mxu0
        %v6220 = vpop.f32.mrb[0].mxu0
        %6221 = vdwg.mxu0
        %s6222 = scalar_lea.vmem %s10, 48
        %v6223 = vld [vmem:[%s6222] sm:$0xf]
        %v6224 = vld [vmem:[%s6222 + $0x4] sm:$0xf]
        %v6225 = vld [vmem:[%s6222 + $0x8] sm:$0xf]
        %v6226 = vld [vmem:[%s6222 + $0xc] sm:$0xf]
        %v6227 = vlaneseq
        %v6228 = vshrl.u32 %v6227, 7
        %v6229 = vsub.s32 3, %v6228
        %v6230 = vrot.slane %v5214, %v6229
        %v6235 = vunpack.c.l.b16 %v6223
        %v6236 = vunpack.c.l.b16 %v6224
        %v6237 = vunpack.c.l.b16 %v6225
        %v6238 = vunpack.c.l.b16 %v6226
        %v6239 = vpack.c.b16 %v6236, %v6235
        %v6240 = vpack.c.b16 %v6238, %v6237
        %6243 = vmatprep.subr.bf16.mxu0 0
        %6244 = vmatpush1.bf16.msra.mxu0 %v6239
        %6245 = vmatprep.subr.bf16.mxu0 0
        %6246 = vmatpush1.bf16.msra.mxu0 %v6240
        %6247 = vmatprep.subr.bf16.mxu0 0
        %6248 = vmatpush1.bf16.msra.mxu0 0
        %6249 = vmatprep.subr.bf16.mxu0 0
        %6250 = vmatpush1.bf16.msra.mxu0 0
        %6251 = vmatprep.subr.bf16.mxu0 0
        %6252 = vmatpush1.bf16.msra.mxu0 0
        %6253 = vmatprep.subr.bf16.mxu0 0
        %6254 = vmatpush1.bf16.msra.mxu0 0
        %6255 = vmatprep.subr.bf16.mxu0 0
        %6256 = vmatpush1.bf16.msra.mxu0 0
        %6257 = vmatprep.subr.bf16.mxu0 0
        %6258 = vmatpush1.bf16.msra.mxu0 0
        %6259 = vmatprep.subr.bf16.mxu0 0
        %6260 = vmatpush1.bf16.msra.mxu0 0
        %6261 = vmatprep.subr.bf16.mxu0 0
        %6262 = vmatpush1.bf16.msra.mxu0 0
        %6263 = vmatprep.subr.bf16.mxu0 0
        %6264 = vmatpush1.bf16.msra.mxu0 0
        %6265 = vmatprep.subr.bf16.mxu0 0
        %6266 = vmatpush1.bf16.msra.mxu0 0
        %6267 = vmatprep.subr.bf16.mxu0 0
        %6268 = vmatpush1.bf16.msra.mxu0 0
        %6269 = vmatprep.subr.bf16.mxu0 0
        %6270 = vmatpush1.bf16.msra.mxu0 0
        %6271 = vmatprep.subr.bf16.mxu0 0
        %6272 = vmatpush1.bf16.msra.mxu0 0
        %6273 = vmatprep.subr.bf16.mxu0 0
        %6274 = vmatpush1.bf16.msra.mxu0 0
        %6275 = vmatprep.mubr.bf16.mxu0 0
        %6276 = vmatmul.mubr.bf16.gmra.mrb[0].mxu0 %v6180
        %v6277 = vpop.f32.mrb[0].mxu0
        %v6278 = vadd.f32 %v6230, %v6277
        %v6279 = vpop.f32.mrb[0].mxu0
        %v6280 = vpop.f32.mrb[0].mxu0
        %v6281 = vpop.f32.mrb[0].mxu0
        %6282 = vdwg.mxu0
        %v6283 = vxor.u32 %v6278, 2147483648
        %v6284 = vmul.f32 %v6283, 1.442695
        %v6285 = vpow.pop %v6284
        %v6286 = vadd.f32 %v6285, 1.0
        %v6287 = vrcp.pop %v6286
        %v6288 = vmul.f32 1.0, %v6287
        %v6289 = vmul.f32 %v6217, %v6288
        %v6290 = vlaneseq
        %v6291 = vshrl.u32 %v6290, 7
        %v6292 = vsub.s32 4, %v6291
        %v6293 = vrot.slane %v5215, %v6292
        %v6294 = vmul.f32 %v6289, %v6293
        %6295 = vmatprep.subr.mxu0 0.0
        %6296 = vmatpush1.msra.mxu0 %v6289
        %6297 = vmatprep.subr.mxu0 0.0
        %6298 = vmatpush1.msra.mxu0 0.0
        %6299 = vmatprep.subr.mxu0 0.0
        %6300 = vmatpush1.msra.mxu0 0.0
        %6301 = vmatprep.subr.mxu0 0.0
        %6302 = vmatpush1.msra.mxu0 0.0
        %6303 = vmatprep.subr.mxu0 0.0
        %6304 = vmatpush1.msra.mxu0 0.0
        %6305 = vmatprep.subr.mxu0 0.0
        %6306 = vmatpush1.msra.mxu0 0.0
        %6307 = vmatprep.subr.mxu0 0.0
        %6308 = vmatpush1.msra.mxu0 0.0
        %6309 = vmatprep.subr.mxu0 0.0
        %6310 = vmatpush1.msra.mxu0 0.0
        %6311 = vmatprep.subr.mxu0 0.0
        %6312 = vmatpush1.msra.mxu0 0.0
        %6313 = vmatprep.subr.mxu0 0.0
        %6314 = vmatpush1.msra.mxu0 0.0
        %6315 = vmatprep.subr.mxu0 0.0
        %6316 = vmatpush1.msra.mxu0 0.0
        %6317 = vmatprep.subr.mxu0 0.0
        %6318 = vmatpush1.msra.mxu0 0.0
        %6319 = vmatprep.subr.mxu0 0.0
        %6320 = vmatpush1.msra.mxu0 0.0
        %6321 = vmatprep.subr.mxu0 0.0
        %6322 = vmatpush1.msra.mxu0 0.0
        %6323 = vmatprep.subr.mxu0 0.0
        %6324 = vmatpush1.msra.mxu0 0.0
        %6325 = vmatprep.subr.mxu0 0.0
        %6326 = vmatpush1.msra.mxu0 0.0
        %6327 = vmatprep.subr.mxu0 0.0
        %6328 = vmatpush1.msra.mxu0 0.0
        %6329 = vmatprep.subr.mxu0 0.0
        %6330 = vmatpush1.msra.mxu0 0.0
        %6331 = vmatprep.subr.mxu0 0.0
        %6332 = vmatpush1.msra.mxu0 0.0
        %6333 = vmatprep.subr.mxu0 0.0
        %6334 = vmatpush1.msra.mxu0 0.0
        %6335 = vmatprep.subr.mxu0 0.0
        %6336 = vmatpush1.msra.mxu0 0.0
        %6337 = vmatprep.subr.mxu0 0.0
        %6338 = vmatpush1.msra.mxu0 0.0
        %6339 = vmatprep.subr.mxu0 0.0
        %6340 = vmatpush1.msra.mxu0 0.0
        %6341 = vmatprep.subr.mxu0 0.0
        %6342 = vmatpush1.msra.mxu0 0.0
        %6343 = vmatprep.subr.mxu0 0.0
        %6344 = vmatpush1.msra.mxu0 0.0
        %6345 = vmatprep.subr.mxu0 0.0
        %6346 = vmatpush1.msra.mxu0 0.0
        %6347 = vmatprep.subr.mxu0 0.0
        %6348 = vmatpush1.msra.mxu0 0.0
        %6349 = vmatprep.subr.mxu0 0.0
        %6350 = vmatpush1.msra.mxu0 0.0
        %6351 = vmatprep.subr.mxu0 0.0
        %6352 = vmatpush1.msra.mxu0 0.0
        %6353 = vmatprep.subr.mxu0 0.0
        %6354 = vmatpush1.msra.mxu0 0.0
        %6355 = vmatprep.subr.mxu0 0.0
        %6356 = vmatpush1.msra.mxu0 0.0
        %6357 = vmatprep.subr.mxu0 0.0
        %6358 = vmatpush1.msra.mxu0 0.0
        %6359 = vmatprep.mubr.f32.mxu0 0.0
        %6360 = vmatmul.mubr.f32.gmra.mrb[0].mxu0 %v1766
        %v6361 = vpop.f32.mrb[0].mxu0
        %v6362 = vadd.f32 0.0, %v6361
        %v6363 = vpop.f32.mrb[0].mxu0
        %6364 = vdwg.mxu0
        %v6365 = vlaneseq
        %v6366 = vshrl.u32 %v6365, 7
        %v6367 = vsub.s32 3, %v6366
        %v6368 = vrot.slane %v5215, %v6367
        %v6369 = vmul.f32 %v6362, %v6368
        %v6370 = vadd.f32 %v6294, %v6369
        %6371 = vmatprep.subr.mxu0 0.0
        %6372 = vmatpush1.msra.mxu0 %v6289
        %6373 = vmatprep.subr.mxu0 0.0
        %6374 = vmatpush1.msra.mxu0 0.0
        %6375 = vmatprep.subr.mxu0 0.0
        %6376 = vmatpush1.msra.mxu0 0.0
        %6377 = vmatprep.subr.mxu0 0.0
        %6378 = vmatpush1.msra.mxu0 0.0
        %6379 = vmatprep.subr.mxu0 0.0
        %6380 = vmatpush1.msra.mxu0 0.0
        %6381 = vmatprep.subr.mxu0 0.0
        %6382 = vmatpush1.msra.mxu0 0.0
        %6383 = vmatprep.subr.mxu0 0.0
        %6384 = vmatpush1.msra.mxu0 0.0
        %6385 = vmatprep.subr.mxu0 0.0
        %6386 = vmatpush1.msra.mxu0 0.0
        %6387 = vmatprep.subr.mxu0 0.0
        %6388 = vmatpush1.msra.mxu0 0.0
        %6389 = vmatprep.subr.mxu0 0.0
        %6390 = vmatpush1.msra.mxu0 0.0
        %6391 = vmatprep.subr.mxu0 0.0
        %6392 = vmatpush1.msra.mxu0 0.0
        %6393 = vmatprep.subr.mxu0 0.0
        %6394 = vmatpush1.msra.mxu0 0.0
        %6395 = vmatprep.subr.mxu0 0.0
        %6396 = vmatpush1.msra.mxu0 0.0
        %6397 = vmatprep.subr.mxu0 0.0
        %6398 = vmatpush1.msra.mxu0 0.0
        %6399 = vmatprep.subr.mxu0 0.0
        %6400 = vmatpush1.msra.mxu0 0.0
        %6401 = vmatprep.subr.mxu0 0.0
        %6402 = vmatpush1.msra.mxu0 0.0
        %6403 = vmatprep.subr.mxu0 0.0
        %6404 = vmatpush1.msra.mxu0 0.0
        %6405 = vmatprep.subr.mxu0 0.0
        %6406 = vmatpush1.msra.mxu0 0.0
        %6407 = vmatprep.subr.mxu0 0.0
        %6408 = vmatpush1.msra.mxu0 0.0
        %6409 = vmatprep.subr.mxu0 0.0
        %6410 = vmatpush1.msra.mxu0 0.0
        %6411 = vmatprep.subr.mxu0 0.0
        %6412 = vmatpush1.msra.mxu0 0.0
        %6413 = vmatprep.subr.mxu0 0.0
        %6414 = vmatpush1.msra.mxu0 0.0
        %6415 = vmatprep.subr.mxu0 0.0
        %6416 = vmatpush1.msra.mxu0 0.0
        %6417 = vmatprep.subr.mxu0 0.0
        %6418 = vmatpush1.msra.mxu0 0.0
        %6419 = vmatprep.subr.mxu0 0.0
        %6420 = vmatpush1.msra.mxu0 0.0
        %6421 = vmatprep.subr.mxu0 0.0
        %6422 = vmatpush1.msra.mxu0 0.0
        %6423 = vmatprep.subr.mxu0 0.0
        %6424 = vmatpush1.msra.mxu0 0.0
        %6425 = vmatprep.subr.mxu0 0.0
        %6426 = vmatpush1.msra.mxu0 0.0
        %6427 = vmatprep.subr.mxu0 0.0
        %6428 = vmatpush1.msra.mxu0 0.0
        %6429 = vmatprep.subr.mxu0 0.0
        %6430 = vmatpush1.msra.mxu0 0.0
        %6431 = vmatprep.subr.mxu0 0.0
        %6432 = vmatpush1.msra.mxu0 0.0
        %6433 = vmatprep.subr.mxu0 0.0
        %6434 = vmatpush1.msra.mxu0 0.0
        %6435 = vmatprep.mubr.f32.mxu0 0.0
        %6436 = vmatmul.mubr.f32.gmra.mrb[0].mxu0 %v1845
        %v6437 = vpop.f32.mrb[0].mxu0
        %v6438 = vadd.f32 0.0, %v6437
        %v6439 = vpop.f32.mrb[0].mxu0
        %6440 = vdwg.mxu0
        %v6441 = vlaneseq
        %v6442 = vshrl.u32 %v6441, 7
        %v6443 = vsub.s32 5, %v6442
        %v6444 = vrot.slane %v5215, %v6443
        %v6445 = vmul.f32 %v6438, %v6444
        %v6446 = vadd.f32 %v6370, %v6445
        %v6447 = vxor.u32 %v6446, 2147483648
        %v6448 = vmul.f32 %v6447, 1.442695
        %v6449 = vpow.pop %v6448
        %v6450 = vadd.f32 %v6449, 1.0
        %v6451 = vrcp.pop %v6450
        %v6452 = vmul.f32 1.0, %v6451
        %v6453 = vmul.f32 %v6446, %v6452
        %s6454 = scalar_lea.vmem %s11, 48
        %v6455 = vld [vmem:[%s6454] sm:$0xf]
        %v6456 = vld [vmem:[%s6454 + $0x4] sm:$0xf]
        %v6457 = vld [vmem:[%s6454 + $0x8] sm:$0xf]
        %v6458 = vld [vmem:[%s6454 + $0xc] sm:$0xf]
        %v6459 = vpack.c.bf16 %v6453, %v6453
        %v6460 = vlaneseq
        %v6461 = vshrl.u32 %v6460, 7
        %v6462 = vsub.s32 4, %v6461
        %v6463 = vrot.slane %v5214, %v6462
        %v6468 = vunpack.c.l.b16 %v6455
        %v6469 = vunpack.c.l.b16 %v6456
        %v6470 = vunpack.c.l.b16 %v6457
        %v6471 = vunpack.c.l.b16 %v6458
        %v6472 = vpack.c.b16 %v6469, %v6468
        %v6473 = vpack.c.b16 %v6471, %v6470
        %v6477 = vsel %vm648, %v6459, 0
        %6479 = vmatprep.subr.bf16.mxu0 0
        %6480 = vmatpush1.bf16.msra.mxu0 %v6472
        %6481 = vmatprep.subr.bf16.mxu0 0
        %6482 = vmatpush1.bf16.msra.mxu0 %v6473
        %6483 = vmatprep.subr.bf16.mxu0 0
        %6484 = vmatpush1.bf16.msra.mxu0 0
        %6485 = vmatprep.subr.bf16.mxu0 0
        %6486 = vmatpush1.bf16.msra.mxu0 0
        %6487 = vmatprep.subr.bf16.mxu0 0
        %6488 = vmatpush1.bf16.msra.mxu0 0
        %6489 = vmatprep.subr.bf16.mxu0 0
        %6490 = vmatpush1.bf16.msra.mxu0 0
        %6491 = vmatprep.subr.bf16.mxu0 0
        %6492 = vmatpush1.bf16.msra.mxu0 0
        %6493 = vmatprep.subr.bf16.mxu0 0
        %6494 = vmatpush1.bf16.msra.mxu0 0
        %6495 = vmatprep.subr.bf16.mxu0 0
        %6496 = vmatpush1.bf16.msra.mxu0 0
        %6497 = vmatprep.subr.bf16.mxu0 0
        %6498 = vmatpush1.bf16.msra.mxu0 0
        %6499 = vmatprep.subr.bf16.mxu0 0
        %6500 = vmatpush1.bf16.msra.mxu0 0
        %6501 = vmatprep.subr.bf16.mxu0 0
        %6502 = vmatpush1.bf16.msra.mxu0 0
        %6503 = vmatprep.subr.bf16.mxu0 0
        %6504 = vmatpush1.bf16.msra.mxu0 0
        %6505 = vmatprep.subr.bf16.mxu0 0
        %6506 = vmatpush1.bf16.msra.mxu0 0
        %6507 = vmatprep.subr.bf16.mxu0 0
        %6508 = vmatpush1.bf16.msra.mxu0 0
        %6509 = vmatprep.subr.bf16.mxu0 0
        %6510 = vmatpush1.bf16.msra.mxu0 0
        %6511 = vmatprep.mubr.bf16.mxu0 0
        %6512 = vmatmul.mubr.bf16.gmra.mrb[0].mxu0 %v6477
        %v6513 = vpop.f32.mrb[0].mxu0
        %v6514 = vadd.f32 %v6463, %v6513
        %v6515 = vpop.f32.mrb[0].mxu0
        %v6516 = vpop.f32.mrb[0].mxu0
        %v6517 = vpop.f32.mrb[0].mxu0
        %6518 = vdwg.mxu0
        %v6519 = vadd.f32 %v6133, %v6514
        %v6520 = vsel %vm648, %v6519, 0.0
        %6521 = vadd.xlane.f32.xlu0 %v6520
        %v6522 = vpop.xlane.xlu0 %6521
        %v6523 = vmul.f32 %v6522, %v652
        %v6524 = vsub.f32 %v6519, %v6523
        %v6525 = vmul.f32 %v6524, %v6524
        %v6526 = vsel %vm648, %v6525, 0.0
        %6527 = vadd.xlane.f32.xlu0 %v6526
        %v6528 = vpop.xlane.xlu0 %6527
        %v6529 = vmul.f32 %v6528, %v652
        %v6530 = vadd.f32 %v6529, 1e-05
        %v6531 = vrsqrt.pop %v6530
        %v6532 = vmul.f32 %v6524, %v6531
        %v6533 = vlaneseq
        %v6534 = vshrl.u32 %v6533, 7
        %v6535 = vsub.s32 5, %v6534
        %v6536 = vrot.slane %v5214, %v6535
        %v6537 = vmul.f32 %v6532, %v6536
        %v6538 = vlaneseq
        %v6539 = vshrl.u32 %v6538, 7
        %v6540 = vsub.s32 6, %v6539
        %v6541 = vrot.slane %v5214, %v6540
        %v6542 = vadd.f32 %v6537, %v6541
        %s6543 = scalar_lea.vmem %s12, 48
        %v6544 = vld [vmem:[%s6543] sm:$0xf]
        %v6545 = vld [vmem:[%s6543 + $0x4] sm:$0xf]
        %v6546 = vld [vmem:[%s6543 + $0x8] sm:$0xf]
        %v6547 = vld [vmem:[%s6543 + $0xc] sm:$0xf]
        %v6548 = vpack.c.bf16 %v6542, %v6542
        %v6549 = vlaneseq
        %v6550 = vshrl.u32 %v6549, 7
        %v6551 = vsub.s32 7, %v6550
        %v6552 = vrot.slane %v5214, %v6551
        %v6557 = vunpack.c.l.b16 %v6544
        %v6558 = vunpack.c.l.b16 %v6545
        %v6559 = vunpack.c.l.b16 %v6546
        %v6560 = vunpack.c.l.b16 %v6547
        %v6561 = vpack.c.b16 %v6558, %v6557
        %v6562 = vpack.c.b16 %v6560, %v6559
        %v6566 = vsel %vm648, %v6548, 0
        %6568 = vmatprep.subr.bf16.mxu0 0
        %6569 = vmatpush1.bf16.msra.mxu0 %v6561
        %6570 = vmatprep.subr.bf16.mxu0 0
        %6571 = vmatpush1.bf16.msra.mxu0 %v6562
        %6572 = vmatprep.subr.bf16.mxu0 0
        %6573 = vmatpush1.bf16.msra.mxu0 0
        %6574 = vmatprep.subr.bf16.mxu0 0
        %6575 = vmatpush1.bf16.msra.mxu0 0
        %6576 = vmatprep.subr.bf16.mxu0 0
        %6577 = vmatpush1.bf16.msra.mxu0 0
        %6578 = vmatprep.subr.bf16.mxu0 0
        %6579 = vmatpush1.bf16.msra.mxu0 0
        %6580 = vmatprep.subr.bf16.mxu0 0
        %6581 = vmatpush1.bf16.msra.mxu0 0
        %6582 = vmatprep.subr.bf16.mxu0 0
        %6583 = vmatpush1.bf16.msra.mxu0 0
        %6584 = vmatprep.subr.bf16.mxu0 0
        %6585 = vmatpush1.bf16.msra.mxu0 0
        %6586 = vmatprep.subr.bf16.mxu0 0
        %6587 = vmatpush1.bf16.msra.mxu0 0
        %6588 = vmatprep.subr.bf16.mxu0 0
        %6589 = vmatpush1.bf16.msra.mxu0 0
        %6590 = vmatprep.subr.bf16.mxu0 0
        %6591 = vmatpush1.bf16.msra.mxu0 0
        %6592 = vmatprep.subr.bf16.mxu0 0
        %6593 = vmatpush1.bf16.msra.mxu0 0
        %6594 = vmatprep.subr.bf16.mxu0 0
        %6595 = vmatpush1.bf16.msra.mxu0 0
        %6596 = vmatprep.subr.bf16.mxu0 0
        %6597 = vmatpush1.bf16.msra.mxu0 0
        %6598 = vmatprep.subr.bf16.mxu0 0
        %6599 = vmatpush1.bf16.msra.mxu0 0
        %6600 = vmatprep.mubr.bf16.mxu0 0
        %6601 = vmatmul.mubr.bf16.gmra.mrb[0].mxu0 %v6566
        %v6602 = vpop.f32.mrb[0].mxu0
        %v6603 = vadd.f32 %v6552, %v6602
        %v6604 = vpop.f32.mrb[0].mxu0
        %v6605 = vpop.f32.mrb[0].mxu0
        %v6606 = vpop.f32.mrb[0].mxu0
        %6607 = vdwg.mxu0
        %v6608 = vxor.u32 %v6603, 2147483648
        %v6609 = vmul.f32 %v6608, 1.442695
        %v6610 = vpow.pop %v6609
        %v6611 = vadd.f32 %v6610, 1.0
        %v6612 = vrcp.pop %v6611
        %v6613 = vmul.f32 1.0, %v6612
        %v6614 = vmul.f32 %v6603, %v6613
        %s6615 = scalar_lea.vmem %s13, 96
        %v6616 = vld [vmem:[%s6615] sm:$0xf]
        %v6617 = vld [vmem:[%s6615 + $0x4] sm:$0xf]
        %v6618 = vld [vmem:[%s6615 + $0x8] sm:$0xf]
        %v6619 = vld [vmem:[%s6615 + $0xc] sm:$0xf]
        %v6620 = vld [vmem:[%s6615 + $0x10] sm:$0xf]
        %v6621 = vld [vmem:[%s6615 + $0x14] sm:$0xf]
        %v6622 = vld [vmem:[%s6615 + $0x18] sm:$0xf]
        %v6623 = vld [vmem:[%s6615 + $0x1c] sm:$0xf]
        %v6624 = vpack.c.bf16 %v6614, %v6614
        %v6625 = vlaneseq
        %v6626 = vshrl.u32 %v6625, 7
        %v6627 = vsub.s32 0, %v6626
        %v6628 = vrot.slane %v5215, %v6627
        %v6637 = vunpack.c.l.b16 %v6616
        %v6638 = vunpack.c.l.b16 %v6617
        %v6639 = vunpack.c.l.b16 %v6618
        %v6640 = vunpack.c.l.b16 %v6619
        %v6641 = vunpack.c.l.b16 %v6620
        %v6642 = vunpack.c.l.b16 %v6621
        %v6643 = vunpack.c.l.b16 %v6622
        %v6644 = vunpack.c.l.b16 %v6623
        %v6645 = vpack.c.b16 %v6638, %v6637
        %v6646 = vpack.c.b16 %v6640, %v6639
        %v6647 = vpack.c.b16 %v6642, %v6641
        %v6648 = vpack.c.b16 %v6644, %v6643
        %v6654 = vsel %vm820, %v6624, 0
        %6656 = vmatprep.subr.bf16.mxu0 0
        %6657 = vmatpush1.bf16.msra.mxu0 %v6645
        %6658 = vmatprep.subr.bf16.mxu0 0
        %6659 = vmatpush1.bf16.msra.mxu0 %v6646
        %6660 = vmatprep.subr.bf16.mxu0 0
        %6661 = vmatpush1.bf16.msra.mxu0 %v6647
        %6662 = vmatprep.subr.bf16.mxu0 0
        %6663 = vmatpush1.bf16.msra.mxu0 %v6648
        %6664 = vmatprep.subr.bf16.mxu0 0
        %6665 = vmatpush1.bf16.msra.mxu0 0
        %6666 = vmatprep.subr.bf16.mxu0 0
        %6667 = vmatpush1.bf16.msra.mxu0 0
        %6668 = vmatprep.subr.bf16.mxu0 0
        %6669 = vmatpush1.bf16.msra.mxu0 0
        %6670 = vmatprep.subr.bf16.mxu0 0
        %6671 = vmatpush1.bf16.msra.mxu0 0
        %6672 = vmatprep.subr.bf16.mxu0 0
        %6673 = vmatpush1.bf16.msra.mxu0 0
        %6674 = vmatprep.subr.bf16.mxu0 0
        %6675 = vmatpush1.bf16.msra.mxu0 0
        %6676 = vmatprep.subr.bf16.mxu0 0
        %6677 = vmatpush1.bf16.msra.mxu0 0
        %6678 = vmatprep.subr.bf16.mxu0 0
        %6679 = vmatpush1.bf16.msra.mxu0 0
        %6680 = vmatprep.subr.bf16.mxu0 0
        %6681 = vmatpush1.bf16.msra.mxu0 0
        %6682 = vmatprep.subr.bf16.mxu0 0
        %6683 = vmatpush1.bf16.msra.mxu0 0
        %6684 = vmatprep.subr.bf16.mxu0 0
        %6685 = vmatpush1.bf16.msra.mxu0 0
        %6686 = vmatprep.subr.bf16.mxu0 0
        %6687 = vmatpush1.bf16.msra.mxu0 0
        %6688 = vmatprep.mubr.bf16.mxu0 0
        %6689 = vmatmul.mubr.bf16.gmra.mrb[0].mxu0 %v6654
        %v6690 = vpop.f32.mrb[0].mxu0
        %v6691 = vadd.f32 %v6628, %v6690
        %v6692 = vpop.f32.mrb[0].mxu0
        %v6693 = vpop.f32.mrb[0].mxu0
        %v6694 = vpop.f32.mrb[0].mxu0
        %6695 = vdwg.mxu0
        %v6696 = vmul.f32 %v6691, 0.5
        %v6697 = vadd.f32 %v6519, %v6696
        %v6698 = vsel %vm648, %v6697, 0.0
        %6699 = vadd.xlane.f32.xlu0 %v6698
        %v6700 = vpop.xlane.xlu0 %6699
        %v6701 = vmul.f32 %v6700, %v652
        %v6702 = vsub.f32 %v6697, %v6701
        %v6703 = vmul.f32 %v6702, %v6702
        %v6704 = vsel %vm648, %v6703, 0.0
        %6705 = vadd.xlane.f32.xlu0 %v6704
        %v6706 = vpop.xlane.xlu0 %6705
        %v6707 = vmul.f32 %v6706, %v652
        %v6708 = vadd.f32 %v6707, 1e-05
        %v6709 = vrsqrt.pop %v6708
        %v6710 = vmul.f32 %v6702, %v6709
        %v6711 = vlaneseq
        %v6712 = vshrl.u32 %v6711, 7
        %v6713 = vsub.s32 1, %v6712
        %v6714 = vrot.slane %v5215, %v6713
        %v6715 = vmul.f32 %v6710, %v6714
        %v6716 = vlaneseq
        %v6717 = vshrl.u32 %v6716, 7
        %v6718 = vsub.s32 2, %v6717
        %v6719 = vrot.slane %v5215, %v6718
        %v6720 = vadd.f32 %v6715, %v6719
        %v6721 = vsel %vm648, %v6720, 0.0
        %v6722 = vrot.slane %v6721, 4
        %v6723 = vadd.f32 %v6721, %v6722
        %v6724 = vrot.slane %v6723, 2
        %v6725 = vadd.f32 %v6723, %v6724
        %v6726 = vrot.slane %v6725, 1
        %v6727 = vadd.f32 %v6725, %v6726
        %v6728 = vrcp.pop 8.0
        %v6729 = vmul.f32 %v6727, %v6728
        %v6730 = vsub.f32 %v6720, %v6729
        %v6731 = vmul.f32 %v6730, %v6730
        %v6732 = vsel %vm648, %v6731, 0.0
        %v6733 = vrot.slane %v6732, 4
        %v6734 = vadd.f32 %v6732, %v6733
        %v6735 = vrot.slane %v6734, 2
        %v6736 = vadd.f32 %v6734, %v6735
        %v6737 = vrot.slane %v6736, 1
        %v6738 = vadd.f32 %v6736, %v6737
        %v6739 = vrcp.pop 7.0
        %v6740 = vmul.f32 %v6738, %v6739
        %v6741 = vrsqrt.pop %v6740
        %v6742 = vmul.f32 %v6740, %v6741
        %vm6743 = vcmp.eq.f32.partialorder %v6740, inf
        %v6744 = vsel %vm6743, %v6740, %v6742
        %vm6745 = vcmp.eq.f32.partialorder %v6740, 0.0
        %v6746 = vand.u32 %v6740, 2147483648
        %v6747 = vsel %vm6745, %v6746, %v6744
        %v6748 = vpack.c.bf16 %v6729, %v6729
        %v6749 = vld [vmem:[%s14] sm:$0xf]
        %v6750 = vld [vmem:[%s14 + $0x4] sm:$0xf]
        %v6751 = vld [vmem:[%s14 + $0x8] sm:$0xf]
        %v6752 = vld [vmem:[%s14 + $0xc] sm:$0xf]
        %v6753 = vpack.c.bf16 %v6747, %v6747
        %v6754 = vld [vmem:[%s14 + $0x10] sm:$0xf]
        %v6755 = vld [vmem:[%s14 + $0x14] sm:$0xf]
        %v6756 = vld [vmem:[%s14 + $0x18] sm:$0xf]
        %v6757 = vld [vmem:[%s14 + $0x1c] sm:$0xf]
        %v6762 = vunpack.c.l.b16 %v6754
        %v6763 = vunpack.c.l.b16 %v6755
        %v6764 = vunpack.c.l.b16 %v6756
        %v6765 = vunpack.c.l.b16 %v6757
        %v6766 = vpack.c.b16 %v6763, %v6762
        %v6767 = vpack.c.b16 %v6765, %v6764
        %v6771 = vsel %vm648, %v6753, 0
        %6773 = vmatprep.subr.bf16.mxu0 0
        %6774 = vmatpush1.bf16.msra.mxu0 %v6766
        %6775 = vmatprep.subr.bf16.mxu0 0
        %6776 = vmatpush1.bf16.msra.mxu0 %v6767
        %6777 = vmatprep.subr.bf16.mxu0 0
        %6778 = vmatpush1.bf16.msra.mxu0 0
        %6779 = vmatprep.subr.bf16.mxu0 0
        %6780 = vmatpush1.bf16.msra.mxu0 0
        %6781 = vmatprep.subr.bf16.mxu0 0
        %6782 = vmatpush1.bf16.msra.mxu0 0
        %6783 = vmatprep.subr.bf16.mxu0 0
        %6784 = vmatpush1.bf16.msra.mxu0 0
        %6785 = vmatprep.subr.bf16.mxu0 0
        %6786 = vmatpush1.bf16.msra.mxu0 0
        %6787 = vmatprep.subr.bf16.mxu0 0
        %6788 = vmatpush1.bf16.msra.mxu0 0
        %6789 = vmatprep.subr.bf16.mxu0 0
        %6790 = vmatpush1.bf16.msra.mxu0 0
        %6791 = vmatprep.subr.bf16.mxu0 0
        %6792 = vmatpush1.bf16.msra.mxu0 0
        %6793 = vmatprep.subr.bf16.mxu0 0
        %6794 = vmatpush1.bf16.msra.mxu0 0
        %6795 = vmatprep.subr.bf16.mxu0 0
        %6796 = vmatpush1.bf16.msra.mxu0 0
        %6797 = vmatprep.subr.bf16.mxu0 0
        %6798 = vmatpush1.bf16.msra.mxu0 0
        %6799 = vmatprep.subr.bf16.mxu0 0
        %6800 = vmatpush1.bf16.msra.mxu0 0
        %6801 = vmatprep.subr.bf16.mxu0 0
        %6802 = vmatpush1.bf16.msra.mxu0 0
        %6803 = vmatprep.subr.bf16.mxu0 0
        %6804 = vmatpush1.bf16.msra.mxu0 0
        %6805 = vmatprep.mubr.bf16.mxu0 0
        %6806 = vmatmul.mubr.bf16.gmra.mrb[0].mxu0 %v6771
        %v6807 = vpop.f32.mrb[0].mxu0
        %v6808 = vadd.f32 0.0, %v6807
        %v6809 = vpop.f32.mrb[0].mxu0
        %v6810 = vpop.f32.mrb[0].mxu0
        %v6811 = vpop.f32.mrb[0].mxu0
        %6812 = vdwg.mxu0
        %v6817 = vunpack.c.l.b16 %v6749
        %v6818 = vunpack.c.l.b16 %v6750
        %v6819 = vunpack.c.l.b16 %v6751
        %v6820 = vunpack.c.l.b16 %v6752
        %v6821 = vpack.c.b16 %v6818, %v6817
        %v6822 = vpack.c.b16 %v6820, %v6819
        %v6826 = vsel %vm648, %v6748, 0
        %6828 = vmatprep.subr.bf16.mxu0 0
        %6829 = vmatpush1.bf16.msra.mxu0 %v6821
        %6830 = vmatprep.subr.bf16.mxu0 0
        %6831 = vmatpush1.bf16.msra.mxu0 %v6822
        %6832 = vmatprep.subr.bf16.mxu0 0
        %6833 = vmatpush1.bf16.msra.mxu0 0
        %6834 = vmatprep.subr.bf16.mxu0 0
        %6835 = vmatpush1.bf16.msra.mxu0 0
        %6836 = vmatprep.subr.bf16.mxu0 0
        %6837 = vmatpush1.bf16.msra.mxu0 0
        %6838 = vmatprep.subr.bf16.mxu0 0
        %6839 = vmatpush1.bf16.msra.mxu0 0
        %6840 = vmatprep.subr.bf16.mxu0 0
        %6841 = vmatpush1.bf16.msra.mxu0 0
        %6842 = vmatprep.subr.bf16.mxu0 0
        %6843 = vmatpush1.bf16.msra.mxu0 0
        %6844 = vmatprep.subr.bf16.mxu0 0
        %6845 = vmatpush1.bf16.msra.mxu0 0
        %6846 = vmatprep.subr.bf16.mxu0 0
        %6847 = vmatpush1.bf16.msra.mxu0 0
        %6848 = vmatprep.subr.bf16.mxu0 0
        %6849 = vmatpush1.bf16.msra.mxu0 0
        %6850 = vmatprep.subr.bf16.mxu0 0
        %6851 = vmatpush1.bf16.msra.mxu0 0
        %6852 = vmatprep.subr.bf16.mxu0 0
        %6853 = vmatpush1.bf16.msra.mxu0 0
        %6854 = vmatprep.subr.bf16.mxu0 0
        %6855 = vmatpush1.bf16.msra.mxu0 0
        %6856 = vmatprep.subr.bf16.mxu0 0
        %6857 = vmatpush1.bf16.msra.mxu0 0
        %6858 = vmatprep.subr.bf16.mxu0 0
        %6859 = vmatpush1.bf16.msra.mxu0 0
        %6860 = vmatprep.mubr.bf16.mxu0 0
        %6861 = vmatmul.mubr.bf16.gmra.mrb[0].mxu0 %v6826
        %v6862 = vpop.f32.mrb[0].mxu0
        %v6863 = vadd.f32 %v6808, %v6862
        %v6864 = vpop.f32.mrb[0].mxu0
        %v6865 = vpop.f32.mrb[0].mxu0
        %v6866 = vpop.f32.mrb[0].mxu0
        %6867 = vdwg.mxu0
        %v6869 = vrot.slane %v589, 3
        %v6871 = vadd.f32 %v6863, %v6869
        %v6872 = vmax.f32 %v6871, 0.0
        %v6873 = vld [vmem:[%s15] sm:$0xf]
        %v6874 = vld [vmem:[%s15 + $0x4] sm:$0xf]
        %v6875 = vld [vmem:[%s15 + $0x8] sm:$0xf]
        %v6876 = vld [vmem:[%s15 + $0xc] sm:$0xf]
        %v6877 = vpack.c.bf16 %v6872, %v6872
        %v6882 = vunpack.c.l.b16 %v6873
        %v6883 = vunpack.c.l.b16 %v6874
        %v6884 = vunpack.c.l.b16 %v6875
        %v6885 = vunpack.c.l.b16 %v6876
        %v6886 = vpack.c.b16 %v6883, %v6882
        %v6887 = vpack.c.b16 %v6885, %v6884
        %v6890 = vrot.slane %v589, 4
        %v6893 = vsel %vm648, %v6877, 0
        %6895 = vmatprep.subr.bf16.mxu0 0
        %6896 = vmatpush1.bf16.msra.mxu0 %v6886
        %6897 = vmatprep.subr.bf16.mxu0 0
        %6898 = vmatpush1.bf16.msra.mxu0 %v6887
        %6899 = vmatprep.subr.bf16.mxu0 0
        %6900 = vmatpush1.bf16.msra.mxu0 0
        %6901 = vmatprep.subr.bf16.mxu0 0
        %6902 = vmatpush1.bf16.msra.mxu0 0
        %6903 = vmatprep.subr.bf16.mxu0 0
        %6904 = vmatpush1.bf16.msra.mxu0 0
        %6905 = vmatprep.subr.bf16.mxu0 0
        %6906 = vmatpush1.bf16.msra.mxu0 0
        %6907 = vmatprep.subr.bf16.mxu0 0
        %6908 = vmatpush1.bf16.msra.mxu0 0
        %6909 = vmatprep.subr.bf16.mxu0 0
        %6910 = vmatpush1.bf16.msra.mxu0 0
        %6911 = vmatprep.subr.bf16.mxu0 0
        %6912 = vmatpush1.bf16.msra.mxu0 0
        %6913 = vmatprep.subr.bf16.mxu0 0
        %6914 = vmatpush1.bf16.msra.mxu0 0
        %6915 = vmatprep.subr.bf16.mxu0 0
        %6916 = vmatpush1.bf16.msra.mxu0 0
        %6917 = vmatprep.subr.bf16.mxu0 0
        %6918 = vmatpush1.bf16.msra.mxu0 0
        %6919 = vmatprep.subr.bf16.mxu0 0
        %6920 = vmatpush1.bf16.msra.mxu0 0
        %6921 = vmatprep.subr.bf16.mxu0 0
        %6922 = vmatpush1.bf16.msra.mxu0 0
        %6923 = vmatprep.subr.bf16.mxu0 0
        %6924 = vmatpush1.bf16.msra.mxu0 0
        %6925 = vmatprep.subr.bf16.mxu0 0
        %6926 = vmatpush1.bf16.msra.mxu0 0
        %6927 = vmatprep.mubr.bf16.mxu0 0
        %6928 = vmatmul.mubr.bf16.gmra.mrb[0].mxu0 %v6893
        %v6929 = vpop.f32.mrb[0].mxu0
        %v6930 = vadd.f32 %v6890, %v6929
        %v6931 = vpop.f32.mrb[0].mxu0
        %v6932 = vpop.f32.mrb[0].mxu0
        %v6933 = vpop.f32.mrb[0].mxu0
        %6934 = vdwg.mxu0
        %v6935 = vmax.f32 %v6930, 0.0
        %v6936 = vld [vmem:[%s16] sm:$0xf]
        %v6937 = vld [vmem:[%s16 + $0x4] sm:$0xf]
        %v6938 = vld [vmem:[%s16 + $0x8] sm:$0xf]
        %v6939 = vld [vmem:[%s16 + $0xc] sm:$0xf]
        %v6940 = vpack.c.bf16 %v6935, %v6935
        %v6945 = vunpack.c.l.b16 %v6936
        %v6946 = vunpack.c.l.b16 %v6937
        %v6947 = vunpack.c.l.b16 %v6938
        %v6948 = vunpack.c.l.b16 %v6939
        %v6949 = vpack.c.b16 %v6946, %v6945
        %v6950 = vpack.c.b16 %v6948, %v6947
        %v6953 = vrot.slane %v589, 5
        %v6956 = vsel %vm648, %v6940, 0
        %6958 = vmatprep.subr.bf16.mxu0 0
        %6959 = vmatpush1.bf16.msra.mxu0 %v6949
        %6960 = vmatprep.subr.bf16.mxu0 0
        %6961 = vmatpush1.bf16.msra.mxu0 %v6950
        %6962 = vmatprep.subr.bf16.mxu0 0
        %6963 = vmatpush1.bf16.msra.mxu0 0
        %6964 = vmatprep.subr.bf16.mxu0 0
        %6965 = vmatpush1.bf16.msra.mxu0 0
        %6966 = vmatprep.subr.bf16.mxu0 0
        %6967 = vmatpush1.bf16.msra.mxu0 0
        %6968 = vmatprep.subr.bf16.mxu0 0
        %6969 = vmatpush1.bf16.msra.mxu0 0
        %6970 = vmatprep.subr.bf16.mxu0 0
        %6971 = vmatpush1.bf16.msra.mxu0 0
        %6972 = vmatprep.subr.bf16.mxu0 0
        %6973 = vmatpush1.bf16.msra.mxu0 0
        %6974 = vmatprep.subr.bf16.mxu0 0
        %6975 = vmatpush1.bf16.msra.mxu0 0
        %6976 = vmatprep.subr.bf16.mxu0 0
        %6977 = vmatpush1.bf16.msra.mxu0 0
        %6978 = vmatprep.subr.bf16.mxu0 0
        %6979 = vmatpush1.bf16.msra.mxu0 0
        %6980 = vmatprep.subr.bf16.mxu0 0
        %6981 = vmatpush1.bf16.msra.mxu0 0
        %6982 = vmatprep.subr.bf16.mxu0 0
        %6983 = vmatpush1.bf16.msra.mxu0 0
        %6984 = vmatprep.subr.bf16.mxu0 0
        %6985 = vmatpush1.bf16.msra.mxu0 0
        %6986 = vmatprep.subr.bf16.mxu0 0
        %6987 = vmatpush1.bf16.msra.mxu0 0
        %6988 = vmatprep.subr.bf16.mxu0 0
        %6989 = vmatpush1.bf16.msra.mxu0 0
        %6990 = vmatprep.mubr.bf16.mxu0 0
        %6991 = vmatmul.mubr.bf16.gmra.mrb[0].mxu0 %v6956
        %v6992 = vpop.f32.mrb[0].mxu0
        %v6993 = vadd.f32 %v6953, %v6992
        %v6994 = vpop.f32.mrb[0].mxu0
        %v6995 = vpop.f32.mrb[0].mxu0
        %v6996 = vpop.f32.mrb[0].mxu0
        %6997 = vdwg.mxu0
        %vm6998 = vcmask 40960
        %6999 = vst.msk [vmem:[%s579] sm:$0x1] %vm6998, %v6993
        %s7000 = sand.u32 %s408, 1
        %s7001 = scalar_lea.sflag [#allocation4], %s7000
        %s7002 = sand.u32 %s408, 1
        %s7003 = scalar_lea.vmem [#allocation7], %s7002
        // Predicated region
        $region97: #{conformer_forward.1} parent=87 // pred_check
          %p7004 = pneg %p418
        $region98: #{conformer_forward.1} parent=87 // pred_check_branch
          %7006 = sbr.rel (%p7004) target = $region100
        $region99: #{conformer_forward.1} parent=87 // pred_region
          %s7008 = ssub.s32 16, 16
          %7009 = vsyncadd %s7001, %s7008
          %s7010 = smul.addr %s33, 16
          %s7011 = scalar_lea.hbm %s17, %s7010
          %s7013 = sshll.u32 %s7003, 4
          %s7014 = int_to_ptr.vmem [resolvable:$true] %s7013
          %7016 = dma.vmem_to_hbm [thread:$0]  %s7014, 16, %s7011, %s7001
        $region100: #{conformer_forward.1} parent=87 // pred_fallthru
          _
      $region88: #{conformer_forward.1} parent=5 // pred_fallthru
        _
      %p7017 = scmp.le.s32.totalorder 2, %s28
      // Predicated region
      $region101: #{conformer_forward.1} parent=5 // pred_check
        %p7018 = pneg %p7017
      $region102: #{conformer_forward.1} parent=5 // pred_check_branch
        %7020 = sbr.rel (%p7018) target = $region104
      $region103: #{conformer_forward.1} parent=5 // pred_region
        %s7021 = ssub.s32 %s28, 2
        // Predicated region
        $region105: #{conformer_forward.1} parent=103 // pred_check
          %p7022 = pneg %p424
        $region106: #{conformer_forward.1} parent=103 // pred_check_branch
          %7024 = sbr.rel (%p7022) target = $region108
        $region107: #{conformer_forward.1} parent=103 // pred_region
          %s7025 = sand.u32 %s409, 1
          %s7026 = scalar_lea.sflag [#allocation4], %s7025
          %s7027 = sand.u32 %s409, 1
          %s7028 = scalar_lea.vmem [#allocation7], %s7027
          %7029 = dma.done %s7026, 16
        $region108: #{conformer_forward.1} parent=103 // pred_fallthru
          _
      $region104: #{conformer_forward.1} parent=5 // pred_fallthru
        _
    $region6: #{conformer_forward.1} parent=1 // loop_footer
      %s32 = sadd.s32 1, %s28
    $region7: #{conformer_forward.1} parent=1 // loop_footer_branch
      %27 = sbr.rel target = $region3
    $region8: #{conformer_forward.1} parent=1 // loop_exit
      _
    %7030 = vsyncpa [#allocation3], 1
    %s7031 = scalar_lea.sflag [#allocation3], 1
    %7032 = vsyncpa %s7031, 1
    %7033 = vsyncpa [#allocation6], 1
    %7034 = vsyncpa [#allocation4], 1
    %s7035 = scalar_lea.sflag [#allocation4], 1
    %7036 = vsyncpa %s7035, 1

</llo_original>
